<compile_context>
chip_gen: v7x
topology: tpu7x:2x2x1
jax: 0.10.0
libtpu: 0.0.40
codegen_flags: <defaults>
</compile_context>

<pallas_src>
import jax
import jax.numpy as jnp
import numpy as np
from jax.experimental import pallas as pl
from jax.experimental.pallas import tpu as pltpu


# ---------------------------------------------------------------------------
# Small hyper-parameters consistent with the module's forward.
# (PyTorch defaults are nhead=6, dim_feedforward=256, num_layers=3; shrunk so
#  the demo is tiny. nhead must divide d_model.)
# ---------------------------------------------------------------------------
D_MODEL = 32
NHEAD = 4
HEAD_DIM = D_MODEL // NHEAD
DIM_FF = 64
NUM_LAYERS = 3
NBODIES = 4
BATCH = 2
IS_MIXED = True
FIRST_HARD_LAYER = 0
LN_EPS = 1e-5
NEG_INF = -1e9  # additive mask value (same effect as torch's bool attn_mask)


def _layer_norm(x, gamma, beta):
    mean = jnp.mean(x, axis=-1, keepdims=True)
    xc = x - mean
    var = jnp.mean(xc * xc, axis=-1, keepdims=True)
    return xc * jax.lax.rsqrt(var + LN_EPS) * gamma + beta


def _bot_kernel(x_ref, pos_ref, bias_ref,
                wqkv_ref, bqkv_ref, wo_ref, bo_ref,
                ln1w_ref, ln1b_ref, w1_ref, b1_ref,
                w2_ref, b2_ref, ln2w_ref, ln2b_ref,
                o_ref, attn_sc):
    """Whole BodyTransformer forward in one kernel invocation.

    x_ref    : (B, N, D)     input body tokens
    pos_ref  : (1, N, D)     absolute-position (body index) embedding
    bias_ref : (L, N, N)     per-layer additive attention bias (0 / -1e9)
    w*_ref   : (L, ...)      stacked per-layer weights (x @ W layout)
    o_ref    : (B, N, D)     encoder output
    attn_sc  : (B*N, D)      VMEM scratch for concatenated head outputs
    """
    B, N, D = x_ref.shape
    L = wqkv_ref.shape[0]
    H, Hd = NHEAD, HEAD_DIM
    scale = 1.0 / float(np.sqrt(Hd))

    # Position-embedding add, then flatten (batch, body) -> rows (sublane-full).
    h2 = (x_ref[...] + pos_ref[...]).reshape(B * N, D)

    for l in range(L):  # static unroll; all layer weights already resident in VMEM
        qkv = jnp.dot(h2, wqkv_ref[l],
                      preferred_element_type=jnp.float32) + bqkv_ref[l]  # (B*N, 3D)
        bias = bias_ref[l]                                               # (N, N)

        # Multi-head self-attention. B and H are tiny & static, so unroll into
        # plain 2-D MXU dots (robust lowering; compute is negligible here).
        for b in range(B):
            r0 = b * N
            for hh in range(H):
                c0 = hh * Hd
                qh = qkv[r0:r0 + N, c0:c0 + Hd] * scale
                kh = qkv[r0:r0 + N, D + c0:D + c0 + Hd]
                vh = qkv[r0:r0 + N, 2 * D + c0:2 * D + c0 + Hd]
                s = jax.lax.dot_general(          # q @ k^T without explicit transpose
                    qh, kh, (((1,), (1,)), ((), ())),
                    preferred_element_type=jnp.float32) + bias
                s = s - jnp.max(s, axis=-1, keepdims=True)
                e = jnp.exp(s)
                p = e / jnp.sum(e, axis=-1, keepdims=True)
                attn_sc[r0:r0 + N, c0:c0 + Hd] = jnp.dot(
                    p, vh, preferred_element_type=jnp.float32)

        attn = jnp.dot(attn_sc[...], wo_ref[l],
                       preferred_element_type=jnp.float32) + bo_ref[l]
        x1 = _layer_norm(h2 + attn, ln1w_ref[l], ln1b_ref[l])      # post-LN block 1
        ff = jnp.maximum(
            jnp.dot(x1, w1_ref[l], preferred_element_type=jnp.float32) + b1_ref[l],
            0.0)                                                    # ReLU
        ff = jnp.dot(ff, w2_ref[l], preferred_element_type=jnp.float32) + b2_ref[l]
        h2 = _layer_norm(x1 + ff, ln2w_ref[l], ln2b_ref[l])        # post-LN block 2

    o_ref[...] = h2.reshape(B, N, D)


def _full_spec(shape):
    zeros = (0,) * len(shape)
    return pl.BlockSpec(shape, lambda i, _z=zeros: _z)


def body_transformer_forward(x, pos, attn_bias, params):
    """x: (B, nbodies, D) float32; returns encoder output (B, nbodies, D)."""
    B, N, D = x.shape
    ins = (x, pos, attn_bias,
           params["wqkv"], params["bqkv"], params["wo"], params["bo"],
           params["ln1w"], params["ln1b"], params["w1"], params["b1"],
           params["w2"], params["b2"], params["ln2w"], params["ln2b"])
    return pl.pallas_call(
        _bot_kernel,
        out_shape=jax.ShapeDtypeStruct((B, N, D), jnp.float32),
        grid=(1,),
        in_specs=[_full_spec(a.shape) for a in ins],
        out_specs=_full_spec((B, N, D)),
        scratch_shapes=[pltpu.VMEM((B * N, D), jnp.float32)],
        compiler_params=pltpu.CompilerParams(
            dimension_semantics=("arbitrary",)),
    )(*ins)


# ---------------------------------------------------------------------------
# Parameter / graph construction (the real module reads a robot config file).
# ---------------------------------------------------------------------------
def _layer_uses_mask(i):
    if not IS_MIXED:
        return True  # BoT-Hard: mask every layer
    # TODO(synk): exact hard/soft alternation of MixedTransformerEncoder is not
    # given in the spec; we alternate hard/soft starting at first_hard_layer.
    return i >= FIRST_HARD_LAYER and (i - FIRST_HARD_LAYER) % 2 == 0


def build_adjacency(n):
    """Star graph: body 0 (trunk) adjacent to every limb; limbs only to trunk."""
    sp = np.full((n, n), 2, np.int32)
    np.fill_diagonal(sp, 0)
    sp[0, :] = np.minimum(sp[0, :], 1)
    sp[:, 0] = np.minimum(sp[:, 0], 1)
    sp[0, 0] = 0
    return sp < 2  # shortest_path_matrix < 2 (includes self)


def build_params(key, adjacency):
    L, D, F, N = NUM_LAYERS, D_MODEL, DIM_FF, NBODIES

    def rnd(k, shape, std=0.02):
        return jax.random.normal(k, shape, jnp.float32) * std

    keys = jax.random.split(key, 12 * L + 2)
    ki = iter(keys)

    # nn.Embedding(nbodies, D) position table, taken at indices [0..N) => (1,N,D)
    pos = rnd(next(ki), (1, N, D))

    names = ("wqkv", "bqkv", "wo", "bo", "ln1w", "ln1b",
             "w1", "b1", "w2", "b2", "ln2w", "ln2b")
    p = {k: [] for k in names}
    for _ in range(L):
        p["wqkv"].append(rnd(next(ki), (D, 3 * D)))   # combined q,k,v (x @ W layout)
        p["bqkv"].append(rnd(next(ki), (1, 3 * D)))
        p["wo"].append(rnd(next(ki), (D, D)))
        p["bo"].append(rnd(next(ki), (1, D)))
        p["ln1w"].append(1.0 + rnd(next(ki), (1, D)))
        p["ln1b"].append(rnd(next(ki), (1, D)))
        p["w1"].append(rnd(next(ki), (D, F)))
        p["b1"].append(rnd(next(ki), (1, F)))
        p["w2"].append(rnd(next(ki), (F, D)))
        p["b2"].append(rnd(next(ki), (1, D)))
        p["ln2w"].append(1.0 + rnd(next(ki), (1, D)))
        p["ln2b"].append(rnd(next(ki), (1, D)))
    params = {k: jnp.stack(v, axis=0) for k, v in p.items()}

    # Fold mask + mixed-layer schedule into per-layer additive attention bias.
    neg = jnp.where(jnp.asarray(~adjacency), NEG_INF, 0.0).astype(jnp.float32)
    attn_bias = jnp.stack(
        [neg if _layer_uses_mask(i) else jnp.zeros((N, N), jnp.float32)
         for i in range(L)], axis=0)
    return pos, params, attn_bias


# ---------------------------------------------------------------------------
# Pure-JAX reference (mirrors PyTorch TransformerEncoderLayer, post-LN, ReLU,
# dropout=0, batch_first=True) for correctness checking.
# ---------------------------------------------------------------------------
def reference_forward(x, pos, attn_bias, params):
    B, N, D = x.shape
    H, Hd = NHEAD, HEAD_DIM
    scale = 1.0 / float(np.sqrt(Hd))
    h = x + pos
    for l in range(NUM_LAYERS):
        h2 = h.reshape(B * N, D)
        qkv = h2 @ params["wqkv"][l] + params["bqkv"][l]
        q = qkv[:, :D].reshape(B, N, H, Hd) * scale
        k = qkv[:, D:2 * D].reshape(B, N, H, Hd)
        v = qkv[:, 2 * D:].reshape(B, N, H, Hd)
        s = jnp.einsum("bqhd,bkhd->bhqk", q, k) + attn_bias[l][None, None]
        pr = jax.nn.softmax(s, axis=-1)
        attn = jnp.einsum("bhqk,bkhd->bqhd", pr, v).reshape(B * N, D)
        attn = attn @ params["wo"][l] + params["bo"][l]
        x1 = _layer_norm(h2 + attn, params["ln1w"][l], params["ln1b"][l])
        ff = jnp.maximum(x1 @ params["w1"][l] + params["b1"][l], 0.0)
        ff = ff @ params["w2"][l] + params["b2"][l]
        h = _layer_norm(x1 + ff, params["ln2w"][l],
                        params["ln2b"][l]).reshape(B, N, D)
    return h


if __name__ == "__main__":
    key = jax.random.PRNGKey(0)
    key, kx, kp = jax.random.split(key, 3)

    adjacency = build_adjacency(NBODIES)
    pos, params, attn_bias = build_params(kp, adjacency)
    x = jax.random.normal(kx, (BATCH, NBODIES, D_MODEL), jnp.float32)

    out = body_transformer_forward(x, pos, attn_bias, params)
    out = jax.block_until_ready(out)

    ref = reference_forward(x, pos, attn_bias, params)
    assert out.shape == (BATCH, NBODIES, D_MODEL)
    max_err = float(jnp.max(jnp.abs(out - ref)))
    assert jnp.allclose(out, ref, atol=2e-4, rtol=2e-4), max_err

    print("KERNEL_OK")
</pallas_src>

<mosaic_0001>
module attributes {stable_mosaic.version = 11 : i64} {
  func.func @_bot_kernel(%arg0: i32, %arg1: memref<2x4x32xf32, #tpu.memory_space<vmem>>, %arg2: memref<1x4x32xf32, #tpu.memory_space<vmem>>, %arg3: memref<3x4x4xf32, #tpu.memory_space<vmem>>, %arg4: memref<3x32x96xf32, #tpu.memory_space<vmem>>, %arg5: memref<3x1x96xf32, #tpu.memory_space<vmem>>, %arg6: memref<3x32x32xf32, #tpu.memory_space<vmem>>, %arg7: memref<3x1x32xf32, #tpu.memory_space<vmem>>, %arg8: memref<3x1x32xf32, #tpu.memory_space<vmem>>, %arg9: memref<3x1x32xf32, #tpu.memory_space<vmem>>, %arg10: memref<3x32x64xf32, #tpu.memory_space<vmem>>, %arg11: memref<3x1x64xf32, #tpu.memory_space<vmem>>, %arg12: memref<3x64x32xf32, #tpu.memory_space<vmem>>, %arg13: memref<3x1x32xf32, #tpu.memory_space<vmem>>, %arg14: memref<3x1x32xf32, #tpu.memory_space<vmem>>, %arg15: memref<3x1x32xf32, #tpu.memory_space<vmem>>, %arg16: memref<2x4x32xf32, #tpu.memory_space<vmem>>, %arg17: memref<8x32xf32, #tpu.memory_space<vmem>>) attributes {dimension_semantics = [#tpu.dimension_semantics<arbitrary>], iteration_bounds = array<i64: 1>, scalar_prefetch = 0 : i64, scratch_operands = 1 : i64, tpu.core_type = #tpu.core_type<tc>, window_params = [{pipeline_mode = #tpu.pipeline_mode<synchronous>, transform_indices = @transform_0, window_bounds = array<i64: 2, 4, 32>}, {pipeline_mode = #tpu.pipeline_mode<synchronous>, transform_indices = @transform_1, window_bounds = array<i64: 1, 4, 32>}, {pipeline_mode = #tpu.pipeline_mode<synchronous>, transform_indices = @transform_2, window_bounds = array<i64: 3, 4, 4>}, {pipeline_mode = #tpu.pipeline_mode<synchronous>, transform_indices = @transform_3, window_bounds = array<i64: 3, 32, 96>}, {pipeline_mode = #tpu.pipeline_mode<synchronous>, transform_indices = @transform_4, window_bounds = array<i64: 3, 1, 96>}, {pipeline_mode = #tpu.pipeline_mode<synchronous>, transform_indices = @transform_5, window_bounds = array<i64: 3, 32, 32>}, {pipeline_mode = #tpu.pipeline_mode<synchronous>, transform_indices = @transform_6, window_bounds = array<i64: 3, 1, 32>}, {pipeline_mode = #tpu.pipeline_mode<synchronous>, transform_indices = @transform_7, window_bounds = array<i64: 3, 1, 32>}, {pipeline_mode = #tpu.pipeline_mode<synchronous>, transform_indices = @transform_8, window_bounds = array<i64: 3, 1, 32>}, {pipeline_mode = #tpu.pipeline_mode<synchronous>, transform_indices = @transform_9, window_bounds = array<i64: 3, 32, 64>}, {pipeline_mode = #tpu.pipeline_mode<synchronous>, transform_indices = @transform_10, window_bounds = array<i64: 3, 1, 64>}, {pipeline_mode = #tpu.pipeline_mode<synchronous>, transform_indices = @transform_11, window_bounds = array<i64: 3, 64, 32>}, {pipeline_mode = #tpu.pipeline_mode<synchronous>, transform_indices = @transform_12, window_bounds = array<i64: 3, 1, 32>}, {pipeline_mode = #tpu.pipeline_mode<synchronous>, transform_indices = @transform_13, window_bounds = array<i64: 3, 1, 32>}, {pipeline_mode = #tpu.pipeline_mode<synchronous>, transform_indices = @transform_14, window_bounds = array<i64: 3, 1, 32>}, {pipeline_mode = #tpu.pipeline_mode<synchronous>, transform_indices = @transform_15, window_bounds = array<i64: 2, 4, 32>}]} {
    %c0 = arith.constant 0 : index
    %c0_0 = arith.constant 0 : index
    %c0_1 = arith.constant 0 : index
    %0 = vector.load %arg1[%c0, %c0_0, %c0_1] : memref<2x4x32xf32, #tpu.memory_space<vmem>>, vector<2x4x32xf32>
    %c0_2 = arith.constant 0 : index
    %c0_3 = arith.constant 0 : index
    %c0_4 = arith.constant 0 : index
    %1 = vector.load %arg2[%c0_2, %c0_3, %c0_4] : memref<1x4x32xf32, #tpu.memory_space<vmem>>, vector<1x4x32xf32>
    %2 = vector.broadcast %1 : vector<1x4x32xf32> to vector<2x4x32xf32>
    %3 = arith.addf %0, %2 : vector<2x4x32xf32>
    %4 = vector.shape_cast %3 : vector<2x4x32xf32> to vector<8x32xf32>
    %c0_5 = arith.constant 0 : index
    %c0_6 = arith.constant 0 : index
    %c0_7 = arith.constant 0 : index
    %5 = vector.load %arg4[%c0_5, %c0_6, %c0_7] : memref<3x32x96xf32, #tpu.memory_space<vmem>>, vector<1x32x96xf32>
    %6 = vector.shape_cast %5 : vector<1x32x96xf32> to vector<32x96xf32>
    %cst = arith.constant dense<0.000000e+00> : vector<8x96xf32>
    %7 = tpu.matmul %4, %6, %cst {dimension_numbers = #tpu.dot_dimension_numbers<[1], [0], [0], [1], [0, 0, 1, 1], [], []>} : vector<8x32xf32>, vector<32x96xf32>, vector<8x96xf32> -> vector<8x96xf32>
    %c0_8 = arith.constant 0 : index
    %c0_9 = arith.constant 0 : index
    %c0_10 = arith.constant 0 : index
    %8 = vector.load %arg5[%c0_8, %c0_9, %c0_10] : memref<3x1x96xf32, #tpu.memory_space<vmem>>, vector<1x1x96xf32>
    %9 = vector.shape_cast %8 : vector<1x1x96xf32> to vector<1x96xf32>
    %10 = vector.broadcast %9 : vector<1x96xf32> to vector<8x96xf32>
    %11 = arith.addf %7, %10 : vector<8x96xf32>
    %c0_11 = arith.constant 0 : index
    %c0_12 = arith.constant 0 : index
    %c0_13 = arith.constant 0 : index
    %12 = vector.load %arg3[%c0_11, %c0_12, %c0_13] : memref<3x4x4xf32, #tpu.memory_space<vmem>>, vector<1x4x4xf32>
    %13 = vector.shape_cast %12 : vector<1x4x4xf32> to vector<4x4xf32>
    %14 = vector.extract_strided_slice %11 {offsets = [0, 0], sizes = [4, 8], strides = [1, 1]} : vector<8x96xf32> to vector<4x8xf32>
    %cst_14 = arith.constant 0.353553385 : f32
    %15 = vector.broadcast %cst_14 : f32 to vector<4x8xf32>
    %16 = arith.mulf %14, %15 : vector<4x8xf32>
    %17 = vector.extract_strided_slice %11 {offsets = [0, 32], sizes = [4, 8], strides = [1, 1]} : vector<8x96xf32> to vector<4x8xf32>
    %18 = vector.extract_strided_slice %11 {offsets = [0, 64], sizes = [4, 8], strides = [1, 1]} : vector<8x96xf32> to vector<4x8xf32>
    %cst_15 = arith.constant dense<0.000000e+00> : vector<4x4xf32>
    %19 = tpu.matmul %16, %17, %cst_15 {dimension_numbers = #tpu.dot_dimension_numbers<[1], [1], [0], [0], [0, 0, 1, 0], [], []>} : vector<4x8xf32>, vector<4x8xf32>, vector<4x4xf32> -> vector<4x4xf32>
    %20 = arith.addf %19, %13 : vector<4x4xf32>
    %cst_16 = arith.constant dense<0xFF800000> : vector<4xf32>
    %21 = vector.multi_reduction <maximumf>, %20, %cst_16 [1] : vector<4x4xf32> to vector<4xf32>
    %22 = vector.shape_cast %21 : vector<4xf32> to vector<4x1xf32>
    %23 = vector.broadcast %22 : vector<4x1xf32> to vector<4x4xf32>
    %24 = arith.subf %20, %23 : vector<4x4xf32>
    %25 = math.exp %24 : vector<4x4xf32>
    %cst_17 = arith.constant dense<0.000000e+00> : vector<4xf32>
    %26 = vector.multi_reduction <add>, %25, %cst_17 [1] : vector<4x4xf32> to vector<4xf32>
    %27 = vector.shape_cast %26 : vector<4xf32> to vector<4x1xf32>
    %28 = vector.broadcast %27 : vector<4x1xf32> to vector<4x4xf32>
    %29 = arith.divf %25, %28 : vector<4x4xf32>
    %cst_18 = arith.constant dense<0.000000e+00> : vector<4x8xf32>
    %30 = tpu.matmul %29, %18, %cst_18 {dimension_numbers = #tpu.dot_dimension_numbers<[1], [0], [0], [1], [0, 0, 1, 1], [], []>} : vector<4x4xf32>, vector<4x8xf32>, vector<4x8xf32> -> vector<4x8xf32>
    %c0_19 = arith.constant 0 : index
    %c0_20 = arith.constant 0 : index
    %31 = vector.load %arg17[%c0_19, %c0_20] : memref<8x32xf32, #tpu.memory_space<vmem>>, vector<4x8xf32>
    tpu.vector_store %arg17[%c0_19, %c0_20], %30 {strides = array<i32>} : memref<8x32xf32, #tpu.memory_space<vmem>>, vector<4x8xf32>,
    %32 = vector.extract_strided_slice %11 {offsets = [0, 8], sizes = [4, 8], strides = [1, 1]} : vector<8x96xf32> to vector<4x8xf32>
    %cst_21 = arith.constant 0.353553385 : f32
    %33 = vector.broadcast %cst_21 : f32 to vector<4x8xf32>
    %34 = arith.mulf %32, %33 : vector<4x8xf32>
    %35 = vector.extract_strided_slice %11 {offsets = [0, 40], sizes = [4, 8], strides = [1, 1]} : vector<8x96xf32> to vector<4x8xf32>
    %36 = vector.extract_strided_slice %11 {offsets = [0, 72], sizes = [4, 8], strides = [1, 1]} : vector<8x96xf32> to vector<4x8xf32>
    %cst_22 = arith.constant dense<0.000000e+00> : vector<4x4xf32>
    %37 = tpu.matmul %34, %35, %cst_22 {dimension_numbers = #tpu.dot_dimension_numbers<[1], [1], [0], [0], [0, 0, 1, 0], [], []>} : vector<4x8xf32>, vector<4x8xf32>, vector<4x4xf32> -> vector<4x4xf32>
    %38 = arith.addf %37, %13 : vector<4x4xf32>
    %cst_23 = arith.constant dense<0xFF800000> : vector<4xf32>
    %39 = vector.multi_reduction <maximumf>, %38, %cst_23 [1] : vector<4x4xf32> to vector<4xf32>
    %40 = vector.shape_cast %39 : vector<4xf32> to vector<4x1xf32>
    %41 = vector.broadcast %40 : vector<4x1xf32> to vector<4x4xf32>
    %42 = arith.subf %38, %41 : vector<4x4xf32>
    %43 = math.exp %42 : vector<4x4xf32>
    %cst_24 = arith.constant dense<0.000000e+00> : vector<4xf32>
    %44 = vector.multi_reduction <add>, %43, %cst_24 [1] : vector<4x4xf32> to vector<4xf32>
    %45 = vector.shape_cast %44 : vector<4xf32> to vector<4x1xf32>
    %46 = vector.broadcast %45 : vector<4x1xf32> to vector<4x4xf32>
    %47 = arith.divf %43, %46 : vector<4x4xf32>
    %cst_25 = arith.constant dense<0.000000e+00> : vector<4x8xf32>
    %48 = tpu.matmul %47, %36, %cst_25 {dimension_numbers = #tpu.dot_dimension_numbers<[1], [0], [0], [1], [0, 0, 1, 1], [], []>} : vector<4x4xf32>, vector<4x8xf32>, vector<4x8xf32> -> vector<4x8xf32>
    %c0_26 = arith.constant 0 : index
    %c8 = arith.constant 8 : index
    %49 = vector.load %arg17[%c0_26, %c8] : memref<8x32xf32, #tpu.memory_space<vmem>>, vector<4x8xf32>
    tpu.vector_store %arg17[%c0_26, %c8], %48 {strides = array<i32>} : memref<8x32xf32, #tpu.memory_space<vmem>>, vector<4x8xf32>,
    %50 = vector.extract_strided_slice %11 {offsets = [0, 16], sizes = [4, 8], strides = [1, 1]} : vector<8x96xf32> to vector<4x8xf32>
    %cst_27 = arith.constant 0.353553385 : f32
    %51 = vector.broadcast %cst_27 : f32 to vector<4x8xf32>
    %52 = arith.mulf %50, %51 : vector<4x8xf32>
    %53 = vector.extract_strided_slice %11 {offsets = [0, 48], sizes = [4, 8], strides = [1, 1]} : vector<8x96xf32> to vector<4x8xf32>
    %54 = vector.extract_strided_slice %11 {offsets = [0, 80], sizes = [4, 8], strides = [1, 1]} : vector<8x96xf32> to vector<4x8xf32>
    %cst_28 = arith.constant dense<0.000000e+00> : vector<4x4xf32>
    %55 = tpu.matmul %52, %53, %cst_28 {dimension_numbers = #tpu.dot_dimension_numbers<[1], [1], [0], [0], [0, 0, 1, 0], [], []>} : vector<4x8xf32>, vector<4x8xf32>, vector<4x4xf32> -> vector<4x4xf32>
    %56 = arith.addf %55, %13 : vector<4x4xf32>
    %cst_29 = arith.constant dense<0xFF800000> : vector<4xf32>
    %57 = vector.multi_reduction <maximumf>, %56, %cst_29 [1] : vector<4x4xf32> to vector<4xf32>
    %58 = vector.shape_cast %57 : vector<4xf32> to vector<4x1xf32>
    %59 = vector.broadcast %58 : vector<4x1xf32> to vector<4x4xf32>
    %60 = arith.subf %56, %59 : vector<4x4xf32>
    %61 = math.exp %60 : vector<4x4xf32>
    %cst_30 = arith.constant dense<0.000000e+00> : vector<4xf32>
    %62 = vector.multi_reduction <add>, %61, %cst_30 [1] : vector<4x4xf32> to vector<4xf32>
    %63 = vector.shape_cast %62 : vector<4xf32> to vector<4x1xf32>
    %64 = vector.broadcast %63 : vector<4x1xf32> to vector<4x4xf32>
    %65 = arith.divf %61, %64 : vector<4x4xf32>
    %cst_31 = arith.constant dense<0.000000e+00> : vector<4x8xf32>
    %66 = tpu.matmul %65, %54, %cst_31 {dimension_numbers = #tpu.dot_dimension_numbers<[1], [0], [0], [1], [0, 0, 1, 1], [], []>} : vector<4x4xf32>, vector<4x8xf32>, vector<4x8xf32> -> vector<4x8xf32>
    %c0_32 = arith.constant 0 : index
    %c16 = arith.constant 16 : index
    %67 = vector.load %arg17[%c0_32, %c16] : memref<8x32xf32, #tpu.memory_space<vmem>>, vector<4x8xf32>
    tpu.vector_store %arg17[%c0_32, %c16], %66 {strides = array<i32>} : memref<8x32xf32, #tpu.memory_space<vmem>>, vector<4x8xf32>,
    %68 = vector.extract_strided_slice %11 {offsets = [0, 24], sizes = [4, 8], strides = [1, 1]} : vector<8x96xf32> to vector<4x8xf32>
    %cst_33 = arith.constant 0.353553385 : f32
    %69 = vector.broadcast %cst_33 : f32 to vector<4x8xf32>
    %70 = arith.mulf %68, %69 : vector<4x8xf32>
    %71 = vector.extract_strided_slice %11 {offsets = [0, 56], sizes = [4, 8], strides = [1, 1]} : vector<8x96xf32> to vector<4x8xf32>
    %72 = vector.extract_strided_slice %11 {offsets = [0, 88], sizes = [4, 8], strides = [1, 1]} : vector<8x96xf32> to vector<4x8xf32>
    %cst_34 = arith.constant dense<0.000000e+00> : vector<4x4xf32>
    %73 = tpu.matmul %70, %71, %cst_34 {dimension_numbers = #tpu.dot_dimension_numbers<[1], [1], [0], [0], [0, 0, 1, 0], [], []>} : vector<4x8xf32>, vector<4x8xf32>, vector<4x4xf32> -> vector<4x4xf32>
    %74 = arith.addf %73, %13 : vector<4x4xf32>
    %cst_35 = arith.constant dense<0xFF800000> : vector<4xf32>
    %75 = vector.multi_reduction <maximumf>, %74, %cst_35 [1] : vector<4x4xf32> to vector<4xf32>
    %76 = vector.shape_cast %75 : vector<4xf32> to vector<4x1xf32>
    %77 = vector.broadcast %76 : vector<4x1xf32> to vector<4x4xf32>
    %78 = arith.subf %74, %77 : vector<4x4xf32>
    %79 = math.exp %78 : vector<4x4xf32>
    %cst_36 = arith.constant dense<0.000000e+00> : vector<4xf32>
    %80 = vector.multi_reduction <add>, %79, %cst_36 [1] : vector<4x4xf32> to vector<4xf32>
    %81 = vector.shape_cast %80 : vector<4xf32> to vector<4x1xf32>
    %82 = vector.broadcast %81 : vector<4x1xf32> to vector<4x4xf32>
    %83 = arith.divf %79, %82 : vector<4x4xf32>
    %cst_37 = arith.constant dense<0.000000e+00> : vector<4x8xf32>
    %84 = tpu.matmul %83, %72, %cst_37 {dimension_numbers = #tpu.dot_dimension_numbers<[1], [0], [0], [1], [0, 0, 1, 1], [], []>} : vector<4x4xf32>, vector<4x8xf32>, vector<4x8xf32> -> vector<4x8xf32>
    %c0_38 = arith.constant 0 : index
    %c24 = arith.constant 24 : index
    %85 = vector.load %arg17[%c0_38, %c24] : memref<8x32xf32, #tpu.memory_space<vmem>>, vector<4x8xf32>
    tpu.vector_store %arg17[%c0_38, %c24], %84 {strides = array<i32>} : memref<8x32xf32, #tpu.memory_space<vmem>>, vector<4x8xf32>,
    %86 = vector.extract_strided_slice %11 {offsets = [4, 0], sizes = [4, 8], strides = [1, 1]} : vector<8x96xf32> to vector<4x8xf32>
    %cst_39 = arith.constant 0.353553385 : f32
    %87 = vector.broadcast %cst_39 : f32 to vector<4x8xf32>
    %88 = arith.mulf %86, %87 : vector<4x8xf32>
    %89 = vector.extract_strided_slice %11 {offsets = [4, 32], sizes = [4, 8], strides = [1, 1]} : vector<8x96xf32> to vector<4x8xf32>
    %90 = vector.extract_strided_slice %11 {offsets = [4, 64], sizes = [4, 8], strides = [1, 1]} : vector<8x96xf32> to vector<4x8xf32>
    %cst_40 = arith.constant dense<0.000000e+00> : vector<4x4xf32>
    %91 = tpu.matmul %88, %89, %cst_40 {dimension_numbers = #tpu.dot_dimension_numbers<[1], [1], [0], [0], [0, 0, 1, 0], [], []>} : vector<4x8xf32>, vector<4x8xf32>, vector<4x4xf32> -> vector<4x4xf32>
    %92 = arith.addf %91, %13 : vector<4x4xf32>
    %cst_41 = arith.constant dense<0xFF800000> : vector<4xf32>
    %93 = vector.multi_reduction <maximumf>, %92, %cst_41 [1] : vector<4x4xf32> to vector<4xf32>
    %94 = vector.shape_cast %93 : vector<4xf32> to vector<4x1xf32>
    %95 = vector.broadcast %94 : vector<4x1xf32> to vector<4x4xf32>
    %96 = arith.subf %92, %95 : vector<4x4xf32>
    %97 = math.exp %96 : vector<4x4xf32>
    %cst_42 = arith.constant dense<0.000000e+00> : vector<4xf32>
    %98 = vector.multi_reduction <add>, %97, %cst_42 [1] : vector<4x4xf32> to vector<4xf32>
    %99 = vector.shape_cast %98 : vector<4xf32> to vector<4x1xf32>
    %100 = vector.broadcast %99 : vector<4x1xf32> to vector<4x4xf32>
    %101 = arith.divf %97, %100 : vector<4x4xf32>
    %cst_43 = arith.constant dense<0.000000e+00> : vector<4x8xf32>
    %102 = tpu.matmul %101, %90, %cst_43 {dimension_numbers = #tpu.dot_dimension_numbers<[1], [0], [0], [1], [0, 0, 1, 1], [], []>} : vector<4x4xf32>, vector<4x8xf32>, vector<4x8xf32> -> vector<4x8xf32>
    %c4 = arith.constant 4 : index
    %c0_44 = arith.constant 0 : index
    %103 = vector.load %arg17[%c4, %c0_44] : memref<8x32xf32, #tpu.memory_space<vmem>>, vector<4x8xf32>
    tpu.vector_store %arg17[%c4, %c0_44], %102 {strides = array<i32>} : memref<8x32xf32, #tpu.memory_space<vmem>>, vector<4x8xf32>,
    %104 = vector.extract_strided_slice %11 {offsets = [4, 8], sizes = [4, 8], strides = [1, 1]} : vector<8x96xf32> to vector<4x8xf32>
    %cst_45 = arith.constant 0.353553385 : f32
    %105 = vector.broadcast %cst_45 : f32 to vector<4x8xf32>
    %106 = arith.mulf %104, %105 : vector<4x8xf32>
    %107 = vector.extract_strided_slice %11 {offsets = [4, 40], sizes = [4, 8], strides = [1, 1]} : vector<8x96xf32> to vector<4x8xf32>
    %108 = vector.extract_strided_slice %11 {offsets = [4, 72], sizes = [4, 8], strides = [1, 1]} : vector<8x96xf32> to vector<4x8xf32>
    %cst_46 = arith.constant dense<0.000000e+00> : vector<4x4xf32>
    %109 = tpu.matmul %106, %107, %cst_46 {dimension_numbers = #tpu.dot_dimension_numbers<[1], [1], [0], [0], [0, 0, 1, 0], [], []>} : vector<4x8xf32>, vector<4x8xf32>, vector<4x4xf32> -> vector<4x4xf32>
    %110 = arith.addf %109, %13 : vector<4x4xf32>
    %cst_47 = arith.constant dense<0xFF800000> : vector<4xf32>
    %111 = vector.multi_reduction <maximumf>, %110, %cst_47 [1] : vector<4x4xf32> to vector<4xf32>
    %112 = vector.shape_cast %111 : vector<4xf32> to vector<4x1xf32>
    %113 = vector.broadcast %112 : vector<4x1xf32> to vector<4x4xf32>
    %114 = arith.subf %110, %113 : vector<4x4xf32>
    %115 = math.exp %114 : vector<4x4xf32>
    %cst_48 = arith.constant dense<0.000000e+00> : vector<4xf32>
    %116 = vector.multi_reduction <add>, %115, %cst_48 [1] : vector<4x4xf32> to vector<4xf32>
    %117 = vector.shape_cast %116 : vector<4xf32> to vector<4x1xf32>
    %118 = vector.broadcast %117 : vector<4x1xf32> to vector<4x4xf32>
    %119 = arith.divf %115, %118 : vector<4x4xf32>
    %cst_49 = arith.constant dense<0.000000e+00> : vector<4x8xf32>
    %120 = tpu.matmul %119, %108, %cst_49 {dimension_numbers = #tpu.dot_dimension_numbers<[1], [0], [0], [1], [0, 0, 1, 1], [], []>} : vector<4x4xf32>, vector<4x8xf32>, vector<4x8xf32> -> vector<4x8xf32>
    %c4_50 = arith.constant 4 : index
    %c8_51 = arith.constant 8 : index
    %121 = vector.load %arg17[%c4_50, %c8_51] : memref<8x32xf32, #tpu.memory_space<vmem>>, vector<4x8xf32>
    tpu.vector_store %arg17[%c4_50, %c8_51], %120 {strides = array<i32>} : memref<8x32xf32, #tpu.memory_space<vmem>>, vector<4x8xf32>,
    %122 = vector.extract_strided_slice %11 {offsets = [4, 16], sizes = [4, 8], strides = [1, 1]} : vector<8x96xf32> to vector<4x8xf32>
    %cst_52 = arith.constant 0.353553385 : f32
    %123 = vector.broadcast %cst_52 : f32 to vector<4x8xf32>
    %124 = arith.mulf %122, %123 : vector<4x8xf32>
    %125 = vector.extract_strided_slice %11 {offsets = [4, 48], sizes = [4, 8], strides = [1, 1]} : vector<8x96xf32> to vector<4x8xf32>
    %126 = vector.extract_strided_slice %11 {offsets = [4, 80], sizes = [4, 8], strides = [1, 1]} : vector<8x96xf32> to vector<4x8xf32>
    %cst_53 = arith.constant dense<0.000000e+00> : vector<4x4xf32>
    %127 = tpu.matmul %124, %125, %cst_53 {dimension_numbers = #tpu.dot_dimension_numbers<[1], [1], [0], [0], [0, 0, 1, 0], [], []>} : vector<4x8xf32>, vector<4x8xf32>, vector<4x4xf32> -> vector<4x4xf32>
    %128 = arith.addf %127, %13 : vector<4x4xf32>
    %cst_54 = arith.constant dense<0xFF800000> : vector<4xf32>
    %129 = vector.multi_reduction <maximumf>, %128, %cst_54 [1] : vector<4x4xf32> to vector<4xf32>
    %130 = vector.shape_cast %129 : vector<4xf32> to vector<4x1xf32>
    %131 = vector.broadcast %130 : vector<4x1xf32> to vector<4x4xf32>
    %132 = arith.subf %128, %131 : vector<4x4xf32>
    %133 = math.exp %132 : vector<4x4xf32>
    %cst_55 = arith.constant dense<0.000000e+00> : vector<4xf32>
    %134 = vector.multi_reduction <add>, %133, %cst_55 [1] : vector<4x4xf32> to vector<4xf32>
    %135 = vector.shape_cast %134 : vector<4xf32> to vector<4x1xf32>
    %136 = vector.broadcast %135 : vector<4x1xf32> to vector<4x4xf32>
    %137 = arith.divf %133, %136 : vector<4x4xf32>
    %cst_56 = arith.constant dense<0.000000e+00> : vector<4x8xf32>
    %138 = tpu.matmul %137, %126, %cst_56 {dimension_numbers = #tpu.dot_dimension_numbers<[1], [0], [0], [1], [0, 0, 1, 1], [], []>} : vector<4x4xf32>, vector<4x8xf32>, vector<4x8xf32> -> vector<4x8xf32>
    %c4_57 = arith.constant 4 : index
    %c16_58 = arith.constant 16 : index
    %139 = vector.load %arg17[%c4_57, %c16_58] : memref<8x32xf32, #tpu.memory_space<vmem>>, vector<4x8xf32>
    tpu.vector_store %arg17[%c4_57, %c16_58], %138 {strides = array<i32>} : memref<8x32xf32, #tpu.memory_space<vmem>>, vector<4x8xf32>,
    %140 = vector.extract_strided_slice %11 {offsets = [4, 24], sizes = [4, 8], strides = [1, 1]} : vector<8x96xf32> to vector<4x8xf32>
    %cst_59 = arith.constant 0.353553385 : f32
    %141 = vector.broadcast %cst_59 : f32 to vector<4x8xf32>
    %142 = arith.mulf %140, %141 : vector<4x8xf32>
    %143 = vector.extract_strided_slice %11 {offsets = [4, 56], sizes = [4, 8], strides = [1, 1]} : vector<8x96xf32> to vector<4x8xf32>
    %144 = vector.extract_strided_slice %11 {offsets = [4, 88], sizes = [4, 8], strides = [1, 1]} : vector<8x96xf32> to vector<4x8xf32>
    %cst_60 = arith.constant dense<0.000000e+00> : vector<4x4xf32>
    %145 = tpu.matmul %142, %143, %cst_60 {dimension_numbers = #tpu.dot_dimension_numbers<[1], [1], [0], [0], [0, 0, 1, 0], [], []>} : vector<4x8xf32>, vector<4x8xf32>, vector<4x4xf32> -> vector<4x4xf32>
    %146 = arith.addf %145, %13 : vector<4x4xf32>
    %cst_61 = arith.constant dense<0xFF800000> : vector<4xf32>
    %147 = vector.multi_reduction <maximumf>, %146, %cst_61 [1] : vector<4x4xf32> to vector<4xf32>
    %148 = vector.shape_cast %147 : vector<4xf32> to vector<4x1xf32>
    %149 = vector.broadcast %148 : vector<4x1xf32> to vector<4x4xf32>
    %150 = arith.subf %146, %149 : vector<4x4xf32>
    %151 = math.exp %150 : vector<4x4xf32>
    %cst_62 = arith.constant dense<0.000000e+00> : vector<4xf32>
    %152 = vector.multi_reduction <add>, %151, %cst_62 [1] : vector<4x4xf32> to vector<4xf32>
    %153 = vector.shape_cast %152 : vector<4xf32> to vector<4x1xf32>
    %154 = vector.broadcast %153 : vector<4x1xf32> to vector<4x4xf32>
    %155 = arith.divf %151, %154 : vector<4x4xf32>
    %cst_63 = arith.constant dense<0.000000e+00> : vector<4x8xf32>
    %156 = tpu.matmul %155, %144, %cst_63 {dimension_numbers = #tpu.dot_dimension_numbers<[1], [0], [0], [1], [0, 0, 1, 1], [], []>} : vector<4x4xf32>, vector<4x8xf32>, vector<4x8xf32> -> vector<4x8xf32>
    %c4_64 = arith.constant 4 : index
    %c24_65 = arith.constant 24 : index
    %157 = vector.load %arg17[%c4_64, %c24_65] : memref<8x32xf32, #tpu.memory_space<vmem>>, vector<4x8xf32>
    tpu.vector_store %arg17[%c4_64, %c24_65], %156 {strides = array<i32>} : memref<8x32xf32, #tpu.memory_space<vmem>>, vector<4x8xf32>,
    %c0_66 = arith.constant 0 : index
    %c0_67 = arith.constant 0 : index
    %158 = vector.load %arg17[%c0_66, %c0_67] : memref<8x32xf32, #tpu.memory_space<vmem>>, vector<8x32xf32>
    %c0_68 = arith.constant 0 : index
    %c0_69 = arith.constant 0 : index
    %c0_70 = arith.constant 0 : index
    %159 = vector.load %arg6[%c0_68, %c0_69, %c0_70] : memref<3x32x32xf32, #tpu.memory_space<vmem>>, vector<1x32x32xf32>
    %160 = vector.shape_cast %159 : vector<1x32x32xf32> to vector<32x32xf32>
    %cst_71 = arith.constant dense<0.000000e+00> : vector<8x32xf32>
    %161 = tpu.matmul %158, %160, %cst_71 {dimension_numbers = #tpu.dot_dimension_numbers<[1], [0], [0], [1], [0, 0, 1, 1], [], []>} : vector<8x32xf32>, vector<32x32xf32>, vector<8x32xf32> -> vector<8x32xf32>
    %c0_72 = arith.constant 0 : index
    %c0_73 = arith.constant 0 : index
    %c0_74 = arith.constant 0 : index
    %162 = vector.load %arg7[%c0_72, %c0_73, %c0_74] : memref<3x1x32xf32, #tpu.memory_space<vmem>>, vector<1x1x32xf32>
    %163 = vector.shape_cast %162 : vector<1x1x32xf32> to vector<1x32xf32>
    %164 = vector.broadcast %163 : vector<1x32xf32> to vector<8x32xf32>
    %165 = arith.addf %161, %164 : vector<8x32xf32>
    %166 = arith.addf %4, %165 : vector<8x32xf32>
    %c0_75 = arith.constant 0 : index
    %c0_76 = arith.constant 0 : index
    %c0_77 = arith.constant 0 : index
    %167 = vector.load %arg8[%c0_75, %c0_76, %c0_77] : memref<3x1x32xf32, #tpu.memory_space<vmem>>, vector<1x1x32xf32>
    %168 = vector.shape_cast %167 : vector<1x1x32xf32> to vector<1x32xf32>
    %c0_78 = arith.constant 0 : index
    %c0_79 = arith.constant 0 : index
    %c0_80 = arith.constant 0 : index
    %169 = vector.load %arg9[%c0_78, %c0_79, %c0_80] : memref<3x1x32xf32, #tpu.memory_space<vmem>>, vector<1x1x32xf32>
    %170 = vector.shape_cast %169 : vector<1x1x32xf32> to vector<1x32xf32>
    %cst_81 = arith.constant dense<0.000000e+00> : vector<8xf32>
    %171 = vector.multi_reduction <add>, %166, %cst_81 [1] : vector<8x32xf32> to vector<8xf32>
    %172 = vector.shape_cast %171 : vector<8xf32> to vector<8x1xf32>
    %cst_82 = arith.constant 3.200000e+01 : f32
    %173 = vector.broadcast %cst_82 : f32 to vector<8x1xf32>
    %174 = arith.divf %172, %173 : vector<8x1xf32>
    %175 = vector.broadcast %174 : vector<8x1xf32> to vector<8x32xf32>
    %176 = arith.subf %166, %175 : vector<8x32xf32>
    %177 = arith.mulf %176, %176 : vector<8x32xf32>
    %cst_83 = arith.constant dense<0.000000e+00> : vector<8xf32>
    %178 = vector.multi_reduction <add>, %177, %cst_83 [1] : vector<8x32xf32> to vector<8xf32>
    %179 = vector.shape_cast %178 : vector<8xf32> to vector<8x1xf32>
    %cst_84 = arith.constant 3.200000e+01 : f32
    %180 = vector.broadcast %cst_84 : f32 to vector<8x1xf32>
    %181 = arith.divf %179, %180 : vector<8x1xf32>
    %cst_85 = arith.constant 9.99999974E-6 : f32
    %182 = vector.broadcast %cst_85 : f32 to vector<8x1xf32>
    %183 = arith.addf %181, %182 : vector<8x1xf32>
    %184 = math.rsqrt %183 : vector<8x1xf32>
    %185 = vector.broadcast %184 : vector<8x1xf32> to vector<8x32xf32>
    %186 = arith.mulf %176, %185 : vector<8x32xf32>
    %187 = vector.broadcast %168 : vector<1x32xf32> to vector<8x32xf32>
    %188 = arith.mulf %186, %187 : vector<8x32xf32>
    %189 = vector.broadcast %170 : vector<1x32xf32> to vector<8x32xf32>
    %190 = arith.addf %188, %189 : vector<8x32xf32>
    %c0_86 = arith.constant 0 : index
    %c0_87 = arith.constant 0 : index
    %c0_88 = arith.constant 0 : index
    %191 = vector.load %arg10[%c0_86, %c0_87, %c0_88] : memref<3x32x64xf32, #tpu.memory_space<vmem>>, vector<1x32x64xf32>
    %192 = vector.shape_cast %191 : vector<1x32x64xf32> to vector<32x64xf32>
    %cst_89 = arith.constant dense<0.000000e+00> : vector<8x64xf32>
    %193 = tpu.matmul %190, %192, %cst_89 {dimension_numbers = #tpu.dot_dimension_numbers<[1], [0], [0], [1], [0, 0, 1, 1], [], []>} : vector<8x32xf32>, vector<32x64xf32>, vector<8x64xf32> -> vector<8x64xf32>
    %c0_90 = arith.constant 0 : index
    %c0_91 = arith.constant 0 : index
    %c0_92 = arith.constant 0 : index
    %194 = vector.load %arg11[%c0_90, %c0_91, %c0_92] : memref<3x1x64xf32, #tpu.memory_space<vmem>>, vector<1x1x64xf32>
    %195 = vector.shape_cast %194 : vector<1x1x64xf32> to vector<1x64xf32>
    %196 = vector.broadcast %195 : vector<1x64xf32> to vector<8x64xf32>
    %197 = arith.addf %193, %196 : vector<8x64xf32>
    %cst_93 = arith.constant 0.000000e+00 : f32
    %198 = vector.broadcast %cst_93 : f32 to vector<8x64xf32>
    %199 = arith.maximumf %197, %198 : vector<8x64xf32>
    %c0_94 = arith.constant 0 : index
    %c0_95 = arith.constant 0 : index
    %c0_96 = arith.constant 0 : index
    %200 = vector.load %arg12[%c0_94, %c0_95, %c0_96] : memref<3x64x32xf32, #tpu.memory_space<vmem>>, vector<1x64x32xf32>
    %201 = vector.shape_cast %200 : vector<1x64x32xf32> to vector<64x32xf32>
    %cst_97 = arith.constant dense<0.000000e+00> : vector<8x32xf32>
    %202 = tpu.matmul %199, %201, %cst_97 {dimension_numbers = #tpu.dot_dimension_numbers<[1], [0], [0], [1], [0, 0, 1, 1], [], []>} : vector<8x64xf32>, vector<64x32xf32>, vector<8x32xf32> -> vector<8x32xf32>
    %c0_98 = arith.constant 0 : index
    %c0_99 = arith.constant 0 : index
    %c0_100 = arith.constant 0 : index
    %203 = vector.load %arg13[%c0_98, %c0_99, %c0_100] : memref<3x1x32xf32, #tpu.memory_space<vmem>>, vector<1x1x32xf32>
    %204 = vector.shape_cast %203 : vector<1x1x32xf32> to vector<1x32xf32>
    %205 = vector.broadcast %204 : vector<1x32xf32> to vector<8x32xf32>
    %206 = arith.addf %202, %205 : vector<8x32xf32>
    %207 = arith.addf %190, %206 : vector<8x32xf32>
    %c0_101 = arith.constant 0 : index
    %c0_102 = arith.constant 0 : index
    %c0_103 = arith.constant 0 : index
    %208 = vector.load %arg14[%c0_101, %c0_102, %c0_103] : memref<3x1x32xf32, #tpu.memory_space<vmem>>, vector<1x1x32xf32>
    %209 = vector.shape_cast %208 : vector<1x1x32xf32> to vector<1x32xf32>
    %c0_104 = arith.constant 0 : index
    %c0_105 = arith.constant 0 : index
    %c0_106 = arith.constant 0 : index
    %210 = vector.load %arg15[%c0_104, %c0_105, %c0_106] : memref<3x1x32xf32, #tpu.memory_space<vmem>>, vector<1x1x32xf32>
    %211 = vector.shape_cast %210 : vector<1x1x32xf32> to vector<1x32xf32>
    %cst_107 = arith.constant dense<0.000000e+00> : vector<8xf32>
    %212 = vector.multi_reduction <add>, %207, %cst_107 [1] : vector<8x32xf32> to vector<8xf32>
    %213 = vector.shape_cast %212 : vector<8xf32> to vector<8x1xf32>
    %cst_108 = arith.constant 3.200000e+01 : f32
    %214 = vector.broadcast %cst_108 : f32 to vector<8x1xf32>
    %215 = arith.divf %213, %214 : vector<8x1xf32>
    %216 = vector.broadcast %215 : vector<8x1xf32> to vector<8x32xf32>
    %217 = arith.subf %207, %216 : vector<8x32xf32>
    %218 = arith.mulf %217, %217 : vector<8x32xf32>
    %cst_109 = arith.constant dense<0.000000e+00> : vector<8xf32>
    %219 = vector.multi_reduction <add>, %218, %cst_109 [1] : vector<8x32xf32> to vector<8xf32>
    %220 = vector.shape_cast %219 : vector<8xf32> to vector<8x1xf32>
    %cst_110 = arith.constant 3.200000e+01 : f32
    %221 = vector.broadcast %cst_110 : f32 to vector<8x1xf32>
    %222 = arith.divf %220, %221 : vector<8x1xf32>
    %cst_111 = arith.constant 9.99999974E-6 : f32
    %223 = vector.broadcast %cst_111 : f32 to vector<8x1xf32>
    %224 = arith.addf %222, %223 : vector<8x1xf32>
    %225 = math.rsqrt %224 : vector<8x1xf32>
    %226 = vector.broadcast %225 : vector<8x1xf32> to vector<8x32xf32>
    %227 = arith.mulf %217, %226 : vector<8x32xf32>
    %228 = vector.broadcast %209 : vector<1x32xf32> to vector<8x32xf32>
    %229 = arith.mulf %227, %228 : vector<8x32xf32>
    %230 = vector.broadcast %211 : vector<1x32xf32> to vector<8x32xf32>
    %231 = arith.addf %229, %230 : vector<8x32xf32>
    %c1 = arith.constant 1 : index
    %c0_112 = arith.constant 0 : index
    %c0_113 = arith.constant 0 : index
    %232 = vector.load %arg4[%c1, %c0_112, %c0_113] : memref<3x32x96xf32, #tpu.memory_space<vmem>>, vector<1x32x96xf32>
    %233 = vector.shape_cast %232 : vector<1x32x96xf32> to vector<32x96xf32>
    %cst_114 = arith.constant dense<0.000000e+00> : vector<8x96xf32>
    %234 = tpu.matmul %231, %233, %cst_114 {dimension_numbers = #tpu.dot_dimension_numbers<[1], [0], [0], [1], [0, 0, 1, 1], [], []>} : vector<8x32xf32>, vector<32x96xf32>, vector<8x96xf32> -> vector<8x96xf32>
    %c1_115 = arith.constant 1 : index
    %c0_116 = arith.constant 0 : index
    %c0_117 = arith.constant 0 : index
    %235 = vector.load %arg5[%c1_115, %c0_116, %c0_117] : memref<3x1x96xf32, #tpu.memory_space<vmem>>, vector<1x1x96xf32>
    %236 = vector.shape_cast %235 : vector<1x1x96xf32> to vector<1x96xf32>
    %237 = vector.broadcast %236 : vector<1x96xf32> to vector<8x96xf32>
    %238 = arith.addf %234, %237 : vector<8x96xf32>
    %c1_118 = arith.constant 1 : index
    %c0_119 = arith.constant 0 : index
    %c0_120 = arith.constant 0 : index
    %239 = vector.load %arg3[%c1_118, %c0_119, %c0_120] : memref<3x4x4xf32, #tpu.memory_space<vmem>>, vector<1x4x4xf32>
    %240 = vector.shape_cast %239 : vector<1x4x4xf32> to vector<4x4xf32>
    %241 = vector.extract_strided_slice %238 {offsets = [0, 0], sizes = [4, 8], strides = [1, 1]} : vector<8x96xf32> to vector<4x8xf32>
    %cst_121 = arith.constant 0.353553385 : f32
    %242 = vector.broadcast %cst_121 : f32 to vector<4x8xf32>
    %243 = arith.mulf %241, %242 : vector<4x8xf32>
    %244 = vector.extract_strided_slice %238 {offsets = [0, 32], sizes = [4, 8], strides = [1, 1]} : vector<8x96xf32> to vector<4x8xf32>
    %245 = vector.extract_strided_slice %238 {offsets = [0, 64], sizes = [4, 8], strides = [1, 1]} : vector<8x96xf32> to vector<4x8xf32>
    %cst_122 = arith.constant dense<0.000000e+00> : vector<4x4xf32>
    %246 = tpu.matmul %243, %244, %cst_122 {dimension_numbers = #tpu.dot_dimension_numbers<[1], [1], [0], [0], [0, 0, 1, 0], [], []>} : vector<4x8xf32>, vector<4x8xf32>, vector<4x4xf32> -> vector<4x4xf32>
    %247 = arith.addf %246, %240 : vector<4x4xf32>
    %cst_123 = arith.constant dense<0xFF800000> : vector<4xf32>
    %248 = vector.multi_reduction <maximumf>, %247, %cst_123 [1] : vector<4x4xf32> to vector<4xf32>
    %249 = vector.shape_cast %248 : vector<4xf32> to vector<4x1xf32>
    %250 = vector.broadcast %249 : vector<4x1xf32> to vector<4x4xf32>
    %251 = arith.subf %247, %250 : vector<4x4xf32>
    %252 = math.exp %251 : vector<4x4xf32>
    %cst_124 = arith.constant dense<0.000000e+00> : vector<4xf32>
    %253 = vector.multi_reduction <add>, %252, %cst_124 [1] : vector<4x4xf32> to vector<4xf32>
    %254 = vector.shape_cast %253 : vector<4xf32> to vector<4x1xf32>
    %255 = vector.broadcast %254 : vector<4x1xf32> to vector<4x4xf32>
    %256 = arith.divf %252, %255 : vector<4x4xf32>
    %cst_125 = arith.constant dense<0.000000e+00> : vector<4x8xf32>
    %257 = tpu.matmul %256, %245, %cst_125 {dimension_numbers = #tpu.dot_dimension_numbers<[1], [0], [0], [1], [0, 0, 1, 1], [], []>} : vector<4x4xf32>, vector<4x8xf32>, vector<4x8xf32> -> vector<4x8xf32>
    %c0_126 = arith.constant 0 : index
    %c0_127 = arith.constant 0 : index
    %258 = vector.load %arg17[%c0_126, %c0_127] : memref<8x32xf32, #tpu.memory_space<vmem>>, vector<4x8xf32>
    tpu.vector_store %arg17[%c0_126, %c0_127], %257 {strides = array<i32>} : memref<8x32xf32, #tpu.memory_space<vmem>>, vector<4x8xf32>,
    %259 = vector.extract_strided_slice %238 {offsets = [0, 8], sizes = [4, 8], strides = [1, 1]} : vector<8x96xf32> to vector<4x8xf32>
    %cst_128 = arith.constant 0.353553385 : f32
    %260 = vector.broadcast %cst_128 : f32 to vector<4x8xf32>
    %261 = arith.mulf %259, %260 : vector<4x8xf32>
    %262 = vector.extract_strided_slice %238 {offsets = [0, 40], sizes = [4, 8], strides = [1, 1]} : vector<8x96xf32> to vector<4x8xf32>
    %263 = vector.extract_strided_slice %238 {offsets = [0, 72], sizes = [4, 8], strides = [1, 1]} : vector<8x96xf32> to vector<4x8xf32>
    %cst_129 = arith.constant dense<0.000000e+00> : vector<4x4xf32>
    %264 = tpu.matmul %261, %262, %cst_129 {dimension_numbers = #tpu.dot_dimension_numbers<[1], [1], [0], [0], [0, 0, 1, 0], [], []>} : vector<4x8xf32>, vector<4x8xf32>, vector<4x4xf32> -> vector<4x4xf32>
    %265 = arith.addf %264, %240 : vector<4x4xf32>
    %cst_130 = arith.constant dense<0xFF800000> : vector<4xf32>
    %266 = vector.multi_reduction <maximumf>, %265, %cst_130 [1] : vector<4x4xf32> to vector<4xf32>
    %267 = vector.shape_cast %266 : vector<4xf32> to vector<4x1xf32>
    %268 = vector.broadcast %267 : vector<4x1xf32> to vector<4x4xf32>
    %269 = arith.subf %265, %268 : vector<4x4xf32>
    %270 = math.exp %269 : vector<4x4xf32>
    %cst_131 = arith.constant dense<0.000000e+00> : vector<4xf32>
    %271 = vector.multi_reduction <add>, %270, %cst_131 [1] : vector<4x4xf32> to vector<4xf32>
    %272 = vector.shape_cast %271 : vector<4xf32> to vector<4x1xf32>
    %273 = vector.broadcast %272 : vector<4x1xf32> to vector<4x4xf32>
    %274 = arith.divf %270, %273 : vector<4x4xf32>
    %cst_132 = arith.constant dense<0.000000e+00> : vector<4x8xf32>
    %275 = tpu.matmul %274, %263, %cst_132 {dimension_numbers = #tpu.dot_dimension_numbers<[1], [0], [0], [1], [0, 0, 1, 1], [], []>} : vector<4x4xf32>, vector<4x8xf32>, vector<4x8xf32> -> vector<4x8xf32>
    %c0_133 = arith.constant 0 : index
    %c8_134 = arith.constant 8 : index
    %276 = vector.load %arg17[%c0_133, %c8_134] : memref<8x32xf32, #tpu.memory_space<vmem>>, vector<4x8xf32>
    tpu.vector_store %arg17[%c0_133, %c8_134], %275 {strides = array<i32>} : memref<8x32xf32, #tpu.memory_space<vmem>>, vector<4x8xf32>,
    %277 = vector.extract_strided_slice %238 {offsets = [0, 16], sizes = [4, 8], strides = [1, 1]} : vector<8x96xf32> to vector<4x8xf32>
    %cst_135 = arith.constant 0.353553385 : f32
    %278 = vector.broadcast %cst_135 : f32 to vector<4x8xf32>
    %279 = arith.mulf %277, %278 : vector<4x8xf32>
    %280 = vector.extract_strided_slice %238 {offsets = [0, 48], sizes = [4, 8], strides = [1, 1]} : vector<8x96xf32> to vector<4x8xf32>
    %281 = vector.extract_strided_slice %238 {offsets = [0, 80], sizes = [4, 8], strides = [1, 1]} : vector<8x96xf32> to vector<4x8xf32>
    %cst_136 = arith.constant dense<0.000000e+00> : vector<4x4xf32>
    %282 = tpu.matmul %279, %280, %cst_136 {dimension_numbers = #tpu.dot_dimension_numbers<[1], [1], [0], [0], [0, 0, 1, 0], [], []>} : vector<4x8xf32>, vector<4x8xf32>, vector<4x4xf32> -> vector<4x4xf32>
    %283 = arith.addf %282, %240 : vector<4x4xf32>
    %cst_137 = arith.constant dense<0xFF800000> : vector<4xf32>
    %284 = vector.multi_reduction <maximumf>, %283, %cst_137 [1] : vector<4x4xf32> to vector<4xf32>
    %285 = vector.shape_cast %284 : vector<4xf32> to vector<4x1xf32>
    %286 = vector.broadcast %285 : vector<4x1xf32> to vector<4x4xf32>
    %287 = arith.subf %283, %286 : vector<4x4xf32>
    %288 = math.exp %287 : vector<4x4xf32>
    %cst_138 = arith.constant dense<0.000000e+00> : vector<4xf32>
    %289 = vector.multi_reduction <add>, %288, %cst_138 [1] : vector<4x4xf32> to vector<4xf32>
    %290 = vector.shape_cast %289 : vector<4xf32> to vector<4x1xf32>
    %291 = vector.broadcast %290 : vector<4x1xf32> to vector<4x4xf32>
    %292 = arith.divf %288, %291 : vector<4x4xf32>
    %cst_139 = arith.constant dense<0.000000e+00> : vector<4x8xf32>
    %293 = tpu.matmul %292, %281, %cst_139 {dimension_numbers = #tpu.dot_dimension_numbers<[1], [0], [0], [1], [0, 0, 1, 1], [], []>} : vector<4x4xf32>, vector<4x8xf32>, vector<4x8xf32> -> vector<4x8xf32>
    %c0_140 = arith.constant 0 : index
    %c16_141 = arith.constant 16 : index
    %294 = vector.load %arg17[%c0_140, %c16_141] : memref<8x32xf32, #tpu.memory_space<vmem>>, vector<4x8xf32>
    tpu.vector_store %arg17[%c0_140, %c16_141], %293 {strides = array<i32>} : memref<8x32xf32, #tpu.memory_space<vmem>>, vector<4x8xf32>,
    %295 = vector.extract_strided_slice %238 {offsets = [0, 24], sizes = [4, 8], strides = [1, 1]} : vector<8x96xf32> to vector<4x8xf32>
    %cst_142 = arith.constant 0.353553385 : f32
    %296 = vector.broadcast %cst_142 : f32 to vector<4x8xf32>
    %297 = arith.mulf %295, %296 : vector<4x8xf32>
    %298 = vector.extract_strided_slice %238 {offsets = [0, 56], sizes = [4, 8], strides = [1, 1]} : vector<8x96xf32> to vector<4x8xf32>
    %299 = vector.extract_strided_slice %238 {offsets = [0, 88], sizes = [4, 8], strides = [1, 1]} : vector<8x96xf32> to vector<4x8xf32>
    %cst_143 = arith.constant dense<0.000000e+00> : vector<4x4xf32>
    %300 = tpu.matmul %297, %298, %cst_143 {dimension_numbers = #tpu.dot_dimension_numbers<[1], [1], [0], [0], [0, 0, 1, 0], [], []>} : vector<4x8xf32>, vector<4x8xf32>, vector<4x4xf32> -> vector<4x4xf32>
    %301 = arith.addf %300, %240 : vector<4x4xf32>
    %cst_144 = arith.constant dense<0xFF800000> : vector<4xf32>
    %302 = vector.multi_reduction <maximumf>, %301, %cst_144 [1] : vector<4x4xf32> to vector<4xf32>
    %303 = vector.shape_cast %302 : vector<4xf32> to vector<4x1xf32>
    %304 = vector.broadcast %303 : vector<4x1xf32> to vector<4x4xf32>
    %305 = arith.subf %301, %304 : vector<4x4xf32>
    %306 = math.exp %305 : vector<4x4xf32>
    %cst_145 = arith.constant dense<0.000000e+00> : vector<4xf32>
    %307 = vector.multi_reduction <add>, %306, %cst_145 [1] : vector<4x4xf32> to vector<4xf32>
    %308 = vector.shape_cast %307 : vector<4xf32> to vector<4x1xf32>
    %309 = vector.broadcast %308 : vector<4x1xf32> to vector<4x4xf32>
    %310 = arith.divf %306, %309 : vector<4x4xf32>
    %cst_146 = arith.constant dense<0.000000e+00> : vector<4x8xf32>
    %311 = tpu.matmul %310, %299, %cst_146 {dimension_numbers = #tpu.dot_dimension_numbers<[1], [0], [0], [1], [0, 0, 1, 1], [], []>} : vector<4x4xf32>, vector<4x8xf32>, vector<4x8xf32> -> vector<4x8xf32>
    %c0_147 = arith.constant 0 : index
    %c24_148 = arith.constant 24 : index
    %312 = vector.load %arg17[%c0_147, %c24_148] : memref<8x32xf32, #tpu.memory_space<vmem>>, vector<4x8xf32>
    tpu.vector_store %arg17[%c0_147, %c24_148], %311 {strides = array<i32>} : memref<8x32xf32, #tpu.memory_space<vmem>>, vector<4x8xf32>,
    %313 = vector.extract_strided_slice %238 {offsets = [4, 0], sizes = [4, 8], strides = [1, 1]} : vector<8x96xf32> to vector<4x8xf32>
    %cst_149 = arith.constant 0.353553385 : f32
    %314 = vector.broadcast %cst_149 : f32 to vector<4x8xf32>
    %315 = arith.mulf %313, %314 : vector<4x8xf32>
    %316 = vector.extract_strided_slice %238 {offsets = [4, 32], sizes = [4, 8], strides = [1, 1]} : vector<8x96xf32> to vector<4x8xf32>
    %317 = vector.extract_strided_slice %238 {offsets = [4, 64], sizes = [4, 8], strides = [1, 1]} : vector<8x96xf32> to vector<4x8xf32>
    %cst_150 = arith.constant dense<0.000000e+00> : vector<4x4xf32>
    %318 = tpu.matmul %315, %316, %cst_150 {dimension_numbers = #tpu.dot_dimension_numbers<[1], [1], [0], [0], [0, 0, 1, 0], [], []>} : vector<4x8xf32>, vector<4x8xf32>, vector<4x4xf32> -> vector<4x4xf32>
    %319 = arith.addf %318, %240 : vector<4x4xf32>
    %cst_151 = arith.constant dense<0xFF800000> : vector<4xf32>
    %320 = vector.multi_reduction <maximumf>, %319, %cst_151 [1] : vector<4x4xf32> to vector<4xf32>
    %321 = vector.shape_cast %320 : vector<4xf32> to vector<4x1xf32>
    %322 = vector.broadcast %321 : vector<4x1xf32> to vector<4x4xf32>
    %323 = arith.subf %319, %322 : vector<4x4xf32>
    %324 = math.exp %323 : vector<4x4xf32>
    %cst_152 = arith.constant dense<0.000000e+00> : vector<4xf32>
    %325 = vector.multi_reduction <add>, %324, %cst_152 [1] : vector<4x4xf32> to vector<4xf32>
    %326 = vector.shape_cast %325 : vector<4xf32> to vector<4x1xf32>
    %327 = vector.broadcast %326 : vector<4x1xf32> to vector<4x4xf32>
    %328 = arith.divf %324, %327 : vector<4x4xf32>
    %cst_153 = arith.constant dense<0.000000e+00> : vector<4x8xf32>
    %329 = tpu.matmul %328, %317, %cst_153 {dimension_numbers = #tpu.dot_dimension_numbers<[1], [0], [0], [1], [0, 0, 1, 1], [], []>} : vector<4x4xf32>, vector<4x8xf32>, vector<4x8xf32> -> vector<4x8xf32>
    %c4_154 = arith.constant 4 : index
    %c0_155 = arith.constant 0 : index
    %330 = vector.load %arg17[%c4_154, %c0_155] : memref<8x32xf32, #tpu.memory_space<vmem>>, vector<4x8xf32>
    tpu.vector_store %arg17[%c4_154, %c0_155], %329 {strides = array<i32>} : memref<8x32xf32, #tpu.memory_space<vmem>>, vector<4x8xf32>,
    %331 = vector.extract_strided_slice %238 {offsets = [4, 8], sizes = [4, 8], strides = [1, 1]} : vector<8x96xf32> to vector<4x8xf32>
    %cst_156 = arith.constant 0.353553385 : f32
    %332 = vector.broadcast %cst_156 : f32 to vector<4x8xf32>
    %333 = arith.mulf %331, %332 : vector<4x8xf32>
    %334 = vector.extract_strided_slice %238 {offsets = [4, 40], sizes = [4, 8], strides = [1, 1]} : vector<8x96xf32> to vector<4x8xf32>
    %335 = vector.extract_strided_slice %238 {offsets = [4, 72], sizes = [4, 8], strides = [1, 1]} : vector<8x96xf32> to vector<4x8xf32>
    %cst_157 = arith.constant dense<0.000000e+00> : vector<4x4xf32>
    %336 = tpu.matmul %333, %334, %cst_157 {dimension_numbers = #tpu.dot_dimension_numbers<[1], [1], [0], [0], [0, 0, 1, 0], [], []>} : vector<4x8xf32>, vector<4x8xf32>, vector<4x4xf32> -> vector<4x4xf32>
    %337 = arith.addf %336, %240 : vector<4x4xf32>
    %cst_158 = arith.constant dense<0xFF800000> : vector<4xf32>
    %338 = vector.multi_reduction <maximumf>, %337, %cst_158 [1] : vector<4x4xf32> to vector<4xf32>
    %339 = vector.shape_cast %338 : vector<4xf32> to vector<4x1xf32>
    %340 = vector.broadcast %339 : vector<4x1xf32> to vector<4x4xf32>
    %341 = arith.subf %337, %340 : vector<4x4xf32>
    %342 = math.exp %341 : vector<4x4xf32>
    %cst_159 = arith.constant dense<0.000000e+00> : vector<4xf32>
    %343 = vector.multi_reduction <add>, %342, %cst_159 [1] : vector<4x4xf32> to vector<4xf32>
    %344 = vector.shape_cast %343 : vector<4xf32> to vector<4x1xf32>
    %345 = vector.broadcast %344 : vector<4x1xf32> to vector<4x4xf32>
    %346 = arith.divf %342, %345 : vector<4x4xf32>
    %cst_160 = arith.constant dense<0.000000e+00> : vector<4x8xf32>
    %347 = tpu.matmul %346, %335, %cst_160 {dimension_numbers = #tpu.dot_dimension_numbers<[1], [0], [0], [1], [0, 0, 1, 1], [], []>} : vector<4x4xf32>, vector<4x8xf32>, vector<4x8xf32> -> vector<4x8xf32>
    %c4_161 = arith.constant 4 : index
    %c8_162 = arith.constant 8 : index
    %348 = vector.load %arg17[%c4_161, %c8_162] : memref<8x32xf32, #tpu.memory_space<vmem>>, vector<4x8xf32>
    tpu.vector_store %arg17[%c4_161, %c8_162], %347 {strides = array<i32>} : memref<8x32xf32, #tpu.memory_space<vmem>>, vector<4x8xf32>,
    %349 = vector.extract_strided_slice %238 {offsets = [4, 16], sizes = [4, 8], strides = [1, 1]} : vector<8x96xf32> to vector<4x8xf32>
    %cst_163 = arith.constant 0.353553385 : f32
    %350 = vector.broadcast %cst_163 : f32 to vector<4x8xf32>
    %351 = arith.mulf %349, %350 : vector<4x8xf32>
    %352 = vector.extract_strided_slice %238 {offsets = [4, 48], sizes = [4, 8], strides = [1, 1]} : vector<8x96xf32> to vector<4x8xf32>
    %353 = vector.extract_strided_slice %238 {offsets = [4, 80], sizes = [4, 8], strides = [1, 1]} : vector<8x96xf32> to vector<4x8xf32>
    %cst_164 = arith.constant dense<0.000000e+00> : vector<4x4xf32>
    %354 = tpu.matmul %351, %352, %cst_164 {dimension_numbers = #tpu.dot_dimension_numbers<[1], [1], [0], [0], [0, 0, 1, 0], [], []>} : vector<4x8xf32>, vector<4x8xf32>, vector<4x4xf32> -> vector<4x4xf32>
    %355 = arith.addf %354, %240 : vector<4x4xf32>
    %cst_165 = arith.constant dense<0xFF800000> : vector<4xf32>
    %356 = vector.multi_reduction <maximumf>, %355, %cst_165 [1] : vector<4x4xf32> to vector<4xf32>
    %357 = vector.shape_cast %356 : vector<4xf32> to vector<4x1xf32>
    %358 = vector.broadcast %357 : vector<4x1xf32> to vector<4x4xf32>
    %359 = arith.subf %355, %358 : vector<4x4xf32>
    %360 = math.exp %359 : vector<4x4xf32>
    %cst_166 = arith.constant dense<0.000000e+00> : vector<4xf32>
    %361 = vector.multi_reduction <add>, %360, %cst_166 [1] : vector<4x4xf32> to vector<4xf32>
    %362 = vector.shape_cast %361 : vector<4xf32> to vector<4x1xf32>
    %363 = vector.broadcast %362 : vector<4x1xf32> to vector<4x4xf32>
    %364 = arith.divf %360, %363 : vector<4x4xf32>
    %cst_167 = arith.constant dense<0.000000e+00> : vector<4x8xf32>
    %365 = tpu.matmul %364, %353, %cst_167 {dimension_numbers = #tpu.dot_dimension_numbers<[1], [0], [0], [1], [0, 0, 1, 1], [], []>} : vector<4x4xf32>, vector<4x8xf32>, vector<4x8xf32> -> vector<4x8xf32>
    %c4_168 = arith.constant 4 : index
    %c16_169 = arith.constant 16 : index
    %366 = vector.load %arg17[%c4_168, %c16_169] : memref<8x32xf32, #tpu.memory_space<vmem>>, vector<4x8xf32>
    tpu.vector_store %arg17[%c4_168, %c16_169], %365 {strides = array<i32>} : memref<8x32xf32, #tpu.memory_space<vmem>>, vector<4x8xf32>,
    %367 = vector.extract_strided_slice %238 {offsets = [4, 24], sizes = [4, 8], strides = [1, 1]} : vector<8x96xf32> to vector<4x8xf32>
    %cst_170 = arith.constant 0.353553385 : f32
    %368 = vector.broadcast %cst_170 : f32 to vector<4x8xf32>
    %369 = arith.mulf %367, %368 : vector<4x8xf32>
    %370 = vector.extract_strided_slice %238 {offsets = [4, 56], sizes = [4, 8], strides = [1, 1]} : vector<8x96xf32> to vector<4x8xf32>
    %371 = vector.extract_strided_slice %238 {offsets = [4, 88], sizes = [4, 8], strides = [1, 1]} : vector<8x96xf32> to vector<4x8xf32>
    %cst_171 = arith.constant dense<0.000000e+00> : vector<4x4xf32>
    %372 = tpu.matmul %369, %370, %cst_171 {dimension_numbers = #tpu.dot_dimension_numbers<[1], [1], [0], [0], [0, 0, 1, 0], [], []>} : vector<4x8xf32>, vector<4x8xf32>, vector<4x4xf32> -> vector<4x4xf32>
    %373 = arith.addf %372, %240 : vector<4x4xf32>
    %cst_172 = arith.constant dense<0xFF800000> : vector<4xf32>
    %374 = vector.multi_reduction <maximumf>, %373, %cst_172 [1] : vector<4x4xf32> to vector<4xf32>
    %375 = vector.shape_cast %374 : vector<4xf32> to vector<4x1xf32>
    %376 = vector.broadcast %375 : vector<4x1xf32> to vector<4x4xf32>
    %377 = arith.subf %373, %376 : vector<4x4xf32>
    %378 = math.exp %377 : vector<4x4xf32>
    %cst_173 = arith.constant dense<0.000000e+00> : vector<4xf32>
    %379 = vector.multi_reduction <add>, %378, %cst_173 [1] : vector<4x4xf32> to vector<4xf32>
    %380 = vector.shape_cast %379 : vector<4xf32> to vector<4x1xf32>
    %381 = vector.broadcast %380 : vector<4x1xf32> to vector<4x4xf32>
    %382 = arith.divf %378, %381 : vector<4x4xf32>
    %cst_174 = arith.constant dense<0.000000e+00> : vector<4x8xf32>
    %383 = tpu.matmul %382, %371, %cst_174 {dimension_numbers = #tpu.dot_dimension_numbers<[1], [0], [0], [1], [0, 0, 1, 1], [], []>} : vector<4x4xf32>, vector<4x8xf32>, vector<4x8xf32> -> vector<4x8xf32>
    %c4_175 = arith.constant 4 : index
    %c24_176 = arith.constant 24 : index
    %384 = vector.load %arg17[%c4_175, %c24_176] : memref<8x32xf32, #tpu.memory_space<vmem>>, vector<4x8xf32>
    tpu.vector_store %arg17[%c4_175, %c24_176], %383 {strides = array<i32>} : memref<8x32xf32, #tpu.memory_space<vmem>>, vector<4x8xf32>,
    %c0_177 = arith.constant 0 : index
    %c0_178 = arith.constant 0 : index
    %385 = vector.load %arg17[%c0_177, %c0_178] : memref<8x32xf32, #tpu.memory_space<vmem>>, vector<8x32xf32>
    %c1_179 = arith.constant 1 : index
    %c0_180 = arith.constant 0 : index
    %c0_181 = arith.constant 0 : index
    %386 = vector.load %arg6[%c1_179, %c0_180, %c0_181] : memref<3x32x32xf32, #tpu.memory_space<vmem>>, vector<1x32x32xf32>
    %387 = vector.shape_cast %386 : vector<1x32x32xf32> to vector<32x32xf32>
    %cst_182 = arith.constant dense<0.000000e+00> : vector<8x32xf32>
    %388 = tpu.matmul %385, %387, %cst_182 {dimension_numbers = #tpu.dot_dimension_numbers<[1], [0], [0], [1], [0, 0, 1, 1], [], []>} : vector<8x32xf32>, vector<32x32xf32>, vector<8x32xf32> -> vector<8x32xf32>
    %c1_183 = arith.constant 1 : index
    %c0_184 = arith.constant 0 : index
    %c0_185 = arith.constant 0 : index
    %389 = vector.load %arg7[%c1_183, %c0_184, %c0_185] : memref<3x1x32xf32, #tpu.memory_space<vmem>>, vector<1x1x32xf32>
    %390 = vector.shape_cast %389 : vector<1x1x32xf32> to vector<1x32xf32>
    %391 = vector.broadcast %390 : vector<1x32xf32> to vector<8x32xf32>
    %392 = arith.addf %388, %391 : vector<8x32xf32>
    %393 = arith.addf %231, %392 : vector<8x32xf32>
    %c1_186 = arith.constant 1 : index
    %c0_187 = arith.constant 0 : index
    %c0_188 = arith.constant 0 : index
    %394 = vector.load %arg8[%c1_186, %c0_187, %c0_188] : memref<3x1x32xf32, #tpu.memory_space<vmem>>, vector<1x1x32xf32>
    %395 = vector.shape_cast %394 : vector<1x1x32xf32> to vector<1x32xf32>
    %c1_189 = arith.constant 1 : index
    %c0_190 = arith.constant 0 : index
    %c0_191 = arith.constant 0 : index
    %396 = vector.load %arg9[%c1_189, %c0_190, %c0_191] : memref<3x1x32xf32, #tpu.memory_space<vmem>>, vector<1x1x32xf32>
    %397 = vector.shape_cast %396 : vector<1x1x32xf32> to vector<1x32xf32>
    %cst_192 = arith.constant dense<0.000000e+00> : vector<8xf32>
    %398 = vector.multi_reduction <add>, %393, %cst_192 [1] : vector<8x32xf32> to vector<8xf32>
    %399 = vector.shape_cast %398 : vector<8xf32> to vector<8x1xf32>
    %cst_193 = arith.constant 3.200000e+01 : f32
    %400 = vector.broadcast %cst_193 : f32 to vector<8x1xf32>
    %401 = arith.divf %399, %400 : vector<8x1xf32>
    %402 = vector.broadcast %401 : vector<8x1xf32> to vector<8x32xf32>
    %403 = arith.subf %393, %402 : vector<8x32xf32>
    %404 = arith.mulf %403, %403 : vector<8x32xf32>
    %cst_194 = arith.constant dense<0.000000e+00> : vector<8xf32>
    %405 = vector.multi_reduction <add>, %404, %cst_194 [1] : vector<8x32xf32> to vector<8xf32>
    %406 = vector.shape_cast %405 : vector<8xf32> to vector<8x1xf32>
    %cst_195 = arith.constant 3.200000e+01 : f32
    %407 = vector.broadcast %cst_195 : f32 to vector<8x1xf32>
    %408 = arith.divf %406, %407 : vector<8x1xf32>
    %cst_196 = arith.constant 9.99999974E-6 : f32
    %409 = vector.broadcast %cst_196 : f32 to vector<8x1xf32>
    %410 = arith.addf %408, %409 : vector<8x1xf32>
    %411 = math.rsqrt %410 : vector<8x1xf32>
    %412 = vector.broadcast %411 : vector<8x1xf32> to vector<8x32xf32>
    %413 = arith.mulf %403, %412 : vector<8x32xf32>
    %414 = vector.broadcast %395 : vector<1x32xf32> to vector<8x32xf32>
    %415 = arith.mulf %413, %414 : vector<8x32xf32>
    %416 = vector.broadcast %397 : vector<1x32xf32> to vector<8x32xf32>
    %417 = arith.addf %415, %416 : vector<8x32xf32>
    %c1_197 = arith.constant 1 : index
    %c0_198 = arith.constant 0 : index
    %c0_199 = arith.constant 0 : index
    %418 = vector.load %arg10[%c1_197, %c0_198, %c0_199] : memref<3x32x64xf32, #tpu.memory_space<vmem>>, vector<1x32x64xf32>
    %419 = vector.shape_cast %418 : vector<1x32x64xf32> to vector<32x64xf32>
    %cst_200 = arith.constant dense<0.000000e+00> : vector<8x64xf32>
    %420 = tpu.matmul %417, %419, %cst_200 {dimension_numbers = #tpu.dot_dimension_numbers<[1], [0], [0], [1], [0, 0, 1, 1], [], []>} : vector<8x32xf32>, vector<32x64xf32>, vector<8x64xf32> -> vector<8x64xf32>
    %c1_201 = arith.constant 1 : index
    %c0_202 = arith.constant 0 : index
    %c0_203 = arith.constant 0 : index
    %421 = vector.load %arg11[%c1_201, %c0_202, %c0_203] : memref<3x1x64xf32, #tpu.memory_space<vmem>>, vector<1x1x64xf32>
    %422 = vector.shape_cast %421 : vector<1x1x64xf32> to vector<1x64xf32>
    %423 = vector.broadcast %422 : vector<1x64xf32> to vector<8x64xf32>
    %424 = arith.addf %420, %423 : vector<8x64xf32>
    %cst_204 = arith.constant 0.000000e+00 : f32
    %425 = vector.broadcast %cst_204 : f32 to vector<8x64xf32>
    %426 = arith.maximumf %424, %425 : vector<8x64xf32>
    %c1_205 = arith.constant 1 : index
    %c0_206 = arith.constant 0 : index
    %c0_207 = arith.constant 0 : index
    %427 = vector.load %arg12[%c1_205, %c0_206, %c0_207] : memref<3x64x32xf32, #tpu.memory_space<vmem>>, vector<1x64x32xf32>
    %428 = vector.shape_cast %427 : vector<1x64x32xf32> to vector<64x32xf32>
    %cst_208 = arith.constant dense<0.000000e+00> : vector<8x32xf32>
    %429 = tpu.matmul %426, %428, %cst_208 {dimension_numbers = #tpu.dot_dimension_numbers<[1], [0], [0], [1], [0, 0, 1, 1], [], []>} : vector<8x64xf32>, vector<64x32xf32>, vector<8x32xf32> -> vector<8x32xf32>
    %c1_209 = arith.constant 1 : index
    %c0_210 = arith.constant 0 : index
    %c0_211 = arith.constant 0 : index
    %430 = vector.load %arg13[%c1_209, %c0_210, %c0_211] : memref<3x1x32xf32, #tpu.memory_space<vmem>>, vector<1x1x32xf32>
    %431 = vector.shape_cast %430 : vector<1x1x32xf32> to vector<1x32xf32>
    %432 = vector.broadcast %431 : vector<1x32xf32> to vector<8x32xf32>
    %433 = arith.addf %429, %432 : vector<8x32xf32>
    %434 = arith.addf %417, %433 : vector<8x32xf32>
    %c1_212 = arith.constant 1 : index
    %c0_213 = arith.constant 0 : index
    %c0_214 = arith.constant 0 : index
    %435 = vector.load %arg14[%c1_212, %c0_213, %c0_214] : memref<3x1x32xf32, #tpu.memory_space<vmem>>, vector<1x1x32xf32>
    %436 = vector.shape_cast %435 : vector<1x1x32xf32> to vector<1x32xf32>
    %c1_215 = arith.constant 1 : index
    %c0_216 = arith.constant 0 : index
    %c0_217 = arith.constant 0 : index
    %437 = vector.load %arg15[%c1_215, %c0_216, %c0_217] : memref<3x1x32xf32, #tpu.memory_space<vmem>>, vector<1x1x32xf32>
    %438 = vector.shape_cast %437 : vector<1x1x32xf32> to vector<1x32xf32>
    %cst_218 = arith.constant dense<0.000000e+00> : vector<8xf32>
    %439 = vector.multi_reduction <add>, %434, %cst_218 [1] : vector<8x32xf32> to vector<8xf32>
    %440 = vector.shape_cast %439 : vector<8xf32> to vector<8x1xf32>
    %cst_219 = arith.constant 3.200000e+01 : f32
    %441 = vector.broadcast %cst_219 : f32 to vector<8x1xf32>
    %442 = arith.divf %440, %441 : vector<8x1xf32>
    %443 = vector.broadcast %442 : vector<8x1xf32> to vector<8x32xf32>
    %444 = arith.subf %434, %443 : vector<8x32xf32>
    %445 = arith.mulf %444, %444 : vector<8x32xf32>
    %cst_220 = arith.constant dense<0.000000e+00> : vector<8xf32>
    %446 = vector.multi_reduction <add>, %445, %cst_220 [1] : vector<8x32xf32> to vector<8xf32>
    %447 = vector.shape_cast %446 : vector<8xf32> to vector<8x1xf32>
    %cst_221 = arith.constant 3.200000e+01 : f32
    %448 = vector.broadcast %cst_221 : f32 to vector<8x1xf32>
    %449 = arith.divf %447, %448 : vector<8x1xf32>
    %cst_222 = arith.constant 9.99999974E-6 : f32
    %450 = vector.broadcast %cst_222 : f32 to vector<8x1xf32>
    %451 = arith.addf %449, %450 : vector<8x1xf32>
    %452 = math.rsqrt %451 : vector<8x1xf32>
    %453 = vector.broadcast %452 : vector<8x1xf32> to vector<8x32xf32>
    %454 = arith.mulf %444, %453 : vector<8x32xf32>
    %455 = vector.broadcast %436 : vector<1x32xf32> to vector<8x32xf32>
    %456 = arith.mulf %454, %455 : vector<8x32xf32>
    %457 = vector.broadcast %438 : vector<1x32xf32> to vector<8x32xf32>
    %458 = arith.addf %456, %457 : vector<8x32xf32>
    %c2 = arith.constant 2 : index
    %c0_223 = arith.constant 0 : index
    %c0_224 = arith.constant 0 : index
    %459 = vector.load %arg4[%c2, %c0_223, %c0_224] : memref<3x32x96xf32, #tpu.memory_space<vmem>>, vector<1x32x96xf32>
    %460 = vector.shape_cast %459 : vector<1x32x96xf32> to vector<32x96xf32>
    %cst_225 = arith.constant dense<0.000000e+00> : vector<8x96xf32>
    %461 = tpu.matmul %458, %460, %cst_225 {dimension_numbers = #tpu.dot_dimension_numbers<[1], [0], [0], [1], [0, 0, 1, 1], [], []>} : vector<8x32xf32>, vector<32x96xf32>, vector<8x96xf32> -> vector<8x96xf32>
    %c2_226 = arith.constant 2 : index
    %c0_227 = arith.constant 0 : index
    %c0_228 = arith.constant 0 : index
    %462 = vector.load %arg5[%c2_226, %c0_227, %c0_228] : memref<3x1x96xf32, #tpu.memory_space<vmem>>, vector<1x1x96xf32>
    %463 = vector.shape_cast %462 : vector<1x1x96xf32> to vector<1x96xf32>
    %464 = vector.broadcast %463 : vector<1x96xf32> to vector<8x96xf32>
    %465 = arith.addf %461, %464 : vector<8x96xf32>
    %c2_229 = arith.constant 2 : index
    %c0_230 = arith.constant 0 : index
    %c0_231 = arith.constant 0 : index
    %466 = vector.load %arg3[%c2_229, %c0_230, %c0_231] : memref<3x4x4xf32, #tpu.memory_space<vmem>>, vector<1x4x4xf32>
    %467 = vector.shape_cast %466 : vector<1x4x4xf32> to vector<4x4xf32>
    %468 = vector.extract_strided_slice %465 {offsets = [0, 0], sizes = [4, 8], strides = [1, 1]} : vector<8x96xf32> to vector<4x8xf32>
    %cst_232 = arith.constant 0.353553385 : f32
    %469 = vector.broadcast %cst_232 : f32 to vector<4x8xf32>
    %470 = arith.mulf %468, %469 : vector<4x8xf32>
    %471 = vector.extract_strided_slice %465 {offsets = [0, 32], sizes = [4, 8], strides = [1, 1]} : vector<8x96xf32> to vector<4x8xf32>
    %472 = vector.extract_strided_slice %465 {offsets = [0, 64], sizes = [4, 8], strides = [1, 1]} : vector<8x96xf32> to vector<4x8xf32>
    %cst_233 = arith.constant dense<0.000000e+00> : vector<4x4xf32>
    %473 = tpu.matmul %470, %471, %cst_233 {dimension_numbers = #tpu.dot_dimension_numbers<[1], [1], [0], [0], [0, 0, 1, 0], [], []>} : vector<4x8xf32>, vector<4x8xf32>, vector<4x4xf32> -> vector<4x4xf32>
    %474 = arith.addf %473, %467 : vector<4x4xf32>
    %cst_234 = arith.constant dense<0xFF800000> : vector<4xf32>
    %475 = vector.multi_reduction <maximumf>, %474, %cst_234 [1] : vector<4x4xf32> to vector<4xf32>
    %476 = vector.shape_cast %475 : vector<4xf32> to vector<4x1xf32>
    %477 = vector.broadcast %476 : vector<4x1xf32> to vector<4x4xf32>
    %478 = arith.subf %474, %477 : vector<4x4xf32>
    %479 = math.exp %478 : vector<4x4xf32>
    %cst_235 = arith.constant dense<0.000000e+00> : vector<4xf32>
    %480 = vector.multi_reduction <add>, %479, %cst_235 [1] : vector<4x4xf32> to vector<4xf32>
    %481 = vector.shape_cast %480 : vector<4xf32> to vector<4x1xf32>
    %482 = vector.broadcast %481 : vector<4x1xf32> to vector<4x4xf32>
    %483 = arith.divf %479, %482 : vector<4x4xf32>
    %cst_236 = arith.constant dense<0.000000e+00> : vector<4x8xf32>
    %484 = tpu.matmul %483, %472, %cst_236 {dimension_numbers = #tpu.dot_dimension_numbers<[1], [0], [0], [1], [0, 0, 1, 1], [], []>} : vector<4x4xf32>, vector<4x8xf32>, vector<4x8xf32> -> vector<4x8xf32>
    %c0_237 = arith.constant 0 : index
    %c0_238 = arith.constant 0 : index
    %485 = vector.load %arg17[%c0_237, %c0_238] : memref<8x32xf32, #tpu.memory_space<vmem>>, vector<4x8xf32>
    tpu.vector_store %arg17[%c0_237, %c0_238], %484 {strides = array<i32>} : memref<8x32xf32, #tpu.memory_space<vmem>>, vector<4x8xf32>,
    %486 = vector.extract_strided_slice %465 {offsets = [0, 8], sizes = [4, 8], strides = [1, 1]} : vector<8x96xf32> to vector<4x8xf32>
    %cst_239 = arith.constant 0.353553385 : f32
    %487 = vector.broadcast %cst_239 : f32 to vector<4x8xf32>
    %488 = arith.mulf %486, %487 : vector<4x8xf32>
    %489 = vector.extract_strided_slice %465 {offsets = [0, 40], sizes = [4, 8], strides = [1, 1]} : vector<8x96xf32> to vector<4x8xf32>
    %490 = vector.extract_strided_slice %465 {offsets = [0, 72], sizes = [4, 8], strides = [1, 1]} : vector<8x96xf32> to vector<4x8xf32>
    %cst_240 = arith.constant dense<0.000000e+00> : vector<4x4xf32>
    %491 = tpu.matmul %488, %489, %cst_240 {dimension_numbers = #tpu.dot_dimension_numbers<[1], [1], [0], [0], [0, 0, 1, 0], [], []>} : vector<4x8xf32>, vector<4x8xf32>, vector<4x4xf32> -> vector<4x4xf32>
    %492 = arith.addf %491, %467 : vector<4x4xf32>
    %cst_241 = arith.constant dense<0xFF800000> : vector<4xf32>
    %493 = vector.multi_reduction <maximumf>, %492, %cst_241 [1] : vector<4x4xf32> to vector<4xf32>
    %494 = vector.shape_cast %493 : vector<4xf32> to vector<4x1xf32>
    %495 = vector.broadcast %494 : vector<4x1xf32> to vector<4x4xf32>
    %496 = arith.subf %492, %495 : vector<4x4xf32>
    %497 = math.exp %496 : vector<4x4xf32>
    %cst_242 = arith.constant dense<0.000000e+00> : vector<4xf32>
    %498 = vector.multi_reduction <add>, %497, %cst_242 [1] : vector<4x4xf32> to vector<4xf32>
    %499 = vector.shape_cast %498 : vector<4xf32> to vector<4x1xf32>
    %500 = vector.broadcast %499 : vector<4x1xf32> to vector<4x4xf32>
    %501 = arith.divf %497, %500 : vector<4x4xf32>
    %cst_243 = arith.constant dense<0.000000e+00> : vector<4x8xf32>
    %502 = tpu.matmul %501, %490, %cst_243 {dimension_numbers = #tpu.dot_dimension_numbers<[1], [0], [0], [1], [0, 0, 1, 1], [], []>} : vector<4x4xf32>, vector<4x8xf32>, vector<4x8xf32> -> vector<4x8xf32>
    %c0_244 = arith.constant 0 : index
    %c8_245 = arith.constant 8 : index
    %503 = vector.load %arg17[%c0_244, %c8_245] : memref<8x32xf32, #tpu.memory_space<vmem>>, vector<4x8xf32>
    tpu.vector_store %arg17[%c0_244, %c8_245], %502 {strides = array<i32>} : memref<8x32xf32, #tpu.memory_space<vmem>>, vector<4x8xf32>,
    %504 = vector.extract_strided_slice %465 {offsets = [0, 16], sizes = [4, 8], strides = [1, 1]} : vector<8x96xf32> to vector<4x8xf32>
    %cst_246 = arith.constant 0.353553385 : f32
    %505 = vector.broadcast %cst_246 : f32 to vector<4x8xf32>
    %506 = arith.mulf %504, %505 : vector<4x8xf32>
    %507 = vector.extract_strided_slice %465 {offsets = [0, 48], sizes = [4, 8], strides = [1, 1]} : vector<8x96xf32> to vector<4x8xf32>
    %508 = vector.extract_strided_slice %465 {offsets = [0, 80], sizes = [4, 8], strides = [1, 1]} : vector<8x96xf32> to vector<4x8xf32>
    %cst_247 = arith.constant dense<0.000000e+00> : vector<4x4xf32>
    %509 = tpu.matmul %506, %507, %cst_247 {dimension_numbers = #tpu.dot_dimension_numbers<[1], [1], [0], [0], [0, 0, 1, 0], [], []>} : vector<4x8xf32>, vector<4x8xf32>, vector<4x4xf32> -> vector<4x4xf32>
    %510 = arith.addf %509, %467 : vector<4x4xf32>
    %cst_248 = arith.constant dense<0xFF800000> : vector<4xf32>
    %511 = vector.multi_reduction <maximumf>, %510, %cst_248 [1] : vector<4x4xf32> to vector<4xf32>
    %512 = vector.shape_cast %511 : vector<4xf32> to vector<4x1xf32>
    %513 = vector.broadcast %512 : vector<4x1xf32> to vector<4x4xf32>
    %514 = arith.subf %510, %513 : vector<4x4xf32>
    %515 = math.exp %514 : vector<4x4xf32>
    %cst_249 = arith.constant dense<0.000000e+00> : vector<4xf32>
    %516 = vector.multi_reduction <add>, %515, %cst_249 [1] : vector<4x4xf32> to vector<4xf32>
    %517 = vector.shape_cast %516 : vector<4xf32> to vector<4x1xf32>
    %518 = vector.broadcast %517 : vector<4x1xf32> to vector<4x4xf32>
    %519 = arith.divf %515, %518 : vector<4x4xf32>
    %cst_250 = arith.constant dense<0.000000e+00> : vector<4x8xf32>
    %520 = tpu.matmul %519, %508, %cst_250 {dimension_numbers = #tpu.dot_dimension_numbers<[1], [0], [0], [1], [0, 0, 1, 1], [], []>} : vector<4x4xf32>, vector<4x8xf32>, vector<4x8xf32> -> vector<4x8xf32>
    %c0_251 = arith.constant 0 : index
    %c16_252 = arith.constant 16 : index
    %521 = vector.load %arg17[%c0_251, %c16_252] : memref<8x32xf32, #tpu.memory_space<vmem>>, vector<4x8xf32>
    tpu.vector_store %arg17[%c0_251, %c16_252], %520 {strides = array<i32>} : memref<8x32xf32, #tpu.memory_space<vmem>>, vector<4x8xf32>,
    %522 = vector.extract_strided_slice %465 {offsets = [0, 24], sizes = [4, 8], strides = [1, 1]} : vector<8x96xf32> to vector<4x8xf32>
    %cst_253 = arith.constant 0.353553385 : f32
    %523 = vector.broadcast %cst_253 : f32 to vector<4x8xf32>
    %524 = arith.mulf %522, %523 : vector<4x8xf32>
    %525 = vector.extract_strided_slice %465 {offsets = [0, 56], sizes = [4, 8], strides = [1, 1]} : vector<8x96xf32> to vector<4x8xf32>
    %526 = vector.extract_strided_slice %465 {offsets = [0, 88], sizes = [4, 8], strides = [1, 1]} : vector<8x96xf32> to vector<4x8xf32>
    %cst_254 = arith.constant dense<0.000000e+00> : vector<4x4xf32>
    %527 = tpu.matmul %524, %525, %cst_254 {dimension_numbers = #tpu.dot_dimension_numbers<[1], [1], [0], [0], [0, 0, 1, 0], [], []>} : vector<4x8xf32>, vector<4x8xf32>, vector<4x4xf32> -> vector<4x4xf32>
    %528 = arith.addf %527, %467 : vector<4x4xf32>
    %cst_255 = arith.constant dense<0xFF800000> : vector<4xf32>
    %529 = vector.multi_reduction <maximumf>, %528, %cst_255 [1] : vector<4x4xf32> to vector<4xf32>
    %530 = vector.shape_cast %529 : vector<4xf32> to vector<4x1xf32>
    %531 = vector.broadcast %530 : vector<4x1xf32> to vector<4x4xf32>
    %532 = arith.subf %528, %531 : vector<4x4xf32>
    %533 = math.exp %532 : vector<4x4xf32>
    %cst_256 = arith.constant dense<0.000000e+00> : vector<4xf32>
    %534 = vector.multi_reduction <add>, %533, %cst_256 [1] : vector<4x4xf32> to vector<4xf32>
    %535 = vector.shape_cast %534 : vector<4xf32> to vector<4x1xf32>
    %536 = vector.broadcast %535 : vector<4x1xf32> to vector<4x4xf32>
    %537 = arith.divf %533, %536 : vector<4x4xf32>
    %cst_257 = arith.constant dense<0.000000e+00> : vector<4x8xf32>
    %538 = tpu.matmul %537, %526, %cst_257 {dimension_numbers = #tpu.dot_dimension_numbers<[1], [0], [0], [1], [0, 0, 1, 1], [], []>} : vector<4x4xf32>, vector<4x8xf32>, vector<4x8xf32> -> vector<4x8xf32>
    %c0_258 = arith.constant 0 : index
    %c24_259 = arith.constant 24 : index
    %539 = vector.load %arg17[%c0_258, %c24_259] : memref<8x32xf32, #tpu.memory_space<vmem>>, vector<4x8xf32>
    tpu.vector_store %arg17[%c0_258, %c24_259], %538 {strides = array<i32>} : memref<8x32xf32, #tpu.memory_space<vmem>>, vector<4x8xf32>,
    %540 = vector.extract_strided_slice %465 {offsets = [4, 0], sizes = [4, 8], strides = [1, 1]} : vector<8x96xf32> to vector<4x8xf32>
    %cst_260 = arith.constant 0.353553385 : f32
    %541 = vector.broadcast %cst_260 : f32 to vector<4x8xf32>
    %542 = arith.mulf %540, %541 : vector<4x8xf32>
    %543 = vector.extract_strided_slice %465 {offsets = [4, 32], sizes = [4, 8], strides = [1, 1]} : vector<8x96xf32> to vector<4x8xf32>
    %544 = vector.extract_strided_slice %465 {offsets = [4, 64], sizes = [4, 8], strides = [1, 1]} : vector<8x96xf32> to vector<4x8xf32>
    %cst_261 = arith.constant dense<0.000000e+00> : vector<4x4xf32>
    %545 = tpu.matmul %542, %543, %cst_261 {dimension_numbers = #tpu.dot_dimension_numbers<[1], [1], [0], [0], [0, 0, 1, 0], [], []>} : vector<4x8xf32>, vector<4x8xf32>, vector<4x4xf32> -> vector<4x4xf32>
    %546 = arith.addf %545, %467 : vector<4x4xf32>
    %cst_262 = arith.constant dense<0xFF800000> : vector<4xf32>
    %547 = vector.multi_reduction <maximumf>, %546, %cst_262 [1] : vector<4x4xf32> to vector<4xf32>
    %548 = vector.shape_cast %547 : vector<4xf32> to vector<4x1xf32>
    %549 = vector.broadcast %548 : vector<4x1xf32> to vector<4x4xf32>
    %550 = arith.subf %546, %549 : vector<4x4xf32>
    %551 = math.exp %550 : vector<4x4xf32>
    %cst_263 = arith.constant dense<0.000000e+00> : vector<4xf32>
    %552 = vector.multi_reduction <add>, %551, %cst_263 [1] : vector<4x4xf32> to vector<4xf32>
    %553 = vector.shape_cast %552 : vector<4xf32> to vector<4x1xf32>
    %554 = vector.broadcast %553 : vector<4x1xf32> to vector<4x4xf32>
    %555 = arith.divf %551, %554 : vector<4x4xf32>
    %cst_264 = arith.constant dense<0.000000e+00> : vector<4x8xf32>
    %556 = tpu.matmul %555, %544, %cst_264 {dimension_numbers = #tpu.dot_dimension_numbers<[1], [0], [0], [1], [0, 0, 1, 1], [], []>} : vector<4x4xf32>, vector<4x8xf32>, vector<4x8xf32> -> vector<4x8xf32>
    %c4_265 = arith.constant 4 : index
    %c0_266 = arith.constant 0 : index
    %557 = vector.load %arg17[%c4_265, %c0_266] : memref<8x32xf32, #tpu.memory_space<vmem>>, vector<4x8xf32>
    tpu.vector_store %arg17[%c4_265, %c0_266], %556 {strides = array<i32>} : memref<8x32xf32, #tpu.memory_space<vmem>>, vector<4x8xf32>,
    %558 = vector.extract_strided_slice %465 {offsets = [4, 8], sizes = [4, 8], strides = [1, 1]} : vector<8x96xf32> to vector<4x8xf32>
    %cst_267 = arith.constant 0.353553385 : f32
    %559 = vector.broadcast %cst_267 : f32 to vector<4x8xf32>
    %560 = arith.mulf %558, %559 : vector<4x8xf32>
    %561 = vector.extract_strided_slice %465 {offsets = [4, 40], sizes = [4, 8], strides = [1, 1]} : vector<8x96xf32> to vector<4x8xf32>
    %562 = vector.extract_strided_slice %465 {offsets = [4, 72], sizes = [4, 8], strides = [1, 1]} : vector<8x96xf32> to vector<4x8xf32>
    %cst_268 = arith.constant dense<0.000000e+00> : vector<4x4xf32>
    %563 = tpu.matmul %560, %561, %cst_268 {dimension_numbers = #tpu.dot_dimension_numbers<[1], [1], [0], [0], [0, 0, 1, 0], [], []>} : vector<4x8xf32>, vector<4x8xf32>, vector<4x4xf32> -> vector<4x4xf32>
    %564 = arith.addf %563, %467 : vector<4x4xf32>
    %cst_269 = arith.constant dense<0xFF800000> : vector<4xf32>
    %565 = vector.multi_reduction <maximumf>, %564, %cst_269 [1] : vector<4x4xf32> to vector<4xf32>
    %566 = vector.shape_cast %565 : vector<4xf32> to vector<4x1xf32>
    %567 = vector.broadcast %566 : vector<4x1xf32> to vector<4x4xf32>
    %568 = arith.subf %564, %567 : vector<4x4xf32>
    %569 = math.exp %568 : vector<4x4xf32>
    %cst_270 = arith.constant dense<0.000000e+00> : vector<4xf32>
    %570 = vector.multi_reduction <add>, %569, %cst_270 [1] : vector<4x4xf32> to vector<4xf32>
    %571 = vector.shape_cast %570 : vector<4xf32> to vector<4x1xf32>
    %572 = vector.broadcast %571 : vector<4x1xf32> to vector<4x4xf32>
    %573 = arith.divf %569, %572 : vector<4x4xf32>
    %cst_271 = arith.constant dense<0.000000e+00> : vector<4x8xf32>
    %574 = tpu.matmul %573, %562, %cst_271 {dimension_numbers = #tpu.dot_dimension_numbers<[1], [0], [0], [1], [0, 0, 1, 1], [], []>} : vector<4x4xf32>, vector<4x8xf32>, vector<4x8xf32> -> vector<4x8xf32>
    %c4_272 = arith.constant 4 : index
    %c8_273 = arith.constant 8 : index
    %575 = vector.load %arg17[%c4_272, %c8_273] : memref<8x32xf32, #tpu.memory_space<vmem>>, vector<4x8xf32>
    tpu.vector_store %arg17[%c4_272, %c8_273], %574 {strides = array<i32>} : memref<8x32xf32, #tpu.memory_space<vmem>>, vector<4x8xf32>,
    %576 = vector.extract_strided_slice %465 {offsets = [4, 16], sizes = [4, 8], strides = [1, 1]} : vector<8x96xf32> to vector<4x8xf32>
    %cst_274 = arith.constant 0.353553385 : f32
    %577 = vector.broadcast %cst_274 : f32 to vector<4x8xf32>
    %578 = arith.mulf %576, %577 : vector<4x8xf32>
    %579 = vector.extract_strided_slice %465 {offsets = [4, 48], sizes = [4, 8], strides = [1, 1]} : vector<8x96xf32> to vector<4x8xf32>
    %580 = vector.extract_strided_slice %465 {offsets = [4, 80], sizes = [4, 8], strides = [1, 1]} : vector<8x96xf32> to vector<4x8xf32>
    %cst_275 = arith.constant dense<0.000000e+00> : vector<4x4xf32>
    %581 = tpu.matmul %578, %579, %cst_275 {dimension_numbers = #tpu.dot_dimension_numbers<[1], [1], [0], [0], [0, 0, 1, 0], [], []>} : vector<4x8xf32>, vector<4x8xf32>, vector<4x4xf32> -> vector<4x4xf32>
    %582 = arith.addf %581, %467 : vector<4x4xf32>
    %cst_276 = arith.constant dense<0xFF800000> : vector<4xf32>
    %583 = vector.multi_reduction <maximumf>, %582, %cst_276 [1] : vector<4x4xf32> to vector<4xf32>
    %584 = vector.shape_cast %583 : vector<4xf32> to vector<4x1xf32>
    %585 = vector.broadcast %584 : vector<4x1xf32> to vector<4x4xf32>
    %586 = arith.subf %582, %585 : vector<4x4xf32>
    %587 = math.exp %586 : vector<4x4xf32>
    %cst_277 = arith.constant dense<0.000000e+00> : vector<4xf32>
    %588 = vector.multi_reduction <add>, %587, %cst_277 [1] : vector<4x4xf32> to vector<4xf32>
    %589 = vector.shape_cast %588 : vector<4xf32> to vector<4x1xf32>
    %590 = vector.broadcast %589 : vector<4x1xf32> to vector<4x4xf32>
    %591 = arith.divf %587, %590 : vector<4x4xf32>
    %cst_278 = arith.constant dense<0.000000e+00> : vector<4x8xf32>
    %592 = tpu.matmul %591, %580, %cst_278 {dimension_numbers = #tpu.dot_dimension_numbers<[1], [0], [0], [1], [0, 0, 1, 1], [], []>} : vector<4x4xf32>, vector<4x8xf32>, vector<4x8xf32> -> vector<4x8xf32>
    %c4_279 = arith.constant 4 : index
    %c16_280 = arith.constant 16 : index
    %593 = vector.load %arg17[%c4_279, %c16_280] : memref<8x32xf32, #tpu.memory_space<vmem>>, vector<4x8xf32>
    tpu.vector_store %arg17[%c4_279, %c16_280], %592 {strides = array<i32>} : memref<8x32xf32, #tpu.memory_space<vmem>>, vector<4x8xf32>,
    %594 = vector.extract_strided_slice %465 {offsets = [4, 24], sizes = [4, 8], strides = [1, 1]} : vector<8x96xf32> to vector<4x8xf32>
    %cst_281 = arith.constant 0.353553385 : f32
    %595 = vector.broadcast %cst_281 : f32 to vector<4x8xf32>
    %596 = arith.mulf %594, %595 : vector<4x8xf32>
    %597 = vector.extract_strided_slice %465 {offsets = [4, 56], sizes = [4, 8], strides = [1, 1]} : vector<8x96xf32> to vector<4x8xf32>
    %598 = vector.extract_strided_slice %465 {offsets = [4, 88], sizes = [4, 8], strides = [1, 1]} : vector<8x96xf32> to vector<4x8xf32>
    %cst_282 = arith.constant dense<0.000000e+00> : vector<4x4xf32>
    %599 = tpu.matmul %596, %597, %cst_282 {dimension_numbers = #tpu.dot_dimension_numbers<[1], [1], [0], [0], [0, 0, 1, 0], [], []>} : vector<4x8xf32>, vector<4x8xf32>, vector<4x4xf32> -> vector<4x4xf32>
    %600 = arith.addf %599, %467 : vector<4x4xf32>
    %cst_283 = arith.constant dense<0xFF800000> : vector<4xf32>
    %601 = vector.multi_reduction <maximumf>, %600, %cst_283 [1] : vector<4x4xf32> to vector<4xf32>
    %602 = vector.shape_cast %601 : vector<4xf32> to vector<4x1xf32>
    %603 = vector.broadcast %602 : vector<4x1xf32> to vector<4x4xf32>
    %604 = arith.subf %600, %603 : vector<4x4xf32>
    %605 = math.exp %604 : vector<4x4xf32>
    %cst_284 = arith.constant dense<0.000000e+00> : vector<4xf32>
    %606 = vector.multi_reduction <add>, %605, %cst_284 [1] : vector<4x4xf32> to vector<4xf32>
    %607 = vector.shape_cast %606 : vector<4xf32> to vector<4x1xf32>
    %608 = vector.broadcast %607 : vector<4x1xf32> to vector<4x4xf32>
    %609 = arith.divf %605, %608 : vector<4x4xf32>
    %cst_285 = arith.constant dense<0.000000e+00> : vector<4x8xf32>
    %610 = tpu.matmul %609, %598, %cst_285 {dimension_numbers = #tpu.dot_dimension_numbers<[1], [0], [0], [1], [0, 0, 1, 1], [], []>} : vector<4x4xf32>, vector<4x8xf32>, vector<4x8xf32> -> vector<4x8xf32>
    %c4_286 = arith.constant 4 : index
    %c24_287 = arith.constant 24 : index
    %611 = vector.load %arg17[%c4_286, %c24_287] : memref<8x32xf32, #tpu.memory_space<vmem>>, vector<4x8xf32>
    tpu.vector_store %arg17[%c4_286, %c24_287], %610 {strides = array<i32>} : memref<8x32xf32, #tpu.memory_space<vmem>>, vector<4x8xf32>,
    %c0_288 = arith.constant 0 : index
    %c0_289 = arith.constant 0 : index
    %612 = vector.load %arg17[%c0_288, %c0_289] : memref<8x32xf32, #tpu.memory_space<vmem>>, vector<8x32xf32>
    %c2_290 = arith.constant 2 : index
    %c0_291 = arith.constant 0 : index
    %c0_292 = arith.constant 0 : index
    %613 = vector.load %arg6[%c2_290, %c0_291, %c0_292] : memref<3x32x32xf32, #tpu.memory_space<vmem>>, vector<1x32x32xf32>
    %614 = vector.shape_cast %613 : vector<1x32x32xf32> to vector<32x32xf32>
    %cst_293 = arith.constant dense<0.000000e+00> : vector<8x32xf32>
    %615 = tpu.matmul %612, %614, %cst_293 {dimension_numbers = #tpu.dot_dimension_numbers<[1], [0], [0], [1], [0, 0, 1, 1], [], []>} : vector<8x32xf32>, vector<32x32xf32>, vector<8x32xf32> -> vector<8x32xf32>
    %c2_294 = arith.constant 2 : index
    %c0_295 = arith.constant 0 : index
    %c0_296 = arith.constant 0 : index
    %616 = vector.load %arg7[%c2_294, %c0_295, %c0_296] : memref<3x1x32xf32, #tpu.memory_space<vmem>>, vector<1x1x32xf32>
    %617 = vector.shape_cast %616 : vector<1x1x32xf32> to vector<1x32xf32>
    %618 = vector.broadcast %617 : vector<1x32xf32> to vector<8x32xf32>
    %619 = arith.addf %615, %618 : vector<8x32xf32>
    %620 = arith.addf %458, %619 : vector<8x32xf32>
    %c2_297 = arith.constant 2 : index
    %c0_298 = arith.constant 0 : index
    %c0_299 = arith.constant 0 : index
    %621 = vector.load %arg8[%c2_297, %c0_298, %c0_299] : memref<3x1x32xf32, #tpu.memory_space<vmem>>, vector<1x1x32xf32>
    %622 = vector.shape_cast %621 : vector<1x1x32xf32> to vector<1x32xf32>
    %c2_300 = arith.constant 2 : index
    %c0_301 = arith.constant 0 : index
    %c0_302 = arith.constant 0 : index
    %623 = vector.load %arg9[%c2_300, %c0_301, %c0_302] : memref<3x1x32xf32, #tpu.memory_space<vmem>>, vector<1x1x32xf32>
    %624 = vector.shape_cast %623 : vector<1x1x32xf32> to vector<1x32xf32>
    %cst_303 = arith.constant dense<0.000000e+00> : vector<8xf32>
    %625 = vector.multi_reduction <add>, %620, %cst_303 [1] : vector<8x32xf32> to vector<8xf32>
    %626 = vector.shape_cast %625 : vector<8xf32> to vector<8x1xf32>
    %cst_304 = arith.constant 3.200000e+01 : f32
    %627 = vector.broadcast %cst_304 : f32 to vector<8x1xf32>
    %628 = arith.divf %626, %627 : vector<8x1xf32>
    %629 = vector.broadcast %628 : vector<8x1xf32> to vector<8x32xf32>
    %630 = arith.subf %620, %629 : vector<8x32xf32>
    %631 = arith.mulf %630, %630 : vector<8x32xf32>
    %cst_305 = arith.constant dense<0.000000e+00> : vector<8xf32>
    %632 = vector.multi_reduction <add>, %631, %cst_305 [1] : vector<8x32xf32> to vector<8xf32>
    %633 = vector.shape_cast %632 : vector<8xf32> to vector<8x1xf32>
    %cst_306 = arith.constant 3.200000e+01 : f32
    %634 = vector.broadcast %cst_306 : f32 to vector<8x1xf32>
    %635 = arith.divf %633, %634 : vector<8x1xf32>
    %cst_307 = arith.constant 9.99999974E-6 : f32
    %636 = vector.broadcast %cst_307 : f32 to vector<8x1xf32>
    %637 = arith.addf %635, %636 : vector<8x1xf32>
    %638 = math.rsqrt %637 : vector<8x1xf32>
    %639 = vector.broadcast %638 : vector<8x1xf32> to vector<8x32xf32>
    %640 = arith.mulf %630, %639 : vector<8x32xf32>
    %641 = vector.broadcast %622 : vector<1x32xf32> to vector<8x32xf32>
    %642 = arith.mulf %640, %641 : vector<8x32xf32>
    %643 = vector.broadcast %624 : vector<1x32xf32> to vector<8x32xf32>
    %644 = arith.addf %642, %643 : vector<8x32xf32>
    %c2_308 = arith.constant 2 : index
    %c0_309 = arith.constant 0 : index
    %c0_310 = arith.constant 0 : index
    %645 = vector.load %arg10[%c2_308, %c0_309, %c0_310] : memref<3x32x64xf32, #tpu.memory_space<vmem>>, vector<1x32x64xf32>
    %646 = vector.shape_cast %645 : vector<1x32x64xf32> to vector<32x64xf32>
    %cst_311 = arith.constant dense<0.000000e+00> : vector<8x64xf32>
    %647 = tpu.matmul %644, %646, %cst_311 {dimension_numbers = #tpu.dot_dimension_numbers<[1], [0], [0], [1], [0, 0, 1, 1], [], []>} : vector<8x32xf32>, vector<32x64xf32>, vector<8x64xf32> -> vector<8x64xf32>
    %c2_312 = arith.constant 2 : index
    %c0_313 = arith.constant 0 : index
    %c0_314 = arith.constant 0 : index
    %648 = vector.load %arg11[%c2_312, %c0_313, %c0_314] : memref<3x1x64xf32, #tpu.memory_space<vmem>>, vector<1x1x64xf32>
    %649 = vector.shape_cast %648 : vector<1x1x64xf32> to vector<1x64xf32>
    %650 = vector.broadcast %649 : vector<1x64xf32> to vector<8x64xf32>
    %651 = arith.addf %647, %650 : vector<8x64xf32>
    %cst_315 = arith.constant 0.000000e+00 : f32
    %652 = vector.broadcast %cst_315 : f32 to vector<8x64xf32>
    %653 = arith.maximumf %651, %652 : vector<8x64xf32>
    %c2_316 = arith.constant 2 : index
    %c0_317 = arith.constant 0 : index
    %c0_318 = arith.constant 0 : index
    %654 = vector.load %arg12[%c2_316, %c0_317, %c0_318] : memref<3x64x32xf32, #tpu.memory_space<vmem>>, vector<1x64x32xf32>
    %655 = vector.shape_cast %654 : vector<1x64x32xf32> to vector<64x32xf32>
    %cst_319 = arith.constant dense<0.000000e+00> : vector<8x32xf32>
    %656 = tpu.matmul %653, %655, %cst_319 {dimension_numbers = #tpu.dot_dimension_numbers<[1], [0], [0], [1], [0, 0, 1, 1], [], []>} : vector<8x64xf32>, vector<64x32xf32>, vector<8x32xf32> -> vector<8x32xf32>
    %c2_320 = arith.constant 2 : index
    %c0_321 = arith.constant 0 : index
    %c0_322 = arith.constant 0 : index
    %657 = vector.load %arg13[%c2_320, %c0_321, %c0_322] : memref<3x1x32xf32, #tpu.memory_space<vmem>>, vector<1x1x32xf32>
    %658 = vector.shape_cast %657 : vector<1x1x32xf32> to vector<1x32xf32>
    %659 = vector.broadcast %658 : vector<1x32xf32> to vector<8x32xf32>
    %660 = arith.addf %656, %659 : vector<8x32xf32>
    %661 = arith.addf %644, %660 : vector<8x32xf32>
    %c2_323 = arith.constant 2 : index
    %c0_324 = arith.constant 0 : index
    %c0_325 = arith.constant 0 : index
    %662 = vector.load %arg14[%c2_323, %c0_324, %c0_325] : memref<3x1x32xf32, #tpu.memory_space<vmem>>, vector<1x1x32xf32>
    %663 = vector.shape_cast %662 : vector<1x1x32xf32> to vector<1x32xf32>
    %c2_326 = arith.constant 2 : index
    %c0_327 = arith.constant 0 : index
    %c0_328 = arith.constant 0 : index
    %664 = vector.load %arg15[%c2_326, %c0_327, %c0_328] : memref<3x1x32xf32, #tpu.memory_space<vmem>>, vector<1x1x32xf32>
    %665 = vector.shape_cast %664 : vector<1x1x32xf32> to vector<1x32xf32>
    %cst_329 = arith.constant dense<0.000000e+00> : vector<8xf32>
    %666 = vector.multi_reduction <add>, %661, %cst_329 [1] : vector<8x32xf32> to vector<8xf32>
    %667 = vector.shape_cast %666 : vector<8xf32> to vector<8x1xf32>
    %cst_330 = arith.constant 3.200000e+01 : f32
    %668 = vector.broadcast %cst_330 : f32 to vector<8x1xf32>
    %669 = arith.divf %667, %668 : vector<8x1xf32>
    %670 = vector.broadcast %669 : vector<8x1xf32> to vector<8x32xf32>
    %671 = arith.subf %661, %670 : vector<8x32xf32>
    %672 = arith.mulf %671, %671 : vector<8x32xf32>
    %cst_331 = arith.constant dense<0.000000e+00> : vector<8xf32>
    %673 = vector.multi_reduction <add>, %672, %cst_331 [1] : vector<8x32xf32> to vector<8xf32>
    %674 = vector.shape_cast %673 : vector<8xf32> to vector<8x1xf32>
    %cst_332 = arith.constant 3.200000e+01 : f32
    %675 = vector.broadcast %cst_332 : f32 to vector<8x1xf32>
    %676 = arith.divf %674, %675 : vector<8x1xf32>
    %cst_333 = arith.constant 9.99999974E-6 : f32
    %677 = vector.broadcast %cst_333 : f32 to vector<8x1xf32>
    %678 = arith.addf %676, %677 : vector<8x1xf32>
    %679 = math.rsqrt %678 : vector<8x1xf32>
    %680 = vector.broadcast %679 : vector<8x1xf32> to vector<8x32xf32>
    %681 = arith.mulf %671, %680 : vector<8x32xf32>
    %682 = vector.broadcast %663 : vector<1x32xf32> to vector<8x32xf32>
    %683 = arith.mulf %681, %682 : vector<8x32xf32>
    %684 = vector.broadcast %665 : vector<1x32xf32> to vector<8x32xf32>
    %685 = arith.addf %683, %684 : vector<8x32xf32>
    %686 = vector.shape_cast %685 : vector<8x32xf32> to vector<2x4x32xf32>
    %c0_334 = arith.constant 0 : index
    %c0_335 = arith.constant 0 : index
    %c0_336 = arith.constant 0 : index
    %687 = vector.load %arg16[%c0_334, %c0_335, %c0_336] : memref<2x4x32xf32, #tpu.memory_space<vmem>>, vector<2x4x32xf32>
    tpu.vector_store %arg16[%c0_334, %c0_335, %c0_336], %686 {strides = array<i32>} : memref<2x4x32xf32, #tpu.memory_space<vmem>>, vector<2x4x32xf32>,
    return
  }
  func.func @transform_0(%arg0: i32) -> (i32, i32, i32) {
    %c0_i32 = arith.constant 0 : i32
    %c0_i32_0 = arith.constant 0 : i32
    %c0_i32_1 = arith.constant 0 : i32
    %c0_i32_2 = arith.constant 0 : i32
    return %c0_i32, %c0_i32_0, %c0_i32_1 : i32, i32, i32
  }
  func.func @transform_1(%arg0: i32) -> (i32, i32, i32) {
    %c0_i32 = arith.constant 0 : i32
    %c0_i32_0 = arith.constant 0 : i32
    %c0_i32_1 = arith.constant 0 : i32
    %c0_i32_2 = arith.constant 0 : i32
    return %c0_i32, %c0_i32_0, %c0_i32_1 : i32, i32, i32
  }
  func.func @transform_2(%arg0: i32) -> (i32, i32, i32) {
    %c0_i32 = arith.constant 0 : i32
    %c0_i32_0 = arith.constant 0 : i32
    %c0_i32_1 = arith.constant 0 : i32
    %c0_i32_2 = arith.constant 0 : i32
    return %c0_i32, %c0_i32_0, %c0_i32_1 : i32, i32, i32
  }
  func.func @transform_3(%arg0: i32) -> (i32, i32, i32) {
    %c0_i32 = arith.constant 0 : i32
    %c0_i32_0 = arith.constant 0 : i32
    %c0_i32_1 = arith.constant 0 : i32
    %c0_i32_2 = arith.constant 0 : i32
    return %c0_i32, %c0_i32_0, %c0_i32_1 : i32, i32, i32
  }
  func.func @transform_4(%arg0: i32) -> (i32, i32, i32) {
    %c0_i32 = arith.constant 0 : i32
    %c0_i32_0 = arith.constant 0 : i32
    %c0_i32_1 = arith.constant 0 : i32
    %c0_i32_2 = arith.constant 0 : i32
    return %c0_i32, %c0_i32_0, %c0_i32_1 : i32, i32, i32
  }
  func.func @transform_5(%arg0: i32) -> (i32, i32, i32) {
    %c0_i32 = arith.constant 0 : i32
    %c0_i32_0 = arith.constant 0 : i32
    %c0_i32_1 = arith.constant 0 : i32
    %c0_i32_2 = arith.constant 0 : i32
    return %c0_i32, %c0_i32_0, %c0_i32_1 : i32, i32, i32
  }
  func.func @transform_6(%arg0: i32) -> (i32, i32, i32) {
    %c0_i32 = arith.constant 0 : i32
    %c0_i32_0 = arith.constant 0 : i32
    %c0_i32_1 = arith.constant 0 : i32
    %c0_i32_2 = arith.constant 0 : i32
    return %c0_i32, %c0_i32_0, %c0_i32_1 : i32, i32, i32
  }
  func.func @transform_7(%arg0: i32) -> (i32, i32, i32) {
    %c0_i32 = arith.constant 0 : i32
    %c0_i32_0 = arith.constant 0 : i32
    %c0_i32_1 = arith.constant 0 : i32
    %c0_i32_2 = arith.constant 0 : i32
    return %c0_i32, %c0_i32_0, %c0_i32_1 : i32, i32, i32
  }
  func.func @transform_8(%arg0: i32) -> (i32, i32, i32) {
    %c0_i32 = arith.constant 0 : i32
    %c0_i32_0 = arith.constant 0 : i32
    %c0_i32_1 = arith.constant 0 : i32
    %c0_i32_2 = arith.constant 0 : i32
    return %c0_i32, %c0_i32_0, %c0_i32_1 : i32, i32, i32
  }
  func.func @transform_9(%arg0: i32) -> (i32, i32, i32) {
    %c0_i32 = arith.constant 0 : i32
    %c0_i32_0 = arith.constant 0 : i32
    %c0_i32_1 = arith.constant 0 : i32
    %c0_i32_2 = arith.constant 0 : i32
    return %c0_i32, %c0_i32_0, %c0_i32_1 : i32, i32, i32
  }
  func.func @transform_10(%arg0: i32) -> (i32, i32, i32) {
    %c0_i32 = arith.constant 0 : i32
    %c0_i32_0 = arith.constant 0 : i32
    %c0_i32_1 = arith.constant 0 : i32
    %c0_i32_2 = arith.constant 0 : i32
    return %c0_i32, %c0_i32_0, %c0_i32_1 : i32, i32, i32
  }
  func.func @transform_11(%arg0: i32) -> (i32, i32, i32) {
    %c0_i32 = arith.constant 0 : i32
    %c0_i32_0 = arith.constant 0 : i32
    %c0_i32_1 = arith.constant 0 : i32
    %c0_i32_2 = arith.constant 0 : i32
    return %c0_i32, %c0_i32_0, %c0_i32_1 : i32, i32, i32
  }
  func.func @transform_12(%arg0: i32) -> (i32, i32, i32) {
    %c0_i32 = arith.constant 0 : i32
    %c0_i32_0 = arith.constant 0 : i32
    %c0_i32_1 = arith.constant 0 : i32
    %c0_i32_2 = arith.constant 0 : i32
    return %c0_i32, %c0_i32_0, %c0_i32_1 : i32, i32, i32
  }
  func.func @transform_13(%arg0: i32) -> (i32, i32, i32) {
    %c0_i32 = arith.constant 0 : i32
    %c0_i32_0 = arith.constant 0 : i32
    %c0_i32_1 = arith.constant 0 : i32
    %c0_i32_2 = arith.constant 0 : i32
    return %c0_i32, %c0_i32_0, %c0_i32_1 : i32, i32, i32
  }
  func.func @transform_14(%arg0: i32) -> (i32, i32, i32) {
    %c0_i32 = arith.constant 0 : i32
    %c0_i32_0 = arith.constant 0 : i32
    %c0_i32_1 = arith.constant 0 : i32
    %c0_i32_2 = arith.constant 0 : i32
    return %c0_i32, %c0_i32_0, %c0_i32_1 : i32, i32, i32
  }
  func.func @transform_15(%arg0: i32) -> (i32, i32, i32) {
    %c0_i32 = arith.constant 0 : i32
    %c0_i32_0 = arith.constant 0 : i32
    %c0_i32_1 = arith.constant 0 : i32
    %c0_i32_2 = arith.constant 0 : i32
    return %c0_i32, %c0_i32_0, %c0_i32_1 : i32, i32, i32
  }
}

</mosaic_0001>

<llo_original>
// kernel: tpu_custom_call.1
$region0: #{tpu_custom_call.1}
  #allocation0 [shape = 'u32[]', space=smem, size = 0x4, offset = 0x4, fixed_abs, tag = 'smem constant byte address 0x4 - core index']
  #allocation1 [shape = 'u32[144,128]{1,0:T(1,128)}', space=vmem, size = 0x12000, scoped, tag = 'internal scratch']
  #allocation2 [shape = 'f32[8,32]{1,0:T(8,128)}', space=vmem, size = 0x1000, scoped, tag = 'scratch operand']
  %s0 = inlined_call_operand.hbm [shape: f32[2,4,32], index: 0, kind: input, shape index: {}]
  %s1 = inlined_call_operand.hbm [shape: f32[1,4,32], index: 1, kind: input, shape index: {}]
  %s2 = inlined_call_operand.hbm [shape: f32[3,4,4], index: 2, kind: input, shape index: {}]
  %s3 = inlined_call_operand.vmem [shape: f32[3,32,96], index: 3, kind: input, shape index: {}]
  %s4 = inlined_call_operand.vmem [shape: f32[3,1,96], index: 4, kind: input, shape index: {}]
  %s5 = inlined_call_operand.vmem [shape: f32[3,32,32], index: 5, kind: input, shape index: {}]
  %s6 = inlined_call_operand.vmem [shape: f32[3,1,32], index: 6, kind: input, shape index: {}]
  %s7 = inlined_call_operand.vmem [shape: f32[3,1,32], index: 7, kind: input, shape index: {}]
  %s8 = inlined_call_operand.vmem [shape: f32[3,1,32], index: 8, kind: input, shape index: {}]
  %s9 = inlined_call_operand.vmem [shape: f32[3,32,64], index: 9, kind: input, shape index: {}]
  %s10 = inlined_call_operand.vmem [shape: f32[3,1,64], index: 10, kind: input, shape index: {}]
  %s11 = inlined_call_operand.vmem [shape: f32[3,64,32], index: 11, kind: input, shape index: {}]
  %s12 = inlined_call_operand.vmem [shape: f32[3,1,32], index: 12, kind: input, shape index: {}]
  %s13 = inlined_call_operand.vmem [shape: f32[3,1,32], index: 13, kind: input, shape index: {}]
  %s14 = inlined_call_operand.vmem [shape: f32[3,1,32], index: 14, kind: input, shape index: {}]
  %s15 = inlined_call_operand.hbm [shape: f32[2,4,32], index: 15, kind: output, shape index: {}]
  %s16 = sld [smem:[#allocation0]]
  $region82: #{tpu_custom_call.1} parent=0
    _
  %s18 = ssub.s32 1, %s16
  %s19 = scalar_select 0, %s18, %s16
  $region1: #{tpu_custom_call.1} parent=0
    #allocation3 [shape = 'u8[4096]{0}', space=vmem, size = 0x1000, scoped, tag = 'input window, operand 0, single buffered']
    #allocation4 [shape = 's32[1]{0}', space=sflag, size = 0x4, scoped, tag = 'scoped memory for tpu_custom_call.1']
    #allocation5 [shape = 's32[1]{0}', space=sflag, size = 0x4, scoped, tag = 'scoped memory for tpu_custom_call.1']
    #allocation6 [shape = 'u8[2048]{0}', space=vmem, size = 0x800, scoped, tag = 'input window, operand 1, single buffered']
    #allocation7 [shape = 's32[1]{0}', space=sflag, size = 0x4, scoped, tag = 'scoped memory for tpu_custom_call.1']
    #allocation8 [shape = 'u8[6144]{0}', space=vmem, size = 0x1800, scoped, tag = 'input window, operand 2, single buffered']
    #allocation9 [shape = 'u8[4096]{0}', space=vmem, size = 0x1000, scoped, tag = 'output window, operand 0, single buffered']
    %20 = vsyncpa [#allocation4], 0
    %21 = vsyncpa [#allocation7], 0
    %22 = vsyncpa [#allocation5], 0
    // Predicated region
    $region2: #{tpu_custom_call.1} parent=1 // pred_check
      _
    $region3: #{tpu_custom_call.1} parent=1 // pred_check_branch
      %24 = sbr.rel (0) target = $region5
    $region4: #{tpu_custom_call.1} parent=1 // pred_region
      %s26 = ssub.s32 128, 128
      %27 = vsyncadd [#allocation4], %s26
      %s28 = sshll.u32 [#allocation3], 4
      %s29 = int_to_ptr.vmem [resolvable:$true] %s28
      %34 = dma.hbm_to_vmem [thread:$0]  %s0, 128, %s29, [#allocation4], 64, 64, 4
    $region5: #{tpu_custom_call.1} parent=1 // pred_fallthru
      _
    // Predicated region
    $region6: #{tpu_custom_call.1} parent=1 // pred_check
      _
    $region7: #{tpu_custom_call.1} parent=1 // pred_check_branch
      %36 = sbr.rel (0) target = $region9
    $region8: #{tpu_custom_call.1} parent=1 // pred_region
      %s38 = ssub.s32 64, 64
      %39 = vsyncadd [#allocation7], %s38
      %s41 = sshll.u32 [#allocation6], 4
      %s42 = int_to_ptr.vmem [resolvable:$true] %s41
      %44 = dma.hbm_to_vmem [thread:$0]  %s1, 64, %s42, [#allocation7]
    $region9: #{tpu_custom_call.1} parent=1 // pred_fallthru
      _
    // Predicated region
    $region10: #{tpu_custom_call.1} parent=1 // pred_check
      _
    $region11: #{tpu_custom_call.1} parent=1 // pred_check_branch
      %46 = sbr.rel (0) target = $region13
    $region12: #{tpu_custom_call.1} parent=1 // pred_region
      %s48 = ssub.s32 192, 192
      %49 = vsyncadd [#allocation7], %s48
      %s50 = sshll.u32 [#allocation8], 4
      %s51 = int_to_ptr.vmem [resolvable:$true] %s50
      %56 = dma.hbm_to_vmem [thread:$0]  %s2, 192, %s51, [#allocation7], 64, 64, 4
    $region13: #{tpu_custom_call.1} parent=1 // pred_fallthru
      _
    // Predicated region
    $region14: #{tpu_custom_call.1} parent=1 // pred_check
      _
    $region15: #{tpu_custom_call.1} parent=1 // pred_check_branch
      %58 = sbr.rel (0) target = $region17
    $region16: #{tpu_custom_call.1} parent=1 // pred_region
      _
    $region17: #{tpu_custom_call.1} parent=1 // pred_fallthru
      _
    // Predicated region
    $region18: #{tpu_custom_call.1} parent=1 // pred_check
      _
    $region19: #{tpu_custom_call.1} parent=1 // pred_check_branch
      %60 = sbr.rel (0) target = $region21
    $region20: #{tpu_custom_call.1} parent=1 // pred_region
      _
    $region21: #{tpu_custom_call.1} parent=1 // pred_fallthru
      _
    // Predicated region
    $region22: #{tpu_custom_call.1} parent=1 // pred_check
      _
    $region23: #{tpu_custom_call.1} parent=1 // pred_check_branch
      %62 = sbr.rel (0) target = $region25
    $region24: #{tpu_custom_call.1} parent=1 // pred_region
      _
    $region25: #{tpu_custom_call.1} parent=1 // pred_fallthru
      _
    // Predicated region
    $region26: #{tpu_custom_call.1} parent=1 // pred_check
      _
    $region27: #{tpu_custom_call.1} parent=1 // pred_check_branch
      %64 = sbr.rel (0) target = $region29
    $region28: #{tpu_custom_call.1} parent=1 // pred_region
      _
    $region29: #{tpu_custom_call.1} parent=1 // pred_fallthru
      _
    // Predicated region
    $region30: #{tpu_custom_call.1} parent=1 // pred_check
      _
    $region31: #{tpu_custom_call.1} parent=1 // pred_check_branch
      %66 = sbr.rel (0) target = $region33
    $region32: #{tpu_custom_call.1} parent=1 // pred_region
      _
    $region33: #{tpu_custom_call.1} parent=1 // pred_fallthru
      _
    // Predicated region
    $region34: #{tpu_custom_call.1} parent=1 // pred_check
      _
    $region35: #{tpu_custom_call.1} parent=1 // pred_check_branch
      %68 = sbr.rel (0) target = $region37
    $region36: #{tpu_custom_call.1} parent=1 // pred_region
      _
    $region37: #{tpu_custom_call.1} parent=1 // pred_fallthru
      _
    // Predicated region
    $region38: #{tpu_custom_call.1} parent=1 // pred_check
      _
    $region39: #{tpu_custom_call.1} parent=1 // pred_check_branch
      %70 = sbr.rel (0) target = $region41
    $region40: #{tpu_custom_call.1} parent=1 // pred_region
      _
    $region41: #{tpu_custom_call.1} parent=1 // pred_fallthru
      _
    // Predicated region
    $region42: #{tpu_custom_call.1} parent=1 // pred_check
      _
    $region43: #{tpu_custom_call.1} parent=1 // pred_check_branch
      %72 = sbr.rel (0) target = $region45
    $region44: #{tpu_custom_call.1} parent=1 // pred_region
      _
    $region45: #{tpu_custom_call.1} parent=1 // pred_fallthru
      _
    // Predicated region
    $region46: #{tpu_custom_call.1} parent=1 // pred_check
      _
    $region47: #{tpu_custom_call.1} parent=1 // pred_check_branch
      %74 = sbr.rel (0) target = $region49
    $region48: #{tpu_custom_call.1} parent=1 // pred_region
      _
    $region49: #{tpu_custom_call.1} parent=1 // pred_fallthru
      _
    // Predicated region
    $region50: #{tpu_custom_call.1} parent=1 // pred_check
      _
    $region51: #{tpu_custom_call.1} parent=1 // pred_check_branch
      %76 = sbr.rel (0) target = $region53
    $region52: #{tpu_custom_call.1} parent=1 // pred_region
      _
    $region53: #{tpu_custom_call.1} parent=1 // pred_fallthru
      _
    // Predicated region
    $region54: #{tpu_custom_call.1} parent=1 // pred_check
      _
    $region55: #{tpu_custom_call.1} parent=1 // pred_check_branch
      %78 = sbr.rel (0) target = $region57
    $region56: #{tpu_custom_call.1} parent=1 // pred_region
      _
    $region57: #{tpu_custom_call.1} parent=1 // pred_fallthru
      _
    // Predicated region
    $region58: #{tpu_custom_call.1} parent=1 // pred_check
      _
    $region59: #{tpu_custom_call.1} parent=1 // pred_check_branch
      %80 = sbr.rel (0) target = $region61
    $region60: #{tpu_custom_call.1} parent=1 // pred_region
      _
    $region61: #{tpu_custom_call.1} parent=1 // pred_fallthru
      _
    // Predicated region
    $region62: #{tpu_custom_call.1} parent=1 // pred_check
      _
    $region63: #{tpu_custom_call.1} parent=1 // pred_check_branch
      %82 = sbr.rel (0) target = $region65
    $region64: #{tpu_custom_call.1} parent=1 // pred_region
      %83 = dma.done [#allocation4], 128
    $region65: #{tpu_custom_call.1} parent=1 // pred_fallthru
      _
    // Predicated region
    $region66: #{tpu_custom_call.1} parent=1 // pred_check
      _
    $region67: #{tpu_custom_call.1} parent=1 // pred_check_branch
      %85 = sbr.rel (0) target = $region69
    $region68: #{tpu_custom_call.1} parent=1 // pred_region
      %86 = dma.done [#allocation7], 64
    $region69: #{tpu_custom_call.1} parent=1 // pred_fallthru
      _
    // Predicated region
    $region70: #{tpu_custom_call.1} parent=1 // pred_check
      _
    $region71: #{tpu_custom_call.1} parent=1 // pred_check_branch
      %88 = sbr.rel (0) target = $region73
    $region72: #{tpu_custom_call.1} parent=1 // pred_region
      %89 = dma.done [#allocation7], 192
    $region73: #{tpu_custom_call.1} parent=1 // pred_fallthru
      _
    %v90 = vld [vmem:[#allocation3] sm:$0xf]
    %v91 = vld [vmem:[#allocation3 + $0x4] sm:$0xf]
    %v92 = vld [vmem:[#allocation6] sm:$0xf]
    %v93 = vadd.f32 %v90, %v92
    %v94 = vadd.f32 %v91, %v92
    %v95 = vld [vmem:[%s3] sm:$0xff]
    %v96 = vld [vmem:[%s3 + $0x8] sm:$0xff]
    %v97 = vld [vmem:[%s3 + $0x10] sm:$0xff]
    %v98 = vld [vmem:[%s3 + $0x18] sm:$0xff]
    %v99 = vld [vmem:[%s4] sm:$0x1]
    %v101 = vlaneseq
    %v102 = vshrl.u32 %v101, 7
    %v103 = vsub.s32 0, %v102
    %v104 = vrot.slane %v99, %v103
    %v108 = vcombine.low %v93, %v94
    %vm109 = vcmask 261120
    %v110 = vsel %vm109, %v108, 0
    %112 = vmatprep.subr.mxu0 0.0
    %113 = vmatpush1.msra.mxu0 %v95
    %114 = vmatprep.subr.mxu0 0.0
    %115 = vmatpush1.msra.mxu0 %v96
    %116 = vmatprep.subr.mxu0 0.0
    %117 = vmatpush1.msra.mxu0 %v97
    %118 = vmatprep.subr.mxu0 0.0
    %119 = vmatpush1.msra.mxu0 %v98
    %120 = vmatprep.subr.mxu0 0.0
    %121 = vmatpush1.msra.mxu0 0.0
    %122 = vmatprep.subr.mxu0 0.0
    %123 = vmatpush1.msra.mxu0 0.0
    %124 = vmatprep.subr.mxu0 0.0
    %125 = vmatpush1.msra.mxu0 0.0
    %126 = vmatprep.subr.mxu0 0.0
    %127 = vmatpush1.msra.mxu0 0.0
    %128 = vmatprep.subr.mxu0 0.0
    %129 = vmatpush1.msra.mxu0 0.0
    %130 = vmatprep.subr.mxu0 0.0
    %131 = vmatpush1.msra.mxu0 0.0
    %132 = vmatprep.subr.mxu0 0.0
    %133 = vmatpush1.msra.mxu0 0.0
    %134 = vmatprep.subr.mxu0 0.0
    %135 = vmatpush1.msra.mxu0 0.0
    %136 = vmatprep.subr.mxu0 0.0
    %137 = vmatpush1.msra.mxu0 0.0
    %138 = vmatprep.subr.mxu0 0.0
    %139 = vmatpush1.msra.mxu0 0.0
    %140 = vmatprep.subr.mxu0 0.0
    %141 = vmatpush1.msra.mxu0 0.0
    %142 = vmatprep.subr.mxu0 0.0
    %143 = vmatpush1.msra.mxu0 0.0
    %144 = vmatprep.subr.mxu0 0.0
    %145 = vmatpush1.msra.mxu0 0.0
    %146 = vmatprep.subr.mxu0 0.0
    %147 = vmatpush1.msra.mxu0 0.0
    %148 = vmatprep.subr.mxu0 0.0
    %149 = vmatpush1.msra.mxu0 0.0
    %150 = vmatprep.subr.mxu0 0.0
    %151 = vmatpush1.msra.mxu0 0.0
    %152 = vmatprep.subr.mxu0 0.0
    %153 = vmatpush1.msra.mxu0 0.0
    %154 = vmatprep.subr.mxu0 0.0
    %155 = vmatpush1.msra.mxu0 0.0
    %156 = vmatprep.subr.mxu0 0.0
    %157 = vmatpush1.msra.mxu0 0.0
    %158 = vmatprep.subr.mxu0 0.0
    %159 = vmatpush1.msra.mxu0 0.0
    %160 = vmatprep.subr.mxu0 0.0
    %161 = vmatpush1.msra.mxu0 0.0
    %162 = vmatprep.subr.mxu0 0.0
    %163 = vmatpush1.msra.mxu0 0.0
    %164 = vmatprep.subr.mxu0 0.0
    %165 = vmatpush1.msra.mxu0 0.0
    %166 = vmatprep.subr.mxu0 0.0
    %167 = vmatpush1.msra.mxu0 0.0
    %168 = vmatprep.subr.mxu0 0.0
    %169 = vmatpush1.msra.mxu0 0.0
    %170 = vmatprep.subr.mxu0 0.0
    %171 = vmatpush1.msra.mxu0 0.0
    %172 = vmatprep.subr.mxu0 0.0
    %173 = vmatpush1.msra.mxu0 0.0
    %174 = vmatprep.subr.mxu0 0.0
    %175 = vmatpush1.msra.mxu0 0.0
    %176 = vmatprep.mubr.f32.mxu0 0.0
    %177 = vmatmul.mubr.f32.gmra.mrb[0].mxu0 %v110
    %v178 = vpop.f32.mrb[0].mxu0
    %v179 = vadd.f32 %v104, %v178
    %v180 = vpop.f32.mrb[0].mxu0
    %181 = vdwg.mxu0
    %v182 = vld [vmem:[#allocation8] sm:$0xf]
    %v183 = vmul.f32 %v179, 0.35355338
    %185 = vrot.lane.b32.xlu0 %v179, 96
    %v186 = vpop.permute.xlu0 %185
    %vm187 = vcmask 64512
    %v189 = vsel %vm187, %v183, 0
    %v191 = vsel %vm187, %v186, 0
    %193 = vmatprep.subr.mxu0 0.0
    %194 = vmatpush1.xpose.msra.mxu0 %v191
    %195 = vmatprep.subr.mxu0 0.0
    %196 = vmatpush1.xpose.msra.mxu0 0.0
    %197 = vmatprep.subr.mxu0 0.0
    %198 = vmatpush1.xpose.msra.mxu0 0.0
    %199 = vmatprep.subr.mxu0 0.0
    %200 = vmatpush1.xpose.msra.mxu0 0.0
    %201 = vmatprep.subr.mxu0 0.0
    %202 = vmatpush1.xpose.msra.mxu0 0.0
    %203 = vmatprep.subr.mxu0 0.0
    %204 = vmatpush1.xpose.msra.mxu0 0.0
    %205 = vmatprep.subr.mxu0 0.0
    %206 = vmatpush1.xpose.msra.mxu0 0.0
    %207 = vmatprep.subr.mxu0 0.0
    %208 = vmatpush1.xpose.msra.mxu0 0.0
    %209 = vmatprep.subr.mxu0 0.0
    %210 = vmatpush1.xpose.msra.mxu0 0.0
    %211 = vmatprep.subr.mxu0 0.0
    %212 = vmatpush1.xpose.msra.mxu0 0.0
    %213 = vmatprep.subr.mxu0 0.0
    %214 = vmatpush1.xpose.msra.mxu0 0.0
    %215 = vmatprep.subr.mxu0 0.0
    %216 = vmatpush1.xpose.msra.mxu0 0.0
    %217 = vmatprep.subr.mxu0 0.0
    %218 = vmatpush1.xpose.msra.mxu0 0.0
    %219 = vmatprep.subr.mxu0 0.0
    %220 = vmatpush1.xpose.msra.mxu0 0.0
    %221 = vmatprep.subr.mxu0 0.0
    %222 = vmatpush1.xpose.msra.mxu0 0.0
    %223 = vmatprep.subr.mxu0 0.0
    %224 = vmatpush1.xpose.msra.mxu0 0.0
    %225 = vmatprep.subr.mxu0 0.0
    %226 = vmatpush1.xpose.msra.mxu0 0.0
    %227 = vmatprep.subr.mxu0 0.0
    %228 = vmatpush1.xpose.msra.mxu0 0.0
    %229 = vmatprep.subr.mxu0 0.0
    %230 = vmatpush1.xpose.msra.mxu0 0.0
    %231 = vmatprep.subr.mxu0 0.0
    %232 = vmatpush1.xpose.msra.mxu0 0.0
    %233 = vmatprep.subr.mxu0 0.0
    %234 = vmatpush1.xpose.msra.mxu0 0.0
    %235 = vmatprep.subr.mxu0 0.0
    %236 = vmatpush1.xpose.msra.mxu0 0.0
    %237 = vmatprep.subr.mxu0 0.0
    %238 = vmatpush1.xpose.msra.mxu0 0.0
    %239 = vmatprep.subr.mxu0 0.0
    %240 = vmatpush1.xpose.msra.mxu0 0.0
    %241 = vmatprep.subr.mxu0 0.0
    %242 = vmatpush1.xpose.msra.mxu0 0.0
    %243 = vmatprep.subr.mxu0 0.0
    %244 = vmatpush1.xpose.msra.mxu0 0.0
    %245 = vmatprep.subr.mxu0 0.0
    %246 = vmatpush1.xpose.msra.mxu0 0.0
    %247 = vmatprep.subr.mxu0 0.0
    %248 = vmatpush1.xpose.msra.mxu0 0.0
    %249 = vmatprep.subr.mxu0 0.0
    %250 = vmatpush1.xpose.msra.mxu0 0.0
    %251 = vmatprep.subr.mxu0 0.0
    %252 = vmatpush1.xpose.msra.mxu0 0.0
    %253 = vmatprep.subr.mxu0 0.0
    %254 = vmatpush1.xpose.msra.mxu0 0.0
    %255 = vmatprep.subr.mxu0 0.0
    %256 = vmatpush1.xpose.msra.mxu0 0.0
    %257 = vmatprep.mubr.f32.mxu0 0.0
    %258 = vmatmul.mubr.f32.gmra.mrb[0].mxu0 %v189
    %v259 = vpop.f32.mrb[0].mxu0
    %v260 = vadd.f32 %v182, %v259
    %v261 = vpop.f32.mrb[0].mxu0
    %262 = vdwg.mxu0
    %vm263 = vcmask 27648
    %v264 = vsel %vm263, %v260, -inf
    %265 = vmax.xlane.f32.xlu0 %v264
    %v266 = vpop.xlane.xlu0 %265
    %v267 = vsub.f32 %v260, %v266
    %v268 = vmul.f32 %v267, 1.442695
    %v269 = vpow.pop %v268
    %v270 = vsel %vm263, %v269, 0.0
    %271 = vadd.xlane.f32.xlu0 %v270
    %v272 = vpop.xlane.xlu0 %271
    %v273 = vrcp.pop %v272
    %v274 = vmul.f32 %v269, %v273
    %275 = vrot.lane.b32.xlu0 %v179, 64
    %v276 = vpop.permute.xlu0 %275
    %vm277 = vcmask 31744
    %v279 = vsel %vm277, %v274, 0
    %vm281 = vcmask 1043456
    %v282 = vsel %vm281, %v276, 0
    %284 = vmatprep.subr.mxu0 0.0
    %285 = vmatpush1.msra.mxu0 %v282
    %286 = vmatprep.subr.mxu0 0.0
    %287 = vmatpush1.msra.mxu0 0.0
    %288 = vmatprep.subr.mxu0 0.0
    %289 = vmatpush1.msra.mxu0 0.0
    %290 = vmatprep.subr.mxu0 0.0
    %291 = vmatpush1.msra.mxu0 0.0
    %292 = vmatprep.subr.mxu0 0.0
    %293 = vmatpush1.msra.mxu0 0.0
    %294 = vmatprep.subr.mxu0 0.0
    %295 = vmatpush1.msra.mxu0 0.0
    %296 = vmatprep.subr.mxu0 0.0
    %297 = vmatpush1.msra.mxu0 0.0
    %298 = vmatprep.subr.mxu0 0.0
    %299 = vmatpush1.msra.mxu0 0.0
    %300 = vmatprep.subr.mxu0 0.0
    %301 = vmatpush1.msra.mxu0 0.0
    %302 = vmatprep.subr.mxu0 0.0
    %303 = vmatpush1.msra.mxu0 0.0
    %304 = vmatprep.subr.mxu0 0.0
    %305 = vmatpush1.msra.mxu0 0.0
    %306 = vmatprep.subr.mxu0 0.0
    %307 = vmatpush1.msra.mxu0 0.0
    %308 = vmatprep.subr.mxu0 0.0
    %309 = vmatpush1.msra.mxu0 0.0
    %310 = vmatprep.subr.mxu0 0.0
    %311 = vmatpush1.msra.mxu0 0.0
    %312 = vmatprep.subr.mxu0 0.0
    %313 = vmatpush1.msra.mxu0 0.0
    %314 = vmatprep.subr.mxu0 0.0
    %315 = vmatpush1.msra.mxu0 0.0
    %316 = vmatprep.subr.mxu0 0.0
    %317 = vmatpush1.msra.mxu0 0.0
    %318 = vmatprep.subr.mxu0 0.0
    %319 = vmatpush1.msra.mxu0 0.0
    %320 = vmatprep.subr.mxu0 0.0
    %321 = vmatpush1.msra.mxu0 0.0
    %322 = vmatprep.subr.mxu0 0.0
    %323 = vmatpush1.msra.mxu0 0.0
    %324 = vmatprep.subr.mxu0 0.0
    %325 = vmatpush1.msra.mxu0 0.0
    %326 = vmatprep.subr.mxu0 0.0
    %327 = vmatpush1.msra.mxu0 0.0
    %328 = vmatprep.subr.mxu0 0.0
    %329 = vmatpush1.msra.mxu0 0.0
    %330 = vmatprep.subr.mxu0 0.0
    %331 = vmatpush1.msra.mxu0 0.0
    %332 = vmatprep.subr.mxu0 0.0
    %333 = vmatpush1.msra.mxu0 0.0
    %334 = vmatprep.subr.mxu0 0.0
    %335 = vmatpush1.msra.mxu0 0.0
    %336 = vmatprep.subr.mxu0 0.0
    %337 = vmatpush1.msra.mxu0 0.0
    %338 = vmatprep.subr.mxu0 0.0
    %339 = vmatpush1.msra.mxu0 0.0
    %340 = vmatprep.subr.mxu0 0.0
    %341 = vmatpush1.msra.mxu0 0.0
    %342 = vmatprep.subr.mxu0 0.0
    %343 = vmatpush1.msra.mxu0 0.0
    %344 = vmatprep.subr.mxu0 0.0
    %345 = vmatpush1.msra.mxu0 0.0
    %346 = vmatprep.subr.mxu0 0.0
    %347 = vmatpush1.msra.mxu0 0.0
    %348 = vmatprep.mubr.f32.mxu0 0.0
    %349 = vmatmul.mubr.f32.gmra.mrb[0].mxu0 %v279
    %v350 = vpop.f32.mrb[0].mxu0
    %v351 = vadd.f32 0.0, %v350
    %v352 = vpop.f32.mrb[0].mxu0
    %353 = vdwg.mxu0
    %vm354 = vcmask 60416
    %355 = vst.msk [vmem:[#allocation2] sm:$0xf] %vm354, %v351
    %356 = vrot.lane.b32.xlu0 %v183, 120
    %v357 = vpop.permute.xlu0 %356
    %358 = vrot.lane.b32.xlu0 %v179, 88
    %v359 = vpop.permute.xlu0 %358
    %v360 = vsel %vm187, %v357, 0
    %v362 = vsel %vm187, %v359, 0
    %364 = vmatprep.subr.mxu0 0.0
    %365 = vmatpush1.xpose.msra.mxu0 %v362
    %366 = vmatprep.subr.mxu0 0.0
    %367 = vmatpush1.xpose.msra.mxu0 0.0
    %368 = vmatprep.subr.mxu0 0.0
    %369 = vmatpush1.xpose.msra.mxu0 0.0
    %370 = vmatprep.subr.mxu0 0.0
    %371 = vmatpush1.xpose.msra.mxu0 0.0
    %372 = vmatprep.subr.mxu0 0.0
    %373 = vmatpush1.xpose.msra.mxu0 0.0
    %374 = vmatprep.subr.mxu0 0.0
    %375 = vmatpush1.xpose.msra.mxu0 0.0
    %376 = vmatprep.subr.mxu0 0.0
    %377 = vmatpush1.xpose.msra.mxu0 0.0
    %378 = vmatprep.subr.mxu0 0.0
    %379 = vmatpush1.xpose.msra.mxu0 0.0
    %380 = vmatprep.subr.mxu0 0.0
    %381 = vmatpush1.xpose.msra.mxu0 0.0
    %382 = vmatprep.subr.mxu0 0.0
    %383 = vmatpush1.xpose.msra.mxu0 0.0
    %384 = vmatprep.subr.mxu0 0.0
    %385 = vmatpush1.xpose.msra.mxu0 0.0
    %386 = vmatprep.subr.mxu0 0.0
    %387 = vmatpush1.xpose.msra.mxu0 0.0
    %388 = vmatprep.subr.mxu0 0.0
    %389 = vmatpush1.xpose.msra.mxu0 0.0
    %390 = vmatprep.subr.mxu0 0.0
    %391 = vmatpush1.xpose.msra.mxu0 0.0
    %392 = vmatprep.subr.mxu0 0.0
    %393 = vmatpush1.xpose.msra.mxu0 0.0
    %394 = vmatprep.subr.mxu0 0.0
    %395 = vmatpush1.xpose.msra.mxu0 0.0
    %396 = vmatprep.subr.mxu0 0.0
    %397 = vmatpush1.xpose.msra.mxu0 0.0
    %398 = vmatprep.subr.mxu0 0.0
    %399 = vmatpush1.xpose.msra.mxu0 0.0
    %400 = vmatprep.subr.mxu0 0.0
    %401 = vmatpush1.xpose.msra.mxu0 0.0
    %402 = vmatprep.subr.mxu0 0.0
    %403 = vmatpush1.xpose.msra.mxu0 0.0
    %404 = vmatprep.subr.mxu0 0.0
    %405 = vmatpush1.xpose.msra.mxu0 0.0
    %406 = vmatprep.subr.mxu0 0.0
    %407 = vmatpush1.xpose.msra.mxu0 0.0
    %408 = vmatprep.subr.mxu0 0.0
    %409 = vmatpush1.xpose.msra.mxu0 0.0
    %410 = vmatprep.subr.mxu0 0.0
    %411 = vmatpush1.xpose.msra.mxu0 0.0
    %412 = vmatprep.subr.mxu0 0.0
    %413 = vmatpush1.xpose.msra.mxu0 0.0
    %414 = vmatprep.subr.mxu0 0.0
    %415 = vmatpush1.xpose.msra.mxu0 0.0
    %416 = vmatprep.subr.mxu0 0.0
    %417 = vmatpush1.xpose.msra.mxu0 0.0
    %418 = vmatprep.subr.mxu0 0.0
    %419 = vmatpush1.xpose.msra.mxu0 0.0
    %420 = vmatprep.subr.mxu0 0.0
    %421 = vmatpush1.xpose.msra.mxu0 0.0
    %422 = vmatprep.subr.mxu0 0.0
    %423 = vmatpush1.xpose.msra.mxu0 0.0
    %424 = vmatprep.subr.mxu0 0.0
    %425 = vmatpush1.xpose.msra.mxu0 0.0
    %426 = vmatprep.subr.mxu0 0.0
    %427 = vmatpush1.xpose.msra.mxu0 0.0
    %428 = vmatprep.mubr.f32.mxu0 0.0
    %429 = vmatmul.mubr.f32.gmra.mrb[0].mxu0 %v360
    %v430 = vpop.f32.mrb[0].mxu0
    %v431 = vadd.f32 %v182, %v430
    %v432 = vpop.f32.mrb[0].mxu0
    %433 = vdwg.mxu0
    %v434 = vsel %vm263, %v431, -inf
    %435 = vmax.xlane.f32.xlu0 %v434
    %v436 = vpop.xlane.xlu0 %435
    %v437 = vsub.f32 %v431, %v436
    %v438 = vmul.f32 %v437, 1.442695
    %v439 = vpow.pop %v438
    %v440 = vsel %vm263, %v439, 0.0
    %441 = vadd.xlane.f32.xlu0 %v440
    %v442 = vpop.xlane.xlu0 %441
    %v443 = vrcp.pop %v442
    %v444 = vmul.f32 %v439, %v443
    %445 = vrot.lane.b32.xlu0 %v179, 56
    %v446 = vpop.permute.xlu0 %445
    %v448 = vsel %vm277, %v444, 0
    %v450 = vsel %vm281, %v446, 0
    %452 = vmatprep.subr.mxu0 0.0
    %453 = vmatpush1.msra.mxu0 %v450
    %454 = vmatprep.subr.mxu0 0.0
    %455 = vmatpush1.msra.mxu0 0.0
    %456 = vmatprep.subr.mxu0 0.0
    %457 = vmatpush1.msra.mxu0 0.0
    %458 = vmatprep.subr.mxu0 0.0
    %459 = vmatpush1.msra.mxu0 0.0
    %460 = vmatprep.subr.mxu0 0.0
    %461 = vmatpush1.msra.mxu0 0.0
    %462 = vmatprep.subr.mxu0 0.0
    %463 = vmatpush1.msra.mxu0 0.0
    %464 = vmatprep.subr.mxu0 0.0
    %465 = vmatpush1.msra.mxu0 0.0
    %466 = vmatprep.subr.mxu0 0.0
    %467 = vmatpush1.msra.mxu0 0.0
    %468 = vmatprep.subr.mxu0 0.0
    %469 = vmatpush1.msra.mxu0 0.0
    %470 = vmatprep.subr.mxu0 0.0
    %471 = vmatpush1.msra.mxu0 0.0
    %472 = vmatprep.subr.mxu0 0.0
    %473 = vmatpush1.msra.mxu0 0.0
    %474 = vmatprep.subr.mxu0 0.0
    %475 = vmatpush1.msra.mxu0 0.0
    %476 = vmatprep.subr.mxu0 0.0
    %477 = vmatpush1.msra.mxu0 0.0
    %478 = vmatprep.subr.mxu0 0.0
    %479 = vmatpush1.msra.mxu0 0.0
    %480 = vmatprep.subr.mxu0 0.0
    %481 = vmatpush1.msra.mxu0 0.0
    %482 = vmatprep.subr.mxu0 0.0
    %483 = vmatpush1.msra.mxu0 0.0
    %484 = vmatprep.subr.mxu0 0.0
    %485 = vmatpush1.msra.mxu0 0.0
    %486 = vmatprep.subr.mxu0 0.0
    %487 = vmatpush1.msra.mxu0 0.0
    %488 = vmatprep.subr.mxu0 0.0
    %489 = vmatpush1.msra.mxu0 0.0
    %490 = vmatprep.subr.mxu0 0.0
    %491 = vmatpush1.msra.mxu0 0.0
    %492 = vmatprep.subr.mxu0 0.0
    %493 = vmatpush1.msra.mxu0 0.0
    %494 = vmatprep.subr.mxu0 0.0
    %495 = vmatpush1.msra.mxu0 0.0
    %496 = vmatprep.subr.mxu0 0.0
    %497 = vmatpush1.msra.mxu0 0.0
    %498 = vmatprep.subr.mxu0 0.0
    %499 = vmatpush1.msra.mxu0 0.0
    %500 = vmatprep.subr.mxu0 0.0
    %501 = vmatpush1.msra.mxu0 0.0
    %502 = vmatprep.subr.mxu0 0.0
    %503 = vmatpush1.msra.mxu0 0.0
    %504 = vmatprep.subr.mxu0 0.0
    %505 = vmatpush1.msra.mxu0 0.0
    %506 = vmatprep.subr.mxu0 0.0
    %507 = vmatpush1.msra.mxu0 0.0
    %508 = vmatprep.subr.mxu0 0.0
    %509 = vmatpush1.msra.mxu0 0.0
    %510 = vmatprep.subr.mxu0 0.0
    %511 = vmatpush1.msra.mxu0 0.0
    %512 = vmatprep.subr.mxu0 0.0
    %513 = vmatpush1.msra.mxu0 0.0
    %514 = vmatprep.subr.mxu0 0.0
    %515 = vmatpush1.msra.mxu0 0.0
    %516 = vmatprep.mubr.f32.mxu0 0.0
    %517 = vmatmul.mubr.f32.gmra.mrb[0].mxu0 %v448
    %v518 = vpop.f32.mrb[0].mxu0
    %v519 = vadd.f32 0.0, %v518
    %v520 = vpop.f32.mrb[0].mxu0
    %521 = vdwg.mxu0
    %523 = vrot.lane.b32.xlu0 %v519, 8
    %v524 = vpop.permute.xlu0 %523
    %vm526 = vcmask 126016
    %527 = vst.msk [vmem:[#allocation2] sm:$0xf] %vm526, %v524
    %528 = vrot.lane.b32.xlu0 %v183, 112
    %v529 = vpop.permute.xlu0 %528
    %530 = vrot.lane.b32.xlu0 %v179, 80
    %v531 = vpop.permute.xlu0 %530
    %v532 = vsel %vm187, %v529, 0
    %v534 = vsel %vm187, %v531, 0
    %536 = vmatprep.subr.mxu0 0.0
    %537 = vmatpush1.xpose.msra.mxu0 %v534
    %538 = vmatprep.subr.mxu0 0.0
    %539 = vmatpush1.xpose.msra.mxu0 0.0
    %540 = vmatprep.subr.mxu0 0.0
    %541 = vmatpush1.xpose.msra.mxu0 0.0
    %542 = vmatprep.subr.mxu0 0.0
    %543 = vmatpush1.xpose.msra.mxu0 0.0
    %544 = vmatprep.subr.mxu0 0.0
    %545 = vmatpush1.xpose.msra.mxu0 0.0
    %546 = vmatprep.subr.mxu0 0.0
    %547 = vmatpush1.xpose.msra.mxu0 0.0
    %548 = vmatprep.subr.mxu0 0.0
    %549 = vmatpush1.xpose.msra.mxu0 0.0
    %550 = vmatprep.subr.mxu0 0.0
    %551 = vmatpush1.xpose.msra.mxu0 0.0
    %552 = vmatprep.subr.mxu0 0.0
    %553 = vmatpush1.xpose.msra.mxu0 0.0
    %554 = vmatprep.subr.mxu0 0.0
    %555 = vmatpush1.xpose.msra.mxu0 0.0
    %556 = vmatprep.subr.mxu0 0.0
    %557 = vmatpush1.xpose.msra.mxu0 0.0
    %558 = vmatprep.subr.mxu0 0.0
    %559 = vmatpush1.xpose.msra.mxu0 0.0
    %560 = vmatprep.subr.mxu0 0.0
    %561 = vmatpush1.xpose.msra.mxu0 0.0
    %562 = vmatprep.subr.mxu0 0.0
    %563 = vmatpush1.xpose.msra.mxu0 0.0
    %564 = vmatprep.subr.mxu0 0.0
    %565 = vmatpush1.xpose.msra.mxu0 0.0
    %566 = vmatprep.subr.mxu0 0.0
    %567 = vmatpush1.xpose.msra.mxu0 0.0
    %568 = vmatprep.subr.mxu0 0.0
    %569 = vmatpush1.xpose.msra.mxu0 0.0
    %570 = vmatprep.subr.mxu0 0.0
    %571 = vmatpush1.xpose.msra.mxu0 0.0
    %572 = vmatprep.subr.mxu0 0.0
    %573 = vmatpush1.xpose.msra.mxu0 0.0
    %574 = vmatprep.subr.mxu0 0.0
    %575 = vmatpush1.xpose.msra.mxu0 0.0
    %576 = vmatprep.subr.mxu0 0.0
    %577 = vmatpush1.xpose.msra.mxu0 0.0
    %578 = vmatprep.subr.mxu0 0.0
    %579 = vmatpush1.xpose.msra.mxu0 0.0
    %580 = vmatprep.subr.mxu0 0.0
    %581 = vmatpush1.xpose.msra.mxu0 0.0
    %582 = vmatprep.subr.mxu0 0.0
    %583 = vmatpush1.xpose.msra.mxu0 0.0
    %584 = vmatprep.subr.mxu0 0.0
    %585 = vmatpush1.xpose.msra.mxu0 0.0
    %586 = vmatprep.subr.mxu0 0.0
    %587 = vmatpush1.xpose.msra.mxu0 0.0
    %588 = vmatprep.subr.mxu0 0.0
    %589 = vmatpush1.xpose.msra.mxu0 0.0
    %590 = vmatprep.subr.mxu0 0.0
    %591 = vmatpush1.xpose.msra.mxu0 0.0
    %592 = vmatprep.subr.mxu0 0.0
    %593 = vmatpush1.xpose.msra.mxu0 0.0
    %594 = vmatprep.subr.mxu0 0.0
    %595 = vmatpush1.xpose.msra.mxu0 0.0
    %596 = vmatprep.subr.mxu0 0.0
    %597 = vmatpush1.xpose.msra.mxu0 0.0
    %598 = vmatprep.subr.mxu0 0.0
    %599 = vmatpush1.xpose.msra.mxu0 0.0
    %600 = vmatprep.mubr.f32.mxu0 0.0
    %601 = vmatmul.mubr.f32.gmra.mrb[0].mxu0 %v532
    %v602 = vpop.f32.mrb[0].mxu0
    %v603 = vadd.f32 %v182, %v602
    %v604 = vpop.f32.mrb[0].mxu0
    %605 = vdwg.mxu0
    %v606 = vsel %vm263, %v603, -inf
    %607 = vmax.xlane.f32.xlu0 %v606
    %v608 = vpop.xlane.xlu0 %607
    %v609 = vsub.f32 %v603, %v608
    %v610 = vmul.f32 %v609, 1.442695
    %v611 = vpow.pop %v610
    %v612 = vsel %vm263, %v611, 0.0
    %613 = vadd.xlane.f32.xlu0 %v612
    %v614 = vpop.xlane.xlu0 %613
    %v615 = vrcp.pop %v614
    %v616 = vmul.f32 %v611, %v615
    %617 = vrot.lane.b32.xlu0 %v179, 48
    %v618 = vpop.permute.xlu0 %617
    %v620 = vsel %vm277, %v616, 0
    %v622 = vsel %vm281, %v618, 0
    %624 = vmatprep.subr.mxu0 0.0
    %625 = vmatpush1.msra.mxu0 %v622
    %626 = vmatprep.subr.mxu0 0.0
    %627 = vmatpush1.msra.mxu0 0.0
    %628 = vmatprep.subr.mxu0 0.0
    %629 = vmatpush1.msra.mxu0 0.0
    %630 = vmatprep.subr.mxu0 0.0
    %631 = vmatpush1.msra.mxu0 0.0
    %632 = vmatprep.subr.mxu0 0.0
    %633 = vmatpush1.msra.mxu0 0.0
    %634 = vmatprep.subr.mxu0 0.0
    %635 = vmatpush1.msra.mxu0 0.0
    %636 = vmatprep.subr.mxu0 0.0
    %637 = vmatpush1.msra.mxu0 0.0
    %638 = vmatprep.subr.mxu0 0.0
    %639 = vmatpush1.msra.mxu0 0.0
    %640 = vmatprep.subr.mxu0 0.0
    %641 = vmatpush1.msra.mxu0 0.0
    %642 = vmatprep.subr.mxu0 0.0
    %643 = vmatpush1.msra.mxu0 0.0
    %644 = vmatprep.subr.mxu0 0.0
    %645 = vmatpush1.msra.mxu0 0.0
    %646 = vmatprep.subr.mxu0 0.0
    %647 = vmatpush1.msra.mxu0 0.0
    %648 = vmatprep.subr.mxu0 0.0
    %649 = vmatpush1.msra.mxu0 0.0
    %650 = vmatprep.subr.mxu0 0.0
    %651 = vmatpush1.msra.mxu0 0.0
    %652 = vmatprep.subr.mxu0 0.0
    %653 = vmatpush1.msra.mxu0 0.0
    %654 = vmatprep.subr.mxu0 0.0
    %655 = vmatpush1.msra.mxu0 0.0
    %656 = vmatprep.subr.mxu0 0.0
    %657 = vmatpush1.msra.mxu0 0.0
    %658 = vmatprep.subr.mxu0 0.0
    %659 = vmatpush1.msra.mxu0 0.0
    %660 = vmatprep.subr.mxu0 0.0
    %661 = vmatpush1.msra.mxu0 0.0
    %662 = vmatprep.subr.mxu0 0.0
    %663 = vmatpush1.msra.mxu0 0.0
    %664 = vmatprep.subr.mxu0 0.0
    %665 = vmatpush1.msra.mxu0 0.0
    %666 = vmatprep.subr.mxu0 0.0
    %667 = vmatpush1.msra.mxu0 0.0
    %668 = vmatprep.subr.mxu0 0.0
    %669 = vmatpush1.msra.mxu0 0.0
    %670 = vmatprep.subr.mxu0 0.0
    %671 = vmatpush1.msra.mxu0 0.0
    %672 = vmatprep.subr.mxu0 0.0
    %673 = vmatpush1.msra.mxu0 0.0
    %674 = vmatprep.subr.mxu0 0.0
    %675 = vmatpush1.msra.mxu0 0.0
    %676 = vmatprep.subr.mxu0 0.0
    %677 = vmatpush1.msra.mxu0 0.0
    %678 = vmatprep.subr.mxu0 0.0
    %679 = vmatpush1.msra.mxu0 0.0
    %680 = vmatprep.subr.mxu0 0.0
    %681 = vmatpush1.msra.mxu0 0.0
    %682 = vmatprep.subr.mxu0 0.0
    %683 = vmatpush1.msra.mxu0 0.0
    %684 = vmatprep.subr.mxu0 0.0
    %685 = vmatpush1.msra.mxu0 0.0
    %686 = vmatprep.subr.mxu0 0.0
    %687 = vmatpush1.msra.mxu0 0.0
    %688 = vmatprep.mubr.f32.mxu0 0.0
    %689 = vmatmul.mubr.f32.gmra.mrb[0].mxu0 %v620
    %v690 = vpop.f32.mrb[0].mxu0
    %v691 = vadd.f32 0.0, %v690
    %v692 = vpop.f32.mrb[0].mxu0
    %693 = vdwg.mxu0
    %695 = vrot.lane.b32.xlu0 %v691, 16
    %v696 = vpop.permute.xlu0 %695
    %vm698 = vcmask 191616
    %699 = vst.msk [vmem:[#allocation2] sm:$0xf] %vm698, %v696
    %700 = vrot.lane.b32.xlu0 %v183, 104
    %v701 = vpop.permute.xlu0 %700
    %702 = vrot.lane.b32.xlu0 %v179, 72
    %v703 = vpop.permute.xlu0 %702
    %v704 = vsel %vm187, %v701, 0
    %v706 = vsel %vm187, %v703, 0
    %708 = vmatprep.subr.mxu0 0.0
    %709 = vmatpush1.xpose.msra.mxu0 %v706
    %710 = vmatprep.subr.mxu0 0.0
    %711 = vmatpush1.xpose.msra.mxu0 0.0
    %712 = vmatprep.subr.mxu0 0.0
    %713 = vmatpush1.xpose.msra.mxu0 0.0
    %714 = vmatprep.subr.mxu0 0.0
    %715 = vmatpush1.xpose.msra.mxu0 0.0
    %716 = vmatprep.subr.mxu0 0.0
    %717 = vmatpush1.xpose.msra.mxu0 0.0
    %718 = vmatprep.subr.mxu0 0.0
    %719 = vmatpush1.xpose.msra.mxu0 0.0
    %720 = vmatprep.subr.mxu0 0.0
    %721 = vmatpush1.xpose.msra.mxu0 0.0
    %722 = vmatprep.subr.mxu0 0.0
    %723 = vmatpush1.xpose.msra.mxu0 0.0
    %724 = vmatprep.subr.mxu0 0.0
    %725 = vmatpush1.xpose.msra.mxu0 0.0
    %726 = vmatprep.subr.mxu0 0.0
    %727 = vmatpush1.xpose.msra.mxu0 0.0
    %728 = vmatprep.subr.mxu0 0.0
    %729 = vmatpush1.xpose.msra.mxu0 0.0
    %730 = vmatprep.subr.mxu0 0.0
    %731 = vmatpush1.xpose.msra.mxu0 0.0
    %732 = vmatprep.subr.mxu0 0.0
    %733 = vmatpush1.xpose.msra.mxu0 0.0
    %734 = vmatprep.subr.mxu0 0.0
    %735 = vmatpush1.xpose.msra.mxu0 0.0
    %736 = vmatprep.subr.mxu0 0.0
    %737 = vmatpush1.xpose.msra.mxu0 0.0
    %738 = vmatprep.subr.mxu0 0.0
    %739 = vmatpush1.xpose.msra.mxu0 0.0
    %740 = vmatprep.subr.mxu0 0.0
    %741 = vmatpush1.xpose.msra.mxu0 0.0
    %742 = vmatprep.subr.mxu0 0.0
    %743 = vmatpush1.xpose.msra.mxu0 0.0
    %744 = vmatprep.subr.mxu0 0.0
    %745 = vmatpush1.xpose.msra.mxu0 0.0
    %746 = vmatprep.subr.mxu0 0.0
    %747 = vmatpush1.xpose.msra.mxu0 0.0
    %748 = vmatprep.subr.mxu0 0.0
    %749 = vmatpush1.xpose.msra.mxu0 0.0
    %750 = vmatprep.subr.mxu0 0.0
    %751 = vmatpush1.xpose.msra.mxu0 0.0
    %752 = vmatprep.subr.mxu0 0.0
    %753 = vmatpush1.xpose.msra.mxu0 0.0
    %754 = vmatprep.subr.mxu0 0.0
    %755 = vmatpush1.xpose.msra.mxu0 0.0
    %756 = vmatprep.subr.mxu0 0.0
    %757 = vmatpush1.xpose.msra.mxu0 0.0
    %758 = vmatprep.subr.mxu0 0.0
    %759 = vmatpush1.xpose.msra.mxu0 0.0
    %760 = vmatprep.subr.mxu0 0.0
    %761 = vmatpush1.xpose.msra.mxu0 0.0
    %762 = vmatprep.subr.mxu0 0.0
    %763 = vmatpush1.xpose.msra.mxu0 0.0
    %764 = vmatprep.subr.mxu0 0.0
    %765 = vmatpush1.xpose.msra.mxu0 0.0
    %766 = vmatprep.subr.mxu0 0.0
    %767 = vmatpush1.xpose.msra.mxu0 0.0
    %768 = vmatprep.subr.mxu0 0.0
    %769 = vmatpush1.xpose.msra.mxu0 0.0
    %770 = vmatprep.subr.mxu0 0.0
    %771 = vmatpush1.xpose.msra.mxu0 0.0
    %772 = vmatprep.mubr.f32.mxu0 0.0
    %773 = vmatmul.mubr.f32.gmra.mrb[0].mxu0 %v704
    %v774 = vpop.f32.mrb[0].mxu0
    %v775 = vadd.f32 %v182, %v774
    %v776 = vpop.f32.mrb[0].mxu0
    %777 = vdwg.mxu0
    %v778 = vsel %vm263, %v775, -inf
    %779 = vmax.xlane.f32.xlu0 %v778
    %v780 = vpop.xlane.xlu0 %779
    %v781 = vsub.f32 %v775, %v780
    %v782 = vmul.f32 %v781, 1.442695
    %v783 = vpow.pop %v782
    %v784 = vsel %vm263, %v783, 0.0
    %785 = vadd.xlane.f32.xlu0 %v784
    %v786 = vpop.xlane.xlu0 %785
    %v787 = vrcp.pop %v786
    %v788 = vmul.f32 %v783, %v787
    %789 = vrot.lane.b32.xlu0 %v179, 40
    %v790 = vpop.permute.xlu0 %789
    %v792 = vsel %vm277, %v788, 0
    %v794 = vsel %vm281, %v790, 0
    %796 = vmatprep.subr.mxu0 0.0
    %797 = vmatpush1.msra.mxu0 %v794
    %798 = vmatprep.subr.mxu0 0.0
    %799 = vmatpush1.msra.mxu0 0.0
    %800 = vmatprep.subr.mxu0 0.0
    %801 = vmatpush1.msra.mxu0 0.0
    %802 = vmatprep.subr.mxu0 0.0
    %803 = vmatpush1.msra.mxu0 0.0
    %804 = vmatprep.subr.mxu0 0.0
    %805 = vmatpush1.msra.mxu0 0.0
    %806 = vmatprep.subr.mxu0 0.0
    %807 = vmatpush1.msra.mxu0 0.0
    %808 = vmatprep.subr.mxu0 0.0
    %809 = vmatpush1.msra.mxu0 0.0
    %810 = vmatprep.subr.mxu0 0.0
    %811 = vmatpush1.msra.mxu0 0.0
    %812 = vmatprep.subr.mxu0 0.0
    %813 = vmatpush1.msra.mxu0 0.0
    %814 = vmatprep.subr.mxu0 0.0
    %815 = vmatpush1.msra.mxu0 0.0
    %816 = vmatprep.subr.mxu0 0.0
    %817 = vmatpush1.msra.mxu0 0.0
    %818 = vmatprep.subr.mxu0 0.0
    %819 = vmatpush1.msra.mxu0 0.0
    %820 = vmatprep.subr.mxu0 0.0
    %821 = vmatpush1.msra.mxu0 0.0
    %822 = vmatprep.subr.mxu0 0.0
    %823 = vmatpush1.msra.mxu0 0.0
    %824 = vmatprep.subr.mxu0 0.0
    %825 = vmatpush1.msra.mxu0 0.0
    %826 = vmatprep.subr.mxu0 0.0
    %827 = vmatpush1.msra.mxu0 0.0
    %828 = vmatprep.subr.mxu0 0.0
    %829 = vmatpush1.msra.mxu0 0.0
    %830 = vmatprep.subr.mxu0 0.0
    %831 = vmatpush1.msra.mxu0 0.0
    %832 = vmatprep.subr.mxu0 0.0
    %833 = vmatpush1.msra.mxu0 0.0
    %834 = vmatprep.subr.mxu0 0.0
    %835 = vmatpush1.msra.mxu0 0.0
    %836 = vmatprep.subr.mxu0 0.0
    %837 = vmatpush1.msra.mxu0 0.0
    %838 = vmatprep.subr.mxu0 0.0
    %839 = vmatpush1.msra.mxu0 0.0
    %840 = vmatprep.subr.mxu0 0.0
    %841 = vmatpush1.msra.mxu0 0.0
    %842 = vmatprep.subr.mxu0 0.0
    %843 = vmatpush1.msra.mxu0 0.0
    %844 = vmatprep.subr.mxu0 0.0
    %845 = vmatpush1.msra.mxu0 0.0
    %846 = vmatprep.subr.mxu0 0.0
    %847 = vmatpush1.msra.mxu0 0.0
    %848 = vmatprep.subr.mxu0 0.0
    %849 = vmatpush1.msra.mxu0 0.0
    %850 = vmatprep.subr.mxu0 0.0
    %851 = vmatpush1.msra.mxu0 0.0
    %852 = vmatprep.subr.mxu0 0.0
    %853 = vmatpush1.msra.mxu0 0.0
    %854 = vmatprep.subr.mxu0 0.0
    %855 = vmatpush1.msra.mxu0 0.0
    %856 = vmatprep.subr.mxu0 0.0
    %857 = vmatpush1.msra.mxu0 0.0
    %858 = vmatprep.subr.mxu0 0.0
    %859 = vmatpush1.msra.mxu0 0.0
    %860 = vmatprep.mubr.f32.mxu0 0.0
    %861 = vmatmul.mubr.f32.gmra.mrb[0].mxu0 %v792
    %v862 = vpop.f32.mrb[0].mxu0
    %v863 = vadd.f32 0.0, %v862
    %v864 = vpop.f32.mrb[0].mxu0
    %865 = vdwg.mxu0
    %867 = vrot.lane.b32.xlu0 %v863, 24
    %v868 = vpop.permute.xlu0 %867
    %vm870 = vcmask 257216
    %871 = vst.msk [vmem:[#allocation2] sm:$0xf] %vm870, %v868
    %v872 = vrot.slane %v183, 4
    %v873 = vrot.slane %v179, 4
    %874 = vrot.lane.b32.xlu0 %v873, 96
    %v875 = vpop.permute.xlu0 %874
    %v876 = vsel %vm187, %v872, 0
    %v878 = vsel %vm187, %v875, 0
    %880 = vmatprep.subr.mxu0 0.0
    %881 = vmatpush1.xpose.msra.mxu0 %v878
    %882 = vmatprep.subr.mxu0 0.0
    %883 = vmatpush1.xpose.msra.mxu0 0.0
    %884 = vmatprep.subr.mxu0 0.0
    %885 = vmatpush1.xpose.msra.mxu0 0.0
    %886 = vmatprep.subr.mxu0 0.0
    %887 = vmatpush1.xpose.msra.mxu0 0.0
    %888 = vmatprep.subr.mxu0 0.0
    %889 = vmatpush1.xpose.msra.mxu0 0.0
    %890 = vmatprep.subr.mxu0 0.0
    %891 = vmatpush1.xpose.msra.mxu0 0.0
    %892 = vmatprep.subr.mxu0 0.0
    %893 = vmatpush1.xpose.msra.mxu0 0.0
    %894 = vmatprep.subr.mxu0 0.0
    %895 = vmatpush1.xpose.msra.mxu0 0.0
    %896 = vmatprep.subr.mxu0 0.0
    %897 = vmatpush1.xpose.msra.mxu0 0.0
    %898 = vmatprep.subr.mxu0 0.0
    %899 = vmatpush1.xpose.msra.mxu0 0.0
    %900 = vmatprep.subr.mxu0 0.0
    %901 = vmatpush1.xpose.msra.mxu0 0.0
    %902 = vmatprep.subr.mxu0 0.0
    %903 = vmatpush1.xpose.msra.mxu0 0.0
    %904 = vmatprep.subr.mxu0 0.0
    %905 = vmatpush1.xpose.msra.mxu0 0.0
    %906 = vmatprep.subr.mxu0 0.0
    %907 = vmatpush1.xpose.msra.mxu0 0.0
    %908 = vmatprep.subr.mxu0 0.0
    %909 = vmatpush1.xpose.msra.mxu0 0.0
    %910 = vmatprep.subr.mxu0 0.0
    %911 = vmatpush1.xpose.msra.mxu0 0.0
    %912 = vmatprep.subr.mxu0 0.0
    %913 = vmatpush1.xpose.msra.mxu0 0.0
    %914 = vmatprep.subr.mxu0 0.0
    %915 = vmatpush1.xpose.msra.mxu0 0.0
    %916 = vmatprep.subr.mxu0 0.0
    %917 = vmatpush1.xpose.msra.mxu0 0.0
    %918 = vmatprep.subr.mxu0 0.0
    %919 = vmatpush1.xpose.msra.mxu0 0.0
    %920 = vmatprep.subr.mxu0 0.0
    %921 = vmatpush1.xpose.msra.mxu0 0.0
    %922 = vmatprep.subr.mxu0 0.0
    %923 = vmatpush1.xpose.msra.mxu0 0.0
    %924 = vmatprep.subr.mxu0 0.0
    %925 = vmatpush1.xpose.msra.mxu0 0.0
    %926 = vmatprep.subr.mxu0 0.0
    %927 = vmatpush1.xpose.msra.mxu0 0.0
    %928 = vmatprep.subr.mxu0 0.0
    %929 = vmatpush1.xpose.msra.mxu0 0.0
    %930 = vmatprep.subr.mxu0 0.0
    %931 = vmatpush1.xpose.msra.mxu0 0.0
    %932 = vmatprep.subr.mxu0 0.0
    %933 = vmatpush1.xpose.msra.mxu0 0.0
    %934 = vmatprep.subr.mxu0 0.0
    %935 = vmatpush1.xpose.msra.mxu0 0.0
    %936 = vmatprep.subr.mxu0 0.0
    %937 = vmatpush1.xpose.msra.mxu0 0.0
    %938 = vmatprep.subr.mxu0 0.0
    %939 = vmatpush1.xpose.msra.mxu0 0.0
    %940 = vmatprep.subr.mxu0 0.0
    %941 = vmatpush1.xpose.msra.mxu0 0.0
    %942 = vmatprep.subr.mxu0 0.0
    %943 = vmatpush1.xpose.msra.mxu0 0.0
    %944 = vmatprep.mubr.f32.mxu0 0.0
    %945 = vmatmul.mubr.f32.gmra.mrb[0].mxu0 %v876
    %v946 = vpop.f32.mrb[0].mxu0
    %v947 = vadd.f32 %v182, %v946
    %v948 = vpop.f32.mrb[0].mxu0
    %949 = vdwg.mxu0
    %v950 = vsel %vm263, %v947, -inf
    %951 = vmax.xlane.f32.xlu0 %v950
    %v952 = vpop.xlane.xlu0 %951
    %v953 = vsub.f32 %v947, %v952
    %v954 = vmul.f32 %v953, 1.442695
    %v955 = vpow.pop %v954
    %v956 = vsel %vm263, %v955, 0.0
    %957 = vadd.xlane.f32.xlu0 %v956
    %v958 = vpop.xlane.xlu0 %957
    %v959 = vrcp.pop %v958
    %v960 = vmul.f32 %v955, %v959
    %961 = vrot.lane.b32.xlu0 %v873, 64
    %v962 = vpop.permute.xlu0 %961
    %v964 = vsel %vm277, %v960, 0
    %v966 = vsel %vm281, %v962, 0
    %968 = vmatprep.subr.mxu0 0.0
    %969 = vmatpush1.msra.mxu0 %v966
    %970 = vmatprep.subr.mxu0 0.0
    %971 = vmatpush1.msra.mxu0 0.0
    %972 = vmatprep.subr.mxu0 0.0
    %973 = vmatpush1.msra.mxu0 0.0
    %974 = vmatprep.subr.mxu0 0.0
    %975 = vmatpush1.msra.mxu0 0.0
    %976 = vmatprep.subr.mxu0 0.0
    %977 = vmatpush1.msra.mxu0 0.0
    %978 = vmatprep.subr.mxu0 0.0
    %979 = vmatpush1.msra.mxu0 0.0
    %980 = vmatprep.subr.mxu0 0.0
    %981 = vmatpush1.msra.mxu0 0.0
    %982 = vmatprep.subr.mxu0 0.0
    %983 = vmatpush1.msra.mxu0 0.0
    %984 = vmatprep.subr.mxu0 0.0
    %985 = vmatpush1.msra.mxu0 0.0
    %986 = vmatprep.subr.mxu0 0.0
    %987 = vmatpush1.msra.mxu0 0.0
    %988 = vmatprep.subr.mxu0 0.0
    %989 = vmatpush1.msra.mxu0 0.0
    %990 = vmatprep.subr.mxu0 0.0
    %991 = vmatpush1.msra.mxu0 0.0
    %992 = vmatprep.subr.mxu0 0.0
    %993 = vmatpush1.msra.mxu0 0.0
    %994 = vmatprep.subr.mxu0 0.0
    %995 = vmatpush1.msra.mxu0 0.0
    %996 = vmatprep.subr.mxu0 0.0
    %997 = vmatpush1.msra.mxu0 0.0
    %998 = vmatprep.subr.mxu0 0.0
    %999 = vmatpush1.msra.mxu0 0.0
    %1000 = vmatprep.subr.mxu0 0.0
    %1001 = vmatpush1.msra.mxu0 0.0
    %1002 = vmatprep.subr.mxu0 0.0
    %1003 = vmatpush1.msra.mxu0 0.0
    %1004 = vmatprep.subr.mxu0 0.0
    %1005 = vmatpush1.msra.mxu0 0.0
    %1006 = vmatprep.subr.mxu0 0.0
    %1007 = vmatpush1.msra.mxu0 0.0
    %1008 = vmatprep.subr.mxu0 0.0
    %1009 = vmatpush1.msra.mxu0 0.0
    %1010 = vmatprep.subr.mxu0 0.0
    %1011 = vmatpush1.msra.mxu0 0.0
    %1012 = vmatprep.subr.mxu0 0.0
    %1013 = vmatpush1.msra.mxu0 0.0
    %1014 = vmatprep.subr.mxu0 0.0
    %1015 = vmatpush1.msra.mxu0 0.0
    %1016 = vmatprep.subr.mxu0 0.0
    %1017 = vmatpush1.msra.mxu0 0.0
    %1018 = vmatprep.subr.mxu0 0.0
    %1019 = vmatpush1.msra.mxu0 0.0
    %1020 = vmatprep.subr.mxu0 0.0
    %1021 = vmatpush1.msra.mxu0 0.0
    %1022 = vmatprep.subr.mxu0 0.0
    %1023 = vmatpush1.msra.mxu0 0.0
    %1024 = vmatprep.subr.mxu0 0.0
    %1025 = vmatpush1.msra.mxu0 0.0
    %1026 = vmatprep.subr.mxu0 0.0
    %1027 = vmatpush1.msra.mxu0 0.0
    %1028 = vmatprep.subr.mxu0 0.0
    %1029 = vmatpush1.msra.mxu0 0.0
    %1030 = vmatprep.subr.mxu0 0.0
    %1031 = vmatpush1.msra.mxu0 0.0
    %1032 = vmatprep.mubr.f32.mxu0 0.0
    %1033 = vmatmul.mubr.f32.gmra.mrb[0].mxu0 %v964
    %v1034 = vpop.f32.mrb[0].mxu0
    %v1035 = vadd.f32 0.0, %v1034
    %v1036 = vpop.f32.mrb[0].mxu0
    %1037 = vdwg.mxu0
    %1038 = vst.msk [vmem:[#allocation2 + $0x4] sm:$0xf] %vm354, %v1035
    %1039 = vrot.lane.b32.xlu0 %v872, 120
    %v1040 = vpop.permute.xlu0 %1039
    %1041 = vrot.lane.b32.xlu0 %v873, 88
    %v1042 = vpop.permute.xlu0 %1041
    %v1043 = vsel %vm187, %v1040, 0
    %v1045 = vsel %vm187, %v1042, 0
    %1047 = vmatprep.subr.mxu0 0.0
    %1048 = vmatpush1.xpose.msra.mxu0 %v1045
    %1049 = vmatprep.subr.mxu0 0.0
    %1050 = vmatpush1.xpose.msra.mxu0 0.0
    %1051 = vmatprep.subr.mxu0 0.0
    %1052 = vmatpush1.xpose.msra.mxu0 0.0
    %1053 = vmatprep.subr.mxu0 0.0
    %1054 = vmatpush1.xpose.msra.mxu0 0.0
    %1055 = vmatprep.subr.mxu0 0.0
    %1056 = vmatpush1.xpose.msra.mxu0 0.0
    %1057 = vmatprep.subr.mxu0 0.0
    %1058 = vmatpush1.xpose.msra.mxu0 0.0
    %1059 = vmatprep.subr.mxu0 0.0
    %1060 = vmatpush1.xpose.msra.mxu0 0.0
    %1061 = vmatprep.subr.mxu0 0.0
    %1062 = vmatpush1.xpose.msra.mxu0 0.0
    %1063 = vmatprep.subr.mxu0 0.0
    %1064 = vmatpush1.xpose.msra.mxu0 0.0
    %1065 = vmatprep.subr.mxu0 0.0
    %1066 = vmatpush1.xpose.msra.mxu0 0.0
    %1067 = vmatprep.subr.mxu0 0.0
    %1068 = vmatpush1.xpose.msra.mxu0 0.0
    %1069 = vmatprep.subr.mxu0 0.0
    %1070 = vmatpush1.xpose.msra.mxu0 0.0
    %1071 = vmatprep.subr.mxu0 0.0
    %1072 = vmatpush1.xpose.msra.mxu0 0.0
    %1073 = vmatprep.subr.mxu0 0.0
    %1074 = vmatpush1.xpose.msra.mxu0 0.0
    %1075 = vmatprep.subr.mxu0 0.0
    %1076 = vmatpush1.xpose.msra.mxu0 0.0
    %1077 = vmatprep.subr.mxu0 0.0
    %1078 = vmatpush1.xpose.msra.mxu0 0.0
    %1079 = vmatprep.subr.mxu0 0.0
    %1080 = vmatpush1.xpose.msra.mxu0 0.0
    %1081 = vmatprep.subr.mxu0 0.0
    %1082 = vmatpush1.xpose.msra.mxu0 0.0
    %1083 = vmatprep.subr.mxu0 0.0
    %1084 = vmatpush1.xpose.msra.mxu0 0.0
    %1085 = vmatprep.subr.mxu0 0.0
    %1086 = vmatpush1.xpose.msra.mxu0 0.0
    %1087 = vmatprep.subr.mxu0 0.0
    %1088 = vmatpush1.xpose.msra.mxu0 0.0
    %1089 = vmatprep.subr.mxu0 0.0
    %1090 = vmatpush1.xpose.msra.mxu0 0.0
    %1091 = vmatprep.subr.mxu0 0.0
    %1092 = vmatpush1.xpose.msra.mxu0 0.0
    %1093 = vmatprep.subr.mxu0 0.0
    %1094 = vmatpush1.xpose.msra.mxu0 0.0
    %1095 = vmatprep.subr.mxu0 0.0
    %1096 = vmatpush1.xpose.msra.mxu0 0.0
    %1097 = vmatprep.subr.mxu0 0.0
    %1098 = vmatpush1.xpose.msra.mxu0 0.0
    %1099 = vmatprep.subr.mxu0 0.0
    %1100 = vmatpush1.xpose.msra.mxu0 0.0
    %1101 = vmatprep.subr.mxu0 0.0
    %1102 = vmatpush1.xpose.msra.mxu0 0.0
    %1103 = vmatprep.subr.mxu0 0.0
    %1104 = vmatpush1.xpose.msra.mxu0 0.0
    %1105 = vmatprep.subr.mxu0 0.0
    %1106 = vmatpush1.xpose.msra.mxu0 0.0
    %1107 = vmatprep.subr.mxu0 0.0
    %1108 = vmatpush1.xpose.msra.mxu0 0.0
    %1109 = vmatprep.subr.mxu0 0.0
    %1110 = vmatpush1.xpose.msra.mxu0 0.0
    %1111 = vmatprep.mubr.f32.mxu0 0.0
    %1112 = vmatmul.mubr.f32.gmra.mrb[0].mxu0 %v1043
    %v1113 = vpop.f32.mrb[0].mxu0
    %v1114 = vadd.f32 %v182, %v1113
    %v1115 = vpop.f32.mrb[0].mxu0
    %1116 = vdwg.mxu0
    %v1117 = vsel %vm263, %v1114, -inf
    %1118 = vmax.xlane.f32.xlu0 %v1117
    %v1119 = vpop.xlane.xlu0 %1118
    %v1120 = vsub.f32 %v1114, %v1119
    %v1121 = vmul.f32 %v1120, 1.442695
    %v1122 = vpow.pop %v1121
    %v1123 = vsel %vm263, %v1122, 0.0
    %1124 = vadd.xlane.f32.xlu0 %v1123
    %v1125 = vpop.xlane.xlu0 %1124
    %v1126 = vrcp.pop %v1125
    %v1127 = vmul.f32 %v1122, %v1126
    %1128 = vrot.lane.b32.xlu0 %v873, 56
    %v1129 = vpop.permute.xlu0 %1128
    %v1131 = vsel %vm277, %v1127, 0
    %v1133 = vsel %vm281, %v1129, 0
    %1135 = vmatprep.subr.mxu0 0.0
    %1136 = vmatpush1.msra.mxu0 %v1133
    %1137 = vmatprep.subr.mxu0 0.0
    %1138 = vmatpush1.msra.mxu0 0.0
    %1139 = vmatprep.subr.mxu0 0.0
    %1140 = vmatpush1.msra.mxu0 0.0
    %1141 = vmatprep.subr.mxu0 0.0
    %1142 = vmatpush1.msra.mxu0 0.0
    %1143 = vmatprep.subr.mxu0 0.0
    %1144 = vmatpush1.msra.mxu0 0.0
    %1145 = vmatprep.subr.mxu0 0.0
    %1146 = vmatpush1.msra.mxu0 0.0
    %1147 = vmatprep.subr.mxu0 0.0
    %1148 = vmatpush1.msra.mxu0 0.0
    %1149 = vmatprep.subr.mxu0 0.0
    %1150 = vmatpush1.msra.mxu0 0.0
    %1151 = vmatprep.subr.mxu0 0.0
    %1152 = vmatpush1.msra.mxu0 0.0
    %1153 = vmatprep.subr.mxu0 0.0
    %1154 = vmatpush1.msra.mxu0 0.0
    %1155 = vmatprep.subr.mxu0 0.0
    %1156 = vmatpush1.msra.mxu0 0.0
    %1157 = vmatprep.subr.mxu0 0.0
    %1158 = vmatpush1.msra.mxu0 0.0
    %1159 = vmatprep.subr.mxu0 0.0
    %1160 = vmatpush1.msra.mxu0 0.0
    %1161 = vmatprep.subr.mxu0 0.0
    %1162 = vmatpush1.msra.mxu0 0.0
    %1163 = vmatprep.subr.mxu0 0.0
    %1164 = vmatpush1.msra.mxu0 0.0
    %1165 = vmatprep.subr.mxu0 0.0
    %1166 = vmatpush1.msra.mxu0 0.0
    %1167 = vmatprep.subr.mxu0 0.0
    %1168 = vmatpush1.msra.mxu0 0.0
    %1169 = vmatprep.subr.mxu0 0.0
    %1170 = vmatpush1.msra.mxu0 0.0
    %1171 = vmatprep.subr.mxu0 0.0
    %1172 = vmatpush1.msra.mxu0 0.0
    %1173 = vmatprep.subr.mxu0 0.0
    %1174 = vmatpush1.msra.mxu0 0.0
    %1175 = vmatprep.subr.mxu0 0.0
    %1176 = vmatpush1.msra.mxu0 0.0
    %1177 = vmatprep.subr.mxu0 0.0
    %1178 = vmatpush1.msra.mxu0 0.0
    %1179 = vmatprep.subr.mxu0 0.0
    %1180 = vmatpush1.msra.mxu0 0.0
    %1181 = vmatprep.subr.mxu0 0.0
    %1182 = vmatpush1.msra.mxu0 0.0
    %1183 = vmatprep.subr.mxu0 0.0
    %1184 = vmatpush1.msra.mxu0 0.0
    %1185 = vmatprep.subr.mxu0 0.0
    %1186 = vmatpush1.msra.mxu0 0.0
    %1187 = vmatprep.subr.mxu0 0.0
    %1188 = vmatpush1.msra.mxu0 0.0
    %1189 = vmatprep.subr.mxu0 0.0
    %1190 = vmatpush1.msra.mxu0 0.0
    %1191 = vmatprep.subr.mxu0 0.0
    %1192 = vmatpush1.msra.mxu0 0.0
    %1193 = vmatprep.subr.mxu0 0.0
    %1194 = vmatpush1.msra.mxu0 0.0
    %1195 = vmatprep.subr.mxu0 0.0
    %1196 = vmatpush1.msra.mxu0 0.0
    %1197 = vmatprep.subr.mxu0 0.0
    %1198 = vmatpush1.msra.mxu0 0.0
    %1199 = vmatprep.mubr.f32.mxu0 0.0
    %1200 = vmatmul.mubr.f32.gmra.mrb[0].mxu0 %v1131
    %v1201 = vpop.f32.mrb[0].mxu0
    %v1202 = vadd.f32 0.0, %v1201
    %v1203 = vpop.f32.mrb[0].mxu0
    %1204 = vdwg.mxu0
    %1206 = vrot.lane.b32.xlu0 %v1202, 8
    %v1207 = vpop.permute.xlu0 %1206
    %1209 = vst.msk [vmem:[#allocation2 + $0x4] sm:$0xf] %vm526, %v1207
    %1210 = vrot.lane.b32.xlu0 %v872, 112
    %v1211 = vpop.permute.xlu0 %1210
    %1212 = vrot.lane.b32.xlu0 %v873, 80
    %v1213 = vpop.permute.xlu0 %1212
    %v1214 = vsel %vm187, %v1211, 0
    %v1216 = vsel %vm187, %v1213, 0
    %1218 = vmatprep.subr.mxu0 0.0
    %1219 = vmatpush1.xpose.msra.mxu0 %v1216
    %1220 = vmatprep.subr.mxu0 0.0
    %1221 = vmatpush1.xpose.msra.mxu0 0.0
    %1222 = vmatprep.subr.mxu0 0.0
    %1223 = vmatpush1.xpose.msra.mxu0 0.0
    %1224 = vmatprep.subr.mxu0 0.0
    %1225 = vmatpush1.xpose.msra.mxu0 0.0
    %1226 = vmatprep.subr.mxu0 0.0
    %1227 = vmatpush1.xpose.msra.mxu0 0.0
    %1228 = vmatprep.subr.mxu0 0.0
    %1229 = vmatpush1.xpose.msra.mxu0 0.0
    %1230 = vmatprep.subr.mxu0 0.0
    %1231 = vmatpush1.xpose.msra.mxu0 0.0
    %1232 = vmatprep.subr.mxu0 0.0
    %1233 = vmatpush1.xpose.msra.mxu0 0.0
    %1234 = vmatprep.subr.mxu0 0.0
    %1235 = vmatpush1.xpose.msra.mxu0 0.0
    %1236 = vmatprep.subr.mxu0 0.0
    %1237 = vmatpush1.xpose.msra.mxu0 0.0
    %1238 = vmatprep.subr.mxu0 0.0
    %1239 = vmatpush1.xpose.msra.mxu0 0.0
    %1240 = vmatprep.subr.mxu0 0.0
    %1241 = vmatpush1.xpose.msra.mxu0 0.0
    %1242 = vmatprep.subr.mxu0 0.0
    %1243 = vmatpush1.xpose.msra.mxu0 0.0
    %1244 = vmatprep.subr.mxu0 0.0
    %1245 = vmatpush1.xpose.msra.mxu0 0.0
    %1246 = vmatprep.subr.mxu0 0.0
    %1247 = vmatpush1.xpose.msra.mxu0 0.0
    %1248 = vmatprep.subr.mxu0 0.0
    %1249 = vmatpush1.xpose.msra.mxu0 0.0
    %1250 = vmatprep.subr.mxu0 0.0
    %1251 = vmatpush1.xpose.msra.mxu0 0.0
    %1252 = vmatprep.subr.mxu0 0.0
    %1253 = vmatpush1.xpose.msra.mxu0 0.0
    %1254 = vmatprep.subr.mxu0 0.0
    %1255 = vmatpush1.xpose.msra.mxu0 0.0
    %1256 = vmatprep.subr.mxu0 0.0
    %1257 = vmatpush1.xpose.msra.mxu0 0.0
    %1258 = vmatprep.subr.mxu0 0.0
    %1259 = vmatpush1.xpose.msra.mxu0 0.0
    %1260 = vmatprep.subr.mxu0 0.0
    %1261 = vmatpush1.xpose.msra.mxu0 0.0
    %1262 = vmatprep.subr.mxu0 0.0
    %1263 = vmatpush1.xpose.msra.mxu0 0.0
    %1264 = vmatprep.subr.mxu0 0.0
    %1265 = vmatpush1.xpose.msra.mxu0 0.0
    %1266 = vmatprep.subr.mxu0 0.0
    %1267 = vmatpush1.xpose.msra.mxu0 0.0
    %1268 = vmatprep.subr.mxu0 0.0
    %1269 = vmatpush1.xpose.msra.mxu0 0.0
    %1270 = vmatprep.subr.mxu0 0.0
    %1271 = vmatpush1.xpose.msra.mxu0 0.0
    %1272 = vmatprep.subr.mxu0 0.0
    %1273 = vmatpush1.xpose.msra.mxu0 0.0
    %1274 = vmatprep.subr.mxu0 0.0
    %1275 = vmatpush1.xpose.msra.mxu0 0.0
    %1276 = vmatprep.subr.mxu0 0.0
    %1277 = vmatpush1.xpose.msra.mxu0 0.0
    %1278 = vmatprep.subr.mxu0 0.0
    %1279 = vmatpush1.xpose.msra.mxu0 0.0
    %1280 = vmatprep.subr.mxu0 0.0
    %1281 = vmatpush1.xpose.msra.mxu0 0.0
    %1282 = vmatprep.mubr.f32.mxu0 0.0
    %1283 = vmatmul.mubr.f32.gmra.mrb[0].mxu0 %v1214
    %v1284 = vpop.f32.mrb[0].mxu0
    %v1285 = vadd.f32 %v182, %v1284
    %v1286 = vpop.f32.mrb[0].mxu0
    %1287 = vdwg.mxu0
    %v1288 = vsel %vm263, %v1285, -inf
    %1289 = vmax.xlane.f32.xlu0 %v1288
    %v1290 = vpop.xlane.xlu0 %1289
    %v1291 = vsub.f32 %v1285, %v1290
    %v1292 = vmul.f32 %v1291, 1.442695
    %v1293 = vpow.pop %v1292
    %v1294 = vsel %vm263, %v1293, 0.0
    %1295 = vadd.xlane.f32.xlu0 %v1294
    %v1296 = vpop.xlane.xlu0 %1295
    %v1297 = vrcp.pop %v1296
    %v1298 = vmul.f32 %v1293, %v1297
    %1299 = vrot.lane.b32.xlu0 %v873, 48
    %v1300 = vpop.permute.xlu0 %1299
    %v1302 = vsel %vm277, %v1298, 0
    %v1304 = vsel %vm281, %v1300, 0
    %1306 = vmatprep.subr.mxu0 0.0
    %1307 = vmatpush1.msra.mxu0 %v1304
    %1308 = vmatprep.subr.mxu0 0.0
    %1309 = vmatpush1.msra.mxu0 0.0
    %1310 = vmatprep.subr.mxu0 0.0
    %1311 = vmatpush1.msra.mxu0 0.0
    %1312 = vmatprep.subr.mxu0 0.0
    %1313 = vmatpush1.msra.mxu0 0.0
    %1314 = vmatprep.subr.mxu0 0.0
    %1315 = vmatpush1.msra.mxu0 0.0
    %1316 = vmatprep.subr.mxu0 0.0
    %1317 = vmatpush1.msra.mxu0 0.0
    %1318 = vmatprep.subr.mxu0 0.0
    %1319 = vmatpush1.msra.mxu0 0.0
    %1320 = vmatprep.subr.mxu0 0.0
    %1321 = vmatpush1.msra.mxu0 0.0
    %1322 = vmatprep.subr.mxu0 0.0
    %1323 = vmatpush1.msra.mxu0 0.0
    %1324 = vmatprep.subr.mxu0 0.0
    %1325 = vmatpush1.msra.mxu0 0.0
    %1326 = vmatprep.subr.mxu0 0.0
    %1327 = vmatpush1.msra.mxu0 0.0
    %1328 = vmatprep.subr.mxu0 0.0
    %1329 = vmatpush1.msra.mxu0 0.0
    %1330 = vmatprep.subr.mxu0 0.0
    %1331 = vmatpush1.msra.mxu0 0.0
    %1332 = vmatprep.subr.mxu0 0.0
    %1333 = vmatpush1.msra.mxu0 0.0
    %1334 = vmatprep.subr.mxu0 0.0
    %1335 = vmatpush1.msra.mxu0 0.0
    %1336 = vmatprep.subr.mxu0 0.0
    %1337 = vmatpush1.msra.mxu0 0.0
    %1338 = vmatprep.subr.mxu0 0.0
    %1339 = vmatpush1.msra.mxu0 0.0
    %1340 = vmatprep.subr.mxu0 0.0
    %1341 = vmatpush1.msra.mxu0 0.0
    %1342 = vmatprep.subr.mxu0 0.0
    %1343 = vmatpush1.msra.mxu0 0.0
    %1344 = vmatprep.subr.mxu0 0.0
    %1345 = vmatpush1.msra.mxu0 0.0
    %1346 = vmatprep.subr.mxu0 0.0
    %1347 = vmatpush1.msra.mxu0 0.0
    %1348 = vmatprep.subr.mxu0 0.0
    %1349 = vmatpush1.msra.mxu0 0.0
    %1350 = vmatprep.subr.mxu0 0.0
    %1351 = vmatpush1.msra.mxu0 0.0
    %1352 = vmatprep.subr.mxu0 0.0
    %1353 = vmatpush1.msra.mxu0 0.0
    %1354 = vmatprep.subr.mxu0 0.0
    %1355 = vmatpush1.msra.mxu0 0.0
    %1356 = vmatprep.subr.mxu0 0.0
    %1357 = vmatpush1.msra.mxu0 0.0
    %1358 = vmatprep.subr.mxu0 0.0
    %1359 = vmatpush1.msra.mxu0 0.0
    %1360 = vmatprep.subr.mxu0 0.0
    %1361 = vmatpush1.msra.mxu0 0.0
    %1362 = vmatprep.subr.mxu0 0.0
    %1363 = vmatpush1.msra.mxu0 0.0
    %1364 = vmatprep.subr.mxu0 0.0
    %1365 = vmatpush1.msra.mxu0 0.0
    %1366 = vmatprep.subr.mxu0 0.0
    %1367 = vmatpush1.msra.mxu0 0.0
    %1368 = vmatprep.subr.mxu0 0.0
    %1369 = vmatpush1.msra.mxu0 0.0
    %1370 = vmatprep.mubr.f32.mxu0 0.0
    %1371 = vmatmul.mubr.f32.gmra.mrb[0].mxu0 %v1302
    %v1372 = vpop.f32.mrb[0].mxu0
    %v1373 = vadd.f32 0.0, %v1372
    %v1374 = vpop.f32.mrb[0].mxu0
    %1375 = vdwg.mxu0
    %1377 = vrot.lane.b32.xlu0 %v1373, 16
    %v1378 = vpop.permute.xlu0 %1377
    %1380 = vst.msk [vmem:[#allocation2 + $0x4] sm:$0xf] %vm698, %v1378
    %1381 = vrot.lane.b32.xlu0 %v872, 104
    %v1382 = vpop.permute.xlu0 %1381
    %1383 = vrot.lane.b32.xlu0 %v873, 72
    %v1384 = vpop.permute.xlu0 %1383
    %v1385 = vsel %vm187, %v1382, 0
    %v1387 = vsel %vm187, %v1384, 0
    %1389 = vmatprep.subr.mxu0 0.0
    %1390 = vmatpush1.xpose.msra.mxu0 %v1387
    %1391 = vmatprep.subr.mxu0 0.0
    %1392 = vmatpush1.xpose.msra.mxu0 0.0
    %1393 = vmatprep.subr.mxu0 0.0
    %1394 = vmatpush1.xpose.msra.mxu0 0.0
    %1395 = vmatprep.subr.mxu0 0.0
    %1396 = vmatpush1.xpose.msra.mxu0 0.0
    %1397 = vmatprep.subr.mxu0 0.0
    %1398 = vmatpush1.xpose.msra.mxu0 0.0
    %1399 = vmatprep.subr.mxu0 0.0
    %1400 = vmatpush1.xpose.msra.mxu0 0.0
    %1401 = vmatprep.subr.mxu0 0.0
    %1402 = vmatpush1.xpose.msra.mxu0 0.0
    %1403 = vmatprep.subr.mxu0 0.0
    %1404 = vmatpush1.xpose.msra.mxu0 0.0
    %1405 = vmatprep.subr.mxu0 0.0
    %1406 = vmatpush1.xpose.msra.mxu0 0.0
    %1407 = vmatprep.subr.mxu0 0.0
    %1408 = vmatpush1.xpose.msra.mxu0 0.0
    %1409 = vmatprep.subr.mxu0 0.0
    %1410 = vmatpush1.xpose.msra.mxu0 0.0
    %1411 = vmatprep.subr.mxu0 0.0
    %1412 = vmatpush1.xpose.msra.mxu0 0.0
    %1413 = vmatprep.subr.mxu0 0.0
    %1414 = vmatpush1.xpose.msra.mxu0 0.0
    %1415 = vmatprep.subr.mxu0 0.0
    %1416 = vmatpush1.xpose.msra.mxu0 0.0
    %1417 = vmatprep.subr.mxu0 0.0
    %1418 = vmatpush1.xpose.msra.mxu0 0.0
    %1419 = vmatprep.subr.mxu0 0.0
    %1420 = vmatpush1.xpose.msra.mxu0 0.0
    %1421 = vmatprep.subr.mxu0 0.0
    %1422 = vmatpush1.xpose.msra.mxu0 0.0
    %1423 = vmatprep.subr.mxu0 0.0
    %1424 = vmatpush1.xpose.msra.mxu0 0.0
    %1425 = vmatprep.subr.mxu0 0.0
    %1426 = vmatpush1.xpose.msra.mxu0 0.0
    %1427 = vmatprep.subr.mxu0 0.0
    %1428 = vmatpush1.xpose.msra.mxu0 0.0
    %1429 = vmatprep.subr.mxu0 0.0
    %1430 = vmatpush1.xpose.msra.mxu0 0.0
    %1431 = vmatprep.subr.mxu0 0.0
    %1432 = vmatpush1.xpose.msra.mxu0 0.0
    %1433 = vmatprep.subr.mxu0 0.0
    %1434 = vmatpush1.xpose.msra.mxu0 0.0
    %1435 = vmatprep.subr.mxu0 0.0
    %1436 = vmatpush1.xpose.msra.mxu0 0.0
    %1437 = vmatprep.subr.mxu0 0.0
    %1438 = vmatpush1.xpose.msra.mxu0 0.0
    %1439 = vmatprep.subr.mxu0 0.0
    %1440 = vmatpush1.xpose.msra.mxu0 0.0
    %1441 = vmatprep.subr.mxu0 0.0
    %1442 = vmatpush1.xpose.msra.mxu0 0.0
    %1443 = vmatprep.subr.mxu0 0.0
    %1444 = vmatpush1.xpose.msra.mxu0 0.0
    %1445 = vmatprep.subr.mxu0 0.0
    %1446 = vmatpush1.xpose.msra.mxu0 0.0
    %1447 = vmatprep.subr.mxu0 0.0
    %1448 = vmatpush1.xpose.msra.mxu0 0.0
    %1449 = vmatprep.subr.mxu0 0.0
    %1450 = vmatpush1.xpose.msra.mxu0 0.0
    %1451 = vmatprep.subr.mxu0 0.0
    %1452 = vmatpush1.xpose.msra.mxu0 0.0
    %1453 = vmatprep.mubr.f32.mxu0 0.0
    %1454 = vmatmul.mubr.f32.gmra.mrb[0].mxu0 %v1385
    %v1455 = vpop.f32.mrb[0].mxu0
    %v1456 = vadd.f32 %v182, %v1455
    %v1457 = vpop.f32.mrb[0].mxu0
    %1458 = vdwg.mxu0
    %v1459 = vsel %vm263, %v1456, -inf
    %1460 = vmax.xlane.f32.xlu0 %v1459
    %v1461 = vpop.xlane.xlu0 %1460
    %v1462 = vsub.f32 %v1456, %v1461
    %v1463 = vmul.f32 %v1462, 1.442695
    %v1464 = vpow.pop %v1463
    %v1465 = vsel %vm263, %v1464, 0.0
    %1466 = vadd.xlane.f32.xlu0 %v1465
    %v1467 = vpop.xlane.xlu0 %1466
    %v1468 = vrcp.pop %v1467
    %v1469 = vmul.f32 %v1464, %v1468
    %1470 = vrot.lane.b32.xlu0 %v873, 40
    %v1471 = vpop.permute.xlu0 %1470
    %v1473 = vsel %vm277, %v1469, 0
    %v1475 = vsel %vm281, %v1471, 0
    %1477 = vmatprep.subr.mxu0 0.0
    %1478 = vmatpush1.msra.mxu0 %v1475
    %1479 = vmatprep.subr.mxu0 0.0
    %1480 = vmatpush1.msra.mxu0 0.0
    %1481 = vmatprep.subr.mxu0 0.0
    %1482 = vmatpush1.msra.mxu0 0.0
    %1483 = vmatprep.subr.mxu0 0.0
    %1484 = vmatpush1.msra.mxu0 0.0
    %1485 = vmatprep.subr.mxu0 0.0
    %1486 = vmatpush1.msra.mxu0 0.0
    %1487 = vmatprep.subr.mxu0 0.0
    %1488 = vmatpush1.msra.mxu0 0.0
    %1489 = vmatprep.subr.mxu0 0.0
    %1490 = vmatpush1.msra.mxu0 0.0
    %1491 = vmatprep.subr.mxu0 0.0
    %1492 = vmatpush1.msra.mxu0 0.0
    %1493 = vmatprep.subr.mxu0 0.0
    %1494 = vmatpush1.msra.mxu0 0.0
    %1495 = vmatprep.subr.mxu0 0.0
    %1496 = vmatpush1.msra.mxu0 0.0
    %1497 = vmatprep.subr.mxu0 0.0
    %1498 = vmatpush1.msra.mxu0 0.0
    %1499 = vmatprep.subr.mxu0 0.0
    %1500 = vmatpush1.msra.mxu0 0.0
    %1501 = vmatprep.subr.mxu0 0.0
    %1502 = vmatpush1.msra.mxu0 0.0
    %1503 = vmatprep.subr.mxu0 0.0
    %1504 = vmatpush1.msra.mxu0 0.0
    %1505 = vmatprep.subr.mxu0 0.0
    %1506 = vmatpush1.msra.mxu0 0.0
    %1507 = vmatprep.subr.mxu0 0.0
    %1508 = vmatpush1.msra.mxu0 0.0
    %1509 = vmatprep.subr.mxu0 0.0
    %1510 = vmatpush1.msra.mxu0 0.0
    %1511 = vmatprep.subr.mxu0 0.0
    %1512 = vmatpush1.msra.mxu0 0.0
    %1513 = vmatprep.subr.mxu0 0.0
    %1514 = vmatpush1.msra.mxu0 0.0
    %1515 = vmatprep.subr.mxu0 0.0
    %1516 = vmatpush1.msra.mxu0 0.0
    %1517 = vmatprep.subr.mxu0 0.0
    %1518 = vmatpush1.msra.mxu0 0.0
    %1519 = vmatprep.subr.mxu0 0.0
    %1520 = vmatpush1.msra.mxu0 0.0
    %1521 = vmatprep.subr.mxu0 0.0
    %1522 = vmatpush1.msra.mxu0 0.0
    %1523 = vmatprep.subr.mxu0 0.0
    %1524 = vmatpush1.msra.mxu0 0.0
    %1525 = vmatprep.subr.mxu0 0.0
    %1526 = vmatpush1.msra.mxu0 0.0
    %1527 = vmatprep.subr.mxu0 0.0
    %1528 = vmatpush1.msra.mxu0 0.0
    %1529 = vmatprep.subr.mxu0 0.0
    %1530 = vmatpush1.msra.mxu0 0.0
    %1531 = vmatprep.subr.mxu0 0.0
    %1532 = vmatpush1.msra.mxu0 0.0
    %1533 = vmatprep.subr.mxu0 0.0
    %1534 = vmatpush1.msra.mxu0 0.0
    %1535 = vmatprep.subr.mxu0 0.0
    %1536 = vmatpush1.msra.mxu0 0.0
    %1537 = vmatprep.subr.mxu0 0.0
    %1538 = vmatpush1.msra.mxu0 0.0
    %1539 = vmatprep.subr.mxu0 0.0
    %1540 = vmatpush1.msra.mxu0 0.0
    %1541 = vmatprep.mubr.f32.mxu0 0.0
    %1542 = vmatmul.mubr.f32.gmra.mrb[0].mxu0 %v1473
    %v1543 = vpop.f32.mrb[0].mxu0
    %v1544 = vadd.f32 0.0, %v1543
    %v1545 = vpop.f32.mrb[0].mxu0
    %1546 = vdwg.mxu0
    %1548 = vrot.lane.b32.xlu0 %v1544, 24
    %v1549 = vpop.permute.xlu0 %1548
    %1551 = vst.msk [vmem:[#allocation2 + $0x4] sm:$0xf] %vm870, %v1549
    %v1552 = vld [vmem:[#allocation2] sm:$0xff]
    %v1553 = vld [vmem:[%s5] sm:$0xff]
    %v1554 = vld [vmem:[%s5 + $0x8] sm:$0xff]
    %v1555 = vld [vmem:[%s5 + $0x10] sm:$0xff]
    %v1556 = vld [vmem:[%s5 + $0x18] sm:$0xff]
    %v1557 = vld [vmem:[%s6] sm:$0x1]
    %v1559 = vlaneseq
    %v1560 = vshrl.u32 %v1559, 7
    %v1561 = vsub.s32 0, %v1560
    %v1562 = vrot.slane %v1557, %v1561
    %v1565 = vsel %vm109, %v1552, 0
    %1567 = vmatprep.subr.mxu0 0.0
    %1568 = vmatpush1.msra.mxu0 %v1553
    %1569 = vmatprep.subr.mxu0 0.0
    %1570 = vmatpush1.msra.mxu0 %v1554
    %1571 = vmatprep.subr.mxu0 0.0
    %1572 = vmatpush1.msra.mxu0 %v1555
    %1573 = vmatprep.subr.mxu0 0.0
    %1574 = vmatpush1.msra.mxu0 %v1556
    %1575 = vmatprep.subr.mxu0 0.0
    %1576 = vmatpush1.msra.mxu0 0.0
    %1577 = vmatprep.subr.mxu0 0.0
    %1578 = vmatpush1.msra.mxu0 0.0
    %1579 = vmatprep.subr.mxu0 0.0
    %1580 = vmatpush1.msra.mxu0 0.0
    %1581 = vmatprep.subr.mxu0 0.0
    %1582 = vmatpush1.msra.mxu0 0.0
    %1583 = vmatprep.subr.mxu0 0.0
    %1584 = vmatpush1.msra.mxu0 0.0
    %1585 = vmatprep.subr.mxu0 0.0
    %1586 = vmatpush1.msra.mxu0 0.0
    %1587 = vmatprep.subr.mxu0 0.0
    %1588 = vmatpush1.msra.mxu0 0.0
    %1589 = vmatprep.subr.mxu0 0.0
    %1590 = vmatpush1.msra.mxu0 0.0
    %1591 = vmatprep.subr.mxu0 0.0
    %1592 = vmatpush1.msra.mxu0 0.0
    %1593 = vmatprep.subr.mxu0 0.0
    %1594 = vmatpush1.msra.mxu0 0.0
    %1595 = vmatprep.subr.mxu0 0.0
    %1596 = vmatpush1.msra.mxu0 0.0
    %1597 = vmatprep.subr.mxu0 0.0
    %1598 = vmatpush1.msra.mxu0 0.0
    %1599 = vmatprep.subr.mxu0 0.0
    %1600 = vmatpush1.msra.mxu0 0.0
    %1601 = vmatprep.subr.mxu0 0.0
    %1602 = vmatpush1.msra.mxu0 0.0
    %1603 = vmatprep.subr.mxu0 0.0
    %1604 = vmatpush1.msra.mxu0 0.0
    %1605 = vmatprep.subr.mxu0 0.0
    %1606 = vmatpush1.msra.mxu0 0.0
    %1607 = vmatprep.subr.mxu0 0.0
    %1608 = vmatpush1.msra.mxu0 0.0
    %1609 = vmatprep.subr.mxu0 0.0
    %1610 = vmatpush1.msra.mxu0 0.0
    %1611 = vmatprep.subr.mxu0 0.0
    %1612 = vmatpush1.msra.mxu0 0.0
    %1613 = vmatprep.subr.mxu0 0.0
    %1614 = vmatpush1.msra.mxu0 0.0
    %1615 = vmatprep.subr.mxu0 0.0
    %1616 = vmatpush1.msra.mxu0 0.0
    %1617 = vmatprep.subr.mxu0 0.0
    %1618 = vmatpush1.msra.mxu0 0.0
    %1619 = vmatprep.subr.mxu0 0.0
    %1620 = vmatpush1.msra.mxu0 0.0
    %1621 = vmatprep.subr.mxu0 0.0
    %1622 = vmatpush1.msra.mxu0 0.0
    %1623 = vmatprep.subr.mxu0 0.0
    %1624 = vmatpush1.msra.mxu0 0.0
    %1625 = vmatprep.subr.mxu0 0.0
    %1626 = vmatpush1.msra.mxu0 0.0
    %1627 = vmatprep.subr.mxu0 0.0
    %1628 = vmatpush1.msra.mxu0 0.0
    %1629 = vmatprep.subr.mxu0 0.0
    %1630 = vmatpush1.msra.mxu0 0.0
    %1631 = vmatprep.mubr.f32.mxu0 0.0
    %1632 = vmatmul.mubr.f32.gmra.mrb[0].mxu0 %v1565
    %v1633 = vpop.f32.mrb[0].mxu0
    %v1634 = vadd.f32 %v1562, %v1633
    %v1635 = vpop.f32.mrb[0].mxu0
    %1636 = vdwg.mxu0
    %v1638 = vcombine.high %v1634, %v1634
    %v1640 = vadd.f32 %v93, %v1634
    %v1641 = vadd.f32 %v94, %v1638
    %v1642 = vld [vmem:[%s7] sm:$0x1]
    %v1643 = vld [vmem:[%s8] sm:$0x1]
    %v1646 = vcombine.low %v1640, %v1641
    %v1648 = vsel %vm109, %v1646, 0.0
    %1649 = vadd.xlane.f32.xlu0 %v1648
    %v1650 = vpop.xlane.xlu0 %1649
    %v1651 = vrcp.pop 32.0
    %v1652 = vmul.f32 %v1650, %v1651
    %v1655 = vunpack.c.l.s4 839922192
    %v1656 = vunpack.c.0.s8 %v1655
    %v1657 = vlaneseq
    %v1658 = vshrl.u32 %v1657, 7
    %v1659 = vsub.s32 %v1656, %v1658
    %v1660 = vrot.slane %v1652, %v1659
    %v1662 = vunpack.c.l.s4 1985246804
    %v1663 = vunpack.c.0.s8 %v1662
    %v1664 = vlaneseq
    %v1665 = vshrl.u32 %v1664, 7
    %v1666 = vsub.s32 %v1663, %v1665
    %v1667 = vrot.slane %v1652, %v1666
    %v1670 = vsub.f32 %v1640, %v1660
    %v1671 = vsub.f32 %v1641, %v1667
    %v1672 = vmul.f32 %v1670, %v1670
    %v1673 = vmul.f32 %v1671, %v1671
    %v1676 = vcombine.low %v1672, %v1673
    %v1678 = vsel %vm109, %v1676, 0.0
    %1679 = vadd.xlane.f32.xlu0 %v1678
    %v1680 = vpop.xlane.xlu0 %1679
    %v1681 = vmul.f32 %v1680, %v1651
    %v1682 = vadd.f32 %v1681, 1e-05
    %v1683 = vrsqrt.pop %v1682
    %v1686 = vunpack.c.l.s4 839922192
    %v1687 = vunpack.c.0.s8 %v1686
    %v1688 = vlaneseq
    %v1689 = vshrl.u32 %v1688, 7
    %v1690 = vsub.s32 %v1687, %v1689
    %v1691 = vrot.slane %v1683, %v1690
    %v1693 = vunpack.c.l.s4 1985246804
    %v1694 = vunpack.c.0.s8 %v1693
    %v1695 = vlaneseq
    %v1696 = vshrl.u32 %v1695, 7
    %v1697 = vsub.s32 %v1694, %v1696
    %v1698 = vrot.slane %v1683, %v1697
    %v1701 = vmul.f32 %v1670, %v1691
    %v1702 = vmul.f32 %v1671, %v1698
    %v1704 = vlaneseq
    %v1705 = vshrl.u32 %v1704, 7
    %v1706 = vsub.s32 0, %v1705
    %v1707 = vrot.slane %v1642, %v1706
    %v1709 = vcombine.high %v1707, %v1707
    %v1711 = vmul.f32 %v1701, %v1707
    %v1712 = vmul.f32 %v1702, %v1709
    %v1714 = vlaneseq
    %v1715 = vshrl.u32 %v1714, 7
    %v1716 = vsub.s32 0, %v1715
    %v1717 = vrot.slane %v1643, %v1716
    %v1719 = vcombine.high %v1717, %v1717
    %v1721 = vadd.f32 %v1711, %v1717
    %v1722 = vadd.f32 %v1712, %v1719
    %v1723 = vld [vmem:[%s9] sm:$0xff]
    %v1724 = vld [vmem:[%s9 + $0x8] sm:$0xff]
    %v1725 = vld [vmem:[%s9 + $0x10] sm:$0xff]
    %v1726 = vld [vmem:[%s9 + $0x18] sm:$0xff]
    %v1727 = vld [vmem:[%s10] sm:$0x1]
    %v1729 = vlaneseq
    %v1730 = vshrl.u32 %v1729, 7
    %v1731 = vsub.s32 0, %v1730
    %v1732 = vrot.slane %v1727, %v1731
    %v1736 = vcombine.low %v1721, %v1722
    %v1737 = vsel %vm109, %v1736, 0
    %1739 = vmatprep.subr.mxu0 0.0
    %1740 = vmatpush1.msra.mxu0 %v1723
    %1741 = vmatprep.subr.mxu0 0.0
    %1742 = vmatpush1.msra.mxu0 %v1724
    %1743 = vmatprep.subr.mxu0 0.0
    %1744 = vmatpush1.msra.mxu0 %v1725
    %1745 = vmatprep.subr.mxu0 0.0
    %1746 = vmatpush1.msra.mxu0 %v1726
    %1747 = vmatprep.subr.mxu0 0.0
    %1748 = vmatpush1.msra.mxu0 0.0
    %1749 = vmatprep.subr.mxu0 0.0
    %1750 = vmatpush1.msra.mxu0 0.0
    %1751 = vmatprep.subr.mxu0 0.0
    %1752 = vmatpush1.msra.mxu0 0.0
    %1753 = vmatprep.subr.mxu0 0.0
    %1754 = vmatpush1.msra.mxu0 0.0
    %1755 = vmatprep.subr.mxu0 0.0
    %1756 = vmatpush1.msra.mxu0 0.0
    %1757 = vmatprep.subr.mxu0 0.0
    %1758 = vmatpush1.msra.mxu0 0.0
    %1759 = vmatprep.subr.mxu0 0.0
    %1760 = vmatpush1.msra.mxu0 0.0
    %1761 = vmatprep.subr.mxu0 0.0
    %1762 = vmatpush1.msra.mxu0 0.0
    %1763 = vmatprep.subr.mxu0 0.0
    %1764 = vmatpush1.msra.mxu0 0.0
    %1765 = vmatprep.subr.mxu0 0.0
    %1766 = vmatpush1.msra.mxu0 0.0
    %1767 = vmatprep.subr.mxu0 0.0
    %1768 = vmatpush1.msra.mxu0 0.0
    %1769 = vmatprep.subr.mxu0 0.0
    %1770 = vmatpush1.msra.mxu0 0.0
    %1771 = vmatprep.subr.mxu0 0.0
    %1772 = vmatpush1.msra.mxu0 0.0
    %1773 = vmatprep.subr.mxu0 0.0
    %1774 = vmatpush1.msra.mxu0 0.0
    %1775 = vmatprep.subr.mxu0 0.0
    %1776 = vmatpush1.msra.mxu0 0.0
    %1777 = vmatprep.subr.mxu0 0.0
    %1778 = vmatpush1.msra.mxu0 0.0
    %1779 = vmatprep.subr.mxu0 0.0
    %1780 = vmatpush1.msra.mxu0 0.0
    %1781 = vmatprep.subr.mxu0 0.0
    %1782 = vmatpush1.msra.mxu0 0.0
    %1783 = vmatprep.subr.mxu0 0.0
    %1784 = vmatpush1.msra.mxu0 0.0
    %1785 = vmatprep.subr.mxu0 0.0
    %1786 = vmatpush1.msra.mxu0 0.0
    %1787 = vmatprep.subr.mxu0 0.0
    %1788 = vmatpush1.msra.mxu0 0.0
    %1789 = vmatprep.subr.mxu0 0.0
    %1790 = vmatpush1.msra.mxu0 0.0
    %1791 = vmatprep.subr.mxu0 0.0
    %1792 = vmatpush1.msra.mxu0 0.0
    %1793 = vmatprep.subr.mxu0 0.0
    %1794 = vmatpush1.msra.mxu0 0.0
    %1795 = vmatprep.subr.mxu0 0.0
    %1796 = vmatpush1.msra.mxu0 0.0
    %1797 = vmatprep.subr.mxu0 0.0
    %1798 = vmatpush1.msra.mxu0 0.0
    %1799 = vmatprep.subr.mxu0 0.0
    %1800 = vmatpush1.msra.mxu0 0.0
    %1801 = vmatprep.subr.mxu0 0.0
    %1802 = vmatpush1.msra.mxu0 0.0
    %1803 = vmatprep.mubr.f32.mxu0 0.0
    %1804 = vmatmul.mubr.f32.gmra.mrb[0].mxu0 %v1737
    %v1805 = vpop.f32.mrb[0].mxu0
    %v1806 = vadd.f32 %v1732, %v1805
    %v1807 = vpop.f32.mrb[0].mxu0
    %1808 = vdwg.mxu0
    %v1809 = vmax.f32 %v1806, 0.0
    %v1810 = vld [vmem:[%s11] sm:$0xff]
    %v1811 = vld [vmem:[%s11 + $0x8] sm:$0xff]
    %v1812 = vld [vmem:[%s11 + $0x10] sm:$0xff]
    %v1813 = vld [vmem:[%s11 + $0x18] sm:$0xff]
    %v1814 = vld [vmem:[%s11 + $0x20] sm:$0xff]
    %v1815 = vld [vmem:[%s11 + $0x28] sm:$0xff]
    %v1816 = vld [vmem:[%s11 + $0x30] sm:$0xff]
    %v1817 = vld [vmem:[%s11 + $0x38] sm:$0xff]
    %v1818 = vld [vmem:[%s12] sm:$0x1]
    %v1820 = vlaneseq
    %v1821 = vshrl.u32 %v1820, 7
    %v1822 = vsub.s32 0, %v1821
    %v1823 = vrot.slane %v1818, %v1822
    %vm1825 = vcmask 523264
    %v1827 = vsel %vm1825, %v1809, 0
    %1829 = vmatprep.subr.mxu0 0.0
    %1830 = vmatpush1.msra.mxu0 %v1810
    %1831 = vmatprep.subr.mxu0 0.0
    %1832 = vmatpush1.msra.mxu0 %v1811
    %1833 = vmatprep.subr.mxu0 0.0
    %1834 = vmatpush1.msra.mxu0 %v1812
    %1835 = vmatprep.subr.mxu0 0.0
    %1836 = vmatpush1.msra.mxu0 %v1813
    %1837 = vmatprep.subr.mxu0 0.0
    %1838 = vmatpush1.msra.mxu0 %v1814
    %1839 = vmatprep.subr.mxu0 0.0
    %1840 = vmatpush1.msra.mxu0 %v1815
    %1841 = vmatprep.subr.mxu0 0.0
    %1842 = vmatpush1.msra.mxu0 %v1816
    %1843 = vmatprep.subr.mxu0 0.0
    %1844 = vmatpush1.msra.mxu0 %v1817
    %1845 = vmatprep.subr.mxu0 0.0
    %1846 = vmatpush1.msra.mxu0 0.0
    %1847 = vmatprep.subr.mxu0 0.0
    %1848 = vmatpush1.msra.mxu0 0.0
    %1849 = vmatprep.subr.mxu0 0.0
    %1850 = vmatpush1.msra.mxu0 0.0
    %1851 = vmatprep.subr.mxu0 0.0
    %1852 = vmatpush1.msra.mxu0 0.0
    %1853 = vmatprep.subr.mxu0 0.0
    %1854 = vmatpush1.msra.mxu0 0.0
    %1855 = vmatprep.subr.mxu0 0.0
    %1856 = vmatpush1.msra.mxu0 0.0
    %1857 = vmatprep.subr.mxu0 0.0
    %1858 = vmatpush1.msra.mxu0 0.0
    %1859 = vmatprep.subr.mxu0 0.0
    %1860 = vmatpush1.msra.mxu0 0.0
    %1861 = vmatprep.subr.mxu0 0.0
    %1862 = vmatpush1.msra.mxu0 0.0
    %1863 = vmatprep.subr.mxu0 0.0
    %1864 = vmatpush1.msra.mxu0 0.0
    %1865 = vmatprep.subr.mxu0 0.0
    %1866 = vmatpush1.msra.mxu0 0.0
    %1867 = vmatprep.subr.mxu0 0.0
    %1868 = vmatpush1.msra.mxu0 0.0
    %1869 = vmatprep.subr.mxu0 0.0
    %1870 = vmatpush1.msra.mxu0 0.0
    %1871 = vmatprep.subr.mxu0 0.0
    %1872 = vmatpush1.msra.mxu0 0.0
    %1873 = vmatprep.subr.mxu0 0.0
    %1874 = vmatpush1.msra.mxu0 0.0
    %1875 = vmatprep.subr.mxu0 0.0
    %1876 = vmatpush1.msra.mxu0 0.0
    %1877 = vmatprep.subr.mxu0 0.0
    %1878 = vmatpush1.msra.mxu0 0.0
    %1879 = vmatprep.subr.mxu0 0.0
    %1880 = vmatpush1.msra.mxu0 0.0
    %1881 = vmatprep.subr.mxu0 0.0
    %1882 = vmatpush1.msra.mxu0 0.0
    %1883 = vmatprep.subr.mxu0 0.0
    %1884 = vmatpush1.msra.mxu0 0.0
    %1885 = vmatprep.subr.mxu0 0.0
    %1886 = vmatpush1.msra.mxu0 0.0
    %1887 = vmatprep.subr.mxu0 0.0
    %1888 = vmatpush1.msra.mxu0 0.0
    %1889 = vmatprep.subr.mxu0 0.0
    %1890 = vmatpush1.msra.mxu0 0.0
    %1891 = vmatprep.subr.mxu0 0.0
    %1892 = vmatpush1.msra.mxu0 0.0
    %1893 = vmatprep.mubr.f32.mxu0 0.0
    %1894 = vmatmul.mubr.f32.gmra.mrb[0].mxu0 %v1827
    %v1895 = vpop.f32.mrb[0].mxu0
    %v1896 = vadd.f32 %v1823, %v1895
    %v1897 = vpop.f32.mrb[0].mxu0
    %1898 = vdwg.mxu0
    %v1900 = vcombine.high %v1896, %v1896
    %v1902 = vadd.f32 %v1721, %v1896
    %v1903 = vadd.f32 %v1722, %v1900
    %v1904 = vld [vmem:[%s13] sm:$0x1]
    %v1905 = vld [vmem:[%s14] sm:$0x1]
    %v1908 = vcombine.low %v1902, %v1903
    %v1910 = vsel %vm109, %v1908, 0.0
    %1911 = vadd.xlane.f32.xlu0 %v1910
    %v1912 = vpop.xlane.xlu0 %1911
    %v1913 = vmul.f32 %v1912, %v1651
    %v1916 = vunpack.c.l.s4 839922192
    %v1917 = vunpack.c.0.s8 %v1916
    %v1918 = vlaneseq
    %v1919 = vshrl.u32 %v1918, 7
    %v1920 = vsub.s32 %v1917, %v1919
    %v1921 = vrot.slane %v1913, %v1920
    %v1923 = vunpack.c.l.s4 1985246804
    %v1924 = vunpack.c.0.s8 %v1923
    %v1925 = vlaneseq
    %v1926 = vshrl.u32 %v1925, 7
    %v1927 = vsub.s32 %v1924, %v1926
    %v1928 = vrot.slane %v1913, %v1927
    %v1931 = vsub.f32 %v1902, %v1921
    %v1932 = vsub.f32 %v1903, %v1928
    %v1933 = vmul.f32 %v1931, %v1931
    %v1934 = vmul.f32 %v1932, %v1932
    %v1937 = vcombine.low %v1933, %v1934
    %v1939 = vsel %vm109, %v1937, 0.0
    %1940 = vadd.xlane.f32.xlu0 %v1939
    %v1941 = vpop.xlane.xlu0 %1940
    %v1942 = vmul.f32 %v1941, %v1651
    %v1943 = vadd.f32 %v1942, 1e-05
    %v1944 = vrsqrt.pop %v1943
    %v1947 = vunpack.c.l.s4 839922192
    %v1948 = vunpack.c.0.s8 %v1947
    %v1949 = vlaneseq
    %v1950 = vshrl.u32 %v1949, 7
    %v1951 = vsub.s32 %v1948, %v1950
    %v1952 = vrot.slane %v1944, %v1951
    %v1954 = vunpack.c.l.s4 1985246804
    %v1955 = vunpack.c.0.s8 %v1954
    %v1956 = vlaneseq
    %v1957 = vshrl.u32 %v1956, 7
    %v1958 = vsub.s32 %v1955, %v1957
    %v1959 = vrot.slane %v1944, %v1958
    %v1962 = vmul.f32 %v1931, %v1952
    %v1963 = vmul.f32 %v1932, %v1959
    %v1965 = vlaneseq
    %v1966 = vshrl.u32 %v1965, 7
    %v1967 = vsub.s32 0, %v1966
    %v1968 = vrot.slane %v1904, %v1967
    %v1970 = vcombine.high %v1968, %v1968
    %v1972 = vmul.f32 %v1962, %v1968
    %v1973 = vmul.f32 %v1963, %v1970
    %v1975 = vlaneseq
    %v1976 = vshrl.u32 %v1975, 7
    %v1977 = vsub.s32 0, %v1976
    %v1978 = vrot.slane %v1905, %v1977
    %v1980 = vcombine.high %v1978, %v1978
    %v1982 = vadd.f32 %v1972, %v1978
    %v1983 = vadd.f32 %v1973, %v1980
    %s1984 = scalar_lea.vmem %s3, 32
    %v1985 = vld [vmem:[%s1984] sm:$0xff]
    %v1986 = vld [vmem:[%s1984 + $0x8] sm:$0xff]
    %v1987 = vld [vmem:[%s1984 + $0x10] sm:$0xff]
    %v1988 = vld [vmem:[%s1984 + $0x18] sm:$0xff]
    %s1989 = scalar_lea.vmem %s4, 1
    %v1990 = vld [vmem:[%s1989] sm:$0x1]
    %v1992 = vlaneseq
    %v1993 = vshrl.u32 %v1992, 7
    %v1994 = vsub.s32 0, %v1993
    %v1995 = vrot.slane %v1990, %v1994
    %v1999 = vcombine.low %v1982, %v1983
    %v2000 = vsel %vm109, %v1999, 0
    %2002 = vmatprep.subr.mxu0 0.0
    %2003 = vmatpush1.msra.mxu0 %v1985
    %2004 = vmatprep.subr.mxu0 0.0
    %2005 = vmatpush1.msra.mxu0 %v1986
    %2006 = vmatprep.subr.mxu0 0.0
    %2007 = vmatpush1.msra.mxu0 %v1987
    %2008 = vmatprep.subr.mxu0 0.0
    %2009 = vmatpush1.msra.mxu0 %v1988
    %2010 = vmatprep.subr.mxu0 0.0
    %2011 = vmatpush1.msra.mxu0 0.0
    %2012 = vmatprep.subr.mxu0 0.0
    %2013 = vmatpush1.msra.mxu0 0.0
    %2014 = vmatprep.subr.mxu0 0.0
    %2015 = vmatpush1.msra.mxu0 0.0
    %2016 = vmatprep.subr.mxu0 0.0
    %2017 = vmatpush1.msra.mxu0 0.0
    %2018 = vmatprep.subr.mxu0 0.0
    %2019 = vmatpush1.msra.mxu0 0.0
    %2020 = vmatprep.subr.mxu0 0.0
    %2021 = vmatpush1.msra.mxu0 0.0
    %2022 = vmatprep.subr.mxu0 0.0
    %2023 = vmatpush1.msra.mxu0 0.0
    %2024 = vmatprep.subr.mxu0 0.0
    %2025 = vmatpush1.msra.mxu0 0.0
    %2026 = vmatprep.subr.mxu0 0.0
    %2027 = vmatpush1.msra.mxu0 0.0
    %2028 = vmatprep.subr.mxu0 0.0
    %2029 = vmatpush1.msra.mxu0 0.0
    %2030 = vmatprep.subr.mxu0 0.0
    %2031 = vmatpush1.msra.mxu0 0.0
    %2032 = vmatprep.subr.mxu0 0.0
    %2033 = vmatpush1.msra.mxu0 0.0
    %2034 = vmatprep.subr.mxu0 0.0
    %2035 = vmatpush1.msra.mxu0 0.0
    %2036 = vmatprep.subr.mxu0 0.0
    %2037 = vmatpush1.msra.mxu0 0.0
    %2038 = vmatprep.subr.mxu0 0.0
    %2039 = vmatpush1.msra.mxu0 0.0
    %2040 = vmatprep.subr.mxu0 0.0
    %2041 = vmatpush1.msra.mxu0 0.0
    %2042 = vmatprep.subr.mxu0 0.0
    %2043 = vmatpush1.msra.mxu0 0.0
    %2044 = vmatprep.subr.mxu0 0.0
    %2045 = vmatpush1.msra.mxu0 0.0
    %2046 = vmatprep.subr.mxu0 0.0
    %2047 = vmatpush1.msra.mxu0 0.0
    %2048 = vmatprep.subr.mxu0 0.0
    %2049 = vmatpush1.msra.mxu0 0.0
    %2050 = vmatprep.subr.mxu0 0.0
    %2051 = vmatpush1.msra.mxu0 0.0
    %2052 = vmatprep.subr.mxu0 0.0
    %2053 = vmatpush1.msra.mxu0 0.0
    %2054 = vmatprep.subr.mxu0 0.0
    %2055 = vmatpush1.msra.mxu0 0.0
    %2056 = vmatprep.subr.mxu0 0.0
    %2057 = vmatpush1.msra.mxu0 0.0
    %2058 = vmatprep.subr.mxu0 0.0
    %2059 = vmatpush1.msra.mxu0 0.0
    %2060 = vmatprep.subr.mxu0 0.0
    %2061 = vmatpush1.msra.mxu0 0.0
    %2062 = vmatprep.subr.mxu0 0.0
    %2063 = vmatpush1.msra.mxu0 0.0
    %2064 = vmatprep.subr.mxu0 0.0
    %2065 = vmatpush1.msra.mxu0 0.0
    %2066 = vmatprep.mubr.f32.mxu0 0.0
    %2067 = vmatmul.mubr.f32.gmra.mrb[0].mxu0 %v2000
    %v2068 = vpop.f32.mrb[0].mxu0
    %v2069 = vadd.f32 %v1995, %v2068
    %v2070 = vpop.f32.mrb[0].mxu0
    %2071 = vdwg.mxu0
    %s2072 = scalar_lea.vmem [#allocation8], 4
    %v2073 = vld [vmem:[%s2072] sm:$0xf]
    %v2074 = vmul.f32 %v2069, 0.35355338
    %2076 = vrot.lane.b32.xlu0 %v2069, 96
    %v2077 = vpop.permute.xlu0 %2076
    %v2079 = vsel %vm187, %v2074, 0
    %v2081 = vsel %vm187, %v2077, 0
    %2083 = vmatprep.subr.mxu0 0.0
    %2084 = vmatpush1.xpose.msra.mxu0 %v2081
    %2085 = vmatprep.subr.mxu0 0.0
    %2086 = vmatpush1.xpose.msra.mxu0 0.0
    %2087 = vmatprep.subr.mxu0 0.0
    %2088 = vmatpush1.xpose.msra.mxu0 0.0
    %2089 = vmatprep.subr.mxu0 0.0
    %2090 = vmatpush1.xpose.msra.mxu0 0.0
    %2091 = vmatprep.subr.mxu0 0.0
    %2092 = vmatpush1.xpose.msra.mxu0 0.0
    %2093 = vmatprep.subr.mxu0 0.0
    %2094 = vmatpush1.xpose.msra.mxu0 0.0
    %2095 = vmatprep.subr.mxu0 0.0
    %2096 = vmatpush1.xpose.msra.mxu0 0.0
    %2097 = vmatprep.subr.mxu0 0.0
    %2098 = vmatpush1.xpose.msra.mxu0 0.0
    %2099 = vmatprep.subr.mxu0 0.0
    %2100 = vmatpush1.xpose.msra.mxu0 0.0
    %2101 = vmatprep.subr.mxu0 0.0
    %2102 = vmatpush1.xpose.msra.mxu0 0.0
    %2103 = vmatprep.subr.mxu0 0.0
    %2104 = vmatpush1.xpose.msra.mxu0 0.0
    %2105 = vmatprep.subr.mxu0 0.0
    %2106 = vmatpush1.xpose.msra.mxu0 0.0
    %2107 = vmatprep.subr.mxu0 0.0
    %2108 = vmatpush1.xpose.msra.mxu0 0.0
    %2109 = vmatprep.subr.mxu0 0.0
    %2110 = vmatpush1.xpose.msra.mxu0 0.0
    %2111 = vmatprep.subr.mxu0 0.0
    %2112 = vmatpush1.xpose.msra.mxu0 0.0
    %2113 = vmatprep.subr.mxu0 0.0
    %2114 = vmatpush1.xpose.msra.mxu0 0.0
    %2115 = vmatprep.subr.mxu0 0.0
    %2116 = vmatpush1.xpose.msra.mxu0 0.0
    %2117 = vmatprep.subr.mxu0 0.0
    %2118 = vmatpush1.xpose.msra.mxu0 0.0
    %2119 = vmatprep.subr.mxu0 0.0
    %2120 = vmatpush1.xpose.msra.mxu0 0.0
    %2121 = vmatprep.subr.mxu0 0.0
    %2122 = vmatpush1.xpose.msra.mxu0 0.0
    %2123 = vmatprep.subr.mxu0 0.0
    %2124 = vmatpush1.xpose.msra.mxu0 0.0
    %2125 = vmatprep.subr.mxu0 0.0
    %2126 = vmatpush1.xpose.msra.mxu0 0.0
    %2127 = vmatprep.subr.mxu0 0.0
    %2128 = vmatpush1.xpose.msra.mxu0 0.0
    %2129 = vmatprep.subr.mxu0 0.0
    %2130 = vmatpush1.xpose.msra.mxu0 0.0
    %2131 = vmatprep.subr.mxu0 0.0
    %2132 = vmatpush1.xpose.msra.mxu0 0.0
    %2133 = vmatprep.subr.mxu0 0.0
    %2134 = vmatpush1.xpose.msra.mxu0 0.0
    %2135 = vmatprep.subr.mxu0 0.0
    %2136 = vmatpush1.xpose.msra.mxu0 0.0
    %2137 = vmatprep.subr.mxu0 0.0
    %2138 = vmatpush1.xpose.msra.mxu0 0.0
    %2139 = vmatprep.subr.mxu0 0.0
    %2140 = vmatpush1.xpose.msra.mxu0 0.0
    %2141 = vmatprep.subr.mxu0 0.0
    %2142 = vmatpush1.xpose.msra.mxu0 0.0
    %2143 = vmatprep.subr.mxu0 0.0
    %2144 = vmatpush1.xpose.msra.mxu0 0.0
    %2145 = vmatprep.subr.mxu0 0.0
    %2146 = vmatpush1.xpose.msra.mxu0 0.0
    %2147 = vmatprep.mubr.f32.mxu0 0.0
    %2148 = vmatmul.mubr.f32.gmra.mrb[0].mxu0 %v2079
    %v2149 = vpop.f32.mrb[0].mxu0
    %v2150 = vadd.f32 %v2073, %v2149
    %v2151 = vpop.f32.mrb[0].mxu0
    %2152 = vdwg.mxu0
    %v2153 = vsel %vm263, %v2150, -inf
    %2154 = vmax.xlane.f32.xlu0 %v2153
    %v2155 = vpop.xlane.xlu0 %2154
    %v2156 = vsub.f32 %v2150, %v2155
    %v2157 = vmul.f32 %v2156, 1.442695
    %v2158 = vpow.pop %v2157
    %v2159 = vsel %vm263, %v2158, 0.0
    %2160 = vadd.xlane.f32.xlu0 %v2159
    %v2161 = vpop.xlane.xlu0 %2160
    %v2162 = vrcp.pop %v2161
    %v2163 = vmul.f32 %v2158, %v2162
    %2164 = vrot.lane.b32.xlu0 %v2069, 64
    %v2165 = vpop.permute.xlu0 %2164
    %v2167 = vsel %vm277, %v2163, 0
    %v2169 = vsel %vm281, %v2165, 0
    %2171 = vmatprep.subr.mxu0 0.0
    %2172 = vmatpush1.msra.mxu0 %v2169
    %2173 = vmatprep.subr.mxu0 0.0
    %2174 = vmatpush1.msra.mxu0 0.0
    %2175 = vmatprep.subr.mxu0 0.0
    %2176 = vmatpush1.msra.mxu0 0.0
    %2177 = vmatprep.subr.mxu0 0.0
    %2178 = vmatpush1.msra.mxu0 0.0
    %2179 = vmatprep.subr.mxu0 0.0
    %2180 = vmatpush1.msra.mxu0 0.0
    %2181 = vmatprep.subr.mxu0 0.0
    %2182 = vmatpush1.msra.mxu0 0.0
    %2183 = vmatprep.subr.mxu0 0.0
    %2184 = vmatpush1.msra.mxu0 0.0
    %2185 = vmatprep.subr.mxu0 0.0
    %2186 = vmatpush1.msra.mxu0 0.0
    %2187 = vmatprep.subr.mxu0 0.0
    %2188 = vmatpush1.msra.mxu0 0.0
    %2189 = vmatprep.subr.mxu0 0.0
    %2190 = vmatpush1.msra.mxu0 0.0
    %2191 = vmatprep.subr.mxu0 0.0
    %2192 = vmatpush1.msra.mxu0 0.0
    %2193 = vmatprep.subr.mxu0 0.0
    %2194 = vmatpush1.msra.mxu0 0.0
    %2195 = vmatprep.subr.mxu0 0.0
    %2196 = vmatpush1.msra.mxu0 0.0
    %2197 = vmatprep.subr.mxu0 0.0
    %2198 = vmatpush1.msra.mxu0 0.0
    %2199 = vmatprep.subr.mxu0 0.0
    %2200 = vmatpush1.msra.mxu0 0.0
    %2201 = vmatprep.subr.mxu0 0.0
    %2202 = vmatpush1.msra.mxu0 0.0
    %2203 = vmatprep.subr.mxu0 0.0
    %2204 = vmatpush1.msra.mxu0 0.0
    %2205 = vmatprep.subr.mxu0 0.0
    %2206 = vmatpush1.msra.mxu0 0.0
    %2207 = vmatprep.subr.mxu0 0.0
    %2208 = vmatpush1.msra.mxu0 0.0
    %2209 = vmatprep.subr.mxu0 0.0
    %2210 = vmatpush1.msra.mxu0 0.0
    %2211 = vmatprep.subr.mxu0 0.0
    %2212 = vmatpush1.msra.mxu0 0.0
    %2213 = vmatprep.subr.mxu0 0.0
    %2214 = vmatpush1.msra.mxu0 0.0
    %2215 = vmatprep.subr.mxu0 0.0
    %2216 = vmatpush1.msra.mxu0 0.0
    %2217 = vmatprep.subr.mxu0 0.0
    %2218 = vmatpush1.msra.mxu0 0.0
    %2219 = vmatprep.subr.mxu0 0.0
    %2220 = vmatpush1.msra.mxu0 0.0
    %2221 = vmatprep.subr.mxu0 0.0
    %2222 = vmatpush1.msra.mxu0 0.0
    %2223 = vmatprep.subr.mxu0 0.0
    %2224 = vmatpush1.msra.mxu0 0.0
    %2225 = vmatprep.subr.mxu0 0.0
    %2226 = vmatpush1.msra.mxu0 0.0
    %2227 = vmatprep.subr.mxu0 0.0
    %2228 = vmatpush1.msra.mxu0 0.0
    %2229 = vmatprep.subr.mxu0 0.0
    %2230 = vmatpush1.msra.mxu0 0.0
    %2231 = vmatprep.subr.mxu0 0.0
    %2232 = vmatpush1.msra.mxu0 0.0
    %2233 = vmatprep.subr.mxu0 0.0
    %2234 = vmatpush1.msra.mxu0 0.0
    %2235 = vmatprep.mubr.f32.mxu0 0.0
    %2236 = vmatmul.mubr.f32.gmra.mrb[0].mxu0 %v2167
    %v2237 = vpop.f32.mrb[0].mxu0
    %v2238 = vadd.f32 0.0, %v2237
    %v2239 = vpop.f32.mrb[0].mxu0
    %2240 = vdwg.mxu0
    %2241 = vst.msk [vmem:[#allocation2] sm:$0xf] %vm354, %v2238
    %2242 = vrot.lane.b32.xlu0 %v2074, 120
    %v2243 = vpop.permute.xlu0 %2242
    %2244 = vrot.lane.b32.xlu0 %v2069, 88
    %v2245 = vpop.permute.xlu0 %2244
    %v2246 = vsel %vm187, %v2243, 0
    %v2248 = vsel %vm187, %v2245, 0
    %2250 = vmatprep.subr.mxu0 0.0
    %2251 = vmatpush1.xpose.msra.mxu0 %v2248
    %2252 = vmatprep.subr.mxu0 0.0
    %2253 = vmatpush1.xpose.msra.mxu0 0.0
    %2254 = vmatprep.subr.mxu0 0.0
    %2255 = vmatpush1.xpose.msra.mxu0 0.0
    %2256 = vmatprep.subr.mxu0 0.0
    %2257 = vmatpush1.xpose.msra.mxu0 0.0
    %2258 = vmatprep.subr.mxu0 0.0
    %2259 = vmatpush1.xpose.msra.mxu0 0.0
    %2260 = vmatprep.subr.mxu0 0.0
    %2261 = vmatpush1.xpose.msra.mxu0 0.0
    %2262 = vmatprep.subr.mxu0 0.0
    %2263 = vmatpush1.xpose.msra.mxu0 0.0
    %2264 = vmatprep.subr.mxu0 0.0
    %2265 = vmatpush1.xpose.msra.mxu0 0.0
    %2266 = vmatprep.subr.mxu0 0.0
    %2267 = vmatpush1.xpose.msra.mxu0 0.0
    %2268 = vmatprep.subr.mxu0 0.0
    %2269 = vmatpush1.xpose.msra.mxu0 0.0
    %2270 = vmatprep.subr.mxu0 0.0
    %2271 = vmatpush1.xpose.msra.mxu0 0.0
    %2272 = vmatprep.subr.mxu0 0.0
    %2273 = vmatpush1.xpose.msra.mxu0 0.0
    %2274 = vmatprep.subr.mxu0 0.0
    %2275 = vmatpush1.xpose.msra.mxu0 0.0
    %2276 = vmatprep.subr.mxu0 0.0
    %2277 = vmatpush1.xpose.msra.mxu0 0.0
    %2278 = vmatprep.subr.mxu0 0.0
    %2279 = vmatpush1.xpose.msra.mxu0 0.0
    %2280 = vmatprep.subr.mxu0 0.0
    %2281 = vmatpush1.xpose.msra.mxu0 0.0
    %2282 = vmatprep.subr.mxu0 0.0
    %2283 = vmatpush1.xpose.msra.mxu0 0.0
    %2284 = vmatprep.subr.mxu0 0.0
    %2285 = vmatpush1.xpose.msra.mxu0 0.0
    %2286 = vmatprep.subr.mxu0 0.0
    %2287 = vmatpush1.xpose.msra.mxu0 0.0
    %2288 = vmatprep.subr.mxu0 0.0
    %2289 = vmatpush1.xpose.msra.mxu0 0.0
    %2290 = vmatprep.subr.mxu0 0.0
    %2291 = vmatpush1.xpose.msra.mxu0 0.0
    %2292 = vmatprep.subr.mxu0 0.0
    %2293 = vmatpush1.xpose.msra.mxu0 0.0
    %2294 = vmatprep.subr.mxu0 0.0
    %2295 = vmatpush1.xpose.msra.mxu0 0.0
    %2296 = vmatprep.subr.mxu0 0.0
    %2297 = vmatpush1.xpose.msra.mxu0 0.0
    %2298 = vmatprep.subr.mxu0 0.0
    %2299 = vmatpush1.xpose.msra.mxu0 0.0
    %2300 = vmatprep.subr.mxu0 0.0
    %2301 = vmatpush1.xpose.msra.mxu0 0.0
    %2302 = vmatprep.subr.mxu0 0.0
    %2303 = vmatpush1.xpose.msra.mxu0 0.0
    %2304 = vmatprep.subr.mxu0 0.0
    %2305 = vmatpush1.xpose.msra.mxu0 0.0
    %2306 = vmatprep.subr.mxu0 0.0
    %2307 = vmatpush1.xpose.msra.mxu0 0.0
    %2308 = vmatprep.subr.mxu0 0.0
    %2309 = vmatpush1.xpose.msra.mxu0 0.0
    %2310 = vmatprep.subr.mxu0 0.0
    %2311 = vmatpush1.xpose.msra.mxu0 0.0
    %2312 = vmatprep.subr.mxu0 0.0
    %2313 = vmatpush1.xpose.msra.mxu0 0.0
    %2314 = vmatprep.mubr.f32.mxu0 0.0
    %2315 = vmatmul.mubr.f32.gmra.mrb[0].mxu0 %v2246
    %v2316 = vpop.f32.mrb[0].mxu0
    %v2317 = vadd.f32 %v2073, %v2316
    %v2318 = vpop.f32.mrb[0].mxu0
    %2319 = vdwg.mxu0
    %v2320 = vsel %vm263, %v2317, -inf
    %2321 = vmax.xlane.f32.xlu0 %v2320
    %v2322 = vpop.xlane.xlu0 %2321
    %v2323 = vsub.f32 %v2317, %v2322
    %v2324 = vmul.f32 %v2323, 1.442695
    %v2325 = vpow.pop %v2324
    %v2326 = vsel %vm263, %v2325, 0.0
    %2327 = vadd.xlane.f32.xlu0 %v2326
    %v2328 = vpop.xlane.xlu0 %2327
    %v2329 = vrcp.pop %v2328
    %v2330 = vmul.f32 %v2325, %v2329
    %2331 = vrot.lane.b32.xlu0 %v2069, 56
    %v2332 = vpop.permute.xlu0 %2331
    %v2334 = vsel %vm277, %v2330, 0
    %v2336 = vsel %vm281, %v2332, 0
    %2338 = vmatprep.subr.mxu0 0.0
    %2339 = vmatpush1.msra.mxu0 %v2336
    %2340 = vmatprep.subr.mxu0 0.0
    %2341 = vmatpush1.msra.mxu0 0.0
    %2342 = vmatprep.subr.mxu0 0.0
    %2343 = vmatpush1.msra.mxu0 0.0
    %2344 = vmatprep.subr.mxu0 0.0
    %2345 = vmatpush1.msra.mxu0 0.0
    %2346 = vmatprep.subr.mxu0 0.0
    %2347 = vmatpush1.msra.mxu0 0.0
    %2348 = vmatprep.subr.mxu0 0.0
    %2349 = vmatpush1.msra.mxu0 0.0
    %2350 = vmatprep.subr.mxu0 0.0
    %2351 = vmatpush1.msra.mxu0 0.0
    %2352 = vmatprep.subr.mxu0 0.0
    %2353 = vmatpush1.msra.mxu0 0.0
    %2354 = vmatprep.subr.mxu0 0.0
    %2355 = vmatpush1.msra.mxu0 0.0
    %2356 = vmatprep.subr.mxu0 0.0
    %2357 = vmatpush1.msra.mxu0 0.0
    %2358 = vmatprep.subr.mxu0 0.0
    %2359 = vmatpush1.msra.mxu0 0.0
    %2360 = vmatprep.subr.mxu0 0.0
    %2361 = vmatpush1.msra.mxu0 0.0
    %2362 = vmatprep.subr.mxu0 0.0
    %2363 = vmatpush1.msra.mxu0 0.0
    %2364 = vmatprep.subr.mxu0 0.0
    %2365 = vmatpush1.msra.mxu0 0.0
    %2366 = vmatprep.subr.mxu0 0.0
    %2367 = vmatpush1.msra.mxu0 0.0
    %2368 = vmatprep.subr.mxu0 0.0
    %2369 = vmatpush1.msra.mxu0 0.0
    %2370 = vmatprep.subr.mxu0 0.0
    %2371 = vmatpush1.msra.mxu0 0.0
    %2372 = vmatprep.subr.mxu0 0.0
    %2373 = vmatpush1.msra.mxu0 0.0
    %2374 = vmatprep.subr.mxu0 0.0
    %2375 = vmatpush1.msra.mxu0 0.0
    %2376 = vmatprep.subr.mxu0 0.0
    %2377 = vmatpush1.msra.mxu0 0.0
    %2378 = vmatprep.subr.mxu0 0.0
    %2379 = vmatpush1.msra.mxu0 0.0
    %2380 = vmatprep.subr.mxu0 0.0
    %2381 = vmatpush1.msra.mxu0 0.0
    %2382 = vmatprep.subr.mxu0 0.0
    %2383 = vmatpush1.msra.mxu0 0.0
    %2384 = vmatprep.subr.mxu0 0.0
    %2385 = vmatpush1.msra.mxu0 0.0
    %2386 = vmatprep.subr.mxu0 0.0
    %2387 = vmatpush1.msra.mxu0 0.0
    %2388 = vmatprep.subr.mxu0 0.0
    %2389 = vmatpush1.msra.mxu0 0.0
    %2390 = vmatprep.subr.mxu0 0.0
    %2391 = vmatpush1.msra.mxu0 0.0
    %2392 = vmatprep.subr.mxu0 0.0
    %2393 = vmatpush1.msra.mxu0 0.0
    %2394 = vmatprep.subr.mxu0 0.0
    %2395 = vmatpush1.msra.mxu0 0.0
    %2396 = vmatprep.subr.mxu0 0.0
    %2397 = vmatpush1.msra.mxu0 0.0
    %2398 = vmatprep.subr.mxu0 0.0
    %2399 = vmatpush1.msra.mxu0 0.0
    %2400 = vmatprep.subr.mxu0 0.0
    %2401 = vmatpush1.msra.mxu0 0.0
    %2402 = vmatprep.mubr.f32.mxu0 0.0
    %2403 = vmatmul.mubr.f32.gmra.mrb[0].mxu0 %v2334
    %v2404 = vpop.f32.mrb[0].mxu0
    %v2405 = vadd.f32 0.0, %v2404
    %v2406 = vpop.f32.mrb[0].mxu0
    %2407 = vdwg.mxu0
    %2409 = vrot.lane.b32.xlu0 %v2405, 8
    %v2410 = vpop.permute.xlu0 %2409
    %2412 = vst.msk [vmem:[#allocation2] sm:$0xf] %vm526, %v2410
    %2413 = vrot.lane.b32.xlu0 %v2074, 112
    %v2414 = vpop.permute.xlu0 %2413
    %2415 = vrot.lane.b32.xlu0 %v2069, 80
    %v2416 = vpop.permute.xlu0 %2415
    %v2417 = vsel %vm187, %v2414, 0
    %v2419 = vsel %vm187, %v2416, 0
    %2421 = vmatprep.subr.mxu0 0.0
    %2422 = vmatpush1.xpose.msra.mxu0 %v2419
    %2423 = vmatprep.subr.mxu0 0.0
    %2424 = vmatpush1.xpose.msra.mxu0 0.0
    %2425 = vmatprep.subr.mxu0 0.0
    %2426 = vmatpush1.xpose.msra.mxu0 0.0
    %2427 = vmatprep.subr.mxu0 0.0
    %2428 = vmatpush1.xpose.msra.mxu0 0.0
    %2429 = vmatprep.subr.mxu0 0.0
    %2430 = vmatpush1.xpose.msra.mxu0 0.0
    %2431 = vmatprep.subr.mxu0 0.0
    %2432 = vmatpush1.xpose.msra.mxu0 0.0
    %2433 = vmatprep.subr.mxu0 0.0
    %2434 = vmatpush1.xpose.msra.mxu0 0.0
    %2435 = vmatprep.subr.mxu0 0.0
    %2436 = vmatpush1.xpose.msra.mxu0 0.0
    %2437 = vmatprep.subr.mxu0 0.0
    %2438 = vmatpush1.xpose.msra.mxu0 0.0
    %2439 = vmatprep.subr.mxu0 0.0
    %2440 = vmatpush1.xpose.msra.mxu0 0.0
    %2441 = vmatprep.subr.mxu0 0.0
    %2442 = vmatpush1.xpose.msra.mxu0 0.0
    %2443 = vmatprep.subr.mxu0 0.0
    %2444 = vmatpush1.xpose.msra.mxu0 0.0
    %2445 = vmatprep.subr.mxu0 0.0
    %2446 = vmatpush1.xpose.msra.mxu0 0.0
    %2447 = vmatprep.subr.mxu0 0.0
    %2448 = vmatpush1.xpose.msra.mxu0 0.0
    %2449 = vmatprep.subr.mxu0 0.0
    %2450 = vmatpush1.xpose.msra.mxu0 0.0
    %2451 = vmatprep.subr.mxu0 0.0
    %2452 = vmatpush1.xpose.msra.mxu0 0.0
    %2453 = vmatprep.subr.mxu0 0.0
    %2454 = vmatpush1.xpose.msra.mxu0 0.0
    %2455 = vmatprep.subr.mxu0 0.0
    %2456 = vmatpush1.xpose.msra.mxu0 0.0
    %2457 = vmatprep.subr.mxu0 0.0
    %2458 = vmatpush1.xpose.msra.mxu0 0.0
    %2459 = vmatprep.subr.mxu0 0.0
    %2460 = vmatpush1.xpose.msra.mxu0 0.0
    %2461 = vmatprep.subr.mxu0 0.0
    %2462 = vmatpush1.xpose.msra.mxu0 0.0
    %2463 = vmatprep.subr.mxu0 0.0
    %2464 = vmatpush1.xpose.msra.mxu0 0.0
    %2465 = vmatprep.subr.mxu0 0.0
    %2466 = vmatpush1.xpose.msra.mxu0 0.0
    %2467 = vmatprep.subr.mxu0 0.0
    %2468 = vmatpush1.xpose.msra.mxu0 0.0
    %2469 = vmatprep.subr.mxu0 0.0
    %2470 = vmatpush1.xpose.msra.mxu0 0.0
    %2471 = vmatprep.subr.mxu0 0.0
    %2472 = vmatpush1.xpose.msra.mxu0 0.0
    %2473 = vmatprep.subr.mxu0 0.0
    %2474 = vmatpush1.xpose.msra.mxu0 0.0
    %2475 = vmatprep.subr.mxu0 0.0
    %2476 = vmatpush1.xpose.msra.mxu0 0.0
    %2477 = vmatprep.subr.mxu0 0.0
    %2478 = vmatpush1.xpose.msra.mxu0 0.0
    %2479 = vmatprep.subr.mxu0 0.0
    %2480 = vmatpush1.xpose.msra.mxu0 0.0
    %2481 = vmatprep.subr.mxu0 0.0
    %2482 = vmatpush1.xpose.msra.mxu0 0.0
    %2483 = vmatprep.subr.mxu0 0.0
    %2484 = vmatpush1.xpose.msra.mxu0 0.0
    %2485 = vmatprep.mubr.f32.mxu0 0.0
    %2486 = vmatmul.mubr.f32.gmra.mrb[0].mxu0 %v2417
    %v2487 = vpop.f32.mrb[0].mxu0
    %v2488 = vadd.f32 %v2073, %v2487
    %v2489 = vpop.f32.mrb[0].mxu0
    %2490 = vdwg.mxu0
    %v2491 = vsel %vm263, %v2488, -inf
    %2492 = vmax.xlane.f32.xlu0 %v2491
    %v2493 = vpop.xlane.xlu0 %2492
    %v2494 = vsub.f32 %v2488, %v2493
    %v2495 = vmul.f32 %v2494, 1.442695
    %v2496 = vpow.pop %v2495
    %v2497 = vsel %vm263, %v2496, 0.0
    %2498 = vadd.xlane.f32.xlu0 %v2497
    %v2499 = vpop.xlane.xlu0 %2498
    %v2500 = vrcp.pop %v2499
    %v2501 = vmul.f32 %v2496, %v2500
    %2502 = vrot.lane.b32.xlu0 %v2069, 48
    %v2503 = vpop.permute.xlu0 %2502
    %v2505 = vsel %vm277, %v2501, 0
    %v2507 = vsel %vm281, %v2503, 0
    %2509 = vmatprep.subr.mxu0 0.0
    %2510 = vmatpush1.msra.mxu0 %v2507
    %2511 = vmatprep.subr.mxu0 0.0
    %2512 = vmatpush1.msra.mxu0 0.0
    %2513 = vmatprep.subr.mxu0 0.0
    %2514 = vmatpush1.msra.mxu0 0.0
    %2515 = vmatprep.subr.mxu0 0.0
    %2516 = vmatpush1.msra.mxu0 0.0
    %2517 = vmatprep.subr.mxu0 0.0
    %2518 = vmatpush1.msra.mxu0 0.0
    %2519 = vmatprep.subr.mxu0 0.0
    %2520 = vmatpush1.msra.mxu0 0.0
    %2521 = vmatprep.subr.mxu0 0.0
    %2522 = vmatpush1.msra.mxu0 0.0
    %2523 = vmatprep.subr.mxu0 0.0
    %2524 = vmatpush1.msra.mxu0 0.0
    %2525 = vmatprep.subr.mxu0 0.0
    %2526 = vmatpush1.msra.mxu0 0.0
    %2527 = vmatprep.subr.mxu0 0.0
    %2528 = vmatpush1.msra.mxu0 0.0
    %2529 = vmatprep.subr.mxu0 0.0
    %2530 = vmatpush1.msra.mxu0 0.0
    %2531 = vmatprep.subr.mxu0 0.0
    %2532 = vmatpush1.msra.mxu0 0.0
    %2533 = vmatprep.subr.mxu0 0.0
    %2534 = vmatpush1.msra.mxu0 0.0
    %2535 = vmatprep.subr.mxu0 0.0
    %2536 = vmatpush1.msra.mxu0 0.0
    %2537 = vmatprep.subr.mxu0 0.0
    %2538 = vmatpush1.msra.mxu0 0.0
    %2539 = vmatprep.subr.mxu0 0.0
    %2540 = vmatpush1.msra.mxu0 0.0
    %2541 = vmatprep.subr.mxu0 0.0
    %2542 = vmatpush1.msra.mxu0 0.0
    %2543 = vmatprep.subr.mxu0 0.0
    %2544 = vmatpush1.msra.mxu0 0.0
    %2545 = vmatprep.subr.mxu0 0.0
    %2546 = vmatpush1.msra.mxu0 0.0
    %2547 = vmatprep.subr.mxu0 0.0
    %2548 = vmatpush1.msra.mxu0 0.0
    %2549 = vmatprep.subr.mxu0 0.0
    %2550 = vmatpush1.msra.mxu0 0.0
    %2551 = vmatprep.subr.mxu0 0.0
    %2552 = vmatpush1.msra.mxu0 0.0
    %2553 = vmatprep.subr.mxu0 0.0
    %2554 = vmatpush1.msra.mxu0 0.0
    %2555 = vmatprep.subr.mxu0 0.0
    %2556 = vmatpush1.msra.mxu0 0.0
    %2557 = vmatprep.subr.mxu0 0.0
    %2558 = vmatpush1.msra.mxu0 0.0
    %2559 = vmatprep.subr.mxu0 0.0
    %2560 = vmatpush1.msra.mxu0 0.0
    %2561 = vmatprep.subr.mxu0 0.0
    %2562 = vmatpush1.msra.mxu0 0.0
    %2563 = vmatprep.subr.mxu0 0.0
    %2564 = vmatpush1.msra.mxu0 0.0
    %2565 = vmatprep.subr.mxu0 0.0
    %2566 = vmatpush1.msra.mxu0 0.0
    %2567 = vmatprep.subr.mxu0 0.0
    %2568 = vmatpush1.msra.mxu0 0.0
    %2569 = vmatprep.subr.mxu0 0.0
    %2570 = vmatpush1.msra.mxu0 0.0
    %2571 = vmatprep.subr.mxu0 0.0
    %2572 = vmatpush1.msra.mxu0 0.0
    %2573 = vmatprep.mubr.f32.mxu0 0.0
    %2574 = vmatmul.mubr.f32.gmra.mrb[0].mxu0 %v2505
    %v2575 = vpop.f32.mrb[0].mxu0
    %v2576 = vadd.f32 0.0, %v2575
    %v2577 = vpop.f32.mrb[0].mxu0
    %2578 = vdwg.mxu0
    %2580 = vrot.lane.b32.xlu0 %v2576, 16
    %v2581 = vpop.permute.xlu0 %2580
    %2583 = vst.msk [vmem:[#allocation2] sm:$0xf] %vm698, %v2581
    %2584 = vrot.lane.b32.xlu0 %v2074, 104
    %v2585 = vpop.permute.xlu0 %2584
    %2586 = vrot.lane.b32.xlu0 %v2069, 72
    %v2587 = vpop.permute.xlu0 %2586
    %v2588 = vsel %vm187, %v2585, 0
    %v2590 = vsel %vm187, %v2587, 0
    %2592 = vmatprep.subr.mxu0 0.0
    %2593 = vmatpush1.xpose.msra.mxu0 %v2590
    %2594 = vmatprep.subr.mxu0 0.0
    %2595 = vmatpush1.xpose.msra.mxu0 0.0
    %2596 = vmatprep.subr.mxu0 0.0
    %2597 = vmatpush1.xpose.msra.mxu0 0.0
    %2598 = vmatprep.subr.mxu0 0.0
    %2599 = vmatpush1.xpose.msra.mxu0 0.0
    %2600 = vmatprep.subr.mxu0 0.0
    %2601 = vmatpush1.xpose.msra.mxu0 0.0
    %2602 = vmatprep.subr.mxu0 0.0
    %2603 = vmatpush1.xpose.msra.mxu0 0.0
    %2604 = vmatprep.subr.mxu0 0.0
    %2605 = vmatpush1.xpose.msra.mxu0 0.0
    %2606 = vmatprep.subr.mxu0 0.0
    %2607 = vmatpush1.xpose.msra.mxu0 0.0
    %2608 = vmatprep.subr.mxu0 0.0
    %2609 = vmatpush1.xpose.msra.mxu0 0.0
    %2610 = vmatprep.subr.mxu0 0.0
    %2611 = vmatpush1.xpose.msra.mxu0 0.0
    %2612 = vmatprep.subr.mxu0 0.0
    %2613 = vmatpush1.xpose.msra.mxu0 0.0
    %2614 = vmatprep.subr.mxu0 0.0
    %2615 = vmatpush1.xpose.msra.mxu0 0.0
    %2616 = vmatprep.subr.mxu0 0.0
    %2617 = vmatpush1.xpose.msra.mxu0 0.0
    %2618 = vmatprep.subr.mxu0 0.0
    %2619 = vmatpush1.xpose.msra.mxu0 0.0
    %2620 = vmatprep.subr.mxu0 0.0
    %2621 = vmatpush1.xpose.msra.mxu0 0.0
    %2622 = vmatprep.subr.mxu0 0.0
    %2623 = vmatpush1.xpose.msra.mxu0 0.0
    %2624 = vmatprep.subr.mxu0 0.0
    %2625 = vmatpush1.xpose.msra.mxu0 0.0
    %2626 = vmatprep.subr.mxu0 0.0
    %2627 = vmatpush1.xpose.msra.mxu0 0.0
    %2628 = vmatprep.subr.mxu0 0.0
    %2629 = vmatpush1.xpose.msra.mxu0 0.0
    %2630 = vmatprep.subr.mxu0 0.0
    %2631 = vmatpush1.xpose.msra.mxu0 0.0
    %2632 = vmatprep.subr.mxu0 0.0
    %2633 = vmatpush1.xpose.msra.mxu0 0.0
    %2634 = vmatprep.subr.mxu0 0.0
    %2635 = vmatpush1.xpose.msra.mxu0 0.0
    %2636 = vmatprep.subr.mxu0 0.0
    %2637 = vmatpush1.xpose.msra.mxu0 0.0
    %2638 = vmatprep.subr.mxu0 0.0
    %2639 = vmatpush1.xpose.msra.mxu0 0.0
    %2640 = vmatprep.subr.mxu0 0.0
    %2641 = vmatpush1.xpose.msra.mxu0 0.0
    %2642 = vmatprep.subr.mxu0 0.0
    %2643 = vmatpush1.xpose.msra.mxu0 0.0
    %2644 = vmatprep.subr.mxu0 0.0
    %2645 = vmatpush1.xpose.msra.mxu0 0.0
    %2646 = vmatprep.subr.mxu0 0.0
    %2647 = vmatpush1.xpose.msra.mxu0 0.0
    %2648 = vmatprep.subr.mxu0 0.0
    %2649 = vmatpush1.xpose.msra.mxu0 0.0
    %2650 = vmatprep.subr.mxu0 0.0
    %2651 = vmatpush1.xpose.msra.mxu0 0.0
    %2652 = vmatprep.subr.mxu0 0.0
    %2653 = vmatpush1.xpose.msra.mxu0 0.0
    %2654 = vmatprep.subr.mxu0 0.0
    %2655 = vmatpush1.xpose.msra.mxu0 0.0
    %2656 = vmatprep.mubr.f32.mxu0 0.0
    %2657 = vmatmul.mubr.f32.gmra.mrb[0].mxu0 %v2588
    %v2658 = vpop.f32.mrb[0].mxu0
    %v2659 = vadd.f32 %v2073, %v2658
    %v2660 = vpop.f32.mrb[0].mxu0
    %2661 = vdwg.mxu0
    %v2662 = vsel %vm263, %v2659, -inf
    %2663 = vmax.xlane.f32.xlu0 %v2662
    %v2664 = vpop.xlane.xlu0 %2663
    %v2665 = vsub.f32 %v2659, %v2664
    %v2666 = vmul.f32 %v2665, 1.442695
    %v2667 = vpow.pop %v2666
    %v2668 = vsel %vm263, %v2667, 0.0
    %2669 = vadd.xlane.f32.xlu0 %v2668
    %v2670 = vpop.xlane.xlu0 %2669
    %v2671 = vrcp.pop %v2670
    %v2672 = vmul.f32 %v2667, %v2671
    %2673 = vrot.lane.b32.xlu0 %v2069, 40
    %v2674 = vpop.permute.xlu0 %2673
    %v2676 = vsel %vm277, %v2672, 0
    %v2678 = vsel %vm281, %v2674, 0
    %2680 = vmatprep.subr.mxu0 0.0
    %2681 = vmatpush1.msra.mxu0 %v2678
    %2682 = vmatprep.subr.mxu0 0.0
    %2683 = vmatpush1.msra.mxu0 0.0
    %2684 = vmatprep.subr.mxu0 0.0
    %2685 = vmatpush1.msra.mxu0 0.0
    %2686 = vmatprep.subr.mxu0 0.0
    %2687 = vmatpush1.msra.mxu0 0.0
    %2688 = vmatprep.subr.mxu0 0.0
    %2689 = vmatpush1.msra.mxu0 0.0
    %2690 = vmatprep.subr.mxu0 0.0
    %2691 = vmatpush1.msra.mxu0 0.0
    %2692 = vmatprep.subr.mxu0 0.0
    %2693 = vmatpush1.msra.mxu0 0.0
    %2694 = vmatprep.subr.mxu0 0.0
    %2695 = vmatpush1.msra.mxu0 0.0
    %2696 = vmatprep.subr.mxu0 0.0
    %2697 = vmatpush1.msra.mxu0 0.0
    %2698 = vmatprep.subr.mxu0 0.0
    %2699 = vmatpush1.msra.mxu0 0.0
    %2700 = vmatprep.subr.mxu0 0.0
    %2701 = vmatpush1.msra.mxu0 0.0
    %2702 = vmatprep.subr.mxu0 0.0
    %2703 = vmatpush1.msra.mxu0 0.0
    %2704 = vmatprep.subr.mxu0 0.0
    %2705 = vmatpush1.msra.mxu0 0.0
    %2706 = vmatprep.subr.mxu0 0.0
    %2707 = vmatpush1.msra.mxu0 0.0
    %2708 = vmatprep.subr.mxu0 0.0
    %2709 = vmatpush1.msra.mxu0 0.0
    %2710 = vmatprep.subr.mxu0 0.0
    %2711 = vmatpush1.msra.mxu0 0.0
    %2712 = vmatprep.subr.mxu0 0.0
    %2713 = vmatpush1.msra.mxu0 0.0
    %2714 = vmatprep.subr.mxu0 0.0
    %2715 = vmatpush1.msra.mxu0 0.0
    %2716 = vmatprep.subr.mxu0 0.0
    %2717 = vmatpush1.msra.mxu0 0.0
    %2718 = vmatprep.subr.mxu0 0.0
    %2719 = vmatpush1.msra.mxu0 0.0
    %2720 = vmatprep.subr.mxu0 0.0
    %2721 = vmatpush1.msra.mxu0 0.0
    %2722 = vmatprep.subr.mxu0 0.0
    %2723 = vmatpush1.msra.mxu0 0.0
    %2724 = vmatprep.subr.mxu0 0.0
    %2725 = vmatpush1.msra.mxu0 0.0
    %2726 = vmatprep.subr.mxu0 0.0
    %2727 = vmatpush1.msra.mxu0 0.0
    %2728 = vmatprep.subr.mxu0 0.0
    %2729 = vmatpush1.msra.mxu0 0.0
    %2730 = vmatprep.subr.mxu0 0.0
    %2731 = vmatpush1.msra.mxu0 0.0
    %2732 = vmatprep.subr.mxu0 0.0
    %2733 = vmatpush1.msra.mxu0 0.0
    %2734 = vmatprep.subr.mxu0 0.0
    %2735 = vmatpush1.msra.mxu0 0.0
    %2736 = vmatprep.subr.mxu0 0.0
    %2737 = vmatpush1.msra.mxu0 0.0
    %2738 = vmatprep.subr.mxu0 0.0
    %2739 = vmatpush1.msra.mxu0 0.0
    %2740 = vmatprep.subr.mxu0 0.0
    %2741 = vmatpush1.msra.mxu0 0.0
    %2742 = vmatprep.subr.mxu0 0.0
    %2743 = vmatpush1.msra.mxu0 0.0
    %2744 = vmatprep.mubr.f32.mxu0 0.0
    %2745 = vmatmul.mubr.f32.gmra.mrb[0].mxu0 %v2676
    %v2746 = vpop.f32.mrb[0].mxu0
    %v2747 = vadd.f32 0.0, %v2746
    %v2748 = vpop.f32.mrb[0].mxu0
    %2749 = vdwg.mxu0
    %2751 = vrot.lane.b32.xlu0 %v2747, 24
    %v2752 = vpop.permute.xlu0 %2751
    %2754 = vst.msk [vmem:[#allocation2] sm:$0xf] %vm870, %v2752
    %v2755 = vrot.slane %v2074, 4
    %v2756 = vrot.slane %v2069, 4
    %2757 = vrot.lane.b32.xlu0 %v2756, 96
    %v2758 = vpop.permute.xlu0 %2757
    %v2759 = vsel %vm187, %v2755, 0
    %v2761 = vsel %vm187, %v2758, 0
    %2763 = vmatprep.subr.mxu0 0.0
    %2764 = vmatpush1.xpose.msra.mxu0 %v2761
    %2765 = vmatprep.subr.mxu0 0.0
    %2766 = vmatpush1.xpose.msra.mxu0 0.0
    %2767 = vmatprep.subr.mxu0 0.0
    %2768 = vmatpush1.xpose.msra.mxu0 0.0
    %2769 = vmatprep.subr.mxu0 0.0
    %2770 = vmatpush1.xpose.msra.mxu0 0.0
    %2771 = vmatprep.subr.mxu0 0.0
    %2772 = vmatpush1.xpose.msra.mxu0 0.0
    %2773 = vmatprep.subr.mxu0 0.0
    %2774 = vmatpush1.xpose.msra.mxu0 0.0
    %2775 = vmatprep.subr.mxu0 0.0
    %2776 = vmatpush1.xpose.msra.mxu0 0.0
    %2777 = vmatprep.subr.mxu0 0.0
    %2778 = vmatpush1.xpose.msra.mxu0 0.0
    %2779 = vmatprep.subr.mxu0 0.0
    %2780 = vmatpush1.xpose.msra.mxu0 0.0
    %2781 = vmatprep.subr.mxu0 0.0
    %2782 = vmatpush1.xpose.msra.mxu0 0.0
    %2783 = vmatprep.subr.mxu0 0.0
    %2784 = vmatpush1.xpose.msra.mxu0 0.0
    %2785 = vmatprep.subr.mxu0 0.0
    %2786 = vmatpush1.xpose.msra.mxu0 0.0
    %2787 = vmatprep.subr.mxu0 0.0
    %2788 = vmatpush1.xpose.msra.mxu0 0.0
    %2789 = vmatprep.subr.mxu0 0.0
    %2790 = vmatpush1.xpose.msra.mxu0 0.0
    %2791 = vmatprep.subr.mxu0 0.0
    %2792 = vmatpush1.xpose.msra.mxu0 0.0
    %2793 = vmatprep.subr.mxu0 0.0
    %2794 = vmatpush1.xpose.msra.mxu0 0.0
    %2795 = vmatprep.subr.mxu0 0.0
    %2796 = vmatpush1.xpose.msra.mxu0 0.0
    %2797 = vmatprep.subr.mxu0 0.0
    %2798 = vmatpush1.xpose.msra.mxu0 0.0
    %2799 = vmatprep.subr.mxu0 0.0
    %2800 = vmatpush1.xpose.msra.mxu0 0.0
    %2801 = vmatprep.subr.mxu0 0.0
    %2802 = vmatpush1.xpose.msra.mxu0 0.0
    %2803 = vmatprep.subr.mxu0 0.0
    %2804 = vmatpush1.xpose.msra.mxu0 0.0
    %2805 = vmatprep.subr.mxu0 0.0
    %2806 = vmatpush1.xpose.msra.mxu0 0.0
    %2807 = vmatprep.subr.mxu0 0.0
    %2808 = vmatpush1.xpose.msra.mxu0 0.0
    %2809 = vmatprep.subr.mxu0 0.0
    %2810 = vmatpush1.xpose.msra.mxu0 0.0
    %2811 = vmatprep.subr.mxu0 0.0
    %2812 = vmatpush1.xpose.msra.mxu0 0.0
    %2813 = vmatprep.subr.mxu0 0.0
    %2814 = vmatpush1.xpose.msra.mxu0 0.0
    %2815 = vmatprep.subr.mxu0 0.0
    %2816 = vmatpush1.xpose.msra.mxu0 0.0
    %2817 = vmatprep.subr.mxu0 0.0
    %2818 = vmatpush1.xpose.msra.mxu0 0.0
    %2819 = vmatprep.subr.mxu0 0.0
    %2820 = vmatpush1.xpose.msra.mxu0 0.0
    %2821 = vmatprep.subr.mxu0 0.0
    %2822 = vmatpush1.xpose.msra.mxu0 0.0
    %2823 = vmatprep.subr.mxu0 0.0
    %2824 = vmatpush1.xpose.msra.mxu0 0.0
    %2825 = vmatprep.subr.mxu0 0.0
    %2826 = vmatpush1.xpose.msra.mxu0 0.0
    %2827 = vmatprep.mubr.f32.mxu0 0.0
    %2828 = vmatmul.mubr.f32.gmra.mrb[0].mxu0 %v2759
    %v2829 = vpop.f32.mrb[0].mxu0
    %v2830 = vadd.f32 %v2073, %v2829
    %v2831 = vpop.f32.mrb[0].mxu0
    %2832 = vdwg.mxu0
    %v2833 = vsel %vm263, %v2830, -inf
    %2834 = vmax.xlane.f32.xlu0 %v2833
    %v2835 = vpop.xlane.xlu0 %2834
    %v2836 = vsub.f32 %v2830, %v2835
    %v2837 = vmul.f32 %v2836, 1.442695
    %v2838 = vpow.pop %v2837
    %v2839 = vsel %vm263, %v2838, 0.0
    %2840 = vadd.xlane.f32.xlu0 %v2839
    %v2841 = vpop.xlane.xlu0 %2840
    %v2842 = vrcp.pop %v2841
    %v2843 = vmul.f32 %v2838, %v2842
    %2844 = vrot.lane.b32.xlu0 %v2756, 64
    %v2845 = vpop.permute.xlu0 %2844
    %v2847 = vsel %vm277, %v2843, 0
    %v2849 = vsel %vm281, %v2845, 0
    %2851 = vmatprep.subr.mxu0 0.0
    %2852 = vmatpush1.msra.mxu0 %v2849
    %2853 = vmatprep.subr.mxu0 0.0
    %2854 = vmatpush1.msra.mxu0 0.0
    %2855 = vmatprep.subr.mxu0 0.0
    %2856 = vmatpush1.msra.mxu0 0.0
    %2857 = vmatprep.subr.mxu0 0.0
    %2858 = vmatpush1.msra.mxu0 0.0
    %2859 = vmatprep.subr.mxu0 0.0
    %2860 = vmatpush1.msra.mxu0 0.0
    %2861 = vmatprep.subr.mxu0 0.0
    %2862 = vmatpush1.msra.mxu0 0.0
    %2863 = vmatprep.subr.mxu0 0.0
    %2864 = vmatpush1.msra.mxu0 0.0
    %2865 = vmatprep.subr.mxu0 0.0
    %2866 = vmatpush1.msra.mxu0 0.0
    %2867 = vmatprep.subr.mxu0 0.0
    %2868 = vmatpush1.msra.mxu0 0.0
    %2869 = vmatprep.subr.mxu0 0.0
    %2870 = vmatpush1.msra.mxu0 0.0
    %2871 = vmatprep.subr.mxu0 0.0
    %2872 = vmatpush1.msra.mxu0 0.0
    %2873 = vmatprep.subr.mxu0 0.0
    %2874 = vmatpush1.msra.mxu0 0.0
    %2875 = vmatprep.subr.mxu0 0.0
    %2876 = vmatpush1.msra.mxu0 0.0
    %2877 = vmatprep.subr.mxu0 0.0
    %2878 = vmatpush1.msra.mxu0 0.0
    %2879 = vmatprep.subr.mxu0 0.0
    %2880 = vmatpush1.msra.mxu0 0.0
    %2881 = vmatprep.subr.mxu0 0.0
    %2882 = vmatpush1.msra.mxu0 0.0
    %2883 = vmatprep.subr.mxu0 0.0
    %2884 = vmatpush1.msra.mxu0 0.0
    %2885 = vmatprep.subr.mxu0 0.0
    %2886 = vmatpush1.msra.mxu0 0.0
    %2887 = vmatprep.subr.mxu0 0.0
    %2888 = vmatpush1.msra.mxu0 0.0
    %2889 = vmatprep.subr.mxu0 0.0
    %2890 = vmatpush1.msra.mxu0 0.0
    %2891 = vmatprep.subr.mxu0 0.0
    %2892 = vmatpush1.msra.mxu0 0.0
    %2893 = vmatprep.subr.mxu0 0.0
    %2894 = vmatpush1.msra.mxu0 0.0
    %2895 = vmatprep.subr.mxu0 0.0
    %2896 = vmatpush1.msra.mxu0 0.0
    %2897 = vmatprep.subr.mxu0 0.0
    %2898 = vmatpush1.msra.mxu0 0.0
    %2899 = vmatprep.subr.mxu0 0.0
    %2900 = vmatpush1.msra.mxu0 0.0
    %2901 = vmatprep.subr.mxu0 0.0
    %2902 = vmatpush1.msra.mxu0 0.0
    %2903 = vmatprep.subr.mxu0 0.0
    %2904 = vmatpush1.msra.mxu0 0.0
    %2905 = vmatprep.subr.mxu0 0.0
    %2906 = vmatpush1.msra.mxu0 0.0
    %2907 = vmatprep.subr.mxu0 0.0
    %2908 = vmatpush1.msra.mxu0 0.0
    %2909 = vmatprep.subr.mxu0 0.0
    %2910 = vmatpush1.msra.mxu0 0.0
    %2911 = vmatprep.subr.mxu0 0.0
    %2912 = vmatpush1.msra.mxu0 0.0
    %2913 = vmatprep.subr.mxu0 0.0
    %2914 = vmatpush1.msra.mxu0 0.0
    %2915 = vmatprep.mubr.f32.mxu0 0.0
    %2916 = vmatmul.mubr.f32.gmra.mrb[0].mxu0 %v2847
    %v2917 = vpop.f32.mrb[0].mxu0
    %v2918 = vadd.f32 0.0, %v2917
    %v2919 = vpop.f32.mrb[0].mxu0
    %2920 = vdwg.mxu0
    %2921 = vst.msk [vmem:[#allocation2 + $0x4] sm:$0xf] %vm354, %v2918
    %2922 = vrot.lane.b32.xlu0 %v2755, 120
    %v2923 = vpop.permute.xlu0 %2922
    %2924 = vrot.lane.b32.xlu0 %v2756, 88
    %v2925 = vpop.permute.xlu0 %2924
    %v2926 = vsel %vm187, %v2923, 0
    %v2928 = vsel %vm187, %v2925, 0
    %2930 = vmatprep.subr.mxu0 0.0
    %2931 = vmatpush1.xpose.msra.mxu0 %v2928
    %2932 = vmatprep.subr.mxu0 0.0
    %2933 = vmatpush1.xpose.msra.mxu0 0.0
    %2934 = vmatprep.subr.mxu0 0.0
    %2935 = vmatpush1.xpose.msra.mxu0 0.0
    %2936 = vmatprep.subr.mxu0 0.0
    %2937 = vmatpush1.xpose.msra.mxu0 0.0
    %2938 = vmatprep.subr.mxu0 0.0
    %2939 = vmatpush1.xpose.msra.mxu0 0.0
    %2940 = vmatprep.subr.mxu0 0.0
    %2941 = vmatpush1.xpose.msra.mxu0 0.0
    %2942 = vmatprep.subr.mxu0 0.0
    %2943 = vmatpush1.xpose.msra.mxu0 0.0
    %2944 = vmatprep.subr.mxu0 0.0
    %2945 = vmatpush1.xpose.msra.mxu0 0.0
    %2946 = vmatprep.subr.mxu0 0.0
    %2947 = vmatpush1.xpose.msra.mxu0 0.0
    %2948 = vmatprep.subr.mxu0 0.0
    %2949 = vmatpush1.xpose.msra.mxu0 0.0
    %2950 = vmatprep.subr.mxu0 0.0
    %2951 = vmatpush1.xpose.msra.mxu0 0.0
    %2952 = vmatprep.subr.mxu0 0.0
    %2953 = vmatpush1.xpose.msra.mxu0 0.0
    %2954 = vmatprep.subr.mxu0 0.0
    %2955 = vmatpush1.xpose.msra.mxu0 0.0
    %2956 = vmatprep.subr.mxu0 0.0
    %2957 = vmatpush1.xpose.msra.mxu0 0.0
    %2958 = vmatprep.subr.mxu0 0.0
    %2959 = vmatpush1.xpose.msra.mxu0 0.0
    %2960 = vmatprep.subr.mxu0 0.0
    %2961 = vmatpush1.xpose.msra.mxu0 0.0
    %2962 = vmatprep.subr.mxu0 0.0
    %2963 = vmatpush1.xpose.msra.mxu0 0.0
    %2964 = vmatprep.subr.mxu0 0.0
    %2965 = vmatpush1.xpose.msra.mxu0 0.0
    %2966 = vmatprep.subr.mxu0 0.0
    %2967 = vmatpush1.xpose.msra.mxu0 0.0
    %2968 = vmatprep.subr.mxu0 0.0
    %2969 = vmatpush1.xpose.msra.mxu0 0.0
    %2970 = vmatprep.subr.mxu0 0.0
    %2971 = vmatpush1.xpose.msra.mxu0 0.0
    %2972 = vmatprep.subr.mxu0 0.0
    %2973 = vmatpush1.xpose.msra.mxu0 0.0
    %2974 = vmatprep.subr.mxu0 0.0
    %2975 = vmatpush1.xpose.msra.mxu0 0.0
    %2976 = vmatprep.subr.mxu0 0.0
    %2977 = vmatpush1.xpose.msra.mxu0 0.0
    %2978 = vmatprep.subr.mxu0 0.0
    %2979 = vmatpush1.xpose.msra.mxu0 0.0
    %2980 = vmatprep.subr.mxu0 0.0
    %2981 = vmatpush1.xpose.msra.mxu0 0.0
    %2982 = vmatprep.subr.mxu0 0.0
    %2983 = vmatpush1.xpose.msra.mxu0 0.0
    %2984 = vmatprep.subr.mxu0 0.0
    %2985 = vmatpush1.xpose.msra.mxu0 0.0
    %2986 = vmatprep.subr.mxu0 0.0
    %2987 = vmatpush1.xpose.msra.mxu0 0.0
    %2988 = vmatprep.subr.mxu0 0.0
    %2989 = vmatpush1.xpose.msra.mxu0 0.0
    %2990 = vmatprep.subr.mxu0 0.0
    %2991 = vmatpush1.xpose.msra.mxu0 0.0
    %2992 = vmatprep.subr.mxu0 0.0
    %2993 = vmatpush1.xpose.msra.mxu0 0.0
    %2994 = vmatprep.mubr.f32.mxu0 0.0
    %2995 = vmatmul.mubr.f32.gmra.mrb[0].mxu0 %v2926
    %v2996 = vpop.f32.mrb[0].mxu0
    %v2997 = vadd.f32 %v2073, %v2996
    %v2998 = vpop.f32.mrb[0].mxu0
    %2999 = vdwg.mxu0
    %v3000 = vsel %vm263, %v2997, -inf
    %3001 = vmax.xlane.f32.xlu0 %v3000
    %v3002 = vpop.xlane.xlu0 %3001
    %v3003 = vsub.f32 %v2997, %v3002
    %v3004 = vmul.f32 %v3003, 1.442695
    %v3005 = vpow.pop %v3004
    %v3006 = vsel %vm263, %v3005, 0.0
    %3007 = vadd.xlane.f32.xlu0 %v3006
    %v3008 = vpop.xlane.xlu0 %3007
    %v3009 = vrcp.pop %v3008
    %v3010 = vmul.f32 %v3005, %v3009
    %3011 = vrot.lane.b32.xlu0 %v2756, 56
    %v3012 = vpop.permute.xlu0 %3011
    %v3014 = vsel %vm277, %v3010, 0
    %v3016 = vsel %vm281, %v3012, 0
    %3018 = vmatprep.subr.mxu0 0.0
    %3019 = vmatpush1.msra.mxu0 %v3016
    %3020 = vmatprep.subr.mxu0 0.0
    %3021 = vmatpush1.msra.mxu0 0.0
    %3022 = vmatprep.subr.mxu0 0.0
    %3023 = vmatpush1.msra.mxu0 0.0
    %3024 = vmatprep.subr.mxu0 0.0
    %3025 = vmatpush1.msra.mxu0 0.0
    %3026 = vmatprep.subr.mxu0 0.0
    %3027 = vmatpush1.msra.mxu0 0.0
    %3028 = vmatprep.subr.mxu0 0.0
    %3029 = vmatpush1.msra.mxu0 0.0
    %3030 = vmatprep.subr.mxu0 0.0
    %3031 = vmatpush1.msra.mxu0 0.0
    %3032 = vmatprep.subr.mxu0 0.0
    %3033 = vmatpush1.msra.mxu0 0.0
    %3034 = vmatprep.subr.mxu0 0.0
    %3035 = vmatpush1.msra.mxu0 0.0
    %3036 = vmatprep.subr.mxu0 0.0
    %3037 = vmatpush1.msra.mxu0 0.0
    %3038 = vmatprep.subr.mxu0 0.0
    %3039 = vmatpush1.msra.mxu0 0.0
    %3040 = vmatprep.subr.mxu0 0.0
    %3041 = vmatpush1.msra.mxu0 0.0
    %3042 = vmatprep.subr.mxu0 0.0
    %3043 = vmatpush1.msra.mxu0 0.0
    %3044 = vmatprep.subr.mxu0 0.0
    %3045 = vmatpush1.msra.mxu0 0.0
    %3046 = vmatprep.subr.mxu0 0.0
    %3047 = vmatpush1.msra.mxu0 0.0
    %3048 = vmatprep.subr.mxu0 0.0
    %3049 = vmatpush1.msra.mxu0 0.0
    %3050 = vmatprep.subr.mxu0 0.0
    %3051 = vmatpush1.msra.mxu0 0.0
    %3052 = vmatprep.subr.mxu0 0.0
    %3053 = vmatpush1.msra.mxu0 0.0
    %3054 = vmatprep.subr.mxu0 0.0
    %3055 = vmatpush1.msra.mxu0 0.0
    %3056 = vmatprep.subr.mxu0 0.0
    %3057 = vmatpush1.msra.mxu0 0.0
    %3058 = vmatprep.subr.mxu0 0.0
    %3059 = vmatpush1.msra.mxu0 0.0
    %3060 = vmatprep.subr.mxu0 0.0
    %3061 = vmatpush1.msra.mxu0 0.0
    %3062 = vmatprep.subr.mxu0 0.0
    %3063 = vmatpush1.msra.mxu0 0.0
    %3064 = vmatprep.subr.mxu0 0.0
    %3065 = vmatpush1.msra.mxu0 0.0
    %3066 = vmatprep.subr.mxu0 0.0
    %3067 = vmatpush1.msra.mxu0 0.0
    %3068 = vmatprep.subr.mxu0 0.0
    %3069 = vmatpush1.msra.mxu0 0.0
    %3070 = vmatprep.subr.mxu0 0.0
    %3071 = vmatpush1.msra.mxu0 0.0
    %3072 = vmatprep.subr.mxu0 0.0
    %3073 = vmatpush1.msra.mxu0 0.0
    %3074 = vmatprep.subr.mxu0 0.0
    %3075 = vmatpush1.msra.mxu0 0.0
    %3076 = vmatprep.subr.mxu0 0.0
    %3077 = vmatpush1.msra.mxu0 0.0
    %3078 = vmatprep.subr.mxu0 0.0
    %3079 = vmatpush1.msra.mxu0 0.0
    %3080 = vmatprep.subr.mxu0 0.0
    %3081 = vmatpush1.msra.mxu0 0.0
    %3082 = vmatprep.mubr.f32.mxu0 0.0
    %3083 = vmatmul.mubr.f32.gmra.mrb[0].mxu0 %v3014
    %v3084 = vpop.f32.mrb[0].mxu0
    %v3085 = vadd.f32 0.0, %v3084
    %v3086 = vpop.f32.mrb[0].mxu0
    %3087 = vdwg.mxu0
    %3089 = vrot.lane.b32.xlu0 %v3085, 8
    %v3090 = vpop.permute.xlu0 %3089
    %3092 = vst.msk [vmem:[#allocation2 + $0x4] sm:$0xf] %vm526, %v3090
    %3093 = vrot.lane.b32.xlu0 %v2755, 112
    %v3094 = vpop.permute.xlu0 %3093
    %3095 = vrot.lane.b32.xlu0 %v2756, 80
    %v3096 = vpop.permute.xlu0 %3095
    %v3097 = vsel %vm187, %v3094, 0
    %v3099 = vsel %vm187, %v3096, 0
    %3101 = vmatprep.subr.mxu0 0.0
    %3102 = vmatpush1.xpose.msra.mxu0 %v3099
    %3103 = vmatprep.subr.mxu0 0.0
    %3104 = vmatpush1.xpose.msra.mxu0 0.0
    %3105 = vmatprep.subr.mxu0 0.0
    %3106 = vmatpush1.xpose.msra.mxu0 0.0
    %3107 = vmatprep.subr.mxu0 0.0
    %3108 = vmatpush1.xpose.msra.mxu0 0.0
    %3109 = vmatprep.subr.mxu0 0.0
    %3110 = vmatpush1.xpose.msra.mxu0 0.0
    %3111 = vmatprep.subr.mxu0 0.0
    %3112 = vmatpush1.xpose.msra.mxu0 0.0
    %3113 = vmatprep.subr.mxu0 0.0
    %3114 = vmatpush1.xpose.msra.mxu0 0.0
    %3115 = vmatprep.subr.mxu0 0.0
    %3116 = vmatpush1.xpose.msra.mxu0 0.0
    %3117 = vmatprep.subr.mxu0 0.0
    %3118 = vmatpush1.xpose.msra.mxu0 0.0
    %3119 = vmatprep.subr.mxu0 0.0
    %3120 = vmatpush1.xpose.msra.mxu0 0.0
    %3121 = vmatprep.subr.mxu0 0.0
    %3122 = vmatpush1.xpose.msra.mxu0 0.0
    %3123 = vmatprep.subr.mxu0 0.0
    %3124 = vmatpush1.xpose.msra.mxu0 0.0
    %3125 = vmatprep.subr.mxu0 0.0
    %3126 = vmatpush1.xpose.msra.mxu0 0.0
    %3127 = vmatprep.subr.mxu0 0.0
    %3128 = vmatpush1.xpose.msra.mxu0 0.0
    %3129 = vmatprep.subr.mxu0 0.0
    %3130 = vmatpush1.xpose.msra.mxu0 0.0
    %3131 = vmatprep.subr.mxu0 0.0
    %3132 = vmatpush1.xpose.msra.mxu0 0.0
    %3133 = vmatprep.subr.mxu0 0.0
    %3134 = vmatpush1.xpose.msra.mxu0 0.0
    %3135 = vmatprep.subr.mxu0 0.0
    %3136 = vmatpush1.xpose.msra.mxu0 0.0
    %3137 = vmatprep.subr.mxu0 0.0
    %3138 = vmatpush1.xpose.msra.mxu0 0.0
    %3139 = vmatprep.subr.mxu0 0.0
    %3140 = vmatpush1.xpose.msra.mxu0 0.0
    %3141 = vmatprep.subr.mxu0 0.0
    %3142 = vmatpush1.xpose.msra.mxu0 0.0
    %3143 = vmatprep.subr.mxu0 0.0
    %3144 = vmatpush1.xpose.msra.mxu0 0.0
    %3145 = vmatprep.subr.mxu0 0.0
    %3146 = vmatpush1.xpose.msra.mxu0 0.0
    %3147 = vmatprep.subr.mxu0 0.0
    %3148 = vmatpush1.xpose.msra.mxu0 0.0
    %3149 = vmatprep.subr.mxu0 0.0
    %3150 = vmatpush1.xpose.msra.mxu0 0.0
    %3151 = vmatprep.subr.mxu0 0.0
    %3152 = vmatpush1.xpose.msra.mxu0 0.0
    %3153 = vmatprep.subr.mxu0 0.0
    %3154 = vmatpush1.xpose.msra.mxu0 0.0
    %3155 = vmatprep.subr.mxu0 0.0
    %3156 = vmatpush1.xpose.msra.mxu0 0.0
    %3157 = vmatprep.subr.mxu0 0.0
    %3158 = vmatpush1.xpose.msra.mxu0 0.0
    %3159 = vmatprep.subr.mxu0 0.0
    %3160 = vmatpush1.xpose.msra.mxu0 0.0
    %3161 = vmatprep.subr.mxu0 0.0
    %3162 = vmatpush1.xpose.msra.mxu0 0.0
    %3163 = vmatprep.subr.mxu0 0.0
    %3164 = vmatpush1.xpose.msra.mxu0 0.0
    %3165 = vmatprep.mubr.f32.mxu0 0.0
    %3166 = vmatmul.mubr.f32.gmra.mrb[0].mxu0 %v3097
    %v3167 = vpop.f32.mrb[0].mxu0
    %v3168 = vadd.f32 %v2073, %v3167
    %v3169 = vpop.f32.mrb[0].mxu0
    %3170 = vdwg.mxu0
    %v3171 = vsel %vm263, %v3168, -inf
    %3172 = vmax.xlane.f32.xlu0 %v3171
    %v3173 = vpop.xlane.xlu0 %3172
    %v3174 = vsub.f32 %v3168, %v3173
    %v3175 = vmul.f32 %v3174, 1.442695
    %v3176 = vpow.pop %v3175
    %v3177 = vsel %vm263, %v3176, 0.0
    %3178 = vadd.xlane.f32.xlu0 %v3177
    %v3179 = vpop.xlane.xlu0 %3178
    %v3180 = vrcp.pop %v3179
    %v3181 = vmul.f32 %v3176, %v3180
    %3182 = vrot.lane.b32.xlu0 %v2756, 48
    %v3183 = vpop.permute.xlu0 %3182
    %v3185 = vsel %vm277, %v3181, 0
    %v3187 = vsel %vm281, %v3183, 0
    %3189 = vmatprep.subr.mxu0 0.0
    %3190 = vmatpush1.msra.mxu0 %v3187
    %3191 = vmatprep.subr.mxu0 0.0
    %3192 = vmatpush1.msra.mxu0 0.0
    %3193 = vmatprep.subr.mxu0 0.0
    %3194 = vmatpush1.msra.mxu0 0.0
    %3195 = vmatprep.subr.mxu0 0.0
    %3196 = vmatpush1.msra.mxu0 0.0
    %3197 = vmatprep.subr.mxu0 0.0
    %3198 = vmatpush1.msra.mxu0 0.0
    %3199 = vmatprep.subr.mxu0 0.0
    %3200 = vmatpush1.msra.mxu0 0.0
    %3201 = vmatprep.subr.mxu0 0.0
    %3202 = vmatpush1.msra.mxu0 0.0
    %3203 = vmatprep.subr.mxu0 0.0
    %3204 = vmatpush1.msra.mxu0 0.0
    %3205 = vmatprep.subr.mxu0 0.0
    %3206 = vmatpush1.msra.mxu0 0.0
    %3207 = vmatprep.subr.mxu0 0.0
    %3208 = vmatpush1.msra.mxu0 0.0
    %3209 = vmatprep.subr.mxu0 0.0
    %3210 = vmatpush1.msra.mxu0 0.0
    %3211 = vmatprep.subr.mxu0 0.0
    %3212 = vmatpush1.msra.mxu0 0.0
    %3213 = vmatprep.subr.mxu0 0.0
    %3214 = vmatpush1.msra.mxu0 0.0
    %3215 = vmatprep.subr.mxu0 0.0
    %3216 = vmatpush1.msra.mxu0 0.0
    %3217 = vmatprep.subr.mxu0 0.0
    %3218 = vmatpush1.msra.mxu0 0.0
    %3219 = vmatprep.subr.mxu0 0.0
    %3220 = vmatpush1.msra.mxu0 0.0
    %3221 = vmatprep.subr.mxu0 0.0
    %3222 = vmatpush1.msra.mxu0 0.0
    %3223 = vmatprep.subr.mxu0 0.0
    %3224 = vmatpush1.msra.mxu0 0.0
    %3225 = vmatprep.subr.mxu0 0.0
    %3226 = vmatpush1.msra.mxu0 0.0
    %3227 = vmatprep.subr.mxu0 0.0
    %3228 = vmatpush1.msra.mxu0 0.0
    %3229 = vmatprep.subr.mxu0 0.0
    %3230 = vmatpush1.msra.mxu0 0.0
    %3231 = vmatprep.subr.mxu0 0.0
    %3232 = vmatpush1.msra.mxu0 0.0
    %3233 = vmatprep.subr.mxu0 0.0
    %3234 = vmatpush1.msra.mxu0 0.0
    %3235 = vmatprep.subr.mxu0 0.0
    %3236 = vmatpush1.msra.mxu0 0.0
    %3237 = vmatprep.subr.mxu0 0.0
    %3238 = vmatpush1.msra.mxu0 0.0
    %3239 = vmatprep.subr.mxu0 0.0
    %3240 = vmatpush1.msra.mxu0 0.0
    %3241 = vmatprep.subr.mxu0 0.0
    %3242 = vmatpush1.msra.mxu0 0.0
    %3243 = vmatprep.subr.mxu0 0.0
    %3244 = vmatpush1.msra.mxu0 0.0
    %3245 = vmatprep.subr.mxu0 0.0
    %3246 = vmatpush1.msra.mxu0 0.0
    %3247 = vmatprep.subr.mxu0 0.0
    %3248 = vmatpush1.msra.mxu0 0.0
    %3249 = vmatprep.subr.mxu0 0.0
    %3250 = vmatpush1.msra.mxu0 0.0
    %3251 = vmatprep.subr.mxu0 0.0
    %3252 = vmatpush1.msra.mxu0 0.0
    %3253 = vmatprep.mubr.f32.mxu0 0.0
    %3254 = vmatmul.mubr.f32.gmra.mrb[0].mxu0 %v3185
    %v3255 = vpop.f32.mrb[0].mxu0
    %v3256 = vadd.f32 0.0, %v3255
    %v3257 = vpop.f32.mrb[0].mxu0
    %3258 = vdwg.mxu0
    %3260 = vrot.lane.b32.xlu0 %v3256, 16
    %v3261 = vpop.permute.xlu0 %3260
    %3263 = vst.msk [vmem:[#allocation2 + $0x4] sm:$0xf] %vm698, %v3261
    %3264 = vrot.lane.b32.xlu0 %v2755, 104
    %v3265 = vpop.permute.xlu0 %3264
    %3266 = vrot.lane.b32.xlu0 %v2756, 72
    %v3267 = vpop.permute.xlu0 %3266
    %v3268 = vsel %vm187, %v3265, 0
    %v3270 = vsel %vm187, %v3267, 0
    %3272 = vmatprep.subr.mxu0 0.0
    %3273 = vmatpush1.xpose.msra.mxu0 %v3270
    %3274 = vmatprep.subr.mxu0 0.0
    %3275 = vmatpush1.xpose.msra.mxu0 0.0
    %3276 = vmatprep.subr.mxu0 0.0
    %3277 = vmatpush1.xpose.msra.mxu0 0.0
    %3278 = vmatprep.subr.mxu0 0.0
    %3279 = vmatpush1.xpose.msra.mxu0 0.0
    %3280 = vmatprep.subr.mxu0 0.0
    %3281 = vmatpush1.xpose.msra.mxu0 0.0
    %3282 = vmatprep.subr.mxu0 0.0
    %3283 = vmatpush1.xpose.msra.mxu0 0.0
    %3284 = vmatprep.subr.mxu0 0.0
    %3285 = vmatpush1.xpose.msra.mxu0 0.0
    %3286 = vmatprep.subr.mxu0 0.0
    %3287 = vmatpush1.xpose.msra.mxu0 0.0
    %3288 = vmatprep.subr.mxu0 0.0
    %3289 = vmatpush1.xpose.msra.mxu0 0.0
    %3290 = vmatprep.subr.mxu0 0.0
    %3291 = vmatpush1.xpose.msra.mxu0 0.0
    %3292 = vmatprep.subr.mxu0 0.0
    %3293 = vmatpush1.xpose.msra.mxu0 0.0
    %3294 = vmatprep.subr.mxu0 0.0
    %3295 = vmatpush1.xpose.msra.mxu0 0.0
    %3296 = vmatprep.subr.mxu0 0.0
    %3297 = vmatpush1.xpose.msra.mxu0 0.0
    %3298 = vmatprep.subr.mxu0 0.0
    %3299 = vmatpush1.xpose.msra.mxu0 0.0
    %3300 = vmatprep.subr.mxu0 0.0
    %3301 = vmatpush1.xpose.msra.mxu0 0.0
    %3302 = vmatprep.subr.mxu0 0.0
    %3303 = vmatpush1.xpose.msra.mxu0 0.0
    %3304 = vmatprep.subr.mxu0 0.0
    %3305 = vmatpush1.xpose.msra.mxu0 0.0
    %3306 = vmatprep.subr.mxu0 0.0
    %3307 = vmatpush1.xpose.msra.mxu0 0.0
    %3308 = vmatprep.subr.mxu0 0.0
    %3309 = vmatpush1.xpose.msra.mxu0 0.0
    %3310 = vmatprep.subr.mxu0 0.0
    %3311 = vmatpush1.xpose.msra.mxu0 0.0
    %3312 = vmatprep.subr.mxu0 0.0
    %3313 = vmatpush1.xpose.msra.mxu0 0.0
    %3314 = vmatprep.subr.mxu0 0.0
    %3315 = vmatpush1.xpose.msra.mxu0 0.0
    %3316 = vmatprep.subr.mxu0 0.0
    %3317 = vmatpush1.xpose.msra.mxu0 0.0
    %3318 = vmatprep.subr.mxu0 0.0
    %3319 = vmatpush1.xpose.msra.mxu0 0.0
    %3320 = vmatprep.subr.mxu0 0.0
    %3321 = vmatpush1.xpose.msra.mxu0 0.0
    %3322 = vmatprep.subr.mxu0 0.0
    %3323 = vmatpush1.xpose.msra.mxu0 0.0
    %3324 = vmatprep.subr.mxu0 0.0
    %3325 = vmatpush1.xpose.msra.mxu0 0.0
    %3326 = vmatprep.subr.mxu0 0.0
    %3327 = vmatpush1.xpose.msra.mxu0 0.0
    %3328 = vmatprep.subr.mxu0 0.0
    %3329 = vmatpush1.xpose.msra.mxu0 0.0
    %3330 = vmatprep.subr.mxu0 0.0
    %3331 = vmatpush1.xpose.msra.mxu0 0.0
    %3332 = vmatprep.subr.mxu0 0.0
    %3333 = vmatpush1.xpose.msra.mxu0 0.0
    %3334 = vmatprep.subr.mxu0 0.0
    %3335 = vmatpush1.xpose.msra.mxu0 0.0
    %3336 = vmatprep.mubr.f32.mxu0 0.0
    %3337 = vmatmul.mubr.f32.gmra.mrb[0].mxu0 %v3268
    %v3338 = vpop.f32.mrb[0].mxu0
    %v3339 = vadd.f32 %v2073, %v3338
    %v3340 = vpop.f32.mrb[0].mxu0
    %3341 = vdwg.mxu0
    %v3342 = vsel %vm263, %v3339, -inf
    %3343 = vmax.xlane.f32.xlu0 %v3342
    %v3344 = vpop.xlane.xlu0 %3343
    %v3345 = vsub.f32 %v3339, %v3344
    %v3346 = vmul.f32 %v3345, 1.442695
    %v3347 = vpow.pop %v3346
    %v3348 = vsel %vm263, %v3347, 0.0
    %3349 = vadd.xlane.f32.xlu0 %v3348
    %v3350 = vpop.xlane.xlu0 %3349
    %v3351 = vrcp.pop %v3350
    %v3352 = vmul.f32 %v3347, %v3351
    %3353 = vrot.lane.b32.xlu0 %v2756, 40
    %v3354 = vpop.permute.xlu0 %3353
    %v3356 = vsel %vm277, %v3352, 0
    %v3358 = vsel %vm281, %v3354, 0
    %3360 = vmatprep.subr.mxu0 0.0
    %3361 = vmatpush1.msra.mxu0 %v3358
    %3362 = vmatprep.subr.mxu0 0.0
    %3363 = vmatpush1.msra.mxu0 0.0
    %3364 = vmatprep.subr.mxu0 0.0
    %3365 = vmatpush1.msra.mxu0 0.0
    %3366 = vmatprep.subr.mxu0 0.0
    %3367 = vmatpush1.msra.mxu0 0.0
    %3368 = vmatprep.subr.mxu0 0.0
    %3369 = vmatpush1.msra.mxu0 0.0
    %3370 = vmatprep.subr.mxu0 0.0
    %3371 = vmatpush1.msra.mxu0 0.0
    %3372 = vmatprep.subr.mxu0 0.0
    %3373 = vmatpush1.msra.mxu0 0.0
    %3374 = vmatprep.subr.mxu0 0.0
    %3375 = vmatpush1.msra.mxu0 0.0
    %3376 = vmatprep.subr.mxu0 0.0
    %3377 = vmatpush1.msra.mxu0 0.0
    %3378 = vmatprep.subr.mxu0 0.0
    %3379 = vmatpush1.msra.mxu0 0.0
    %3380 = vmatprep.subr.mxu0 0.0
    %3381 = vmatpush1.msra.mxu0 0.0
    %3382 = vmatprep.subr.mxu0 0.0
    %3383 = vmatpush1.msra.mxu0 0.0
    %3384 = vmatprep.subr.mxu0 0.0
    %3385 = vmatpush1.msra.mxu0 0.0
    %3386 = vmatprep.subr.mxu0 0.0
    %3387 = vmatpush1.msra.mxu0 0.0
    %3388 = vmatprep.subr.mxu0 0.0
    %3389 = vmatpush1.msra.mxu0 0.0
    %3390 = vmatprep.subr.mxu0 0.0
    %3391 = vmatpush1.msra.mxu0 0.0
    %3392 = vmatprep.subr.mxu0 0.0
    %3393 = vmatpush1.msra.mxu0 0.0
    %3394 = vmatprep.subr.mxu0 0.0
    %3395 = vmatpush1.msra.mxu0 0.0
    %3396 = vmatprep.subr.mxu0 0.0
    %3397 = vmatpush1.msra.mxu0 0.0
    %3398 = vmatprep.subr.mxu0 0.0
    %3399 = vmatpush1.msra.mxu0 0.0
    %3400 = vmatprep.subr.mxu0 0.0
    %3401 = vmatpush1.msra.mxu0 0.0
    %3402 = vmatprep.subr.mxu0 0.0
    %3403 = vmatpush1.msra.mxu0 0.0
    %3404 = vmatprep.subr.mxu0 0.0
    %3405 = vmatpush1.msra.mxu0 0.0
    %3406 = vmatprep.subr.mxu0 0.0
    %3407 = vmatpush1.msra.mxu0 0.0
    %3408 = vmatprep.subr.mxu0 0.0
    %3409 = vmatpush1.msra.mxu0 0.0
    %3410 = vmatprep.subr.mxu0 0.0
    %3411 = vmatpush1.msra.mxu0 0.0
    %3412 = vmatprep.subr.mxu0 0.0
    %3413 = vmatpush1.msra.mxu0 0.0
    %3414 = vmatprep.subr.mxu0 0.0
    %3415 = vmatpush1.msra.mxu0 0.0
    %3416 = vmatprep.subr.mxu0 0.0
    %3417 = vmatpush1.msra.mxu0 0.0
    %3418 = vmatprep.subr.mxu0 0.0
    %3419 = vmatpush1.msra.mxu0 0.0
    %3420 = vmatprep.subr.mxu0 0.0
    %3421 = vmatpush1.msra.mxu0 0.0
    %3422 = vmatprep.subr.mxu0 0.0
    %3423 = vmatpush1.msra.mxu0 0.0
    %3424 = vmatprep.mubr.f32.mxu0 0.0
    %3425 = vmatmul.mubr.f32.gmra.mrb[0].mxu0 %v3356
    %v3426 = vpop.f32.mrb[0].mxu0
    %v3427 = vadd.f32 0.0, %v3426
    %v3428 = vpop.f32.mrb[0].mxu0
    %3429 = vdwg.mxu0
    %3431 = vrot.lane.b32.xlu0 %v3427, 24
    %v3432 = vpop.permute.xlu0 %3431
    %3434 = vst.msk [vmem:[#allocation2 + $0x4] sm:$0xf] %vm870, %v3432
    %v3435 = vld [vmem:[#allocation2] sm:$0xff]
    %s3436 = scalar_lea.vmem %s5, 32
    %v3437 = vld [vmem:[%s3436] sm:$0xff]
    %v3438 = vld [vmem:[%s3436 + $0x8] sm:$0xff]
    %v3439 = vld [vmem:[%s3436 + $0x10] sm:$0xff]
    %v3440 = vld [vmem:[%s3436 + $0x18] sm:$0xff]
    %s3441 = scalar_lea.vmem %s6, 1
    %v3442 = vld [vmem:[%s3441] sm:$0x1]
    %v3444 = vlaneseq
    %v3445 = vshrl.u32 %v3444, 7
    %v3446 = vsub.s32 0, %v3445
    %v3447 = vrot.slane %v3442, %v3446
    %v3450 = vsel %vm109, %v3435, 0
    %3452 = vmatprep.subr.mxu0 0.0
    %3453 = vmatpush1.msra.mxu0 %v3437
    %3454 = vmatprep.subr.mxu0 0.0
    %3455 = vmatpush1.msra.mxu0 %v3438
    %3456 = vmatprep.subr.mxu0 0.0
    %3457 = vmatpush1.msra.mxu0 %v3439
    %3458 = vmatprep.subr.mxu0 0.0
    %3459 = vmatpush1.msra.mxu0 %v3440
    %3460 = vmatprep.subr.mxu0 0.0
    %3461 = vmatpush1.msra.mxu0 0.0
    %3462 = vmatprep.subr.mxu0 0.0
    %3463 = vmatpush1.msra.mxu0 0.0
    %3464 = vmatprep.subr.mxu0 0.0
    %3465 = vmatpush1.msra.mxu0 0.0
    %3466 = vmatprep.subr.mxu0 0.0
    %3467 = vmatpush1.msra.mxu0 0.0
    %3468 = vmatprep.subr.mxu0 0.0
    %3469 = vmatpush1.msra.mxu0 0.0
    %3470 = vmatprep.subr.mxu0 0.0
    %3471 = vmatpush1.msra.mxu0 0.0
    %3472 = vmatprep.subr.mxu0 0.0
    %3473 = vmatpush1.msra.mxu0 0.0
    %3474 = vmatprep.subr.mxu0 0.0
    %3475 = vmatpush1.msra.mxu0 0.0
    %3476 = vmatprep.subr.mxu0 0.0
    %3477 = vmatpush1.msra.mxu0 0.0
    %3478 = vmatprep.subr.mxu0 0.0
    %3479 = vmatpush1.msra.mxu0 0.0
    %3480 = vmatprep.subr.mxu0 0.0
    %3481 = vmatpush1.msra.mxu0 0.0
    %3482 = vmatprep.subr.mxu0 0.0
    %3483 = vmatpush1.msra.mxu0 0.0
    %3484 = vmatprep.subr.mxu0 0.0
    %3485 = vmatpush1.msra.mxu0 0.0
    %3486 = vmatprep.subr.mxu0 0.0
    %3487 = vmatpush1.msra.mxu0 0.0
    %3488 = vmatprep.subr.mxu0 0.0
    %3489 = vmatpush1.msra.mxu0 0.0
    %3490 = vmatprep.subr.mxu0 0.0
    %3491 = vmatpush1.msra.mxu0 0.0
    %3492 = vmatprep.subr.mxu0 0.0
    %3493 = vmatpush1.msra.mxu0 0.0
    %3494 = vmatprep.subr.mxu0 0.0
    %3495 = vmatpush1.msra.mxu0 0.0
    %3496 = vmatprep.subr.mxu0 0.0
    %3497 = vmatpush1.msra.mxu0 0.0
    %3498 = vmatprep.subr.mxu0 0.0
    %3499 = vmatpush1.msra.mxu0 0.0
    %3500 = vmatprep.subr.mxu0 0.0
    %3501 = vmatpush1.msra.mxu0 0.0
    %3502 = vmatprep.subr.mxu0 0.0
    %3503 = vmatpush1.msra.mxu0 0.0
    %3504 = vmatprep.subr.mxu0 0.0
    %3505 = vmatpush1.msra.mxu0 0.0
    %3506 = vmatprep.subr.mxu0 0.0
    %3507 = vmatpush1.msra.mxu0 0.0
    %3508 = vmatprep.subr.mxu0 0.0
    %3509 = vmatpush1.msra.mxu0 0.0
    %3510 = vmatprep.subr.mxu0 0.0
    %3511 = vmatpush1.msra.mxu0 0.0
    %3512 = vmatprep.subr.mxu0 0.0
    %3513 = vmatpush1.msra.mxu0 0.0
    %3514 = vmatprep.subr.mxu0 0.0
    %3515 = vmatpush1.msra.mxu0 0.0
    %3516 = vmatprep.mubr.f32.mxu0 0.0
    %3517 = vmatmul.mubr.f32.gmra.mrb[0].mxu0 %v3450
    %v3518 = vpop.f32.mrb[0].mxu0
    %v3519 = vadd.f32 %v3447, %v3518
    %v3520 = vpop.f32.mrb[0].mxu0
    %3521 = vdwg.mxu0
    %v3523 = vcombine.high %v3519, %v3519
    %v3525 = vadd.f32 %v1982, %v3519
    %v3526 = vadd.f32 %v1983, %v3523
    %s3527 = scalar_lea.vmem %s7, 1
    %v3528 = vld [vmem:[%s3527] sm:$0x1]
    %s3529 = scalar_lea.vmem %s8, 1
    %v3530 = vld [vmem:[%s3529] sm:$0x1]
    %v3533 = vcombine.low %v3525, %v3526
    %v3535 = vsel %vm109, %v3533, 0.0
    %3536 = vadd.xlane.f32.xlu0 %v3535
    %v3537 = vpop.xlane.xlu0 %3536
    %v3538 = vmul.f32 %v3537, %v1651
    %v3541 = vunpack.c.l.s4 839922192
    %v3542 = vunpack.c.0.s8 %v3541
    %v3543 = vlaneseq
    %v3544 = vshrl.u32 %v3543, 7
    %v3545 = vsub.s32 %v3542, %v3544
    %v3546 = vrot.slane %v3538, %v3545
    %v3548 = vunpack.c.l.s4 1985246804
    %v3549 = vunpack.c.0.s8 %v3548
    %v3550 = vlaneseq
    %v3551 = vshrl.u32 %v3550, 7
    %v3552 = vsub.s32 %v3549, %v3551
    %v3553 = vrot.slane %v3538, %v3552
    %v3556 = vsub.f32 %v3525, %v3546
    %v3557 = vsub.f32 %v3526, %v3553
    %v3558 = vmul.f32 %v3556, %v3556
    %v3559 = vmul.f32 %v3557, %v3557
    %v3562 = vcombine.low %v3558, %v3559
    %v3564 = vsel %vm109, %v3562, 0.0
    %3565 = vadd.xlane.f32.xlu0 %v3564
    %v3566 = vpop.xlane.xlu0 %3565
    %v3567 = vmul.f32 %v3566, %v1651
    %v3568 = vadd.f32 %v3567, 1e-05
    %v3569 = vrsqrt.pop %v3568
    %v3572 = vunpack.c.l.s4 839922192
    %v3573 = vunpack.c.0.s8 %v3572
    %v3574 = vlaneseq
    %v3575 = vshrl.u32 %v3574, 7
    %v3576 = vsub.s32 %v3573, %v3575
    %v3577 = vrot.slane %v3569, %v3576
    %v3579 = vunpack.c.l.s4 1985246804
    %v3580 = vunpack.c.0.s8 %v3579
    %v3581 = vlaneseq
    %v3582 = vshrl.u32 %v3581, 7
    %v3583 = vsub.s32 %v3580, %v3582
    %v3584 = vrot.slane %v3569, %v3583
    %v3587 = vmul.f32 %v3556, %v3577
    %v3588 = vmul.f32 %v3557, %v3584
    %v3590 = vlaneseq
    %v3591 = vshrl.u32 %v3590, 7
    %v3592 = vsub.s32 0, %v3591
    %v3593 = vrot.slane %v3528, %v3592
    %v3595 = vcombine.high %v3593, %v3593
    %v3597 = vmul.f32 %v3587, %v3593
    %v3598 = vmul.f32 %v3588, %v3595
    %v3600 = vlaneseq
    %v3601 = vshrl.u32 %v3600, 7
    %v3602 = vsub.s32 0, %v3601
    %v3603 = vrot.slane %v3530, %v3602
    %v3605 = vcombine.high %v3603, %v3603
    %v3607 = vadd.f32 %v3597, %v3603
    %v3608 = vadd.f32 %v3598, %v3605
    %s3609 = scalar_lea.vmem %s9, 32
    %v3610 = vld [vmem:[%s3609] sm:$0xff]
    %v3611 = vld [vmem:[%s3609 + $0x8] sm:$0xff]
    %v3612 = vld [vmem:[%s3609 + $0x10] sm:$0xff]
    %v3613 = vld [vmem:[%s3609 + $0x18] sm:$0xff]
    %s3614 = scalar_lea.vmem %s10, 1
    %v3615 = vld [vmem:[%s3614] sm:$0x1]
    %v3617 = vlaneseq
    %v3618 = vshrl.u32 %v3617, 7
    %v3619 = vsub.s32 0, %v3618
    %v3620 = vrot.slane %v3615, %v3619
    %v3624 = vcombine.low %v3607, %v3608
    %v3625 = vsel %vm109, %v3624, 0
    %3627 = vmatprep.subr.mxu0 0.0
    %3628 = vmatpush1.msra.mxu0 %v3610
    %3629 = vmatprep.subr.mxu0 0.0
    %3630 = vmatpush1.msra.mxu0 %v3611
    %3631 = vmatprep.subr.mxu0 0.0
    %3632 = vmatpush1.msra.mxu0 %v3612
    %3633 = vmatprep.subr.mxu0 0.0
    %3634 = vmatpush1.msra.mxu0 %v3613
    %3635 = vmatprep.subr.mxu0 0.0
    %3636 = vmatpush1.msra.mxu0 0.0
    %3637 = vmatprep.subr.mxu0 0.0
    %3638 = vmatpush1.msra.mxu0 0.0
    %3639 = vmatprep.subr.mxu0 0.0
    %3640 = vmatpush1.msra.mxu0 0.0
    %3641 = vmatprep.subr.mxu0 0.0
    %3642 = vmatpush1.msra.mxu0 0.0
    %3643 = vmatprep.subr.mxu0 0.0
    %3644 = vmatpush1.msra.mxu0 0.0
    %3645 = vmatprep.subr.mxu0 0.0
    %3646 = vmatpush1.msra.mxu0 0.0
    %3647 = vmatprep.subr.mxu0 0.0
    %3648 = vmatpush1.msra.mxu0 0.0
    %3649 = vmatprep.subr.mxu0 0.0
    %3650 = vmatpush1.msra.mxu0 0.0
    %3651 = vmatprep.subr.mxu0 0.0
    %3652 = vmatpush1.msra.mxu0 0.0
    %3653 = vmatprep.subr.mxu0 0.0
    %3654 = vmatpush1.msra.mxu0 0.0
    %3655 = vmatprep.subr.mxu0 0.0
    %3656 = vmatpush1.msra.mxu0 0.0
    %3657 = vmatprep.subr.mxu0 0.0
    %3658 = vmatpush1.msra.mxu0 0.0
    %3659 = vmatprep.subr.mxu0 0.0
    %3660 = vmatpush1.msra.mxu0 0.0
    %3661 = vmatprep.subr.mxu0 0.0
    %3662 = vmatpush1.msra.mxu0 0.0
    %3663 = vmatprep.subr.mxu0 0.0
    %3664 = vmatpush1.msra.mxu0 0.0
    %3665 = vmatprep.subr.mxu0 0.0
    %3666 = vmatpush1.msra.mxu0 0.0
    %3667 = vmatprep.subr.mxu0 0.0
    %3668 = vmatpush1.msra.mxu0 0.0
    %3669 = vmatprep.subr.mxu0 0.0
    %3670 = vmatpush1.msra.mxu0 0.0
    %3671 = vmatprep.subr.mxu0 0.0
    %3672 = vmatpush1.msra.mxu0 0.0
    %3673 = vmatprep.subr.mxu0 0.0
    %3674 = vmatpush1.msra.mxu0 0.0
    %3675 = vmatprep.subr.mxu0 0.0
    %3676 = vmatpush1.msra.mxu0 0.0
    %3677 = vmatprep.subr.mxu0 0.0
    %3678 = vmatpush1.msra.mxu0 0.0
    %3679 = vmatprep.subr.mxu0 0.0
    %3680 = vmatpush1.msra.mxu0 0.0
    %3681 = vmatprep.subr.mxu0 0.0
    %3682 = vmatpush1.msra.mxu0 0.0
    %3683 = vmatprep.subr.mxu0 0.0
    %3684 = vmatpush1.msra.mxu0 0.0
    %3685 = vmatprep.subr.mxu0 0.0
    %3686 = vmatpush1.msra.mxu0 0.0
    %3687 = vmatprep.subr.mxu0 0.0
    %3688 = vmatpush1.msra.mxu0 0.0
    %3689 = vmatprep.subr.mxu0 0.0
    %3690 = vmatpush1.msra.mxu0 0.0
    %3691 = vmatprep.mubr.f32.mxu0 0.0
    %3692 = vmatmul.mubr.f32.gmra.mrb[0].mxu0 %v3625
    %v3693 = vpop.f32.mrb[0].mxu0
    %v3694 = vadd.f32 %v3620, %v3693
    %v3695 = vpop.f32.mrb[0].mxu0
    %3696 = vdwg.mxu0
    %v3697 = vmax.f32 %v3694, 0.0
    %s3698 = scalar_lea.vmem %s11, 64
    %v3699 = vld [vmem:[%s3698] sm:$0xff]
    %v3700 = vld [vmem:[%s3698 + $0x8] sm:$0xff]
    %v3701 = vld [vmem:[%s3698 + $0x10] sm:$0xff]
    %v3702 = vld [vmem:[%s3698 + $0x18] sm:$0xff]
    %v3703 = vld [vmem:[%s3698 + $0x20] sm:$0xff]
    %v3704 = vld [vmem:[%s3698 + $0x28] sm:$0xff]
    %v3705 = vld [vmem:[%s3698 + $0x30] sm:$0xff]
    %v3706 = vld [vmem:[%s3698 + $0x38] sm:$0xff]
    %s3707 = scalar_lea.vmem %s12, 1
    %v3708 = vld [vmem:[%s3707] sm:$0x1]
    %v3710 = vlaneseq
    %v3711 = vshrl.u32 %v3710, 7
    %v3712 = vsub.s32 0, %v3711
    %v3713 = vrot.slane %v3708, %v3712
    %v3716 = vsel %vm1825, %v3697, 0
    %3718 = vmatprep.subr.mxu0 0.0
    %3719 = vmatpush1.msra.mxu0 %v3699
    %3720 = vmatprep.subr.mxu0 0.0
    %3721 = vmatpush1.msra.mxu0 %v3700
    %3722 = vmatprep.subr.mxu0 0.0
    %3723 = vmatpush1.msra.mxu0 %v3701
    %3724 = vmatprep.subr.mxu0 0.0
    %3725 = vmatpush1.msra.mxu0 %v3702
    %3726 = vmatprep.subr.mxu0 0.0
    %3727 = vmatpush1.msra.mxu0 %v3703
    %3728 = vmatprep.subr.mxu0 0.0
    %3729 = vmatpush1.msra.mxu0 %v3704
    %3730 = vmatprep.subr.mxu0 0.0
    %3731 = vmatpush1.msra.mxu0 %v3705
    %3732 = vmatprep.subr.mxu0 0.0
    %3733 = vmatpush1.msra.mxu0 %v3706
    %3734 = vmatprep.subr.mxu0 0.0
    %3735 = vmatpush1.msra.mxu0 0.0
    %3736 = vmatprep.subr.mxu0 0.0
    %3737 = vmatpush1.msra.mxu0 0.0
    %3738 = vmatprep.subr.mxu0 0.0
    %3739 = vmatpush1.msra.mxu0 0.0
    %3740 = vmatprep.subr.mxu0 0.0
    %3741 = vmatpush1.msra.mxu0 0.0
    %3742 = vmatprep.subr.mxu0 0.0
    %3743 = vmatpush1.msra.mxu0 0.0
    %3744 = vmatprep.subr.mxu0 0.0
    %3745 = vmatpush1.msra.mxu0 0.0
    %3746 = vmatprep.subr.mxu0 0.0
    %3747 = vmatpush1.msra.mxu0 0.0
    %3748 = vmatprep.subr.mxu0 0.0
    %3749 = vmatpush1.msra.mxu0 0.0
    %3750 = vmatprep.subr.mxu0 0.0
    %3751 = vmatpush1.msra.mxu0 0.0
    %3752 = vmatprep.subr.mxu0 0.0
    %3753 = vmatpush1.msra.mxu0 0.0
    %3754 = vmatprep.subr.mxu0 0.0
    %3755 = vmatpush1.msra.mxu0 0.0
    %3756 = vmatprep.subr.mxu0 0.0
    %3757 = vmatpush1.msra.mxu0 0.0
    %3758 = vmatprep.subr.mxu0 0.0
    %3759 = vmatpush1.msra.mxu0 0.0
    %3760 = vmatprep.subr.mxu0 0.0
    %3761 = vmatpush1.msra.mxu0 0.0
    %3762 = vmatprep.subr.mxu0 0.0
    %3763 = vmatpush1.msra.mxu0 0.0
    %3764 = vmatprep.subr.mxu0 0.0
    %3765 = vmatpush1.msra.mxu0 0.0
    %3766 = vmatprep.subr.mxu0 0.0
    %3767 = vmatpush1.msra.mxu0 0.0
    %3768 = vmatprep.subr.mxu0 0.0
    %3769 = vmatpush1.msra.mxu0 0.0
    %3770 = vmatprep.subr.mxu0 0.0
    %3771 = vmatpush1.msra.mxu0 0.0
    %3772 = vmatprep.subr.mxu0 0.0
    %3773 = vmatpush1.msra.mxu0 0.0
    %3774 = vmatprep.subr.mxu0 0.0
    %3775 = vmatpush1.msra.mxu0 0.0
    %3776 = vmatprep.subr.mxu0 0.0
    %3777 = vmatpush1.msra.mxu0 0.0
    %3778 = vmatprep.subr.mxu0 0.0
    %3779 = vmatpush1.msra.mxu0 0.0
    %3780 = vmatprep.subr.mxu0 0.0
    %3781 = vmatpush1.msra.mxu0 0.0
    %3782 = vmatprep.mubr.f32.mxu0 0.0
    %3783 = vmatmul.mubr.f32.gmra.mrb[0].mxu0 %v3716
    %v3784 = vpop.f32.mrb[0].mxu0
    %v3785 = vadd.f32 %v3713, %v3784
    %v3786 = vpop.f32.mrb[0].mxu0
    %3787 = vdwg.mxu0
    %v3789 = vcombine.high %v3785, %v3785
    %v3791 = vadd.f32 %v3607, %v3785
    %v3792 = vadd.f32 %v3608, %v3789
    %s3793 = scalar_lea.vmem %s13, 1
    %v3794 = vld [vmem:[%s3793] sm:$0x1]
    %s3795 = scalar_lea.vmem %s14, 1
    %v3796 = vld [vmem:[%s3795] sm:$0x1]
    %v3799 = vcombine.low %v3791, %v3792
    %v3801 = vsel %vm109, %v3799, 0.0
    %3802 = vadd.xlane.f32.xlu0 %v3801
    %v3803 = vpop.xlane.xlu0 %3802
    %v3804 = vmul.f32 %v3803, %v1651
    %v3807 = vunpack.c.l.s4 839922192
    %v3808 = vunpack.c.0.s8 %v3807
    %v3809 = vlaneseq
    %v3810 = vshrl.u32 %v3809, 7
    %v3811 = vsub.s32 %v3808, %v3810
    %v3812 = vrot.slane %v3804, %v3811
    %v3814 = vunpack.c.l.s4 1985246804
    %v3815 = vunpack.c.0.s8 %v3814
    %v3816 = vlaneseq
    %v3817 = vshrl.u32 %v3816, 7
    %v3818 = vsub.s32 %v3815, %v3817
    %v3819 = vrot.slane %v3804, %v3818
    %v3822 = vsub.f32 %v3791, %v3812
    %v3823 = vsub.f32 %v3792, %v3819
    %v3824 = vmul.f32 %v3822, %v3822
    %v3825 = vmul.f32 %v3823, %v3823
    %v3828 = vcombine.low %v3824, %v3825
    %v3830 = vsel %vm109, %v3828, 0.0
    %3831 = vadd.xlane.f32.xlu0 %v3830
    %v3832 = vpop.xlane.xlu0 %3831
    %v3833 = vmul.f32 %v3832, %v1651
    %v3834 = vadd.f32 %v3833, 1e-05
    %v3835 = vrsqrt.pop %v3834
    %v3838 = vunpack.c.l.s4 839922192
    %v3839 = vunpack.c.0.s8 %v3838
    %v3840 = vlaneseq
    %v3841 = vshrl.u32 %v3840, 7
    %v3842 = vsub.s32 %v3839, %v3841
    %v3843 = vrot.slane %v3835, %v3842
    %v3845 = vunpack.c.l.s4 1985246804
    %v3846 = vunpack.c.0.s8 %v3845
    %v3847 = vlaneseq
    %v3848 = vshrl.u32 %v3847, 7
    %v3849 = vsub.s32 %v3846, %v3848
    %v3850 = vrot.slane %v3835, %v3849
    %v3853 = vmul.f32 %v3822, %v3843
    %v3854 = vmul.f32 %v3823, %v3850
    %v3856 = vlaneseq
    %v3857 = vshrl.u32 %v3856, 7
    %v3858 = vsub.s32 0, %v3857
    %v3859 = vrot.slane %v3794, %v3858
    %v3861 = vcombine.high %v3859, %v3859
    %v3863 = vmul.f32 %v3853, %v3859
    %v3864 = vmul.f32 %v3854, %v3861
    %v3866 = vlaneseq
    %v3867 = vshrl.u32 %v3866, 7
    %v3868 = vsub.s32 0, %v3867
    %v3869 = vrot.slane %v3796, %v3868
    %v3871 = vcombine.high %v3869, %v3869
    %v3873 = vadd.f32 %v3863, %v3869
    %v3874 = vadd.f32 %v3864, %v3871
    %s3875 = scalar_lea.vmem %s3, 64
    %v3876 = vld [vmem:[%s3875] sm:$0xff]
    %v3877 = vld [vmem:[%s3875 + $0x8] sm:$0xff]
    %v3878 = vld [vmem:[%s3875 + $0x10] sm:$0xff]
    %v3879 = vld [vmem:[%s3875 + $0x18] sm:$0xff]
    %s3880 = scalar_lea.vmem %s4, 2
    %v3881 = vld [vmem:[%s3880] sm:$0x1]
    %v3883 = vlaneseq
    %v3884 = vshrl.u32 %v3883, 7
    %v3885 = vsub.s32 0, %v3884
    %v3886 = vrot.slane %v3881, %v3885
    %v3890 = vcombine.low %v3873, %v3874
    %v3891 = vsel %vm109, %v3890, 0
    %3893 = vmatprep.subr.mxu0 0.0
    %3894 = vmatpush1.msra.mxu0 %v3876
    %3895 = vmatprep.subr.mxu0 0.0
    %3896 = vmatpush1.msra.mxu0 %v3877
    %3897 = vmatprep.subr.mxu0 0.0
    %3898 = vmatpush1.msra.mxu0 %v3878
    %3899 = vmatprep.subr.mxu0 0.0
    %3900 = vmatpush1.msra.mxu0 %v3879
    %3901 = vmatprep.subr.mxu0 0.0
    %3902 = vmatpush1.msra.mxu0 0.0
    %3903 = vmatprep.subr.mxu0 0.0
    %3904 = vmatpush1.msra.mxu0 0.0
    %3905 = vmatprep.subr.mxu0 0.0
    %3906 = vmatpush1.msra.mxu0 0.0
    %3907 = vmatprep.subr.mxu0 0.0
    %3908 = vmatpush1.msra.mxu0 0.0
    %3909 = vmatprep.subr.mxu0 0.0
    %3910 = vmatpush1.msra.mxu0 0.0
    %3911 = vmatprep.subr.mxu0 0.0
    %3912 = vmatpush1.msra.mxu0 0.0
    %3913 = vmatprep.subr.mxu0 0.0
    %3914 = vmatpush1.msra.mxu0 0.0
    %3915 = vmatprep.subr.mxu0 0.0
    %3916 = vmatpush1.msra.mxu0 0.0
    %3917 = vmatprep.subr.mxu0 0.0
    %3918 = vmatpush1.msra.mxu0 0.0
    %3919 = vmatprep.subr.mxu0 0.0
    %3920 = vmatpush1.msra.mxu0 0.0
    %3921 = vmatprep.subr.mxu0 0.0
    %3922 = vmatpush1.msra.mxu0 0.0
    %3923 = vmatprep.subr.mxu0 0.0
    %3924 = vmatpush1.msra.mxu0 0.0
    %3925 = vmatprep.subr.mxu0 0.0
    %3926 = vmatpush1.msra.mxu0 0.0
    %3927 = vmatprep.subr.mxu0 0.0
    %3928 = vmatpush1.msra.mxu0 0.0
    %3929 = vmatprep.subr.mxu0 0.0
    %3930 = vmatpush1.msra.mxu0 0.0
    %3931 = vmatprep.subr.mxu0 0.0
    %3932 = vmatpush1.msra.mxu0 0.0
    %3933 = vmatprep.subr.mxu0 0.0
    %3934 = vmatpush1.msra.mxu0 0.0
    %3935 = vmatprep.subr.mxu0 0.0
    %3936 = vmatpush1.msra.mxu0 0.0
    %3937 = vmatprep.subr.mxu0 0.0
    %3938 = vmatpush1.msra.mxu0 0.0
    %3939 = vmatprep.subr.mxu0 0.0
    %3940 = vmatpush1.msra.mxu0 0.0
    %3941 = vmatprep.subr.mxu0 0.0
    %3942 = vmatpush1.msra.mxu0 0.0
    %3943 = vmatprep.subr.mxu0 0.0
    %3944 = vmatpush1.msra.mxu0 0.0
    %3945 = vmatprep.subr.mxu0 0.0
    %3946 = vmatpush1.msra.mxu0 0.0
    %3947 = vmatprep.subr.mxu0 0.0
    %3948 = vmatpush1.msra.mxu0 0.0
    %3949 = vmatprep.subr.mxu0 0.0
    %3950 = vmatpush1.msra.mxu0 0.0
    %3951 = vmatprep.subr.mxu0 0.0
    %3952 = vmatpush1.msra.mxu0 0.0
    %3953 = vmatprep.subr.mxu0 0.0
    %3954 = vmatpush1.msra.mxu0 0.0
    %3955 = vmatprep.subr.mxu0 0.0
    %3956 = vmatpush1.msra.mxu0 0.0
    %3957 = vmatprep.mubr.f32.mxu0 0.0
    %3958 = vmatmul.mubr.f32.gmra.mrb[0].mxu0 %v3891
    %v3959 = vpop.f32.mrb[0].mxu0
    %v3960 = vadd.f32 %v3886, %v3959
    %v3961 = vpop.f32.mrb[0].mxu0
    %3962 = vdwg.mxu0
    %s3963 = scalar_lea.vmem [#allocation8], 8
    %v3964 = vld [vmem:[%s3963] sm:$0xf]
    %v3965 = vmul.f32 %v3960, 0.35355338
    %3967 = vrot.lane.b32.xlu0 %v3960, 96
    %v3968 = vpop.permute.xlu0 %3967
    %v3970 = vsel %vm187, %v3965, 0
    %v3972 = vsel %vm187, %v3968, 0
    %3974 = vmatprep.subr.mxu0 0.0
    %3975 = vmatpush1.xpose.msra.mxu0 %v3972
    %3976 = vmatprep.subr.mxu0 0.0
    %3977 = vmatpush1.xpose.msra.mxu0 0.0
    %3978 = vmatprep.subr.mxu0 0.0
    %3979 = vmatpush1.xpose.msra.mxu0 0.0
    %3980 = vmatprep.subr.mxu0 0.0
    %3981 = vmatpush1.xpose.msra.mxu0 0.0
    %3982 = vmatprep.subr.mxu0 0.0
    %3983 = vmatpush1.xpose.msra.mxu0 0.0
    %3984 = vmatprep.subr.mxu0 0.0
    %3985 = vmatpush1.xpose.msra.mxu0 0.0
    %3986 = vmatprep.subr.mxu0 0.0
    %3987 = vmatpush1.xpose.msra.mxu0 0.0
    %3988 = vmatprep.subr.mxu0 0.0
    %3989 = vmatpush1.xpose.msra.mxu0 0.0
    %3990 = vmatprep.subr.mxu0 0.0
    %3991 = vmatpush1.xpose.msra.mxu0 0.0
    %3992 = vmatprep.subr.mxu0 0.0
    %3993 = vmatpush1.xpose.msra.mxu0 0.0
    %3994 = vmatprep.subr.mxu0 0.0
    %3995 = vmatpush1.xpose.msra.mxu0 0.0
    %3996 = vmatprep.subr.mxu0 0.0
    %3997 = vmatpush1.xpose.msra.mxu0 0.0
    %3998 = vmatprep.subr.mxu0 0.0
    %3999 = vmatpush1.xpose.msra.mxu0 0.0
    %4000 = vmatprep.subr.mxu0 0.0
    %4001 = vmatpush1.xpose.msra.mxu0 0.0
    %4002 = vmatprep.subr.mxu0 0.0
    %4003 = vmatpush1.xpose.msra.mxu0 0.0
    %4004 = vmatprep.subr.mxu0 0.0
    %4005 = vmatpush1.xpose.msra.mxu0 0.0
    %4006 = vmatprep.subr.mxu0 0.0
    %4007 = vmatpush1.xpose.msra.mxu0 0.0
    %4008 = vmatprep.subr.mxu0 0.0
    %4009 = vmatpush1.xpose.msra.mxu0 0.0
    %4010 = vmatprep.subr.mxu0 0.0
    %4011 = vmatpush1.xpose.msra.mxu0 0.0
    %4012 = vmatprep.subr.mxu0 0.0
    %4013 = vmatpush1.xpose.msra.mxu0 0.0
    %4014 = vmatprep.subr.mxu0 0.0
    %4015 = vmatpush1.xpose.msra.mxu0 0.0
    %4016 = vmatprep.subr.mxu0 0.0
    %4017 = vmatpush1.xpose.msra.mxu0 0.0
    %4018 = vmatprep.subr.mxu0 0.0
    %4019 = vmatpush1.xpose.msra.mxu0 0.0
    %4020 = vmatprep.subr.mxu0 0.0
    %4021 = vmatpush1.xpose.msra.mxu0 0.0
    %4022 = vmatprep.subr.mxu0 0.0
    %4023 = vmatpush1.xpose.msra.mxu0 0.0
    %4024 = vmatprep.subr.mxu0 0.0
    %4025 = vmatpush1.xpose.msra.mxu0 0.0
    %4026 = vmatprep.subr.mxu0 0.0
    %4027 = vmatpush1.xpose.msra.mxu0 0.0
    %4028 = vmatprep.subr.mxu0 0.0
    %4029 = vmatpush1.xpose.msra.mxu0 0.0
    %4030 = vmatprep.subr.mxu0 0.0
    %4031 = vmatpush1.xpose.msra.mxu0 0.0
    %4032 = vmatprep.subr.mxu0 0.0
    %4033 = vmatpush1.xpose.msra.mxu0 0.0
    %4034 = vmatprep.subr.mxu0 0.0
    %4035 = vmatpush1.xpose.msra.mxu0 0.0
    %4036 = vmatprep.subr.mxu0 0.0
    %4037 = vmatpush1.xpose.msra.mxu0 0.0
    %4038 = vmatprep.mubr.f32.mxu0 0.0
    %4039 = vmatmul.mubr.f32.gmra.mrb[0].mxu0 %v3970
    %v4040 = vpop.f32.mrb[0].mxu0
    %v4041 = vadd.f32 %v3964, %v4040
    %v4042 = vpop.f32.mrb[0].mxu0
    %4043 = vdwg.mxu0
    %v4044 = vsel %vm263, %v4041, -inf
    %4045 = vmax.xlane.f32.xlu0 %v4044
    %v4046 = vpop.xlane.xlu0 %4045
    %v4047 = vsub.f32 %v4041, %v4046
    %v4048 = vmul.f32 %v4047, 1.442695
    %v4049 = vpow.pop %v4048
    %v4050 = vsel %vm263, %v4049, 0.0
    %4051 = vadd.xlane.f32.xlu0 %v4050
    %v4052 = vpop.xlane.xlu0 %4051
    %v4053 = vrcp.pop %v4052
    %v4054 = vmul.f32 %v4049, %v4053
    %4055 = vrot.lane.b32.xlu0 %v3960, 64
    %v4056 = vpop.permute.xlu0 %4055
    %v4058 = vsel %vm277, %v4054, 0
    %v4060 = vsel %vm281, %v4056, 0
    %4062 = vmatprep.subr.mxu0 0.0
    %4063 = vmatpush1.msra.mxu0 %v4060
    %4064 = vmatprep.subr.mxu0 0.0
    %4065 = vmatpush1.msra.mxu0 0.0
    %4066 = vmatprep.subr.mxu0 0.0
    %4067 = vmatpush1.msra.mxu0 0.0
    %4068 = vmatprep.subr.mxu0 0.0
    %4069 = vmatpush1.msra.mxu0 0.0
    %4070 = vmatprep.subr.mxu0 0.0
    %4071 = vmatpush1.msra.mxu0 0.0
    %4072 = vmatprep.subr.mxu0 0.0
    %4073 = vmatpush1.msra.mxu0 0.0
    %4074 = vmatprep.subr.mxu0 0.0
    %4075 = vmatpush1.msra.mxu0 0.0
    %4076 = vmatprep.subr.mxu0 0.0
    %4077 = vmatpush1.msra.mxu0 0.0
    %4078 = vmatprep.subr.mxu0 0.0
    %4079 = vmatpush1.msra.mxu0 0.0
    %4080 = vmatprep.subr.mxu0 0.0
    %4081 = vmatpush1.msra.mxu0 0.0
    %4082 = vmatprep.subr.mxu0 0.0
    %4083 = vmatpush1.msra.mxu0 0.0
    %4084 = vmatprep.subr.mxu0 0.0
    %4085 = vmatpush1.msra.mxu0 0.0
    %4086 = vmatprep.subr.mxu0 0.0
    %4087 = vmatpush1.msra.mxu0 0.0
    %4088 = vmatprep.subr.mxu0 0.0
    %4089 = vmatpush1.msra.mxu0 0.0
    %4090 = vmatprep.subr.mxu0 0.0
    %4091 = vmatpush1.msra.mxu0 0.0
    %4092 = vmatprep.subr.mxu0 0.0
    %4093 = vmatpush1.msra.mxu0 0.0
    %4094 = vmatprep.subr.mxu0 0.0
    %4095 = vmatpush1.msra.mxu0 0.0
    %4096 = vmatprep.subr.mxu0 0.0
    %4097 = vmatpush1.msra.mxu0 0.0
    %4098 = vmatprep.subr.mxu0 0.0
    %4099 = vmatpush1.msra.mxu0 0.0
    %4100 = vmatprep.subr.mxu0 0.0
    %4101 = vmatpush1.msra.mxu0 0.0
    %4102 = vmatprep.subr.mxu0 0.0
    %4103 = vmatpush1.msra.mxu0 0.0
    %4104 = vmatprep.subr.mxu0 0.0
    %4105 = vmatpush1.msra.mxu0 0.0
    %4106 = vmatprep.subr.mxu0 0.0
    %4107 = vmatpush1.msra.mxu0 0.0
    %4108 = vmatprep.subr.mxu0 0.0
    %4109 = vmatpush1.msra.mxu0 0.0
    %4110 = vmatprep.subr.mxu0 0.0
    %4111 = vmatpush1.msra.mxu0 0.0
    %4112 = vmatprep.subr.mxu0 0.0
    %4113 = vmatpush1.msra.mxu0 0.0
    %4114 = vmatprep.subr.mxu0 0.0
    %4115 = vmatpush1.msra.mxu0 0.0
    %4116 = vmatprep.subr.mxu0 0.0
    %4117 = vmatpush1.msra.mxu0 0.0
    %4118 = vmatprep.subr.mxu0 0.0
    %4119 = vmatpush1.msra.mxu0 0.0
    %4120 = vmatprep.subr.mxu0 0.0
    %4121 = vmatpush1.msra.mxu0 0.0
    %4122 = vmatprep.subr.mxu0 0.0
    %4123 = vmatpush1.msra.mxu0 0.0
    %4124 = vmatprep.subr.mxu0 0.0
    %4125 = vmatpush1.msra.mxu0 0.0
    %4126 = vmatprep.mubr.f32.mxu0 0.0
    %4127 = vmatmul.mubr.f32.gmra.mrb[0].mxu0 %v4058
    %v4128 = vpop.f32.mrb[0].mxu0
    %v4129 = vadd.f32 0.0, %v4128
    %v4130 = vpop.f32.mrb[0].mxu0
    %4131 = vdwg.mxu0
    %4132 = vst.msk [vmem:[#allocation2] sm:$0xf] %vm354, %v4129
    %4133 = vrot.lane.b32.xlu0 %v3965, 120
    %v4134 = vpop.permute.xlu0 %4133
    %4135 = vrot.lane.b32.xlu0 %v3960, 88
    %v4136 = vpop.permute.xlu0 %4135
    %v4137 = vsel %vm187, %v4134, 0
    %v4139 = vsel %vm187, %v4136, 0
    %4141 = vmatprep.subr.mxu0 0.0
    %4142 = vmatpush1.xpose.msra.mxu0 %v4139
    %4143 = vmatprep.subr.mxu0 0.0
    %4144 = vmatpush1.xpose.msra.mxu0 0.0
    %4145 = vmatprep.subr.mxu0 0.0
    %4146 = vmatpush1.xpose.msra.mxu0 0.0
    %4147 = vmatprep.subr.mxu0 0.0
    %4148 = vmatpush1.xpose.msra.mxu0 0.0
    %4149 = vmatprep.subr.mxu0 0.0
    %4150 = vmatpush1.xpose.msra.mxu0 0.0
    %4151 = vmatprep.subr.mxu0 0.0
    %4152 = vmatpush1.xpose.msra.mxu0 0.0
    %4153 = vmatprep.subr.mxu0 0.0
    %4154 = vmatpush1.xpose.msra.mxu0 0.0
    %4155 = vmatprep.subr.mxu0 0.0
    %4156 = vmatpush1.xpose.msra.mxu0 0.0
    %4157 = vmatprep.subr.mxu0 0.0
    %4158 = vmatpush1.xpose.msra.mxu0 0.0
    %4159 = vmatprep.subr.mxu0 0.0
    %4160 = vmatpush1.xpose.msra.mxu0 0.0
    %4161 = vmatprep.subr.mxu0 0.0
    %4162 = vmatpush1.xpose.msra.mxu0 0.0
    %4163 = vmatprep.subr.mxu0 0.0
    %4164 = vmatpush1.xpose.msra.mxu0 0.0
    %4165 = vmatprep.subr.mxu0 0.0
    %4166 = vmatpush1.xpose.msra.mxu0 0.0
    %4167 = vmatprep.subr.mxu0 0.0
    %4168 = vmatpush1.xpose.msra.mxu0 0.0
    %4169 = vmatprep.subr.mxu0 0.0
    %4170 = vmatpush1.xpose.msra.mxu0 0.0
    %4171 = vmatprep.subr.mxu0 0.0
    %4172 = vmatpush1.xpose.msra.mxu0 0.0
    %4173 = vmatprep.subr.mxu0 0.0
    %4174 = vmatpush1.xpose.msra.mxu0 0.0
    %4175 = vmatprep.subr.mxu0 0.0
    %4176 = vmatpush1.xpose.msra.mxu0 0.0
    %4177 = vmatprep.subr.mxu0 0.0
    %4178 = vmatpush1.xpose.msra.mxu0 0.0
    %4179 = vmatprep.subr.mxu0 0.0
    %4180 = vmatpush1.xpose.msra.mxu0 0.0
    %4181 = vmatprep.subr.mxu0 0.0
    %4182 = vmatpush1.xpose.msra.mxu0 0.0
    %4183 = vmatprep.subr.mxu0 0.0
    %4184 = vmatpush1.xpose.msra.mxu0 0.0
    %4185 = vmatprep.subr.mxu0 0.0
    %4186 = vmatpush1.xpose.msra.mxu0 0.0
    %4187 = vmatprep.subr.mxu0 0.0
    %4188 = vmatpush1.xpose.msra.mxu0 0.0
    %4189 = vmatprep.subr.mxu0 0.0
    %4190 = vmatpush1.xpose.msra.mxu0 0.0
    %4191 = vmatprep.subr.mxu0 0.0
    %4192 = vmatpush1.xpose.msra.mxu0 0.0
    %4193 = vmatprep.subr.mxu0 0.0
    %4194 = vmatpush1.xpose.msra.mxu0 0.0
    %4195 = vmatprep.subr.mxu0 0.0
    %4196 = vmatpush1.xpose.msra.mxu0 0.0
    %4197 = vmatprep.subr.mxu0 0.0
    %4198 = vmatpush1.xpose.msra.mxu0 0.0
    %4199 = vmatprep.subr.mxu0 0.0
    %4200 = vmatpush1.xpose.msra.mxu0 0.0
    %4201 = vmatprep.subr.mxu0 0.0
    %4202 = vmatpush1.xpose.msra.mxu0 0.0
    %4203 = vmatprep.subr.mxu0 0.0
    %4204 = vmatpush1.xpose.msra.mxu0 0.0
    %4205 = vmatprep.mubr.f32.mxu0 0.0
    %4206 = vmatmul.mubr.f32.gmra.mrb[0].mxu0 %v4137
    %v4207 = vpop.f32.mrb[0].mxu0
    %v4208 = vadd.f32 %v3964, %v4207
    %v4209 = vpop.f32.mrb[0].mxu0
    %4210 = vdwg.mxu0
    %v4211 = vsel %vm263, %v4208, -inf
    %4212 = vmax.xlane.f32.xlu0 %v4211
    %v4213 = vpop.xlane.xlu0 %4212
    %v4214 = vsub.f32 %v4208, %v4213
    %v4215 = vmul.f32 %v4214, 1.442695
    %v4216 = vpow.pop %v4215
    %v4217 = vsel %vm263, %v4216, 0.0
    %4218 = vadd.xlane.f32.xlu0 %v4217
    %v4219 = vpop.xlane.xlu0 %4218
    %v4220 = vrcp.pop %v4219
    %v4221 = vmul.f32 %v4216, %v4220
    %4222 = vrot.lane.b32.xlu0 %v3960, 56
    %v4223 = vpop.permute.xlu0 %4222
    %v4225 = vsel %vm277, %v4221, 0
    %v4227 = vsel %vm281, %v4223, 0
    %4229 = vmatprep.subr.mxu0 0.0
    %4230 = vmatpush1.msra.mxu0 %v4227
    %4231 = vmatprep.subr.mxu0 0.0
    %4232 = vmatpush1.msra.mxu0 0.0
    %4233 = vmatprep.subr.mxu0 0.0
    %4234 = vmatpush1.msra.mxu0 0.0
    %4235 = vmatprep.subr.mxu0 0.0
    %4236 = vmatpush1.msra.mxu0 0.0
    %4237 = vmatprep.subr.mxu0 0.0
    %4238 = vmatpush1.msra.mxu0 0.0
    %4239 = vmatprep.subr.mxu0 0.0
    %4240 = vmatpush1.msra.mxu0 0.0
    %4241 = vmatprep.subr.mxu0 0.0
    %4242 = vmatpush1.msra.mxu0 0.0
    %4243 = vmatprep.subr.mxu0 0.0
    %4244 = vmatpush1.msra.mxu0 0.0
    %4245 = vmatprep.subr.mxu0 0.0
    %4246 = vmatpush1.msra.mxu0 0.0
    %4247 = vmatprep.subr.mxu0 0.0
    %4248 = vmatpush1.msra.mxu0 0.0
    %4249 = vmatprep.subr.mxu0 0.0
    %4250 = vmatpush1.msra.mxu0 0.0
    %4251 = vmatprep.subr.mxu0 0.0
    %4252 = vmatpush1.msra.mxu0 0.0
    %4253 = vmatprep.subr.mxu0 0.0
    %4254 = vmatpush1.msra.mxu0 0.0
    %4255 = vmatprep.subr.mxu0 0.0
    %4256 = vmatpush1.msra.mxu0 0.0
    %4257 = vmatprep.subr.mxu0 0.0
    %4258 = vmatpush1.msra.mxu0 0.0
    %4259 = vmatprep.subr.mxu0 0.0
    %4260 = vmatpush1.msra.mxu0 0.0
    %4261 = vmatprep.subr.mxu0 0.0
    %4262 = vmatpush1.msra.mxu0 0.0
    %4263 = vmatprep.subr.mxu0 0.0
    %4264 = vmatpush1.msra.mxu0 0.0
    %4265 = vmatprep.subr.mxu0 0.0
    %4266 = vmatpush1.msra.mxu0 0.0
    %4267 = vmatprep.subr.mxu0 0.0
    %4268 = vmatpush1.msra.mxu0 0.0
    %4269 = vmatprep.subr.mxu0 0.0
    %4270 = vmatpush1.msra.mxu0 0.0
    %4271 = vmatprep.subr.mxu0 0.0
    %4272 = vmatpush1.msra.mxu0 0.0
    %4273 = vmatprep.subr.mxu0 0.0
    %4274 = vmatpush1.msra.mxu0 0.0
    %4275 = vmatprep.subr.mxu0 0.0
    %4276 = vmatpush1.msra.mxu0 0.0
    %4277 = vmatprep.subr.mxu0 0.0
    %4278 = vmatpush1.msra.mxu0 0.0
    %4279 = vmatprep.subr.mxu0 0.0
    %4280 = vmatpush1.msra.mxu0 0.0
    %4281 = vmatprep.subr.mxu0 0.0
    %4282 = vmatpush1.msra.mxu0 0.0
    %4283 = vmatprep.subr.mxu0 0.0
    %4284 = vmatpush1.msra.mxu0 0.0
    %4285 = vmatprep.subr.mxu0 0.0
    %4286 = vmatpush1.msra.mxu0 0.0
    %4287 = vmatprep.subr.mxu0 0.0
    %4288 = vmatpush1.msra.mxu0 0.0
    %4289 = vmatprep.subr.mxu0 0.0
    %4290 = vmatpush1.msra.mxu0 0.0
    %4291 = vmatprep.subr.mxu0 0.0
    %4292 = vmatpush1.msra.mxu0 0.0
    %4293 = vmatprep.mubr.f32.mxu0 0.0
    %4294 = vmatmul.mubr.f32.gmra.mrb[0].mxu0 %v4225
    %v4295 = vpop.f32.mrb[0].mxu0
    %v4296 = vadd.f32 0.0, %v4295
    %v4297 = vpop.f32.mrb[0].mxu0
    %4298 = vdwg.mxu0
    %4300 = vrot.lane.b32.xlu0 %v4296, 8
    %v4301 = vpop.permute.xlu0 %4300
    %4303 = vst.msk [vmem:[#allocation2] sm:$0xf] %vm526, %v4301
    %4304 = vrot.lane.b32.xlu0 %v3965, 112
    %v4305 = vpop.permute.xlu0 %4304
    %4306 = vrot.lane.b32.xlu0 %v3960, 80
    %v4307 = vpop.permute.xlu0 %4306
    %v4308 = vsel %vm187, %v4305, 0
    %v4310 = vsel %vm187, %v4307, 0
    %4312 = vmatprep.subr.mxu0 0.0
    %4313 = vmatpush1.xpose.msra.mxu0 %v4310
    %4314 = vmatprep.subr.mxu0 0.0
    %4315 = vmatpush1.xpose.msra.mxu0 0.0
    %4316 = vmatprep.subr.mxu0 0.0
    %4317 = vmatpush1.xpose.msra.mxu0 0.0
    %4318 = vmatprep.subr.mxu0 0.0
    %4319 = vmatpush1.xpose.msra.mxu0 0.0
    %4320 = vmatprep.subr.mxu0 0.0
    %4321 = vmatpush1.xpose.msra.mxu0 0.0
    %4322 = vmatprep.subr.mxu0 0.0
    %4323 = vmatpush1.xpose.msra.mxu0 0.0
    %4324 = vmatprep.subr.mxu0 0.0
    %4325 = vmatpush1.xpose.msra.mxu0 0.0
    %4326 = vmatprep.subr.mxu0 0.0
    %4327 = vmatpush1.xpose.msra.mxu0 0.0
    %4328 = vmatprep.subr.mxu0 0.0
    %4329 = vmatpush1.xpose.msra.mxu0 0.0
    %4330 = vmatprep.subr.mxu0 0.0
    %4331 = vmatpush1.xpose.msra.mxu0 0.0
    %4332 = vmatprep.subr.mxu0 0.0
    %4333 = vmatpush1.xpose.msra.mxu0 0.0
    %4334 = vmatprep.subr.mxu0 0.0
    %4335 = vmatpush1.xpose.msra.mxu0 0.0
    %4336 = vmatprep.subr.mxu0 0.0
    %4337 = vmatpush1.xpose.msra.mxu0 0.0
    %4338 = vmatprep.subr.mxu0 0.0
    %4339 = vmatpush1.xpose.msra.mxu0 0.0
    %4340 = vmatprep.subr.mxu0 0.0
    %4341 = vmatpush1.xpose.msra.mxu0 0.0
    %4342 = vmatprep.subr.mxu0 0.0
    %4343 = vmatpush1.xpose.msra.mxu0 0.0
    %4344 = vmatprep.subr.mxu0 0.0
    %4345 = vmatpush1.xpose.msra.mxu0 0.0
    %4346 = vmatprep.subr.mxu0 0.0
    %4347 = vmatpush1.xpose.msra.mxu0 0.0
    %4348 = vmatprep.subr.mxu0 0.0
    %4349 = vmatpush1.xpose.msra.mxu0 0.0
    %4350 = vmatprep.subr.mxu0 0.0
    %4351 = vmatpush1.xpose.msra.mxu0 0.0
    %4352 = vmatprep.subr.mxu0 0.0
    %4353 = vmatpush1.xpose.msra.mxu0 0.0
    %4354 = vmatprep.subr.mxu0 0.0
    %4355 = vmatpush1.xpose.msra.mxu0 0.0
    %4356 = vmatprep.subr.mxu0 0.0
    %4357 = vmatpush1.xpose.msra.mxu0 0.0
    %4358 = vmatprep.subr.mxu0 0.0
    %4359 = vmatpush1.xpose.msra.mxu0 0.0
    %4360 = vmatprep.subr.mxu0 0.0
    %4361 = vmatpush1.xpose.msra.mxu0 0.0
    %4362 = vmatprep.subr.mxu0 0.0
    %4363 = vmatpush1.xpose.msra.mxu0 0.0
    %4364 = vmatprep.subr.mxu0 0.0
    %4365 = vmatpush1.xpose.msra.mxu0 0.0
    %4366 = vmatprep.subr.mxu0 0.0
    %4367 = vmatpush1.xpose.msra.mxu0 0.0
    %4368 = vmatprep.subr.mxu0 0.0
    %4369 = vmatpush1.xpose.msra.mxu0 0.0
    %4370 = vmatprep.subr.mxu0 0.0
    %4371 = vmatpush1.xpose.msra.mxu0 0.0
    %4372 = vmatprep.subr.mxu0 0.0
    %4373 = vmatpush1.xpose.msra.mxu0 0.0
    %4374 = vmatprep.subr.mxu0 0.0
    %4375 = vmatpush1.xpose.msra.mxu0 0.0
    %4376 = vmatprep.mubr.f32.mxu0 0.0
    %4377 = vmatmul.mubr.f32.gmra.mrb[0].mxu0 %v4308
    %v4378 = vpop.f32.mrb[0].mxu0
    %v4379 = vadd.f32 %v3964, %v4378
    %v4380 = vpop.f32.mrb[0].mxu0
    %4381 = vdwg.mxu0
    %v4382 = vsel %vm263, %v4379, -inf
    %4383 = vmax.xlane.f32.xlu0 %v4382
    %v4384 = vpop.xlane.xlu0 %4383
    %v4385 = vsub.f32 %v4379, %v4384
    %v4386 = vmul.f32 %v4385, 1.442695
    %v4387 = vpow.pop %v4386
    %v4388 = vsel %vm263, %v4387, 0.0
    %4389 = vadd.xlane.f32.xlu0 %v4388
    %v4390 = vpop.xlane.xlu0 %4389
    %v4391 = vrcp.pop %v4390
    %v4392 = vmul.f32 %v4387, %v4391
    %4393 = vrot.lane.b32.xlu0 %v3960, 48
    %v4394 = vpop.permute.xlu0 %4393
    %v4396 = vsel %vm277, %v4392, 0
    %v4398 = vsel %vm281, %v4394, 0
    %4400 = vmatprep.subr.mxu0 0.0
    %4401 = vmatpush1.msra.mxu0 %v4398
    %4402 = vmatprep.subr.mxu0 0.0
    %4403 = vmatpush1.msra.mxu0 0.0
    %4404 = vmatprep.subr.mxu0 0.0
    %4405 = vmatpush1.msra.mxu0 0.0
    %4406 = vmatprep.subr.mxu0 0.0
    %4407 = vmatpush1.msra.mxu0 0.0
    %4408 = vmatprep.subr.mxu0 0.0
    %4409 = vmatpush1.msra.mxu0 0.0
    %4410 = vmatprep.subr.mxu0 0.0
    %4411 = vmatpush1.msra.mxu0 0.0
    %4412 = vmatprep.subr.mxu0 0.0
    %4413 = vmatpush1.msra.mxu0 0.0
    %4414 = vmatprep.subr.mxu0 0.0
    %4415 = vmatpush1.msra.mxu0 0.0
    %4416 = vmatprep.subr.mxu0 0.0
    %4417 = vmatpush1.msra.mxu0 0.0
    %4418 = vmatprep.subr.mxu0 0.0
    %4419 = vmatpush1.msra.mxu0 0.0
    %4420 = vmatprep.subr.mxu0 0.0
    %4421 = vmatpush1.msra.mxu0 0.0
    %4422 = vmatprep.subr.mxu0 0.0
    %4423 = vmatpush1.msra.mxu0 0.0
    %4424 = vmatprep.subr.mxu0 0.0
    %4425 = vmatpush1.msra.mxu0 0.0
    %4426 = vmatprep.subr.mxu0 0.0
    %4427 = vmatpush1.msra.mxu0 0.0
    %4428 = vmatprep.subr.mxu0 0.0
    %4429 = vmatpush1.msra.mxu0 0.0
    %4430 = vmatprep.subr.mxu0 0.0
    %4431 = vmatpush1.msra.mxu0 0.0
    %4432 = vmatprep.subr.mxu0 0.0
    %4433 = vmatpush1.msra.mxu0 0.0
    %4434 = vmatprep.subr.mxu0 0.0
    %4435 = vmatpush1.msra.mxu0 0.0
    %4436 = vmatprep.subr.mxu0 0.0
    %4437 = vmatpush1.msra.mxu0 0.0
    %4438 = vmatprep.subr.mxu0 0.0
    %4439 = vmatpush1.msra.mxu0 0.0
    %4440 = vmatprep.subr.mxu0 0.0
    %4441 = vmatpush1.msra.mxu0 0.0
    %4442 = vmatprep.subr.mxu0 0.0
    %4443 = vmatpush1.msra.mxu0 0.0
    %4444 = vmatprep.subr.mxu0 0.0
    %4445 = vmatpush1.msra.mxu0 0.0
    %4446 = vmatprep.subr.mxu0 0.0
    %4447 = vmatpush1.msra.mxu0 0.0
    %4448 = vmatprep.subr.mxu0 0.0
    %4449 = vmatpush1.msra.mxu0 0.0
    %4450 = vmatprep.subr.mxu0 0.0
    %4451 = vmatpush1.msra.mxu0 0.0
    %4452 = vmatprep.subr.mxu0 0.0
    %4453 = vmatpush1.msra.mxu0 0.0
    %4454 = vmatprep.subr.mxu0 0.0
    %4455 = vmatpush1.msra.mxu0 0.0
    %4456 = vmatprep.subr.mxu0 0.0
    %4457 = vmatpush1.msra.mxu0 0.0
    %4458 = vmatprep.subr.mxu0 0.0
    %4459 = vmatpush1.msra.mxu0 0.0
    %4460 = vmatprep.subr.mxu0 0.0
    %4461 = vmatpush1.msra.mxu0 0.0
    %4462 = vmatprep.subr.mxu0 0.0
    %4463 = vmatpush1.msra.mxu0 0.0
    %4464 = vmatprep.mubr.f32.mxu0 0.0
    %4465 = vmatmul.mubr.f32.gmra.mrb[0].mxu0 %v4396
    %v4466 = vpop.f32.mrb[0].mxu0
    %v4467 = vadd.f32 0.0, %v4466
    %v4468 = vpop.f32.mrb[0].mxu0
    %4469 = vdwg.mxu0
    %4471 = vrot.lane.b32.xlu0 %v4467, 16
    %v4472 = vpop.permute.xlu0 %4471
    %4474 = vst.msk [vmem:[#allocation2] sm:$0xf] %vm698, %v4472
    %4475 = vrot.lane.b32.xlu0 %v3965, 104
    %v4476 = vpop.permute.xlu0 %4475
    %4477 = vrot.lane.b32.xlu0 %v3960, 72
    %v4478 = vpop.permute.xlu0 %4477
    %v4479 = vsel %vm187, %v4476, 0
    %v4481 = vsel %vm187, %v4478, 0
    %4483 = vmatprep.subr.mxu0 0.0
    %4484 = vmatpush1.xpose.msra.mxu0 %v4481
    %4485 = vmatprep.subr.mxu0 0.0
    %4486 = vmatpush1.xpose.msra.mxu0 0.0
    %4487 = vmatprep.subr.mxu0 0.0
    %4488 = vmatpush1.xpose.msra.mxu0 0.0
    %4489 = vmatprep.subr.mxu0 0.0
    %4490 = vmatpush1.xpose.msra.mxu0 0.0
    %4491 = vmatprep.subr.mxu0 0.0
    %4492 = vmatpush1.xpose.msra.mxu0 0.0
    %4493 = vmatprep.subr.mxu0 0.0
    %4494 = vmatpush1.xpose.msra.mxu0 0.0
    %4495 = vmatprep.subr.mxu0 0.0
    %4496 = vmatpush1.xpose.msra.mxu0 0.0
    %4497 = vmatprep.subr.mxu0 0.0
    %4498 = vmatpush1.xpose.msra.mxu0 0.0
    %4499 = vmatprep.subr.mxu0 0.0
    %4500 = vmatpush1.xpose.msra.mxu0 0.0
    %4501 = vmatprep.subr.mxu0 0.0
    %4502 = vmatpush1.xpose.msra.mxu0 0.0
    %4503 = vmatprep.subr.mxu0 0.0
    %4504 = vmatpush1.xpose.msra.mxu0 0.0
    %4505 = vmatprep.subr.mxu0 0.0
    %4506 = vmatpush1.xpose.msra.mxu0 0.0
    %4507 = vmatprep.subr.mxu0 0.0
    %4508 = vmatpush1.xpose.msra.mxu0 0.0
    %4509 = vmatprep.subr.mxu0 0.0
    %4510 = vmatpush1.xpose.msra.mxu0 0.0
    %4511 = vmatprep.subr.mxu0 0.0
    %4512 = vmatpush1.xpose.msra.mxu0 0.0
    %4513 = vmatprep.subr.mxu0 0.0
    %4514 = vmatpush1.xpose.msra.mxu0 0.0
    %4515 = vmatprep.subr.mxu0 0.0
    %4516 = vmatpush1.xpose.msra.mxu0 0.0
    %4517 = vmatprep.subr.mxu0 0.0
    %4518 = vmatpush1.xpose.msra.mxu0 0.0
    %4519 = vmatprep.subr.mxu0 0.0
    %4520 = vmatpush1.xpose.msra.mxu0 0.0
    %4521 = vmatprep.subr.mxu0 0.0
    %4522 = vmatpush1.xpose.msra.mxu0 0.0
    %4523 = vmatprep.subr.mxu0 0.0
    %4524 = vmatpush1.xpose.msra.mxu0 0.0
    %4525 = vmatprep.subr.mxu0 0.0
    %4526 = vmatpush1.xpose.msra.mxu0 0.0
    %4527 = vmatprep.subr.mxu0 0.0
    %4528 = vmatpush1.xpose.msra.mxu0 0.0
    %4529 = vmatprep.subr.mxu0 0.0
    %4530 = vmatpush1.xpose.msra.mxu0 0.0
    %4531 = vmatprep.subr.mxu0 0.0
    %4532 = vmatpush1.xpose.msra.mxu0 0.0
    %4533 = vmatprep.subr.mxu0 0.0
    %4534 = vmatpush1.xpose.msra.mxu0 0.0
    %4535 = vmatprep.subr.mxu0 0.0
    %4536 = vmatpush1.xpose.msra.mxu0 0.0
    %4537 = vmatprep.subr.mxu0 0.0
    %4538 = vmatpush1.xpose.msra.mxu0 0.0
    %4539 = vmatprep.subr.mxu0 0.0
    %4540 = vmatpush1.xpose.msra.mxu0 0.0
    %4541 = vmatprep.subr.mxu0 0.0
    %4542 = vmatpush1.xpose.msra.mxu0 0.0
    %4543 = vmatprep.subr.mxu0 0.0
    %4544 = vmatpush1.xpose.msra.mxu0 0.0
    %4545 = vmatprep.subr.mxu0 0.0
    %4546 = vmatpush1.xpose.msra.mxu0 0.0
    %4547 = vmatprep.mubr.f32.mxu0 0.0
    %4548 = vmatmul.mubr.f32.gmra.mrb[0].mxu0 %v4479
    %v4549 = vpop.f32.mrb[0].mxu0
    %v4550 = vadd.f32 %v3964, %v4549
    %v4551 = vpop.f32.mrb[0].mxu0
    %4552 = vdwg.mxu0
    %v4553 = vsel %vm263, %v4550, -inf
    %4554 = vmax.xlane.f32.xlu0 %v4553
    %v4555 = vpop.xlane.xlu0 %4554
    %v4556 = vsub.f32 %v4550, %v4555
    %v4557 = vmul.f32 %v4556, 1.442695
    %v4558 = vpow.pop %v4557
    %v4559 = vsel %vm263, %v4558, 0.0
    %4560 = vadd.xlane.f32.xlu0 %v4559
    %v4561 = vpop.xlane.xlu0 %4560
    %v4562 = vrcp.pop %v4561
    %v4563 = vmul.f32 %v4558, %v4562
    %4564 = vrot.lane.b32.xlu0 %v3960, 40
    %v4565 = vpop.permute.xlu0 %4564
    %v4567 = vsel %vm277, %v4563, 0
    %v4569 = vsel %vm281, %v4565, 0
    %4571 = vmatprep.subr.mxu0 0.0
    %4572 = vmatpush1.msra.mxu0 %v4569
    %4573 = vmatprep.subr.mxu0 0.0
    %4574 = vmatpush1.msra.mxu0 0.0
    %4575 = vmatprep.subr.mxu0 0.0
    %4576 = vmatpush1.msra.mxu0 0.0
    %4577 = vmatprep.subr.mxu0 0.0
    %4578 = vmatpush1.msra.mxu0 0.0
    %4579 = vmatprep.subr.mxu0 0.0
    %4580 = vmatpush1.msra.mxu0 0.0
    %4581 = vmatprep.subr.mxu0 0.0
    %4582 = vmatpush1.msra.mxu0 0.0
    %4583 = vmatprep.subr.mxu0 0.0
    %4584 = vmatpush1.msra.mxu0 0.0
    %4585 = vmatprep.subr.mxu0 0.0
    %4586 = vmatpush1.msra.mxu0 0.0
    %4587 = vmatprep.subr.mxu0 0.0
    %4588 = vmatpush1.msra.mxu0 0.0
    %4589 = vmatprep.subr.mxu0 0.0
    %4590 = vmatpush1.msra.mxu0 0.0
    %4591 = vmatprep.subr.mxu0 0.0
    %4592 = vmatpush1.msra.mxu0 0.0
    %4593 = vmatprep.subr.mxu0 0.0
    %4594 = vmatpush1.msra.mxu0 0.0
    %4595 = vmatprep.subr.mxu0 0.0
    %4596 = vmatpush1.msra.mxu0 0.0
    %4597 = vmatprep.subr.mxu0 0.0
    %4598 = vmatpush1.msra.mxu0 0.0
    %4599 = vmatprep.subr.mxu0 0.0
    %4600 = vmatpush1.msra.mxu0 0.0
    %4601 = vmatprep.subr.mxu0 0.0
    %4602 = vmatpush1.msra.mxu0 0.0
    %4603 = vmatprep.subr.mxu0 0.0
    %4604 = vmatpush1.msra.mxu0 0.0
    %4605 = vmatprep.subr.mxu0 0.0
    %4606 = vmatpush1.msra.mxu0 0.0
    %4607 = vmatprep.subr.mxu0 0.0
    %4608 = vmatpush1.msra.mxu0 0.0
    %4609 = vmatprep.subr.mxu0 0.0
    %4610 = vmatpush1.msra.mxu0 0.0
    %4611 = vmatprep.subr.mxu0 0.0
    %4612 = vmatpush1.msra.mxu0 0.0
    %4613 = vmatprep.subr.mxu0 0.0
    %4614 = vmatpush1.msra.mxu0 0.0
    %4615 = vmatprep.subr.mxu0 0.0
    %4616 = vmatpush1.msra.mxu0 0.0
    %4617 = vmatprep.subr.mxu0 0.0
    %4618 = vmatpush1.msra.mxu0 0.0
    %4619 = vmatprep.subr.mxu0 0.0
    %4620 = vmatpush1.msra.mxu0 0.0
    %4621 = vmatprep.subr.mxu0 0.0
    %4622 = vmatpush1.msra.mxu0 0.0
    %4623 = vmatprep.subr.mxu0 0.0
    %4624 = vmatpush1.msra.mxu0 0.0
    %4625 = vmatprep.subr.mxu0 0.0
    %4626 = vmatpush1.msra.mxu0 0.0
    %4627 = vmatprep.subr.mxu0 0.0
    %4628 = vmatpush1.msra.mxu0 0.0
    %4629 = vmatprep.subr.mxu0 0.0
    %4630 = vmatpush1.msra.mxu0 0.0
    %4631 = vmatprep.subr.mxu0 0.0
    %4632 = vmatpush1.msra.mxu0 0.0
    %4633 = vmatprep.subr.mxu0 0.0
    %4634 = vmatpush1.msra.mxu0 0.0
    %4635 = vmatprep.mubr.f32.mxu0 0.0
    %4636 = vmatmul.mubr.f32.gmra.mrb[0].mxu0 %v4567
    %v4637 = vpop.f32.mrb[0].mxu0
    %v4638 = vadd.f32 0.0, %v4637
    %v4639 = vpop.f32.mrb[0].mxu0
    %4640 = vdwg.mxu0
    %4642 = vrot.lane.b32.xlu0 %v4638, 24
    %v4643 = vpop.permute.xlu0 %4642
    %4645 = vst.msk [vmem:[#allocation2] sm:$0xf] %vm870, %v4643
    %v4646 = vrot.slane %v3965, 4
    %v4647 = vrot.slane %v3960, 4
    %4648 = vrot.lane.b32.xlu0 %v4647, 96
    %v4649 = vpop.permute.xlu0 %4648
    %v4650 = vsel %vm187, %v4646, 0
    %v4652 = vsel %vm187, %v4649, 0
    %4654 = vmatprep.subr.mxu0 0.0
    %4655 = vmatpush1.xpose.msra.mxu0 %v4652
    %4656 = vmatprep.subr.mxu0 0.0
    %4657 = vmatpush1.xpose.msra.mxu0 0.0
    %4658 = vmatprep.subr.mxu0 0.0
    %4659 = vmatpush1.xpose.msra.mxu0 0.0
    %4660 = vmatprep.subr.mxu0 0.0
    %4661 = vmatpush1.xpose.msra.mxu0 0.0
    %4662 = vmatprep.subr.mxu0 0.0
    %4663 = vmatpush1.xpose.msra.mxu0 0.0
    %4664 = vmatprep.subr.mxu0 0.0
    %4665 = vmatpush1.xpose.msra.mxu0 0.0
    %4666 = vmatprep.subr.mxu0 0.0
    %4667 = vmatpush1.xpose.msra.mxu0 0.0
    %4668 = vmatprep.subr.mxu0 0.0
    %4669 = vmatpush1.xpose.msra.mxu0 0.0
    %4670 = vmatprep.subr.mxu0 0.0
    %4671 = vmatpush1.xpose.msra.mxu0 0.0
    %4672 = vmatprep.subr.mxu0 0.0
    %4673 = vmatpush1.xpose.msra.mxu0 0.0
    %4674 = vmatprep.subr.mxu0 0.0
    %4675 = vmatpush1.xpose.msra.mxu0 0.0
    %4676 = vmatprep.subr.mxu0 0.0
    %4677 = vmatpush1.xpose.msra.mxu0 0.0
    %4678 = vmatprep.subr.mxu0 0.0
    %4679 = vmatpush1.xpose.msra.mxu0 0.0
    %4680 = vmatprep.subr.mxu0 0.0
    %4681 = vmatpush1.xpose.msra.mxu0 0.0
    %4682 = vmatprep.subr.mxu0 0.0
    %4683 = vmatpush1.xpose.msra.mxu0 0.0
    %4684 = vmatprep.subr.mxu0 0.0
    %4685 = vmatpush1.xpose.msra.mxu0 0.0
    %4686 = vmatprep.subr.mxu0 0.0
    %4687 = vmatpush1.xpose.msra.mxu0 0.0
    %4688 = vmatprep.subr.mxu0 0.0
    %4689 = vmatpush1.xpose.msra.mxu0 0.0
    %4690 = vmatprep.subr.mxu0 0.0
    %4691 = vmatpush1.xpose.msra.mxu0 0.0
    %4692 = vmatprep.subr.mxu0 0.0
    %4693 = vmatpush1.xpose.msra.mxu0 0.0
    %4694 = vmatprep.subr.mxu0 0.0
    %4695 = vmatpush1.xpose.msra.mxu0 0.0
    %4696 = vmatprep.subr.mxu0 0.0
    %4697 = vmatpush1.xpose.msra.mxu0 0.0
    %4698 = vmatprep.subr.mxu0 0.0
    %4699 = vmatpush1.xpose.msra.mxu0 0.0
    %4700 = vmatprep.subr.mxu0 0.0
    %4701 = vmatpush1.xpose.msra.mxu0 0.0
    %4702 = vmatprep.subr.mxu0 0.0
    %4703 = vmatpush1.xpose.msra.mxu0 0.0
    %4704 = vmatprep.subr.mxu0 0.0
    %4705 = vmatpush1.xpose.msra.mxu0 0.0
    %4706 = vmatprep.subr.mxu0 0.0
    %4707 = vmatpush1.xpose.msra.mxu0 0.0
    %4708 = vmatprep.subr.mxu0 0.0
    %4709 = vmatpush1.xpose.msra.mxu0 0.0
    %4710 = vmatprep.subr.mxu0 0.0
    %4711 = vmatpush1.xpose.msra.mxu0 0.0
    %4712 = vmatprep.subr.mxu0 0.0
    %4713 = vmatpush1.xpose.msra.mxu0 0.0
    %4714 = vmatprep.subr.mxu0 0.0
    %4715 = vmatpush1.xpose.msra.mxu0 0.0
    %4716 = vmatprep.subr.mxu0 0.0
    %4717 = vmatpush1.xpose.msra.mxu0 0.0
    %4718 = vmatprep.mubr.f32.mxu0 0.0
    %4719 = vmatmul.mubr.f32.gmra.mrb[0].mxu0 %v4650
    %v4720 = vpop.f32.mrb[0].mxu0
    %v4721 = vadd.f32 %v3964, %v4720
    %v4722 = vpop.f32.mrb[0].mxu0
    %4723 = vdwg.mxu0
    %v4724 = vsel %vm263, %v4721, -inf
    %4725 = vmax.xlane.f32.xlu0 %v4724
    %v4726 = vpop.xlane.xlu0 %4725
    %v4727 = vsub.f32 %v4721, %v4726
    %v4728 = vmul.f32 %v4727, 1.442695
    %v4729 = vpow.pop %v4728
    %v4730 = vsel %vm263, %v4729, 0.0
    %4731 = vadd.xlane.f32.xlu0 %v4730
    %v4732 = vpop.xlane.xlu0 %4731
    %v4733 = vrcp.pop %v4732
    %v4734 = vmul.f32 %v4729, %v4733
    %4735 = vrot.lane.b32.xlu0 %v4647, 64
    %v4736 = vpop.permute.xlu0 %4735
    %v4738 = vsel %vm277, %v4734, 0
    %v4740 = vsel %vm281, %v4736, 0
    %4742 = vmatprep.subr.mxu0 0.0
    %4743 = vmatpush1.msra.mxu0 %v4740
    %4744 = vmatprep.subr.mxu0 0.0
    %4745 = vmatpush1.msra.mxu0 0.0
    %4746 = vmatprep.subr.mxu0 0.0
    %4747 = vmatpush1.msra.mxu0 0.0
    %4748 = vmatprep.subr.mxu0 0.0
    %4749 = vmatpush1.msra.mxu0 0.0
    %4750 = vmatprep.subr.mxu0 0.0
    %4751 = vmatpush1.msra.mxu0 0.0
    %4752 = vmatprep.subr.mxu0 0.0
    %4753 = vmatpush1.msra.mxu0 0.0
    %4754 = vmatprep.subr.mxu0 0.0
    %4755 = vmatpush1.msra.mxu0 0.0
    %4756 = vmatprep.subr.mxu0 0.0
    %4757 = vmatpush1.msra.mxu0 0.0
    %4758 = vmatprep.subr.mxu0 0.0
    %4759 = vmatpush1.msra.mxu0 0.0
    %4760 = vmatprep.subr.mxu0 0.0
    %4761 = vmatpush1.msra.mxu0 0.0
    %4762 = vmatprep.subr.mxu0 0.0
    %4763 = vmatpush1.msra.mxu0 0.0
    %4764 = vmatprep.subr.mxu0 0.0
    %4765 = vmatpush1.msra.mxu0 0.0
    %4766 = vmatprep.subr.mxu0 0.0
    %4767 = vmatpush1.msra.mxu0 0.0
    %4768 = vmatprep.subr.mxu0 0.0
    %4769 = vmatpush1.msra.mxu0 0.0
    %4770 = vmatprep.subr.mxu0 0.0
    %4771 = vmatpush1.msra.mxu0 0.0
    %4772 = vmatprep.subr.mxu0 0.0
    %4773 = vmatpush1.msra.mxu0 0.0
    %4774 = vmatprep.subr.mxu0 0.0
    %4775 = vmatpush1.msra.mxu0 0.0
    %4776 = vmatprep.subr.mxu0 0.0
    %4777 = vmatpush1.msra.mxu0 0.0
    %4778 = vmatprep.subr.mxu0 0.0
    %4779 = vmatpush1.msra.mxu0 0.0
    %4780 = vmatprep.subr.mxu0 0.0
    %4781 = vmatpush1.msra.mxu0 0.0
    %4782 = vmatprep.subr.mxu0 0.0
    %4783 = vmatpush1.msra.mxu0 0.0
    %4784 = vmatprep.subr.mxu0 0.0
    %4785 = vmatpush1.msra.mxu0 0.0
    %4786 = vmatprep.subr.mxu0 0.0
    %4787 = vmatpush1.msra.mxu0 0.0
    %4788 = vmatprep.subr.mxu0 0.0
    %4789 = vmatpush1.msra.mxu0 0.0
    %4790 = vmatprep.subr.mxu0 0.0
    %4791 = vmatpush1.msra.mxu0 0.0
    %4792 = vmatprep.subr.mxu0 0.0
    %4793 = vmatpush1.msra.mxu0 0.0
    %4794 = vmatprep.subr.mxu0 0.0
    %4795 = vmatpush1.msra.mxu0 0.0
    %4796 = vmatprep.subr.mxu0 0.0
    %4797 = vmatpush1.msra.mxu0 0.0
    %4798 = vmatprep.subr.mxu0 0.0
    %4799 = vmatpush1.msra.mxu0 0.0
    %4800 = vmatprep.subr.mxu0 0.0
    %4801 = vmatpush1.msra.mxu0 0.0
    %4802 = vmatprep.subr.mxu0 0.0
    %4803 = vmatpush1.msra.mxu0 0.0
    %4804 = vmatprep.subr.mxu0 0.0
    %4805 = vmatpush1.msra.mxu0 0.0
    %4806 = vmatprep.mubr.f32.mxu0 0.0
    %4807 = vmatmul.mubr.f32.gmra.mrb[0].mxu0 %v4738
    %v4808 = vpop.f32.mrb[0].mxu0
    %v4809 = vadd.f32 0.0, %v4808
    %v4810 = vpop.f32.mrb[0].mxu0
    %4811 = vdwg.mxu0
    %4812 = vst.msk [vmem:[#allocation2 + $0x4] sm:$0xf] %vm354, %v4809
    %4813 = vrot.lane.b32.xlu0 %v4646, 120
    %v4814 = vpop.permute.xlu0 %4813
    %4815 = vrot.lane.b32.xlu0 %v4647, 88
    %v4816 = vpop.permute.xlu0 %4815
    %v4817 = vsel %vm187, %v4814, 0
    %v4819 = vsel %vm187, %v4816, 0
    %4821 = vmatprep.subr.mxu0 0.0
    %4822 = vmatpush1.xpose.msra.mxu0 %v4819
    %4823 = vmatprep.subr.mxu0 0.0
    %4824 = vmatpush1.xpose.msra.mxu0 0.0
    %4825 = vmatprep.subr.mxu0 0.0
    %4826 = vmatpush1.xpose.msra.mxu0 0.0
    %4827 = vmatprep.subr.mxu0 0.0
    %4828 = vmatpush1.xpose.msra.mxu0 0.0
    %4829 = vmatprep.subr.mxu0 0.0
    %4830 = vmatpush1.xpose.msra.mxu0 0.0
    %4831 = vmatprep.subr.mxu0 0.0
    %4832 = vmatpush1.xpose.msra.mxu0 0.0
    %4833 = vmatprep.subr.mxu0 0.0
    %4834 = vmatpush1.xpose.msra.mxu0 0.0
    %4835 = vmatprep.subr.mxu0 0.0
    %4836 = vmatpush1.xpose.msra.mxu0 0.0
    %4837 = vmatprep.subr.mxu0 0.0
    %4838 = vmatpush1.xpose.msra.mxu0 0.0
    %4839 = vmatprep.subr.mxu0 0.0
    %4840 = vmatpush1.xpose.msra.mxu0 0.0
    %4841 = vmatprep.subr.mxu0 0.0
    %4842 = vmatpush1.xpose.msra.mxu0 0.0
    %4843 = vmatprep.subr.mxu0 0.0
    %4844 = vmatpush1.xpose.msra.mxu0 0.0
    %4845 = vmatprep.subr.mxu0 0.0
    %4846 = vmatpush1.xpose.msra.mxu0 0.0
    %4847 = vmatprep.subr.mxu0 0.0
    %4848 = vmatpush1.xpose.msra.mxu0 0.0
    %4849 = vmatprep.subr.mxu0 0.0
    %4850 = vmatpush1.xpose.msra.mxu0 0.0
    %4851 = vmatprep.subr.mxu0 0.0
    %4852 = vmatpush1.xpose.msra.mxu0 0.0
    %4853 = vmatprep.subr.mxu0 0.0
    %4854 = vmatpush1.xpose.msra.mxu0 0.0
    %4855 = vmatprep.subr.mxu0 0.0
    %4856 = vmatpush1.xpose.msra.mxu0 0.0
    %4857 = vmatprep.subr.mxu0 0.0
    %4858 = vmatpush1.xpose.msra.mxu0 0.0
    %4859 = vmatprep.subr.mxu0 0.0
    %4860 = vmatpush1.xpose.msra.mxu0 0.0
    %4861 = vmatprep.subr.mxu0 0.0
    %4862 = vmatpush1.xpose.msra.mxu0 0.0
    %4863 = vmatprep.subr.mxu0 0.0
    %4864 = vmatpush1.xpose.msra.mxu0 0.0
    %4865 = vmatprep.subr.mxu0 0.0
    %4866 = vmatpush1.xpose.msra.mxu0 0.0
    %4867 = vmatprep.subr.mxu0 0.0
    %4868 = vmatpush1.xpose.msra.mxu0 0.0
    %4869 = vmatprep.subr.mxu0 0.0
    %4870 = vmatpush1.xpose.msra.mxu0 0.0
    %4871 = vmatprep.subr.mxu0 0.0
    %4872 = vmatpush1.xpose.msra.mxu0 0.0
    %4873 = vmatprep.subr.mxu0 0.0
    %4874 = vmatpush1.xpose.msra.mxu0 0.0
    %4875 = vmatprep.subr.mxu0 0.0
    %4876 = vmatpush1.xpose.msra.mxu0 0.0
    %4877 = vmatprep.subr.mxu0 0.0
    %4878 = vmatpush1.xpose.msra.mxu0 0.0
    %4879 = vmatprep.subr.mxu0 0.0
    %4880 = vmatpush1.xpose.msra.mxu0 0.0
    %4881 = vmatprep.subr.mxu0 0.0
    %4882 = vmatpush1.xpose.msra.mxu0 0.0
    %4883 = vmatprep.subr.mxu0 0.0
    %4884 = vmatpush1.xpose.msra.mxu0 0.0
    %4885 = vmatprep.mubr.f32.mxu0 0.0
    %4886 = vmatmul.mubr.f32.gmra.mrb[0].mxu0 %v4817
    %v4887 = vpop.f32.mrb[0].mxu0
    %v4888 = vadd.f32 %v3964, %v4887
    %v4889 = vpop.f32.mrb[0].mxu0
    %4890 = vdwg.mxu0
    %v4891 = vsel %vm263, %v4888, -inf
    %4892 = vmax.xlane.f32.xlu0 %v4891
    %v4893 = vpop.xlane.xlu0 %4892
    %v4894 = vsub.f32 %v4888, %v4893
    %v4895 = vmul.f32 %v4894, 1.442695
    %v4896 = vpow.pop %v4895
    %v4897 = vsel %vm263, %v4896, 0.0
    %4898 = vadd.xlane.f32.xlu0 %v4897
    %v4899 = vpop.xlane.xlu0 %4898
    %v4900 = vrcp.pop %v4899
    %v4901 = vmul.f32 %v4896, %v4900
    %4902 = vrot.lane.b32.xlu0 %v4647, 56
    %v4903 = vpop.permute.xlu0 %4902
    %v4905 = vsel %vm277, %v4901, 0
    %v4907 = vsel %vm281, %v4903, 0
    %4909 = vmatprep.subr.mxu0 0.0
    %4910 = vmatpush1.msra.mxu0 %v4907
    %4911 = vmatprep.subr.mxu0 0.0
    %4912 = vmatpush1.msra.mxu0 0.0
    %4913 = vmatprep.subr.mxu0 0.0
    %4914 = vmatpush1.msra.mxu0 0.0
    %4915 = vmatprep.subr.mxu0 0.0
    %4916 = vmatpush1.msra.mxu0 0.0
    %4917 = vmatprep.subr.mxu0 0.0
    %4918 = vmatpush1.msra.mxu0 0.0
    %4919 = vmatprep.subr.mxu0 0.0
    %4920 = vmatpush1.msra.mxu0 0.0
    %4921 = vmatprep.subr.mxu0 0.0
    %4922 = vmatpush1.msra.mxu0 0.0
    %4923 = vmatprep.subr.mxu0 0.0
    %4924 = vmatpush1.msra.mxu0 0.0
    %4925 = vmatprep.subr.mxu0 0.0
    %4926 = vmatpush1.msra.mxu0 0.0
    %4927 = vmatprep.subr.mxu0 0.0
    %4928 = vmatpush1.msra.mxu0 0.0
    %4929 = vmatprep.subr.mxu0 0.0
    %4930 = vmatpush1.msra.mxu0 0.0
    %4931 = vmatprep.subr.mxu0 0.0
    %4932 = vmatpush1.msra.mxu0 0.0
    %4933 = vmatprep.subr.mxu0 0.0
    %4934 = vmatpush1.msra.mxu0 0.0
    %4935 = vmatprep.subr.mxu0 0.0
    %4936 = vmatpush1.msra.mxu0 0.0
    %4937 = vmatprep.subr.mxu0 0.0
    %4938 = vmatpush1.msra.mxu0 0.0
    %4939 = vmatprep.subr.mxu0 0.0
    %4940 = vmatpush1.msra.mxu0 0.0
    %4941 = vmatprep.subr.mxu0 0.0
    %4942 = vmatpush1.msra.mxu0 0.0
    %4943 = vmatprep.subr.mxu0 0.0
    %4944 = vmatpush1.msra.mxu0 0.0
    %4945 = vmatprep.subr.mxu0 0.0
    %4946 = vmatpush1.msra.mxu0 0.0
    %4947 = vmatprep.subr.mxu0 0.0
    %4948 = vmatpush1.msra.mxu0 0.0
    %4949 = vmatprep.subr.mxu0 0.0
    %4950 = vmatpush1.msra.mxu0 0.0
    %4951 = vmatprep.subr.mxu0 0.0
    %4952 = vmatpush1.msra.mxu0 0.0
    %4953 = vmatprep.subr.mxu0 0.0
    %4954 = vmatpush1.msra.mxu0 0.0
    %4955 = vmatprep.subr.mxu0 0.0
    %4956 = vmatpush1.msra.mxu0 0.0
    %4957 = vmatprep.subr.mxu0 0.0
    %4958 = vmatpush1.msra.mxu0 0.0
    %4959 = vmatprep.subr.mxu0 0.0
    %4960 = vmatpush1.msra.mxu0 0.0
    %4961 = vmatprep.subr.mxu0 0.0
    %4962 = vmatpush1.msra.mxu0 0.0
    %4963 = vmatprep.subr.mxu0 0.0
    %4964 = vmatpush1.msra.mxu0 0.0
    %4965 = vmatprep.subr.mxu0 0.0
    %4966 = vmatpush1.msra.mxu0 0.0
    %4967 = vmatprep.subr.mxu0 0.0
    %4968 = vmatpush1.msra.mxu0 0.0
    %4969 = vmatprep.subr.mxu0 0.0
    %4970 = vmatpush1.msra.mxu0 0.0
    %4971 = vmatprep.subr.mxu0 0.0
    %4972 = vmatpush1.msra.mxu0 0.0
    %4973 = vmatprep.mubr.f32.mxu0 0.0
    %4974 = vmatmul.mubr.f32.gmra.mrb[0].mxu0 %v4905
    %v4975 = vpop.f32.mrb[0].mxu0
    %v4976 = vadd.f32 0.0, %v4975
    %v4977 = vpop.f32.mrb[0].mxu0
    %4978 = vdwg.mxu0
    %4980 = vrot.lane.b32.xlu0 %v4976, 8
    %v4981 = vpop.permute.xlu0 %4980
    %4983 = vst.msk [vmem:[#allocation2 + $0x4] sm:$0xf] %vm526, %v4981
    %4984 = vrot.lane.b32.xlu0 %v4646, 112
    %v4985 = vpop.permute.xlu0 %4984
    %4986 = vrot.lane.b32.xlu0 %v4647, 80
    %v4987 = vpop.permute.xlu0 %4986
    %v4988 = vsel %vm187, %v4985, 0
    %v4990 = vsel %vm187, %v4987, 0
    %4992 = vmatprep.subr.mxu0 0.0
    %4993 = vmatpush1.xpose.msra.mxu0 %v4990
    %4994 = vmatprep.subr.mxu0 0.0
    %4995 = vmatpush1.xpose.msra.mxu0 0.0
    %4996 = vmatprep.subr.mxu0 0.0
    %4997 = vmatpush1.xpose.msra.mxu0 0.0
    %4998 = vmatprep.subr.mxu0 0.0
    %4999 = vmatpush1.xpose.msra.mxu0 0.0
    %5000 = vmatprep.subr.mxu0 0.0
    %5001 = vmatpush1.xpose.msra.mxu0 0.0
    %5002 = vmatprep.subr.mxu0 0.0
    %5003 = vmatpush1.xpose.msra.mxu0 0.0
    %5004 = vmatprep.subr.mxu0 0.0
    %5005 = vmatpush1.xpose.msra.mxu0 0.0
    %5006 = vmatprep.subr.mxu0 0.0
    %5007 = vmatpush1.xpose.msra.mxu0 0.0
    %5008 = vmatprep.subr.mxu0 0.0
    %5009 = vmatpush1.xpose.msra.mxu0 0.0
    %5010 = vmatprep.subr.mxu0 0.0
    %5011 = vmatpush1.xpose.msra.mxu0 0.0
    %5012 = vmatprep.subr.mxu0 0.0
    %5013 = vmatpush1.xpose.msra.mxu0 0.0
    %5014 = vmatprep.subr.mxu0 0.0
    %5015 = vmatpush1.xpose.msra.mxu0 0.0
    %5016 = vmatprep.subr.mxu0 0.0
    %5017 = vmatpush1.xpose.msra.mxu0 0.0
    %5018 = vmatprep.subr.mxu0 0.0
    %5019 = vmatpush1.xpose.msra.mxu0 0.0
    %5020 = vmatprep.subr.mxu0 0.0
    %5021 = vmatpush1.xpose.msra.mxu0 0.0
    %5022 = vmatprep.subr.mxu0 0.0
    %5023 = vmatpush1.xpose.msra.mxu0 0.0
    %5024 = vmatprep.subr.mxu0 0.0
    %5025 = vmatpush1.xpose.msra.mxu0 0.0
    %5026 = vmatprep.subr.mxu0 0.0
    %5027 = vmatpush1.xpose.msra.mxu0 0.0
    %5028 = vmatprep.subr.mxu0 0.0
    %5029 = vmatpush1.xpose.msra.mxu0 0.0
    %5030 = vmatprep.subr.mxu0 0.0
    %5031 = vmatpush1.xpose.msra.mxu0 0.0
    %5032 = vmatprep.subr.mxu0 0.0
    %5033 = vmatpush1.xpose.msra.mxu0 0.0
    %5034 = vmatprep.subr.mxu0 0.0
    %5035 = vmatpush1.xpose.msra.mxu0 0.0
    %5036 = vmatprep.subr.mxu0 0.0
    %5037 = vmatpush1.xpose.msra.mxu0 0.0
    %5038 = vmatprep.subr.mxu0 0.0
    %5039 = vmatpush1.xpose.msra.mxu0 0.0
    %5040 = vmatprep.subr.mxu0 0.0
    %5041 = vmatpush1.xpose.msra.mxu0 0.0
    %5042 = vmatprep.subr.mxu0 0.0
    %5043 = vmatpush1.xpose.msra.mxu0 0.0
    %5044 = vmatprep.subr.mxu0 0.0
    %5045 = vmatpush1.xpose.msra.mxu0 0.0
    %5046 = vmatprep.subr.mxu0 0.0
    %5047 = vmatpush1.xpose.msra.mxu0 0.0
    %5048 = vmatprep.subr.mxu0 0.0
    %5049 = vmatpush1.xpose.msra.mxu0 0.0
    %5050 = vmatprep.subr.mxu0 0.0
    %5051 = vmatpush1.xpose.msra.mxu0 0.0
    %5052 = vmatprep.subr.mxu0 0.0
    %5053 = vmatpush1.xpose.msra.mxu0 0.0
    %5054 = vmatprep.subr.mxu0 0.0
    %5055 = vmatpush1.xpose.msra.mxu0 0.0
    %5056 = vmatprep.mubr.f32.mxu0 0.0
    %5057 = vmatmul.mubr.f32.gmra.mrb[0].mxu0 %v4988
    %v5058 = vpop.f32.mrb[0].mxu0
    %v5059 = vadd.f32 %v3964, %v5058
    %v5060 = vpop.f32.mrb[0].mxu0
    %5061 = vdwg.mxu0
    %v5062 = vsel %vm263, %v5059, -inf
    %5063 = vmax.xlane.f32.xlu0 %v5062
    %v5064 = vpop.xlane.xlu0 %5063
    %v5065 = vsub.f32 %v5059, %v5064
    %v5066 = vmul.f32 %v5065, 1.442695
    %v5067 = vpow.pop %v5066
    %v5068 = vsel %vm263, %v5067, 0.0
    %5069 = vadd.xlane.f32.xlu0 %v5068
    %v5070 = vpop.xlane.xlu0 %5069
    %v5071 = vrcp.pop %v5070
    %v5072 = vmul.f32 %v5067, %v5071
    %5073 = vrot.lane.b32.xlu0 %v4647, 48
    %v5074 = vpop.permute.xlu0 %5073
    %v5076 = vsel %vm277, %v5072, 0
    %v5078 = vsel %vm281, %v5074, 0
    %5080 = vmatprep.subr.mxu0 0.0
    %5081 = vmatpush1.msra.mxu0 %v5078
    %5082 = vmatprep.subr.mxu0 0.0
    %5083 = vmatpush1.msra.mxu0 0.0
    %5084 = vmatprep.subr.mxu0 0.0
    %5085 = vmatpush1.msra.mxu0 0.0
    %5086 = vmatprep.subr.mxu0 0.0
    %5087 = vmatpush1.msra.mxu0 0.0
    %5088 = vmatprep.subr.mxu0 0.0
    %5089 = vmatpush1.msra.mxu0 0.0
    %5090 = vmatprep.subr.mxu0 0.0
    %5091 = vmatpush1.msra.mxu0 0.0
    %5092 = vmatprep.subr.mxu0 0.0
    %5093 = vmatpush1.msra.mxu0 0.0
    %5094 = vmatprep.subr.mxu0 0.0
    %5095 = vmatpush1.msra.mxu0 0.0
    %5096 = vmatprep.subr.mxu0 0.0
    %5097 = vmatpush1.msra.mxu0 0.0
    %5098 = vmatprep.subr.mxu0 0.0
    %5099 = vmatpush1.msra.mxu0 0.0
    %5100 = vmatprep.subr.mxu0 0.0
    %5101 = vmatpush1.msra.mxu0 0.0
    %5102 = vmatprep.subr.mxu0 0.0
    %5103 = vmatpush1.msra.mxu0 0.0
    %5104 = vmatprep.subr.mxu0 0.0
    %5105 = vmatpush1.msra.mxu0 0.0
    %5106 = vmatprep.subr.mxu0 0.0
    %5107 = vmatpush1.msra.mxu0 0.0
    %5108 = vmatprep.subr.mxu0 0.0
    %5109 = vmatpush1.msra.mxu0 0.0
    %5110 = vmatprep.subr.mxu0 0.0
    %5111 = vmatpush1.msra.mxu0 0.0
    %5112 = vmatprep.subr.mxu0 0.0
    %5113 = vmatpush1.msra.mxu0 0.0
    %5114 = vmatprep.subr.mxu0 0.0
    %5115 = vmatpush1.msra.mxu0 0.0
    %5116 = vmatprep.subr.mxu0 0.0
    %5117 = vmatpush1.msra.mxu0 0.0
    %5118 = vmatprep.subr.mxu0 0.0
    %5119 = vmatpush1.msra.mxu0 0.0
    %5120 = vmatprep.subr.mxu0 0.0
    %5121 = vmatpush1.msra.mxu0 0.0
    %5122 = vmatprep.subr.mxu0 0.0
    %5123 = vmatpush1.msra.mxu0 0.0
    %5124 = vmatprep.subr.mxu0 0.0
    %5125 = vmatpush1.msra.mxu0 0.0
    %5126 = vmatprep.subr.mxu0 0.0
    %5127 = vmatpush1.msra.mxu0 0.0
    %5128 = vmatprep.subr.mxu0 0.0
    %5129 = vmatpush1.msra.mxu0 0.0
    %5130 = vmatprep.subr.mxu0 0.0
    %5131 = vmatpush1.msra.mxu0 0.0
    %5132 = vmatprep.subr.mxu0 0.0
    %5133 = vmatpush1.msra.mxu0 0.0
    %5134 = vmatprep.subr.mxu0 0.0
    %5135 = vmatpush1.msra.mxu0 0.0
    %5136 = vmatprep.subr.mxu0 0.0
    %5137 = vmatpush1.msra.mxu0 0.0
    %5138 = vmatprep.subr.mxu0 0.0
    %5139 = vmatpush1.msra.mxu0 0.0
    %5140 = vmatprep.subr.mxu0 0.0
    %5141 = vmatpush1.msra.mxu0 0.0
    %5142 = vmatprep.subr.mxu0 0.0
    %5143 = vmatpush1.msra.mxu0 0.0
    %5144 = vmatprep.mubr.f32.mxu0 0.0
    %5145 = vmatmul.mubr.f32.gmra.mrb[0].mxu0 %v5076
    %v5146 = vpop.f32.mrb[0].mxu0
    %v5147 = vadd.f32 0.0, %v5146
    %v5148 = vpop.f32.mrb[0].mxu0
    %5149 = vdwg.mxu0
    %5151 = vrot.lane.b32.xlu0 %v5147, 16
    %v5152 = vpop.permute.xlu0 %5151
    %5154 = vst.msk [vmem:[#allocation2 + $0x4] sm:$0xf] %vm698, %v5152
    %5155 = vrot.lane.b32.xlu0 %v4646, 104
    %v5156 = vpop.permute.xlu0 %5155
    %5157 = vrot.lane.b32.xlu0 %v4647, 72
    %v5158 = vpop.permute.xlu0 %5157
    %v5159 = vsel %vm187, %v5156, 0
    %v5161 = vsel %vm187, %v5158, 0
    %5163 = vmatprep.subr.mxu0 0.0
    %5164 = vmatpush1.xpose.msra.mxu0 %v5161
    %5165 = vmatprep.subr.mxu0 0.0
    %5166 = vmatpush1.xpose.msra.mxu0 0.0
    %5167 = vmatprep.subr.mxu0 0.0
    %5168 = vmatpush1.xpose.msra.mxu0 0.0
    %5169 = vmatprep.subr.mxu0 0.0
    %5170 = vmatpush1.xpose.msra.mxu0 0.0
    %5171 = vmatprep.subr.mxu0 0.0
    %5172 = vmatpush1.xpose.msra.mxu0 0.0
    %5173 = vmatprep.subr.mxu0 0.0
    %5174 = vmatpush1.xpose.msra.mxu0 0.0
    %5175 = vmatprep.subr.mxu0 0.0
    %5176 = vmatpush1.xpose.msra.mxu0 0.0
    %5177 = vmatprep.subr.mxu0 0.0
    %5178 = vmatpush1.xpose.msra.mxu0 0.0
    %5179 = vmatprep.subr.mxu0 0.0
    %5180 = vmatpush1.xpose.msra.mxu0 0.0
    %5181 = vmatprep.subr.mxu0 0.0
    %5182 = vmatpush1.xpose.msra.mxu0 0.0
    %5183 = vmatprep.subr.mxu0 0.0
    %5184 = vmatpush1.xpose.msra.mxu0 0.0
    %5185 = vmatprep.subr.mxu0 0.0
    %5186 = vmatpush1.xpose.msra.mxu0 0.0
    %5187 = vmatprep.subr.mxu0 0.0
    %5188 = vmatpush1.xpose.msra.mxu0 0.0
    %5189 = vmatprep.subr.mxu0 0.0
    %5190 = vmatpush1.xpose.msra.mxu0 0.0
    %5191 = vmatprep.subr.mxu0 0.0
    %5192 = vmatpush1.xpose.msra.mxu0 0.0
    %5193 = vmatprep.subr.mxu0 0.0
    %5194 = vmatpush1.xpose.msra.mxu0 0.0
    %5195 = vmatprep.subr.mxu0 0.0
    %5196 = vmatpush1.xpose.msra.mxu0 0.0
    %5197 = vmatprep.subr.mxu0 0.0
    %5198 = vmatpush1.xpose.msra.mxu0 0.0
    %5199 = vmatprep.subr.mxu0 0.0
    %5200 = vmatpush1.xpose.msra.mxu0 0.0
    %5201 = vmatprep.subr.mxu0 0.0
    %5202 = vmatpush1.xpose.msra.mxu0 0.0
    %5203 = vmatprep.subr.mxu0 0.0
    %5204 = vmatpush1.xpose.msra.mxu0 0.0
    %5205 = vmatprep.subr.mxu0 0.0
    %5206 = vmatpush1.xpose.msra.mxu0 0.0
    %5207 = vmatprep.subr.mxu0 0.0
    %5208 = vmatpush1.xpose.msra.mxu0 0.0
    %5209 = vmatprep.subr.mxu0 0.0
    %5210 = vmatpush1.xpose.msra.mxu0 0.0
    %5211 = vmatprep.subr.mxu0 0.0
    %5212 = vmatpush1.xpose.msra.mxu0 0.0
    %5213 = vmatprep.subr.mxu0 0.0
    %5214 = vmatpush1.xpose.msra.mxu0 0.0
    %5215 = vmatprep.subr.mxu0 0.0
    %5216 = vmatpush1.xpose.msra.mxu0 0.0
    %5217 = vmatprep.subr.mxu0 0.0
    %5218 = vmatpush1.xpose.msra.mxu0 0.0
    %5219 = vmatprep.subr.mxu0 0.0
    %5220 = vmatpush1.xpose.msra.mxu0 0.0
    %5221 = vmatprep.subr.mxu0 0.0
    %5222 = vmatpush1.xpose.msra.mxu0 0.0
    %5223 = vmatprep.subr.mxu0 0.0
    %5224 = vmatpush1.xpose.msra.mxu0 0.0
    %5225 = vmatprep.subr.mxu0 0.0
    %5226 = vmatpush1.xpose.msra.mxu0 0.0
    %5227 = vmatprep.mubr.f32.mxu0 0.0
    %5228 = vmatmul.mubr.f32.gmra.mrb[0].mxu0 %v5159
    %v5229 = vpop.f32.mrb[0].mxu0
    %v5230 = vadd.f32 %v3964, %v5229
    %v5231 = vpop.f32.mrb[0].mxu0
    %5232 = vdwg.mxu0
    %v5233 = vsel %vm263, %v5230, -inf
    %5234 = vmax.xlane.f32.xlu0 %v5233
    %v5235 = vpop.xlane.xlu0 %5234
    %v5236 = vsub.f32 %v5230, %v5235
    %v5237 = vmul.f32 %v5236, 1.442695
    %v5238 = vpow.pop %v5237
    %v5239 = vsel %vm263, %v5238, 0.0
    %5240 = vadd.xlane.f32.xlu0 %v5239
    %v5241 = vpop.xlane.xlu0 %5240
    %v5242 = vrcp.pop %v5241
    %v5243 = vmul.f32 %v5238, %v5242
    %5244 = vrot.lane.b32.xlu0 %v4647, 40
    %v5245 = vpop.permute.xlu0 %5244
    %v5247 = vsel %vm277, %v5243, 0
    %v5249 = vsel %vm281, %v5245, 0
    %5251 = vmatprep.subr.mxu0 0.0
    %5252 = vmatpush1.msra.mxu0 %v5249
    %5253 = vmatprep.subr.mxu0 0.0
    %5254 = vmatpush1.msra.mxu0 0.0
    %5255 = vmatprep.subr.mxu0 0.0
    %5256 = vmatpush1.msra.mxu0 0.0
    %5257 = vmatprep.subr.mxu0 0.0
    %5258 = vmatpush1.msra.mxu0 0.0
    %5259 = vmatprep.subr.mxu0 0.0
    %5260 = vmatpush1.msra.mxu0 0.0
    %5261 = vmatprep.subr.mxu0 0.0
    %5262 = vmatpush1.msra.mxu0 0.0
    %5263 = vmatprep.subr.mxu0 0.0
    %5264 = vmatpush1.msra.mxu0 0.0
    %5265 = vmatprep.subr.mxu0 0.0
    %5266 = vmatpush1.msra.mxu0 0.0
    %5267 = vmatprep.subr.mxu0 0.0
    %5268 = vmatpush1.msra.mxu0 0.0
    %5269 = vmatprep.subr.mxu0 0.0
    %5270 = vmatpush1.msra.mxu0 0.0
    %5271 = vmatprep.subr.mxu0 0.0
    %5272 = vmatpush1.msra.mxu0 0.0
    %5273 = vmatprep.subr.mxu0 0.0
    %5274 = vmatpush1.msra.mxu0 0.0
    %5275 = vmatprep.subr.mxu0 0.0
    %5276 = vmatpush1.msra.mxu0 0.0
    %5277 = vmatprep.subr.mxu0 0.0
    %5278 = vmatpush1.msra.mxu0 0.0
    %5279 = vmatprep.subr.mxu0 0.0
    %5280 = vmatpush1.msra.mxu0 0.0
    %5281 = vmatprep.subr.mxu0 0.0
    %5282 = vmatpush1.msra.mxu0 0.0
    %5283 = vmatprep.subr.mxu0 0.0
    %5284 = vmatpush1.msra.mxu0 0.0
    %5285 = vmatprep.subr.mxu0 0.0
    %5286 = vmatpush1.msra.mxu0 0.0
    %5287 = vmatprep.subr.mxu0 0.0
    %5288 = vmatpush1.msra.mxu0 0.0
    %5289 = vmatprep.subr.mxu0 0.0
    %5290 = vmatpush1.msra.mxu0 0.0
    %5291 = vmatprep.subr.mxu0 0.0
    %5292 = vmatpush1.msra.mxu0 0.0
    %5293 = vmatprep.subr.mxu0 0.0
    %5294 = vmatpush1.msra.mxu0 0.0
    %5295 = vmatprep.subr.mxu0 0.0
    %5296 = vmatpush1.msra.mxu0 0.0
    %5297 = vmatprep.subr.mxu0 0.0
    %5298 = vmatpush1.msra.mxu0 0.0
    %5299 = vmatprep.subr.mxu0 0.0
    %5300 = vmatpush1.msra.mxu0 0.0
    %5301 = vmatprep.subr.mxu0 0.0
    %5302 = vmatpush1.msra.mxu0 0.0
    %5303 = vmatprep.subr.mxu0 0.0
    %5304 = vmatpush1.msra.mxu0 0.0
    %5305 = vmatprep.subr.mxu0 0.0
    %5306 = vmatpush1.msra.mxu0 0.0
    %5307 = vmatprep.subr.mxu0 0.0
    %5308 = vmatpush1.msra.mxu0 0.0
    %5309 = vmatprep.subr.mxu0 0.0
    %5310 = vmatpush1.msra.mxu0 0.0
    %5311 = vmatprep.subr.mxu0 0.0
    %5312 = vmatpush1.msra.mxu0 0.0
    %5313 = vmatprep.subr.mxu0 0.0
    %5314 = vmatpush1.msra.mxu0 0.0
    %5315 = vmatprep.mubr.f32.mxu0 0.0
    %5316 = vmatmul.mubr.f32.gmra.mrb[0].mxu0 %v5247
    %v5317 = vpop.f32.mrb[0].mxu0
    %v5318 = vadd.f32 0.0, %v5317
    %v5319 = vpop.f32.mrb[0].mxu0
    %5320 = vdwg.mxu0
    %5322 = vrot.lane.b32.xlu0 %v5318, 24
    %v5323 = vpop.permute.xlu0 %5322
    %5325 = vst.msk [vmem:[#allocation2 + $0x4] sm:$0xf] %vm870, %v5323
    %v5326 = vld [vmem:[#allocation2] sm:$0xff]
    %s5327 = scalar_lea.vmem %s5, 64
    %v5328 = vld [vmem:[%s5327] sm:$0xff]
    %v5329 = vld [vmem:[%s5327 + $0x8] sm:$0xff]
    %v5330 = vld [vmem:[%s5327 + $0x10] sm:$0xff]
    %v5331 = vld [vmem:[%s5327 + $0x18] sm:$0xff]
    %s5332 = scalar_lea.vmem %s6, 2
    %v5333 = vld [vmem:[%s5332] sm:$0x1]
    %v5335 = vlaneseq
    %v5336 = vshrl.u32 %v5335, 7
    %v5337 = vsub.s32 0, %v5336
    %v5338 = vrot.slane %v5333, %v5337
    %v5341 = vsel %vm109, %v5326, 0
    %5343 = vmatprep.subr.mxu0 0.0
    %5344 = vmatpush1.msra.mxu0 %v5328
    %5345 = vmatprep.subr.mxu0 0.0
    %5346 = vmatpush1.msra.mxu0 %v5329
    %5347 = vmatprep.subr.mxu0 0.0
    %5348 = vmatpush1.msra.mxu0 %v5330
    %5349 = vmatprep.subr.mxu0 0.0
    %5350 = vmatpush1.msra.mxu0 %v5331
    %5351 = vmatprep.subr.mxu0 0.0
    %5352 = vmatpush1.msra.mxu0 0.0
    %5353 = vmatprep.subr.mxu0 0.0
    %5354 = vmatpush1.msra.mxu0 0.0
    %5355 = vmatprep.subr.mxu0 0.0
    %5356 = vmatpush1.msra.mxu0 0.0
    %5357 = vmatprep.subr.mxu0 0.0
    %5358 = vmatpush1.msra.mxu0 0.0
    %5359 = vmatprep.subr.mxu0 0.0
    %5360 = vmatpush1.msra.mxu0 0.0
    %5361 = vmatprep.subr.mxu0 0.0
    %5362 = vmatpush1.msra.mxu0 0.0
    %5363 = vmatprep.subr.mxu0 0.0
    %5364 = vmatpush1.msra.mxu0 0.0
    %5365 = vmatprep.subr.mxu0 0.0
    %5366 = vmatpush1.msra.mxu0 0.0
    %5367 = vmatprep.subr.mxu0 0.0
    %5368 = vmatpush1.msra.mxu0 0.0
    %5369 = vmatprep.subr.mxu0 0.0
    %5370 = vmatpush1.msra.mxu0 0.0
    %5371 = vmatprep.subr.mxu0 0.0
    %5372 = vmatpush1.msra.mxu0 0.0
    %5373 = vmatprep.subr.mxu0 0.0
    %5374 = vmatpush1.msra.mxu0 0.0
    %5375 = vmatprep.subr.mxu0 0.0
    %5376 = vmatpush1.msra.mxu0 0.0
    %5377 = vmatprep.subr.mxu0 0.0
    %5378 = vmatpush1.msra.mxu0 0.0
    %5379 = vmatprep.subr.mxu0 0.0
    %5380 = vmatpush1.msra.mxu0 0.0
    %5381 = vmatprep.subr.mxu0 0.0
    %5382 = vmatpush1.msra.mxu0 0.0
    %5383 = vmatprep.subr.mxu0 0.0
    %5384 = vmatpush1.msra.mxu0 0.0
    %5385 = vmatprep.subr.mxu0 0.0
    %5386 = vmatpush1.msra.mxu0 0.0
    %5387 = vmatprep.subr.mxu0 0.0
    %5388 = vmatpush1.msra.mxu0 0.0
    %5389 = vmatprep.subr.mxu0 0.0
    %5390 = vmatpush1.msra.mxu0 0.0
    %5391 = vmatprep.subr.mxu0 0.0
    %5392 = vmatpush1.msra.mxu0 0.0
    %5393 = vmatprep.subr.mxu0 0.0
    %5394 = vmatpush1.msra.mxu0 0.0
    %5395 = vmatprep.subr.mxu0 0.0
    %5396 = vmatpush1.msra.mxu0 0.0
    %5397 = vmatprep.subr.mxu0 0.0
    %5398 = vmatpush1.msra.mxu0 0.0
    %5399 = vmatprep.subr.mxu0 0.0
    %5400 = vmatpush1.msra.mxu0 0.0
    %5401 = vmatprep.subr.mxu0 0.0
    %5402 = vmatpush1.msra.mxu0 0.0
    %5403 = vmatprep.subr.mxu0 0.0
    %5404 = vmatpush1.msra.mxu0 0.0
    %5405 = vmatprep.subr.mxu0 0.0
    %5406 = vmatpush1.msra.mxu0 0.0
    %5407 = vmatprep.mubr.f32.mxu0 0.0
    %5408 = vmatmul.mubr.f32.gmra.mrb[0].mxu0 %v5341
    %v5409 = vpop.f32.mrb[0].mxu0
    %v5410 = vadd.f32 %v5338, %v5409
    %v5411 = vpop.f32.mrb[0].mxu0
    %5412 = vdwg.mxu0
    %v5414 = vcombine.high %v5410, %v5410
    %v5416 = vadd.f32 %v3873, %v5410
    %v5417 = vadd.f32 %v3874, %v5414
    %s5418 = scalar_lea.vmem %s7, 2
    %v5419 = vld [vmem:[%s5418] sm:$0x1]
    %s5420 = scalar_lea.vmem %s8, 2
    %v5421 = vld [vmem:[%s5420] sm:$0x1]
    %v5424 = vcombine.low %v5416, %v5417
    %v5426 = vsel %vm109, %v5424, 0.0
    %5427 = vadd.xlane.f32.xlu0 %v5426
    %v5428 = vpop.xlane.xlu0 %5427
    %v5429 = vmul.f32 %v5428, %v1651
    %v5432 = vunpack.c.l.s4 839922192
    %v5433 = vunpack.c.0.s8 %v5432
    %v5434 = vlaneseq
    %v5435 = vshrl.u32 %v5434, 7
    %v5436 = vsub.s32 %v5433, %v5435
    %v5437 = vrot.slane %v5429, %v5436
    %v5439 = vunpack.c.l.s4 1985246804
    %v5440 = vunpack.c.0.s8 %v5439
    %v5441 = vlaneseq
    %v5442 = vshrl.u32 %v5441, 7
    %v5443 = vsub.s32 %v5440, %v5442
    %v5444 = vrot.slane %v5429, %v5443
    %v5447 = vsub.f32 %v5416, %v5437
    %v5448 = vsub.f32 %v5417, %v5444
    %v5449 = vmul.f32 %v5447, %v5447
    %v5450 = vmul.f32 %v5448, %v5448
    %v5453 = vcombine.low %v5449, %v5450
    %v5455 = vsel %vm109, %v5453, 0.0
    %5456 = vadd.xlane.f32.xlu0 %v5455
    %v5457 = vpop.xlane.xlu0 %5456
    %v5458 = vmul.f32 %v5457, %v1651
    %v5459 = vadd.f32 %v5458, 1e-05
    %v5460 = vrsqrt.pop %v5459
    %v5463 = vunpack.c.l.s4 839922192
    %v5464 = vunpack.c.0.s8 %v5463
    %v5465 = vlaneseq
    %v5466 = vshrl.u32 %v5465, 7
    %v5467 = vsub.s32 %v5464, %v5466
    %v5468 = vrot.slane %v5460, %v5467
    %v5470 = vunpack.c.l.s4 1985246804
    %v5471 = vunpack.c.0.s8 %v5470
    %v5472 = vlaneseq
    %v5473 = vshrl.u32 %v5472, 7
    %v5474 = vsub.s32 %v5471, %v5473
    %v5475 = vrot.slane %v5460, %v5474
    %v5478 = vmul.f32 %v5447, %v5468
    %v5479 = vmul.f32 %v5448, %v5475
    %v5481 = vlaneseq
    %v5482 = vshrl.u32 %v5481, 7
    %v5483 = vsub.s32 0, %v5482
    %v5484 = vrot.slane %v5419, %v5483
    %v5486 = vcombine.high %v5484, %v5484
    %v5488 = vmul.f32 %v5478, %v5484
    %v5489 = vmul.f32 %v5479, %v5486
    %v5491 = vlaneseq
    %v5492 = vshrl.u32 %v5491, 7
    %v5493 = vsub.s32 0, %v5492
    %v5494 = vrot.slane %v5421, %v5493
    %v5496 = vcombine.high %v5494, %v5494
    %v5498 = vadd.f32 %v5488, %v5494
    %v5499 = vadd.f32 %v5489, %v5496
    %s5500 = scalar_lea.vmem %s9, 64
    %v5501 = vld [vmem:[%s5500] sm:$0xff]
    %v5502 = vld [vmem:[%s5500 + $0x8] sm:$0xff]
    %v5503 = vld [vmem:[%s5500 + $0x10] sm:$0xff]
    %v5504 = vld [vmem:[%s5500 + $0x18] sm:$0xff]
    %s5505 = scalar_lea.vmem %s10, 2
    %v5506 = vld [vmem:[%s5505] sm:$0x1]
    %v5508 = vlaneseq
    %v5509 = vshrl.u32 %v5508, 7
    %v5510 = vsub.s32 0, %v5509
    %v5511 = vrot.slane %v5506, %v5510
    %v5515 = vcombine.low %v5498, %v5499
    %v5516 = vsel %vm109, %v5515, 0
    %5518 = vmatprep.subr.mxu0 0.0
    %5519 = vmatpush1.msra.mxu0 %v5501
    %5520 = vmatprep.subr.mxu0 0.0
    %5521 = vmatpush1.msra.mxu0 %v5502
    %5522 = vmatprep.subr.mxu0 0.0
    %5523 = vmatpush1.msra.mxu0 %v5503
    %5524 = vmatprep.subr.mxu0 0.0
    %5525 = vmatpush1.msra.mxu0 %v5504
    %5526 = vmatprep.subr.mxu0 0.0
    %5527 = vmatpush1.msra.mxu0 0.0
    %5528 = vmatprep.subr.mxu0 0.0
    %5529 = vmatpush1.msra.mxu0 0.0
    %5530 = vmatprep.subr.mxu0 0.0
    %5531 = vmatpush1.msra.mxu0 0.0
    %5532 = vmatprep.subr.mxu0 0.0
    %5533 = vmatpush1.msra.mxu0 0.0
    %5534 = vmatprep.subr.mxu0 0.0
    %5535 = vmatpush1.msra.mxu0 0.0
    %5536 = vmatprep.subr.mxu0 0.0
    %5537 = vmatpush1.msra.mxu0 0.0
    %5538 = vmatprep.subr.mxu0 0.0
    %5539 = vmatpush1.msra.mxu0 0.0
    %5540 = vmatprep.subr.mxu0 0.0
    %5541 = vmatpush1.msra.mxu0 0.0
    %5542 = vmatprep.subr.mxu0 0.0
    %5543 = vmatpush1.msra.mxu0 0.0
    %5544 = vmatprep.subr.mxu0 0.0
    %5545 = vmatpush1.msra.mxu0 0.0
    %5546 = vmatprep.subr.mxu0 0.0
    %5547 = vmatpush1.msra.mxu0 0.0
    %5548 = vmatprep.subr.mxu0 0.0
    %5549 = vmatpush1.msra.mxu0 0.0
    %5550 = vmatprep.subr.mxu0 0.0
    %5551 = vmatpush1.msra.mxu0 0.0
    %5552 = vmatprep.subr.mxu0 0.0
    %5553 = vmatpush1.msra.mxu0 0.0
    %5554 = vmatprep.subr.mxu0 0.0
    %5555 = vmatpush1.msra.mxu0 0.0
    %5556 = vmatprep.subr.mxu0 0.0
    %5557 = vmatpush1.msra.mxu0 0.0
    %5558 = vmatprep.subr.mxu0 0.0
    %5559 = vmatpush1.msra.mxu0 0.0
    %5560 = vmatprep.subr.mxu0 0.0
    %5561 = vmatpush1.msra.mxu0 0.0
    %5562 = vmatprep.subr.mxu0 0.0
    %5563 = vmatpush1.msra.mxu0 0.0
    %5564 = vmatprep.subr.mxu0 0.0
    %5565 = vmatpush1.msra.mxu0 0.0
    %5566 = vmatprep.subr.mxu0 0.0
    %5567 = vmatpush1.msra.mxu0 0.0
    %5568 = vmatprep.subr.mxu0 0.0
    %5569 = vmatpush1.msra.mxu0 0.0
    %5570 = vmatprep.subr.mxu0 0.0
    %5571 = vmatpush1.msra.mxu0 0.0
    %5572 = vmatprep.subr.mxu0 0.0
    %5573 = vmatpush1.msra.mxu0 0.0
    %5574 = vmatprep.subr.mxu0 0.0
    %5575 = vmatpush1.msra.mxu0 0.0
    %5576 = vmatprep.subr.mxu0 0.0
    %5577 = vmatpush1.msra.mxu0 0.0
    %5578 = vmatprep.subr.mxu0 0.0
    %5579 = vmatpush1.msra.mxu0 0.0
    %5580 = vmatprep.subr.mxu0 0.0
    %5581 = vmatpush1.msra.mxu0 0.0
    %5582 = vmatprep.mubr.f32.mxu0 0.0
    %5583 = vmatmul.mubr.f32.gmra.mrb[0].mxu0 %v5516
    %v5584 = vpop.f32.mrb[0].mxu0
    %v5585 = vadd.f32 %v5511, %v5584
    %v5586 = vpop.f32.mrb[0].mxu0
    %5587 = vdwg.mxu0
    %v5588 = vmax.f32 %v5585, 0.0
    %s5589 = scalar_lea.vmem %s11, 128
    %v5590 = vld [vmem:[%s5589] sm:$0xff]
    %v5591 = vld [vmem:[%s5589 + $0x8] sm:$0xff]
    %v5592 = vld [vmem:[%s5589 + $0x10] sm:$0xff]
    %v5593 = vld [vmem:[%s5589 + $0x18] sm:$0xff]
    %v5594 = vld [vmem:[%s5589 + $0x20] sm:$0xff]
    %v5595 = vld [vmem:[%s5589 + $0x28] sm:$0xff]
    %v5596 = vld [vmem:[%s5589 + $0x30] sm:$0xff]
    %v5597 = vld [vmem:[%s5589 + $0x38] sm:$0xff]
    %s5598 = scalar_lea.vmem %s12, 2
    %v5599 = vld [vmem:[%s5598] sm:$0x1]
    %v5601 = vlaneseq
    %v5602 = vshrl.u32 %v5601, 7
    %v5603 = vsub.s32 0, %v5602
    %v5604 = vrot.slane %v5599, %v5603
    %v5607 = vsel %vm1825, %v5588, 0
    %5609 = vmatprep.subr.mxu0 0.0
    %5610 = vmatpush1.msra.mxu0 %v5590
    %5611 = vmatprep.subr.mxu0 0.0
    %5612 = vmatpush1.msra.mxu0 %v5591
    %5613 = vmatprep.subr.mxu0 0.0
    %5614 = vmatpush1.msra.mxu0 %v5592
    %5615 = vmatprep.subr.mxu0 0.0
    %5616 = vmatpush1.msra.mxu0 %v5593
    %5617 = vmatprep.subr.mxu0 0.0
    %5618 = vmatpush1.msra.mxu0 %v5594
    %5619 = vmatprep.subr.mxu0 0.0
    %5620 = vmatpush1.msra.mxu0 %v5595
    %5621 = vmatprep.subr.mxu0 0.0
    %5622 = vmatpush1.msra.mxu0 %v5596
    %5623 = vmatprep.subr.mxu0 0.0
    %5624 = vmatpush1.msra.mxu0 %v5597
    %5625 = vmatprep.subr.mxu0 0.0
    %5626 = vmatpush1.msra.mxu0 0.0
    %5627 = vmatprep.subr.mxu0 0.0
    %5628 = vmatpush1.msra.mxu0 0.0
    %5629 = vmatprep.subr.mxu0 0.0
    %5630 = vmatpush1.msra.mxu0 0.0
    %5631 = vmatprep.subr.mxu0 0.0
    %5632 = vmatpush1.msra.mxu0 0.0
    %5633 = vmatprep.subr.mxu0 0.0
    %5634 = vmatpush1.msra.mxu0 0.0
    %5635 = vmatprep.subr.mxu0 0.0
    %5636 = vmatpush1.msra.mxu0 0.0
    %5637 = vmatprep.subr.mxu0 0.0
    %5638 = vmatpush1.msra.mxu0 0.0
    %5639 = vmatprep.subr.mxu0 0.0
    %5640 = vmatpush1.msra.mxu0 0.0
    %5641 = vmatprep.subr.mxu0 0.0
    %5642 = vmatpush1.msra.mxu0 0.0
    %5643 = vmatprep.subr.mxu0 0.0
    %5644 = vmatpush1.msra.mxu0 0.0
    %5645 = vmatprep.subr.mxu0 0.0
    %5646 = vmatpush1.msra.mxu0 0.0
    %5647 = vmatprep.subr.mxu0 0.0
    %5648 = vmatpush1.msra.mxu0 0.0
    %5649 = vmatprep.subr.mxu0 0.0
    %5650 = vmatpush1.msra.mxu0 0.0
    %5651 = vmatprep.subr.mxu0 0.0
    %5652 = vmatpush1.msra.mxu0 0.0
    %5653 = vmatprep.subr.mxu0 0.0
    %5654 = vmatpush1.msra.mxu0 0.0
    %5655 = vmatprep.subr.mxu0 0.0
    %5656 = vmatpush1.msra.mxu0 0.0
    %5657 = vmatprep.subr.mxu0 0.0
    %5658 = vmatpush1.msra.mxu0 0.0
    %5659 = vmatprep.subr.mxu0 0.0
    %5660 = vmatpush1.msra.mxu0 0.0
    %5661 = vmatprep.subr.mxu0 0.0
    %5662 = vmatpush1.msra.mxu0 0.0
    %5663 = vmatprep.subr.mxu0 0.0
    %5664 = vmatpush1.msra.mxu0 0.0
    %5665 = vmatprep.subr.mxu0 0.0
    %5666 = vmatpush1.msra.mxu0 0.0
    %5667 = vmatprep.subr.mxu0 0.0
    %5668 = vmatpush1.msra.mxu0 0.0
    %5669 = vmatprep.subr.mxu0 0.0
    %5670 = vmatpush1.msra.mxu0 0.0
    %5671 = vmatprep.subr.mxu0 0.0
    %5672 = vmatpush1.msra.mxu0 0.0
    %5673 = vmatprep.mubr.f32.mxu0 0.0
    %5674 = vmatmul.mubr.f32.gmra.mrb[0].mxu0 %v5607
    %v5675 = vpop.f32.mrb[0].mxu0
    %v5676 = vadd.f32 %v5604, %v5675
    %v5677 = vpop.f32.mrb[0].mxu0
    %5678 = vdwg.mxu0
    %v5680 = vcombine.high %v5676, %v5676
    %v5682 = vadd.f32 %v5498, %v5676
    %v5683 = vadd.f32 %v5499, %v5680
    %s5684 = scalar_lea.vmem %s13, 2
    %v5685 = vld [vmem:[%s5684] sm:$0x1]
    %s5686 = scalar_lea.vmem %s14, 2
    %v5687 = vld [vmem:[%s5686] sm:$0x1]
    %v5690 = vcombine.low %v5682, %v5683
    %v5692 = vsel %vm109, %v5690, 0.0
    %5693 = vadd.xlane.f32.xlu0 %v5692
    %v5694 = vpop.xlane.xlu0 %5693
    %v5695 = vmul.f32 %v5694, %v1651
    %v5698 = vunpack.c.l.s4 839922192
    %v5699 = vunpack.c.0.s8 %v5698
    %v5700 = vlaneseq
    %v5701 = vshrl.u32 %v5700, 7
    %v5702 = vsub.s32 %v5699, %v5701
    %v5703 = vrot.slane %v5695, %v5702
    %v5705 = vunpack.c.l.s4 1985246804
    %v5706 = vunpack.c.0.s8 %v5705
    %v5707 = vlaneseq
    %v5708 = vshrl.u32 %v5707, 7
    %v5709 = vsub.s32 %v5706, %v5708
    %v5710 = vrot.slane %v5695, %v5709
    %v5713 = vsub.f32 %v5682, %v5703
    %v5714 = vsub.f32 %v5683, %v5710
    %v5715 = vmul.f32 %v5713, %v5713
    %v5716 = vmul.f32 %v5714, %v5714
    %v5719 = vcombine.low %v5715, %v5716
    %v5721 = vsel %vm109, %v5719, 0.0
    %5722 = vadd.xlane.f32.xlu0 %v5721
    %v5723 = vpop.xlane.xlu0 %5722
    %v5724 = vmul.f32 %v5723, %v1651
    %v5725 = vadd.f32 %v5724, 1e-05
    %v5726 = vrsqrt.pop %v5725
    %v5729 = vunpack.c.l.s4 839922192
    %v5730 = vunpack.c.0.s8 %v5729
    %v5731 = vlaneseq
    %v5732 = vshrl.u32 %v5731, 7
    %v5733 = vsub.s32 %v5730, %v5732
    %v5734 = vrot.slane %v5726, %v5733
    %v5736 = vunpack.c.l.s4 1985246804
    %v5737 = vunpack.c.0.s8 %v5736
    %v5738 = vlaneseq
    %v5739 = vshrl.u32 %v5738, 7
    %v5740 = vsub.s32 %v5737, %v5739
    %v5741 = vrot.slane %v5726, %v5740
    %v5744 = vmul.f32 %v5713, %v5734
    %v5745 = vmul.f32 %v5714, %v5741
    %v5747 = vlaneseq
    %v5748 = vshrl.u32 %v5747, 7
    %v5749 = vsub.s32 0, %v5748
    %v5750 = vrot.slane %v5685, %v5749
    %v5752 = vcombine.high %v5750, %v5750
    %v5754 = vmul.f32 %v5744, %v5750
    %v5755 = vmul.f32 %v5745, %v5752
    %v5757 = vlaneseq
    %v5758 = vshrl.u32 %v5757, 7
    %v5759 = vsub.s32 0, %v5758
    %v5760 = vrot.slane %v5687, %v5759
    %v5762 = vcombine.high %v5760, %v5760
    %v5764 = vadd.f32 %v5754, %v5760
    %v5765 = vadd.f32 %v5755, %v5762
    %vm5766 = vcmask 257024
    %5767 = vst.msk [vmem:[#allocation9] sm:$0xf] %vm5766, %v5764
    %5768 = vst.msk [vmem:[#allocation9 + $0x4] sm:$0xf] %vm5766, %v5765
    // Predicated region
    $region74: #{tpu_custom_call.1} parent=1 // pred_check
      _
    $region75: #{tpu_custom_call.1} parent=1 // pred_check_branch
      %5770 = sbr.rel (0) target = $region77
    $region76: #{tpu_custom_call.1} parent=1 // pred_region
      %s5772 = ssub.s32 128, 128
      %5773 = vsyncadd [#allocation5], %s5772
      %s5774 = sshll.u32 [#allocation9], 4
      %s5775 = int_to_ptr.vmem [resolvable:$true] %s5774
      %5780 = dma.vmem_to_hbm [thread:$0]  %s5775, 128, %s15, [#allocation5], 64, 64, 4
    $region77: #{tpu_custom_call.1} parent=1 // pred_fallthru
      _
    // Predicated region
    $region78: #{tpu_custom_call.1} parent=1 // pred_check
      _
    $region79: #{tpu_custom_call.1} parent=1 // pred_check_branch
      %5782 = sbr.rel (0) target = $region81
    $region80: #{tpu_custom_call.1} parent=1 // pred_region
      %5783 = dma.done [#allocation5], 128
    $region81: #{tpu_custom_call.1} parent=1 // pred_fallthru
      _
    %5784 = vsyncpa [#allocation4], 1
    %5785 = vsyncpa [#allocation7], 1
    %5786 = vsyncpa [#allocation5], 1

</llo_original>
